<compile_context>
chip_gen: v7x
topology: tpu7x:2x2x1
jax: 0.10.0
libtpu: 0.0.40
codegen_flags: <defaults>
</compile_context>

<pallas_src>
import numpy as np
import jax
import jax.numpy as jnp
from jax.experimental import pallas as pl
from jax.experimental.pallas import tpu as pltpu  # noqa: F401  (TPU backend)


# ----------------------------- Pallas kernels -----------------------------

def encoder_kernel(feat_ref, wn_ref, bn_ref, ws_ref, bs_ref,
                   node_ref, struct_ref, graph_ref):
    # feat_ref : (B*L, 3E) full slab -- batch folded into the sublane axis.
    feat = feat_ref[...]
    node = jnp.dot(feat, wn_ref[...],
                   preferred_element_type=jnp.float32) + bn_ref[...]
    node = jnp.maximum(node, 0.0)                                  # ReLU
    struct = jnp.tanh(jnp.dot(feat, ws_ref[...],
                              preferred_element_type=jnp.float32) + bs_ref[...])
    node_ref[...] = node
    struct_ref[...] = struct
    # Graph embedding = per-batch max-pool over nodes (segment max, one shot).
    B, H = graph_ref.shape
    L = feat.shape[0] // B
    graph_ref[...] = jnp.max(node.reshape(B, L, H), axis=1)


def fused_decoder_kernel(x_ref, enc_ref, st_ref, g_ref,
                         wix_ref, wiph_ref, wisib_ref, bi_ref,
                         wh_ref, bh_ref,
                         wac1_ref, wac2_ref, wah_ref, batt_ref,
                         wout_ref, bout_ref,
                         pred_ref):
    enc = enc_ref[...]                      # (B, L, H) node embeddings
    st = st_ref[...]                        # (B, L, H) structural info
    g = g_ref[...]                          # (B, H)    graph embedding
    B, H = g.shape
    T = x_ref.shape[0]
    Vp = pred_ref.shape[2]

    # Load loop-invariant weights from VMEM once; hoist bias broadcasts.
    wix, wh = wix_ref[...], wh_ref[...]
    wac1, wac2, wah = wac1_ref[...], wac2_ref[...], wah_ref[...]
    wout = wout_ref[...]
    batt_b = jnp.broadcast_to(batt_ref[...], (B, H))
    bout_b = jnp.broadcast_to(bout_ref[...], (B, Vp))

    # cur_index == 1 path: parent_h = graph hidden state, sibling_state = 0,
    # both constant over the loop -> precompute their i2h gate contribution
    # once (replaces the per-step concat([x, parent_h, sibling]) @ wi).
    parent_h = g
    sibling = jnp.zeros_like(g)
    gate_base = (jnp.dot(parent_h, wiph_ref[...],
                         preferred_element_type=jnp.float32)
                 + jnp.dot(sibling, wisib_ref[...],
                           preferred_element_type=jnp.float32)
                 + bi_ref[...] + bh_ref[...])                  # (B, 4H)

    def step(t, carry):
        prev_c, prev_h = carry
        x = x_ref[t]                                            # (B, E)

        # ---- Dec_LSTM cell: gates on a full 4H=128-lane vreg ----
        gates = (gate_base
                 + jnp.dot(x, wix, preferred_element_type=jnp.float32)
                 + jnp.dot(prev_h, wh, preferred_element_type=jnp.float32))
        ingate = jax.nn.sigmoid(gates[:, 0:H])
        forget = jax.nn.sigmoid(gates[:, H:2 * H])
        cellg = jnp.tanh(gates[:, 2 * H:3 * H])
        outg = jax.nn.sigmoid(gates[:, 3 * H:4 * H])
        cy = forget * prev_c + ingate * cellg
        hy = outg * jnp.tanh(cy)

        # ---- SeparateAttention: lane-major (B,1,L) scores, softmax on lanes
        hq = hy[:, None, :]                                     # (B, 1, H)
        s1 = jnp.einsum('bqd,bld->bql', hq, enc,
                        preferred_element_type=jnp.float32)     # (B, 1, L)
        a1 = jax.nn.softmax(s1, axis=-1)
        ctx1 = jnp.einsum('bql,bld->bqd', a1, enc,
                          preferred_element_type=jnp.float32)[:, 0, :]
        s2 = jnp.einsum('bqd,bld->bql', hq, st,
                        preferred_element_type=jnp.float32)
        a2 = jax.nn.softmax(s2, axis=-1)
        ctx2 = jnp.einsum('bql,bld->bqd', a2, st,
                          preferred_element_type=jnp.float32)[:, 0, :]

        # tanh(linear([ctx1, ctx2, hy])) done as 3 matmuls (no lane concat).
        hid = jnp.tanh(jnp.dot(ctx1, wac1, preferred_element_type=jnp.float32)
                       + jnp.dot(ctx2, wac2, preferred_element_type=jnp.float32)
                       + jnp.dot(hy, wah, preferred_element_type=jnp.float32)
                       + batt_b)
        logits = jnp.dot(hid, wout, preferred_element_type=jnp.float32) + bout_b
        # Padded columns carry a -1e30 bias -> exp underflows to 0, so the
        # log-softmax over the real V columns is exact.  Lane-dense store.
        pred_ref[t] = jax.nn.log_softmax(logits, axis=-1)       # (B, Vp)
        return cy, hy

    jax.lax.fori_loop(0, T, step, (g, g), unroll=True)


# ----------------------------- wrappers -----------------------------------

def run_encoder(feat, wn, bn, ws, bs, batch_size):
    BL, _ = feat.shape
    H = wn.shape[1]
    return pl.pallas_call(
        encoder_kernel,
        out_shape=(jax.ShapeDtypeStruct((BL, H), jnp.float32),
                   jax.ShapeDtypeStruct((BL, H), jnp.float32),
                   jax.ShapeDtypeStruct((batch_size, H), jnp.float32)),
    )(feat, wn, bn, ws, bs)


def run_fused_decoder(x_all, enc, struct, graph,
                      wi_x, wi_ph, wi_sib, bi, wh, bh,
                      watt_c1, watt_c2, watt_h, batt, wout_p, bout_p):
    T, B, _ = x_all.shape
    Vp = wout_p.shape[1]
    return pl.pallas_call(
        fused_decoder_kernel,
        out_shape=jax.ShapeDtypeStruct((T, B, Vp), jnp.float32),
    )(x_all, enc, struct, graph, wi_x, wi_ph, wi_sib, bi, wh, bh,
      watt_c1, watt_c2, watt_h, batt, wout_p, bout_p)


# ----------------------------- model glue ----------------------------------

def build_graph(group_nums, seq_length, max_degree=6):
    """Port of Graph2TreeIBM.build_graph (pure index arithmetic, host-side)."""
    max_length = int(max(seq_length))
    batch_size = len(seq_length)
    fw_list, bw_list = [], []
    slide = 0
    for b in range(batch_size):
        fw = np.zeros((max_length, max_degree), dtype=np.int32)
        bw = np.zeros((max_length, max_degree), dtype=np.int32)
        fw_idx = np.zeros(max_length, dtype=np.int32)
        bw_idx = np.zeros(max_length, dtype=np.int32)
        for (i, j) in group_nums[b]:
            if fw_idx[i] < max_degree:
                fw[i, fw_idx[i]] = j + slide
                fw_idx[i] += 1
            if bw_idx[j] < max_degree:
                bw[j, bw_idx[j]] = i + slide
                bw_idx[j] += 1
        for r in range(max_length):
            fw[r, fw_idx[r]:] = max_length - 1 + slide
            bw[r, bw_idx[r]:] = max_length - 1 + slide
        fw_list.append(fw)
        bw_list.append(bw)
        slide += max_length
    fw_adj = np.concatenate(fw_list, axis=0)
    bw_adj = np.concatenate(bw_list, axis=0)
    nodes = np.arange(fw_adj.shape[0], dtype=np.int32).reshape(batch_size,
                                                               max_length)
    return fw_adj, bw_adj, nodes


@jax.jit
def _forward_core(params, seq, fw_adj, bw_adj, target):
    B, L = seq.shape
    E = params["enc_emb"].shape[1]
    H = params["wn"].shape[1]
    V = params["wout"].shape[1]
    T = target.shape[1] - 1

    # ---- GraphEncoder glue: embedding + mean over sampled neighbours ----
    emb_flat = params["enc_emb"][seq].reshape(B * L, E)
    fw_nei = jnp.take(emb_flat, fw_adj, axis=0).mean(axis=1)
    bw_nei = jnp.take(emb_flat, bw_adj, axis=0).mean(axis=1)
    feat = jnp.concatenate([emb_flat, fw_nei, bw_nei], axis=-1)    # (B*L, 3E)

    node_f, struct_f, graph_emb = run_encoder(
        feat, params["wn"], params["bn"], params["ws"], params["bs"], B)
    node = node_f.reshape(B, L, H)
    struct = struct_f.reshape(B, L, H)

    # ---- prepare fused-decoder operands (weight splits / lane padding) ----
    wi = params["wi"]                              # (E + 2H, 4H)
    wi_x, wi_ph, wi_sib = wi[:E], wi[E:E + H], wi[E + H:]
    watt = params["watt"]                          # (3H, H)
    watt_c1, watt_c2, watt_h = watt[:H], watt[H:2 * H], watt[2 * H:]
    Vp = max(128, ((V + 127) // 128) * 128)        # lane-dense logits
    wout_p = jnp.zeros((H, Vp), jnp.float32).at[:, :V].set(params["wout"])
    bout_p = jnp.full((1, Vp), -1e30, jnp.float32).at[:, :V].set(params["bout"])

    # Teacher-forced decoder inputs, pre-gathered: (T, B, E)
    x_all = jnp.transpose(params["dec_emb"][target[:, :T]], (1, 0, 2))

    pred_all = run_fused_decoder(
        x_all, node, struct, graph_emb,
        wi_x, wi_ph, wi_sib, params["bi"], params["wh"], params["bh"],
        watt_c1, watt_c2, watt_h, params["batt"], wout_p, bout_p)

    predict = jnp.transpose(pred_all[:, :, :V], (1, 0, 2)).reshape(B * T, V)
    # Labels aligned row-for-row with `predict` (torch stacks then flattens).
    label = target[:, 1:T + 1].reshape(-1)
    return predict, label


def graph2tree_forward(params, seq, seq_length, group_nums, target, cfg):
    del cfg  # all sizes are derived from parameter / input array shapes
    fw_adj, bw_adj, _nodes = build_graph(group_nums, seq_length)
    return _forward_core(params, seq, jnp.asarray(fw_adj),
                         jnp.asarray(bw_adj), target)


# ----------------------------- main -----------------------------------------

if __name__ == "__main__":
    cfg = dict(hidden_size=32, embedding_size=32, vocab_size=20,
               symbol_size=16, max_output_len=6, teacher_force_ratio=1.0)
    B, L = 2, 8
    E, H, V = cfg["embedding_size"], cfg["hidden_size"], cfg["symbol_size"]

    key = jax.random.PRNGKey(0)
    keys = jax.random.split(key, 16)

    def init(k, shape, scale=0.05):
        return scale * jax.random.normal(k, shape, dtype=jnp.float32)

    params = {
        "enc_emb": init(keys[0], (cfg["vocab_size"], E)),
        "dec_emb": init(keys[1], (cfg["vocab_size"], E)).at[0].set(0.0),
        "wn": init(keys[2], (3 * E, H)), "bn": init(keys[3], (1, H)),
        "ws": init(keys[4], (3 * E, H)), "bs": init(keys[5], (1, H)),
        "wi": init(keys[6], (E + 2 * H, 4 * H)), "bi": init(keys[7], (1, 4 * H)),
        "wh": init(keys[8], (H, 4 * H)), "bh": init(keys[9], (1, 4 * H)),
        "watt": init(keys[10], (3 * H, H)), "batt": init(keys[11], (1, H)),
        "wout": init(keys[12], (H, V)), "bout": init(keys[13], (1, V)),
    }

    seq = jax.random.randint(keys[14], (B, L), 1, cfg["vocab_size"],
                             dtype=jnp.int32)
    target = jax.random.randint(keys[15], (B, cfg["max_output_len"] + 1),
                                1, V, dtype=jnp.int32)
    seq_length = [L, L]
    group_nums = [[(i, (i + 1) % L) for i in range(L)] + [(0, L - 1)]
                  for _ in range(B)]

    predict, label = graph2tree_forward(params, seq, seq_length, group_nums,
                                        target, cfg)
    jax.block_until_ready(predict)
    jax.block_until_ready(label)

    T = cfg["max_output_len"]
    assert predict.shape == (B * T, V), predict.shape
    assert label.shape == (B * T,), label.shape
    assert bool(jnp.all(jnp.isfinite(predict)))
    # log-softmax rows must (approximately) normalize
    assert bool(jnp.all(jnp.abs(jnp.sum(jnp.exp(predict), axis=-1) - 1.0) < 1e-3))
    print("KERNEL_OK")
</pallas_src>

<mosaic_0001>
module attributes {stable_mosaic.version = 11 : i64} {
  func.func @fused_decoder_kernel(%arg0: memref<6x2x32xf32, #tpu.memory_space<vmem>>, %arg1: memref<2x8x32xf32, #tpu.memory_space<vmem>>, %arg2: memref<2x8x32xf32, #tpu.memory_space<vmem>>, %arg3: memref<2x32xf32, #tpu.memory_space<vmem>>, %arg4: memref<32x128xf32, #tpu.memory_space<vmem>>, %arg5: memref<32x128xf32, #tpu.memory_space<vmem>>, %arg6: memref<32x128xf32, #tpu.memory_space<vmem>>, %arg7: memref<1x128xf32, #tpu.memory_space<vmem>>, %arg8: memref<32x128xf32, #tpu.memory_space<vmem>>, %arg9: memref<1x128xf32, #tpu.memory_space<vmem>>, %arg10: memref<32x32xf32, #tpu.memory_space<vmem>>, %arg11: memref<32x32xf32, #tpu.memory_space<vmem>>, %arg12: memref<32x32xf32, #tpu.memory_space<vmem>>, %arg13: memref<1x32xf32, #tpu.memory_space<vmem>>, %arg14: memref<32x128xf32, #tpu.memory_space<vmem>>, %arg15: memref<1x128xf32, #tpu.memory_space<vmem>>, %arg16: memref<6x2x128xf32, #tpu.memory_space<vmem>>) attributes {dimension_semantics = [], scalar_prefetch = 0 : i64, scratch_operands = 0 : i64, tpu.core_type = #tpu.core_type<tc>} {
    %c0 = arith.constant 0 : index
    %c0_0 = arith.constant 0 : index
    %c0_1 = arith.constant 0 : index
    %0 = vector.load %arg1[%c0, %c0_0, %c0_1] : memref<2x8x32xf32, #tpu.memory_space<vmem>>, vector<2x8x32xf32>
    %c0_2 = arith.constant 0 : index
    %c0_3 = arith.constant 0 : index
    %c0_4 = arith.constant 0 : index
    %1 = vector.load %arg2[%c0_2, %c0_3, %c0_4] : memref<2x8x32xf32, #tpu.memory_space<vmem>>, vector<2x8x32xf32>
    %c0_5 = arith.constant 0 : index
    %c0_6 = arith.constant 0 : index
    %2 = vector.load %arg3[%c0_5, %c0_6] : memref<2x32xf32, #tpu.memory_space<vmem>>, vector<2x32xf32>
    %c0_7 = arith.constant 0 : index
    %c0_8 = arith.constant 0 : index
    %3 = vector.load %arg4[%c0_7, %c0_8] : memref<32x128xf32, #tpu.memory_space<vmem>>, vector<32x128xf32>
    %c0_9 = arith.constant 0 : index
    %c0_10 = arith.constant 0 : index
    %4 = vector.load %arg8[%c0_9, %c0_10] : memref<32x128xf32, #tpu.memory_space<vmem>>, vector<32x128xf32>
    %c0_11 = arith.constant 0 : index
    %c0_12 = arith.constant 0 : index
    %5 = vector.load %arg10[%c0_11, %c0_12] : memref<32x32xf32, #tpu.memory_space<vmem>>, vector<32x32xf32>
    %c0_13 = arith.constant 0 : index
    %c0_14 = arith.constant 0 : index
    %6 = vector.load %arg11[%c0_13, %c0_14] : memref<32x32xf32, #tpu.memory_space<vmem>>, vector<32x32xf32>
    %c0_15 = arith.constant 0 : index
    %c0_16 = arith.constant 0 : index
    %7 = vector.load %arg12[%c0_15, %c0_16] : memref<32x32xf32, #tpu.memory_space<vmem>>, vector<32x32xf32>
    %c0_17 = arith.constant 0 : index
    %c0_18 = arith.constant 0 : index
    %8 = vector.load %arg14[%c0_17, %c0_18] : memref<32x128xf32, #tpu.memory_space<vmem>>, vector<32x128xf32>
    %c0_19 = arith.constant 0 : index
    %c0_20 = arith.constant 0 : index
    %9 = vector.load %arg13[%c0_19, %c0_20] : memref<1x32xf32, #tpu.memory_space<vmem>>, vector<1x32xf32>
    %10 = vector.shape_cast %9 : vector<1x32xf32> to vector<1x32xf32>
    %11 = vector.broadcast %10 : vector<1x32xf32> to vector<2x32xf32>
    %c0_21 = arith.constant 0 : index
    %c0_22 = arith.constant 0 : index
    %12 = vector.load %arg15[%c0_21, %c0_22] : memref<1x128xf32, #tpu.memory_space<vmem>>, vector<1x128xf32>
    %13 = vector.shape_cast %12 : vector<1x128xf32> to vector<1x128xf32>
    %14 = vector.broadcast %13 : vector<1x128xf32> to vector<2x128xf32>
    %cst = arith.constant 0.000000e+00 : f32
    %15 = vector.broadcast %cst : f32 to vector<2x32xf32>
    %c0_23 = arith.constant 0 : index
    %c0_24 = arith.constant 0 : index
    %16 = vector.load %arg5[%c0_23, %c0_24] : memref<32x128xf32, #tpu.memory_space<vmem>>, vector<32x128xf32>
    %cst_25 = arith.constant dense<0.000000e+00> : vector<2x128xf32>
    %17 = tpu.matmul %2, %16, %cst_25 {dimension_numbers = #tpu.dot_dimension_numbers<[1], [0], [0], [1], [0, 0, 1, 1], [], []>} : vector<2x32xf32>, vector<32x128xf32>, vector<2x128xf32> -> vector<2x128xf32>
    %c0_26 = arith.constant 0 : index
    %c0_27 = arith.constant 0 : index
    %18 = vector.load %arg6[%c0_26, %c0_27] : memref<32x128xf32, #tpu.memory_space<vmem>>, vector<32x128xf32>
    %cst_28 = arith.constant dense<0.000000e+00> : vector<2x128xf32>
    %19 = tpu.matmul %15, %18, %cst_28 {dimension_numbers = #tpu.dot_dimension_numbers<[1], [0], [0], [1], [0, 0, 1, 1], [], []>} : vector<2x32xf32>, vector<32x128xf32>, vector<2x128xf32> -> vector<2x128xf32>
    %20 = arith.addf %17, %19 : vector<2x128xf32>
    %c0_29 = arith.constant 0 : index
    %c0_30 = arith.constant 0 : index
    %21 = vector.load %arg7[%c0_29, %c0_30] : memref<1x128xf32, #tpu.memory_space<vmem>>, vector<1x128xf32>
    %22 = vector.broadcast %21 : vector<1x128xf32> to vector<2x128xf32>
    %23 = arith.addf %20, %22 : vector<2x128xf32>
    %c0_31 = arith.constant 0 : index
    %c0_32 = arith.constant 0 : index
    %24 = vector.load %arg9[%c0_31, %c0_32] : memref<1x128xf32, #tpu.memory_space<vmem>>, vector<1x128xf32>
    %25 = vector.broadcast %24 : vector<1x128xf32> to vector<2x128xf32>
    %26 = arith.addf %23, %25 : vector<2x128xf32>
    %c0_i32 = arith.constant 0 : i32
    %27 = arith.index_cast %c0_i32 : i32 to index
    %c0_33 = arith.constant 0 : index
    %c0_34 = arith.constant 0 : index
    %28 = vector.load %arg0[%27, %c0_33, %c0_34] : memref<6x2x32xf32, #tpu.memory_space<vmem>>, vector<1x2x32xf32>
    %29 = vector.shape_cast %28 : vector<1x2x32xf32> to vector<2x32xf32>
    %cst_35 = arith.constant dense<0.000000e+00> : vector<2x128xf32>
    %30 = tpu.matmul %29, %3, %cst_35 {dimension_numbers = #tpu.dot_dimension_numbers<[1], [0], [0], [1], [0, 0, 1, 1], [], []>} : vector<2x32xf32>, vector<32x128xf32>, vector<2x128xf32> -> vector<2x128xf32>
    %31 = arith.addf %26, %30 : vector<2x128xf32>
    %cst_36 = arith.constant dense<0.000000e+00> : vector<2x128xf32>
    %32 = tpu.matmul %2, %4, %cst_36 {dimension_numbers = #tpu.dot_dimension_numbers<[1], [0], [0], [1], [0, 0, 1, 1], [], []>} : vector<2x32xf32>, vector<32x128xf32>, vector<2x128xf32> -> vector<2x128xf32>
    %33 = arith.addf %31, %32 : vector<2x128xf32>
    %34 = vector.extract_strided_slice %33 {offsets = [0, 0], sizes = [2, 32], strides = [1, 1]} : vector<2x128xf32> to vector<2x32xf32>
    %35 = arith.negf %34 : vector<2x32xf32>
    %36 = math.exp %35 : vector<2x32xf32>
    %cst_37 = arith.constant 1.000000e+00 : f32
    %37 = vector.broadcast %cst_37 : f32 to vector<2x32xf32>
    %38 = arith.addf %37, %36 : vector<2x32xf32>
    %39 = arith.divf %37, %38 : vector<2x32xf32>
    %40 = vector.extract_strided_slice %33 {offsets = [0, 32], sizes = [2, 32], strides = [1, 1]} : vector<2x128xf32> to vector<2x32xf32>
    %41 = arith.negf %40 : vector<2x32xf32>
    %42 = math.exp %41 : vector<2x32xf32>
    %cst_38 = arith.constant 1.000000e+00 : f32
    %43 = vector.broadcast %cst_38 : f32 to vector<2x32xf32>
    %44 = arith.addf %43, %42 : vector<2x32xf32>
    %45 = arith.divf %43, %44 : vector<2x32xf32>
    %46 = vector.extract_strided_slice %33 {offsets = [0, 64], sizes = [2, 32], strides = [1, 1]} : vector<2x128xf32> to vector<2x32xf32>
    %47 = math.tanh %46 : vector<2x32xf32>
    %48 = vector.extract_strided_slice %33 {offsets = [0, 96], sizes = [2, 32], strides = [1, 1]} : vector<2x128xf32> to vector<2x32xf32>
    %49 = arith.negf %48 : vector<2x32xf32>
    %50 = math.exp %49 : vector<2x32xf32>
    %cst_39 = arith.constant 1.000000e+00 : f32
    %51 = vector.broadcast %cst_39 : f32 to vector<2x32xf32>
    %52 = arith.addf %51, %50 : vector<2x32xf32>
    %53 = arith.divf %51, %52 : vector<2x32xf32>
    %54 = arith.mulf %45, %2 : vector<2x32xf32>
    %55 = arith.mulf %39, %47 : vector<2x32xf32>
    %56 = arith.addf %54, %55 : vector<2x32xf32>
    %57 = math.tanh %56 : vector<2x32xf32>
    %58 = arith.mulf %53, %57 : vector<2x32xf32>
    %59 = vector.shape_cast %58 : vector<2x32xf32> to vector<2x1x32xf32>
    "tpu.trace_start"() <{level = 10 : i32, message = "bqd,bld->bql"}> : () -> ()
    %cst_40 = arith.constant dense<0.000000e+00> : vector<2x1x8xf32>
    %60 = tpu.matmul %59, %0, %cst_40 {dimension_numbers = #tpu.dot_dimension_numbers<[2], [2], [1], [1], [0, 0, 0, 1, 1, 1], [0], [0]>} : vector<2x1x32xf32>, vector<2x8x32xf32>, vector<2x1x8xf32> -> vector<2x1x8xf32>
    "tpu.trace_stop"() : () -> ()
    %cst_41 = arith.constant dense<0xFF800000> : vector<2x1xf32>
    %61 = vector.multi_reduction <maximumf>, %60, %cst_41 [2] : vector<2x1x8xf32> to vector<2x1xf32>
    %cst_42 = arith.constant 0xFF800000 : f32
    %62 = vector.broadcast %cst_42 : f32 to vector<2x1xf32>
    %63 = arith.maximumf %62, %61 : vector<2x1xf32>
    %64 = vector.shape_cast %63 : vector<2x1xf32> to vector<2x1x1xf32>
    %65 = vector.broadcast %64 : vector<2x1x1xf32> to vector<2x1x8xf32>
    %66 = arith.subf %60, %65 : vector<2x1x8xf32>
    %67 = math.exp %66 : vector<2x1x8xf32>
    %cst_43 = arith.constant dense<0.000000e+00> : vector<2x1xf32>
    %68 = vector.multi_reduction <add>, %67, %cst_43 [2] : vector<2x1x8xf32> to vector<2x1xf32>
    %69 = vector.shape_cast %68 : vector<2x1xf32> to vector<2x1x1xf32>
    %70 = vector.broadcast %69 : vector<2x1x1xf32> to vector<2x1x8xf32>
    %71 = arith.divf %67, %70 : vector<2x1x8xf32>
    "tpu.trace_start"() <{level = 10 : i32, message = "bql,bld->bqd"}> : () -> ()
    %cst_44 = arith.constant dense<0.000000e+00> : vector<2x1x32xf32>
    %72 = tpu.matmul %71, %0, %cst_44 {dimension_numbers = #tpu.dot_dimension_numbers<[2], [1], [1], [2], [0, 0, 0, 1, 1, 2], [0], [0]>} : vector<2x1x8xf32>, vector<2x8x32xf32>, vector<2x1x32xf32> -> vector<2x1x32xf32>
    "tpu.trace_stop"() : () -> ()
    %73 = vector.shape_cast %72 : vector<2x1x32xf32> to vector<2x32xf32>
    "tpu.trace_start"() <{level = 10 : i32, message = "bqd,bld->bql"}> : () -> ()
    %cst_45 = arith.constant dense<0.000000e+00> : vector<2x1x8xf32>
    %74 = tpu.matmul %59, %1, %cst_45 {dimension_numbers = #tpu.dot_dimension_numbers<[2], [2], [1], [1], [0, 0, 0, 1, 1, 1], [0], [0]>} : vector<2x1x32xf32>, vector<2x8x32xf32>, vector<2x1x8xf32> -> vector<2x1x8xf32>
    "tpu.trace_stop"() : () -> ()
    %cst_46 = arith.constant dense<0xFF800000> : vector<2x1xf32>
    %75 = vector.multi_reduction <maximumf>, %74, %cst_46 [2] : vector<2x1x8xf32> to vector<2x1xf32>
    %cst_47 = arith.constant 0xFF800000 : f32
    %76 = vector.broadcast %cst_47 : f32 to vector<2x1xf32>
    %77 = arith.maximumf %76, %75 : vector<2x1xf32>
    %78 = vector.shape_cast %77 : vector<2x1xf32> to vector<2x1x1xf32>
    %79 = vector.broadcast %78 : vector<2x1x1xf32> to vector<2x1x8xf32>
    %80 = arith.subf %74, %79 : vector<2x1x8xf32>
    %81 = math.exp %80 : vector<2x1x8xf32>
    %cst_48 = arith.constant dense<0.000000e+00> : vector<2x1xf32>
    %82 = vector.multi_reduction <add>, %81, %cst_48 [2] : vector<2x1x8xf32> to vector<2x1xf32>
    %83 = vector.shape_cast %82 : vector<2x1xf32> to vector<2x1x1xf32>
    %84 = vector.broadcast %83 : vector<2x1x1xf32> to vector<2x1x8xf32>
    %85 = arith.divf %81, %84 : vector<2x1x8xf32>
    "tpu.trace_start"() <{level = 10 : i32, message = "bql,bld->bqd"}> : () -> ()
    %cst_49 = arith.constant dense<0.000000e+00> : vector<2x1x32xf32>
    %86 = tpu.matmul %85, %1, %cst_49 {dimension_numbers = #tpu.dot_dimension_numbers<[2], [1], [1], [2], [0, 0, 0, 1, 1, 2], [0], [0]>} : vector<2x1x8xf32>, vector<2x8x32xf32>, vector<2x1x32xf32> -> vector<2x1x32xf32>
    "tpu.trace_stop"() : () -> ()
    %87 = vector.shape_cast %86 : vector<2x1x32xf32> to vector<2x32xf32>
    %cst_50 = arith.constant dense<0.000000e+00> : vector<2x32xf32>
    %88 = tpu.matmul %73, %5, %cst_50 {dimension_numbers = #tpu.dot_dimension_numbers<[1], [0], [0], [1], [0, 0, 1, 1], [], []>} : vector<2x32xf32>, vector<32x32xf32>, vector<2x32xf32> -> vector<2x32xf32>
    %cst_51 = arith.constant dense<0.000000e+00> : vector<2x32xf32>
    %89 = tpu.matmul %87, %6, %cst_51 {dimension_numbers = #tpu.dot_dimension_numbers<[1], [0], [0], [1], [0, 0, 1, 1], [], []>} : vector<2x32xf32>, vector<32x32xf32>, vector<2x32xf32> -> vector<2x32xf32>
    %90 = arith.addf %88, %89 : vector<2x32xf32>
    %cst_52 = arith.constant dense<0.000000e+00> : vector<2x32xf32>
    %91 = tpu.matmul %58, %7, %cst_52 {dimension_numbers = #tpu.dot_dimension_numbers<[1], [0], [0], [1], [0, 0, 1, 1], [], []>} : vector<2x32xf32>, vector<32x32xf32>, vector<2x32xf32> -> vector<2x32xf32>
    %92 = arith.addf %90, %91 : vector<2x32xf32>
    %93 = arith.addf %92, %11 : vector<2x32xf32>
    %94 = math.tanh %93 : vector<2x32xf32>
    %cst_53 = arith.constant dense<0.000000e+00> : vector<2x128xf32>
    %95 = tpu.matmul %94, %8, %cst_53 {dimension_numbers = #tpu.dot_dimension_numbers<[1], [0], [0], [1], [0, 0, 1, 1], [], []>} : vector<2x32xf32>, vector<32x128xf32>, vector<2x128xf32> -> vector<2x128xf32>
    %96 = arith.addf %95, %14 : vector<2x128xf32>
    %cst_54 = arith.constant dense<0xFF800000> : vector<2xf32>
    %97 = vector.multi_reduction <maximumf>, %96, %cst_54 [1] : vector<2x128xf32> to vector<2xf32>
    %cst_55 = arith.constant 0xFF800000 : f32
    %98 = vector.broadcast %cst_55 : f32 to vector<2xf32>
    %99 = arith.maximumf %98, %97 : vector<2xf32>
    %100 = vector.shape_cast %99 : vector<2xf32> to vector<2x1xf32>
    %101 = vector.broadcast %100 : vector<2x1xf32> to vector<2x128xf32>
    %102 = arith.subf %96, %101 : vector<2x128xf32>
    %103 = math.exp %102 : vector<2x128xf32>
    %cst_56 = arith.constant dense<0.000000e+00> : vector<2xf32>
    %104 = vector.multi_reduction <add>, %103, %cst_56 [1] : vector<2x128xf32> to vector<2xf32>
    %105 = vector.shape_cast %104 : vector<2xf32> to vector<2x1xf32>
    %106 = math.log %105 : vector<2x1xf32>
    %107 = vector.broadcast %106 : vector<2x1xf32> to vector<2x128xf32>
    %108 = arith.subf %102, %107 : vector<2x128xf32>
    %109 = arith.index_cast %c0_i32 : i32 to index
    %c0_57 = arith.constant 0 : index
    %c0_58 = arith.constant 0 : index
    %110 = vector.load %arg16[%109, %c0_57, %c0_58] : memref<6x2x128xf32, #tpu.memory_space<vmem>>, vector<1x2x128xf32>
    %111 = vector.shape_cast %110 : vector<1x2x128xf32> to vector<2x128xf32>
    %112 = vector.shape_cast %108 : vector<2x128xf32> to vector<1x2x128xf32>
    tpu.vector_store %arg16[%109, %c0_57, %c0_58], %112 {strides = array<i32>} : memref<6x2x128xf32, #tpu.memory_space<vmem>>, vector<1x2x128xf32>,
    %c1_i32 = arith.constant 1 : i32
    %113 = arith.index_cast %c1_i32 : i32 to index
    %c0_59 = arith.constant 0 : index
    %c0_60 = arith.constant 0 : index
    %114 = vector.load %arg0[%113, %c0_59, %c0_60] : memref<6x2x32xf32, #tpu.memory_space<vmem>>, vector<1x2x32xf32>
    %115 = vector.shape_cast %114 : vector<1x2x32xf32> to vector<2x32xf32>
    %cst_61 = arith.constant dense<0.000000e+00> : vector<2x128xf32>
    %116 = tpu.matmul %115, %3, %cst_61 {dimension_numbers = #tpu.dot_dimension_numbers<[1], [0], [0], [1], [0, 0, 1, 1], [], []>} : vector<2x32xf32>, vector<32x128xf32>, vector<2x128xf32> -> vector<2x128xf32>
    %117 = arith.addf %26, %116 : vector<2x128xf32>
    %cst_62 = arith.constant dense<0.000000e+00> : vector<2x128xf32>
    %118 = tpu.matmul %58, %4, %cst_62 {dimension_numbers = #tpu.dot_dimension_numbers<[1], [0], [0], [1], [0, 0, 1, 1], [], []>} : vector<2x32xf32>, vector<32x128xf32>, vector<2x128xf32> -> vector<2x128xf32>
    %119 = arith.addf %117, %118 : vector<2x128xf32>
    %120 = vector.extract_strided_slice %119 {offsets = [0, 0], sizes = [2, 32], strides = [1, 1]} : vector<2x128xf32> to vector<2x32xf32>
    %121 = arith.negf %120 : vector<2x32xf32>
    %122 = math.exp %121 : vector<2x32xf32>
    %cst_63 = arith.constant 1.000000e+00 : f32
    %123 = vector.broadcast %cst_63 : f32 to vector<2x32xf32>
    %124 = arith.addf %123, %122 : vector<2x32xf32>
    %125 = arith.divf %123, %124 : vector<2x32xf32>
    %126 = vector.extract_strided_slice %119 {offsets = [0, 32], sizes = [2, 32], strides = [1, 1]} : vector<2x128xf32> to vector<2x32xf32>
    %127 = arith.negf %126 : vector<2x32xf32>
    %128 = math.exp %127 : vector<2x32xf32>
    %cst_64 = arith.constant 1.000000e+00 : f32
    %129 = vector.broadcast %cst_64 : f32 to vector<2x32xf32>
    %130 = arith.addf %129, %128 : vector<2x32xf32>
    %131 = arith.divf %129, %130 : vector<2x32xf32>
    %132 = vector.extract_strided_slice %119 {offsets = [0, 64], sizes = [2, 32], strides = [1, 1]} : vector<2x128xf32> to vector<2x32xf32>
    %133 = math.tanh %132 : vector<2x32xf32>
    %134 = vector.extract_strided_slice %119 {offsets = [0, 96], sizes = [2, 32], strides = [1, 1]} : vector<2x128xf32> to vector<2x32xf32>
    %135 = arith.negf %134 : vector<2x32xf32>
    %136 = math.exp %135 : vector<2x32xf32>
    %cst_65 = arith.constant 1.000000e+00 : f32
    %137 = vector.broadcast %cst_65 : f32 to vector<2x32xf32>
    %138 = arith.addf %137, %136 : vector<2x32xf32>
    %139 = arith.divf %137, %138 : vector<2x32xf32>
    %140 = arith.mulf %131, %56 : vector<2x32xf32>
    %141 = arith.mulf %125, %133 : vector<2x32xf32>
    %142 = arith.addf %140, %141 : vector<2x32xf32>
    %143 = math.tanh %142 : vector<2x32xf32>
    %144 = arith.mulf %139, %143 : vector<2x32xf32>
    %145 = vector.shape_cast %144 : vector<2x32xf32> to vector<2x1x32xf32>
    "tpu.trace_start"() <{level = 10 : i32, message = "bqd,bld->bql"}> : () -> ()
    %cst_66 = arith.constant dense<0.000000e+00> : vector<2x1x8xf32>
    %146 = tpu.matmul %145, %0, %cst_66 {dimension_numbers = #tpu.dot_dimension_numbers<[2], [2], [1], [1], [0, 0, 0, 1, 1, 1], [0], [0]>} : vector<2x1x32xf32>, vector<2x8x32xf32>, vector<2x1x8xf32> -> vector<2x1x8xf32>
    "tpu.trace_stop"() : () -> ()
    %cst_67 = arith.constant dense<0xFF800000> : vector<2x1xf32>
    %147 = vector.multi_reduction <maximumf>, %146, %cst_67 [2] : vector<2x1x8xf32> to vector<2x1xf32>
    %cst_68 = arith.constant 0xFF800000 : f32
    %148 = vector.broadcast %cst_68 : f32 to vector<2x1xf32>
    %149 = arith.maximumf %148, %147 : vector<2x1xf32>
    %150 = vector.shape_cast %149 : vector<2x1xf32> to vector<2x1x1xf32>
    %151 = vector.broadcast %150 : vector<2x1x1xf32> to vector<2x1x8xf32>
    %152 = arith.subf %146, %151 : vector<2x1x8xf32>
    %153 = math.exp %152 : vector<2x1x8xf32>
    %cst_69 = arith.constant dense<0.000000e+00> : vector<2x1xf32>
    %154 = vector.multi_reduction <add>, %153, %cst_69 [2] : vector<2x1x8xf32> to vector<2x1xf32>
    %155 = vector.shape_cast %154 : vector<2x1xf32> to vector<2x1x1xf32>
    %156 = vector.broadcast %155 : vector<2x1x1xf32> to vector<2x1x8xf32>
    %157 = arith.divf %153, %156 : vector<2x1x8xf32>
    "tpu.trace_start"() <{level = 10 : i32, message = "bql,bld->bqd"}> : () -> ()
    %cst_70 = arith.constant dense<0.000000e+00> : vector<2x1x32xf32>
    %158 = tpu.matmul %157, %0, %cst_70 {dimension_numbers = #tpu.dot_dimension_numbers<[2], [1], [1], [2], [0, 0, 0, 1, 1, 2], [0], [0]>} : vector<2x1x8xf32>, vector<2x8x32xf32>, vector<2x1x32xf32> -> vector<2x1x32xf32>
    "tpu.trace_stop"() : () -> ()
    %159 = vector.shape_cast %158 : vector<2x1x32xf32> to vector<2x32xf32>
    "tpu.trace_start"() <{level = 10 : i32, message = "bqd,bld->bql"}> : () -> ()
    %cst_71 = arith.constant dense<0.000000e+00> : vector<2x1x8xf32>
    %160 = tpu.matmul %145, %1, %cst_71 {dimension_numbers = #tpu.dot_dimension_numbers<[2], [2], [1], [1], [0, 0, 0, 1, 1, 1], [0], [0]>} : vector<2x1x32xf32>, vector<2x8x32xf32>, vector<2x1x8xf32> -> vector<2x1x8xf32>
    "tpu.trace_stop"() : () -> ()
    %cst_72 = arith.constant dense<0xFF800000> : vector<2x1xf32>
    %161 = vector.multi_reduction <maximumf>, %160, %cst_72 [2] : vector<2x1x8xf32> to vector<2x1xf32>
    %cst_73 = arith.constant 0xFF800000 : f32
    %162 = vector.broadcast %cst_73 : f32 to vector<2x1xf32>
    %163 = arith.maximumf %162, %161 : vector<2x1xf32>
    %164 = vector.shape_cast %163 : vector<2x1xf32> to vector<2x1x1xf32>
    %165 = vector.broadcast %164 : vector<2x1x1xf32> to vector<2x1x8xf32>
    %166 = arith.subf %160, %165 : vector<2x1x8xf32>
    %167 = math.exp %166 : vector<2x1x8xf32>
    %cst_74 = arith.constant dense<0.000000e+00> : vector<2x1xf32>
    %168 = vector.multi_reduction <add>, %167, %cst_74 [2] : vector<2x1x8xf32> to vector<2x1xf32>
    %169 = vector.shape_cast %168 : vector<2x1xf32> to vector<2x1x1xf32>
    %170 = vector.broadcast %169 : vector<2x1x1xf32> to vector<2x1x8xf32>
    %171 = arith.divf %167, %170 : vector<2x1x8xf32>
    "tpu.trace_start"() <{level = 10 : i32, message = "bql,bld->bqd"}> : () -> ()
    %cst_75 = arith.constant dense<0.000000e+00> : vector<2x1x32xf32>
    %172 = tpu.matmul %171, %1, %cst_75 {dimension_numbers = #tpu.dot_dimension_numbers<[2], [1], [1], [2], [0, 0, 0, 1, 1, 2], [0], [0]>} : vector<2x1x8xf32>, vector<2x8x32xf32>, vector<2x1x32xf32> -> vector<2x1x32xf32>
    "tpu.trace_stop"() : () -> ()
    %173 = vector.shape_cast %172 : vector<2x1x32xf32> to vector<2x32xf32>
    %cst_76 = arith.constant dense<0.000000e+00> : vector<2x32xf32>
    %174 = tpu.matmul %159, %5, %cst_76 {dimension_numbers = #tpu.dot_dimension_numbers<[1], [0], [0], [1], [0, 0, 1, 1], [], []>} : vector<2x32xf32>, vector<32x32xf32>, vector<2x32xf32> -> vector<2x32xf32>
    %cst_77 = arith.constant dense<0.000000e+00> : vector<2x32xf32>
    %175 = tpu.matmul %173, %6, %cst_77 {dimension_numbers = #tpu.dot_dimension_numbers<[1], [0], [0], [1], [0, 0, 1, 1], [], []>} : vector<2x32xf32>, vector<32x32xf32>, vector<2x32xf32> -> vector<2x32xf32>
    %176 = arith.addf %174, %175 : vector<2x32xf32>
    %cst_78 = arith.constant dense<0.000000e+00> : vector<2x32xf32>
    %177 = tpu.matmul %144, %7, %cst_78 {dimension_numbers = #tpu.dot_dimension_numbers<[1], [0], [0], [1], [0, 0, 1, 1], [], []>} : vector<2x32xf32>, vector<32x32xf32>, vector<2x32xf32> -> vector<2x32xf32>
    %178 = arith.addf %176, %177 : vector<2x32xf32>
    %179 = arith.addf %178, %11 : vector<2x32xf32>
    %180 = math.tanh %179 : vector<2x32xf32>
    %cst_79 = arith.constant dense<0.000000e+00> : vector<2x128xf32>
    %181 = tpu.matmul %180, %8, %cst_79 {dimension_numbers = #tpu.dot_dimension_numbers<[1], [0], [0], [1], [0, 0, 1, 1], [], []>} : vector<2x32xf32>, vector<32x128xf32>, vector<2x128xf32> -> vector<2x128xf32>
    %182 = arith.addf %181, %14 : vector<2x128xf32>
    %cst_80 = arith.constant dense<0xFF800000> : vector<2xf32>
    %183 = vector.multi_reduction <maximumf>, %182, %cst_80 [1] : vector<2x128xf32> to vector<2xf32>
    %cst_81 = arith.constant 0xFF800000 : f32
    %184 = vector.broadcast %cst_81 : f32 to vector<2xf32>
    %185 = arith.maximumf %184, %183 : vector<2xf32>
    %186 = vector.shape_cast %185 : vector<2xf32> to vector<2x1xf32>
    %187 = vector.broadcast %186 : vector<2x1xf32> to vector<2x128xf32>
    %188 = arith.subf %182, %187 : vector<2x128xf32>
    %189 = math.exp %188 : vector<2x128xf32>
    %cst_82 = arith.constant dense<0.000000e+00> : vector<2xf32>
    %190 = vector.multi_reduction <add>, %189, %cst_82 [1] : vector<2x128xf32> to vector<2xf32>
    %191 = vector.shape_cast %190 : vector<2xf32> to vector<2x1xf32>
    %192 = math.log %191 : vector<2x1xf32>
    %193 = vector.broadcast %192 : vector<2x1xf32> to vector<2x128xf32>
    %194 = arith.subf %188, %193 : vector<2x128xf32>
    %195 = arith.index_cast %c1_i32 : i32 to index
    %c0_83 = arith.constant 0 : index
    %c0_84 = arith.constant 0 : index
    %196 = vector.load %arg16[%195, %c0_83, %c0_84] : memref<6x2x128xf32, #tpu.memory_space<vmem>>, vector<1x2x128xf32>
    %197 = vector.shape_cast %196 : vector<1x2x128xf32> to vector<2x128xf32>
    %198 = vector.shape_cast %194 : vector<2x128xf32> to vector<1x2x128xf32>
    tpu.vector_store %arg16[%195, %c0_83, %c0_84], %198 {strides = array<i32>} : memref<6x2x128xf32, #tpu.memory_space<vmem>>, vector<1x2x128xf32>,
    %c2_i32 = arith.constant 2 : i32
    %199 = arith.index_cast %c2_i32 : i32 to index
    %c0_85 = arith.constant 0 : index
    %c0_86 = arith.constant 0 : index
    %200 = vector.load %arg0[%199, %c0_85, %c0_86] : memref<6x2x32xf32, #tpu.memory_space<vmem>>, vector<1x2x32xf32>
    %201 = vector.shape_cast %200 : vector<1x2x32xf32> to vector<2x32xf32>
    %cst_87 = arith.constant dense<0.000000e+00> : vector<2x128xf32>
    %202 = tpu.matmul %201, %3, %cst_87 {dimension_numbers = #tpu.dot_dimension_numbers<[1], [0], [0], [1], [0, 0, 1, 1], [], []>} : vector<2x32xf32>, vector<32x128xf32>, vector<2x128xf32> -> vector<2x128xf32>
    %203 = arith.addf %26, %202 : vector<2x128xf32>
    %cst_88 = arith.constant dense<0.000000e+00> : vector<2x128xf32>
    %204 = tpu.matmul %144, %4, %cst_88 {dimension_numbers = #tpu.dot_dimension_numbers<[1], [0], [0], [1], [0, 0, 1, 1], [], []>} : vector<2x32xf32>, vector<32x128xf32>, vector<2x128xf32> -> vector<2x128xf32>
    %205 = arith.addf %203, %204 : vector<2x128xf32>
    %206 = vector.extract_strided_slice %205 {offsets = [0, 0], sizes = [2, 32], strides = [1, 1]} : vector<2x128xf32> to vector<2x32xf32>
    %207 = arith.negf %206 : vector<2x32xf32>
    %208 = math.exp %207 : vector<2x32xf32>
    %cst_89 = arith.constant 1.000000e+00 : f32
    %209 = vector.broadcast %cst_89 : f32 to vector<2x32xf32>
    %210 = arith.addf %209, %208 : vector<2x32xf32>
    %211 = arith.divf %209, %210 : vector<2x32xf32>
    %212 = vector.extract_strided_slice %205 {offsets = [0, 32], sizes = [2, 32], strides = [1, 1]} : vector<2x128xf32> to vector<2x32xf32>
    %213 = arith.negf %212 : vector<2x32xf32>
    %214 = math.exp %213 : vector<2x32xf32>
    %cst_90 = arith.constant 1.000000e+00 : f32
    %215 = vector.broadcast %cst_90 : f32 to vector<2x32xf32>
    %216 = arith.addf %215, %214 : vector<2x32xf32>
    %217 = arith.divf %215, %216 : vector<2x32xf32>
    %218 = vector.extract_strided_slice %205 {offsets = [0, 64], sizes = [2, 32], strides = [1, 1]} : vector<2x128xf32> to vector<2x32xf32>
    %219 = math.tanh %218 : vector<2x32xf32>
    %220 = vector.extract_strided_slice %205 {offsets = [0, 96], sizes = [2, 32], strides = [1, 1]} : vector<2x128xf32> to vector<2x32xf32>
    %221 = arith.negf %220 : vector<2x32xf32>
    %222 = math.exp %221 : vector<2x32xf32>
    %cst_91 = arith.constant 1.000000e+00 : f32
    %223 = vector.broadcast %cst_91 : f32 to vector<2x32xf32>
    %224 = arith.addf %223, %222 : vector<2x32xf32>
    %225 = arith.divf %223, %224 : vector<2x32xf32>
    %226 = arith.mulf %217, %142 : vector<2x32xf32>
    %227 = arith.mulf %211, %219 : vector<2x32xf32>
    %228 = arith.addf %226, %227 : vector<2x32xf32>
    %229 = math.tanh %228 : vector<2x32xf32>
    %230 = arith.mulf %225, %229 : vector<2x32xf32>
    %231 = vector.shape_cast %230 : vector<2x32xf32> to vector<2x1x32xf32>
    "tpu.trace_start"() <{level = 10 : i32, message = "bqd,bld->bql"}> : () -> ()
    %cst_92 = arith.constant dense<0.000000e+00> : vector<2x1x8xf32>
    %232 = tpu.matmul %231, %0, %cst_92 {dimension_numbers = #tpu.dot_dimension_numbers<[2], [2], [1], [1], [0, 0, 0, 1, 1, 1], [0], [0]>} : vector<2x1x32xf32>, vector<2x8x32xf32>, vector<2x1x8xf32> -> vector<2x1x8xf32>
    "tpu.trace_stop"() : () -> ()
    %cst_93 = arith.constant dense<0xFF800000> : vector<2x1xf32>
    %233 = vector.multi_reduction <maximumf>, %232, %cst_93 [2] : vector<2x1x8xf32> to vector<2x1xf32>
    %cst_94 = arith.constant 0xFF800000 : f32
    %234 = vector.broadcast %cst_94 : f32 to vector<2x1xf32>
    %235 = arith.maximumf %234, %233 : vector<2x1xf32>
    %236 = vector.shape_cast %235 : vector<2x1xf32> to vector<2x1x1xf32>
    %237 = vector.broadcast %236 : vector<2x1x1xf32> to vector<2x1x8xf32>
    %238 = arith.subf %232, %237 : vector<2x1x8xf32>
    %239 = math.exp %238 : vector<2x1x8xf32>
    %cst_95 = arith.constant dense<0.000000e+00> : vector<2x1xf32>
    %240 = vector.multi_reduction <add>, %239, %cst_95 [2] : vector<2x1x8xf32> to vector<2x1xf32>
    %241 = vector.shape_cast %240 : vector<2x1xf32> to vector<2x1x1xf32>
    %242 = vector.broadcast %241 : vector<2x1x1xf32> to vector<2x1x8xf32>
    %243 = arith.divf %239, %242 : vector<2x1x8xf32>
    "tpu.trace_start"() <{level = 10 : i32, message = "bql,bld->bqd"}> : () -> ()
    %cst_96 = arith.constant dense<0.000000e+00> : vector<2x1x32xf32>
    %244 = tpu.matmul %243, %0, %cst_96 {dimension_numbers = #tpu.dot_dimension_numbers<[2], [1], [1], [2], [0, 0, 0, 1, 1, 2], [0], [0]>} : vector<2x1x8xf32>, vector<2x8x32xf32>, vector<2x1x32xf32> -> vector<2x1x32xf32>
    "tpu.trace_stop"() : () -> ()
    %245 = vector.shape_cast %244 : vector<2x1x32xf32> to vector<2x32xf32>
    "tpu.trace_start"() <{level = 10 : i32, message = "bqd,bld->bql"}> : () -> ()
    %cst_97 = arith.constant dense<0.000000e+00> : vector<2x1x8xf32>
    %246 = tpu.matmul %231, %1, %cst_97 {dimension_numbers = #tpu.dot_dimension_numbers<[2], [2], [1], [1], [0, 0, 0, 1, 1, 1], [0], [0]>} : vector<2x1x32xf32>, vector<2x8x32xf32>, vector<2x1x8xf32> -> vector<2x1x8xf32>
    "tpu.trace_stop"() : () -> ()
    %cst_98 = arith.constant dense<0xFF800000> : vector<2x1xf32>
    %247 = vector.multi_reduction <maximumf>, %246, %cst_98 [2] : vector<2x1x8xf32> to vector<2x1xf32>
    %cst_99 = arith.constant 0xFF800000 : f32
    %248 = vector.broadcast %cst_99 : f32 to vector<2x1xf32>
    %249 = arith.maximumf %248, %247 : vector<2x1xf32>
    %250 = vector.shape_cast %249 : vector<2x1xf32> to vector<2x1x1xf32>
    %251 = vector.broadcast %250 : vector<2x1x1xf32> to vector<2x1x8xf32>
    %252 = arith.subf %246, %251 : vector<2x1x8xf32>
    %253 = math.exp %252 : vector<2x1x8xf32>
    %cst_100 = arith.constant dense<0.000000e+00> : vector<2x1xf32>
    %254 = vector.multi_reduction <add>, %253, %cst_100 [2] : vector<2x1x8xf32> to vector<2x1xf32>
    %255 = vector.shape_cast %254 : vector<2x1xf32> to vector<2x1x1xf32>
    %256 = vector.broadcast %255 : vector<2x1x1xf32> to vector<2x1x8xf32>
    %257 = arith.divf %253, %256 : vector<2x1x8xf32>
    "tpu.trace_start"() <{level = 10 : i32, message = "bql,bld->bqd"}> : () -> ()
    %cst_101 = arith.constant dense<0.000000e+00> : vector<2x1x32xf32>
    %258 = tpu.matmul %257, %1, %cst_101 {dimension_numbers = #tpu.dot_dimension_numbers<[2], [1], [1], [2], [0, 0, 0, 1, 1, 2], [0], [0]>} : vector<2x1x8xf32>, vector<2x8x32xf32>, vector<2x1x32xf32> -> vector<2x1x32xf32>
    "tpu.trace_stop"() : () -> ()
    %259 = vector.shape_cast %258 : vector<2x1x32xf32> to vector<2x32xf32>
    %cst_102 = arith.constant dense<0.000000e+00> : vector<2x32xf32>
    %260 = tpu.matmul %245, %5, %cst_102 {dimension_numbers = #tpu.dot_dimension_numbers<[1], [0], [0], [1], [0, 0, 1, 1], [], []>} : vector<2x32xf32>, vector<32x32xf32>, vector<2x32xf32> -> vector<2x32xf32>
    %cst_103 = arith.constant dense<0.000000e+00> : vector<2x32xf32>
    %261 = tpu.matmul %259, %6, %cst_103 {dimension_numbers = #tpu.dot_dimension_numbers<[1], [0], [0], [1], [0, 0, 1, 1], [], []>} : vector<2x32xf32>, vector<32x32xf32>, vector<2x32xf32> -> vector<2x32xf32>
    %262 = arith.addf %260, %261 : vector<2x32xf32>
    %cst_104 = arith.constant dense<0.000000e+00> : vector<2x32xf32>
    %263 = tpu.matmul %230, %7, %cst_104 {dimension_numbers = #tpu.dot_dimension_numbers<[1], [0], [0], [1], [0, 0, 1, 1], [], []>} : vector<2x32xf32>, vector<32x32xf32>, vector<2x32xf32> -> vector<2x32xf32>
    %264 = arith.addf %262, %263 : vector<2x32xf32>
    %265 = arith.addf %264, %11 : vector<2x32xf32>
    %266 = math.tanh %265 : vector<2x32xf32>
    %cst_105 = arith.constant dense<0.000000e+00> : vector<2x128xf32>
    %267 = tpu.matmul %266, %8, %cst_105 {dimension_numbers = #tpu.dot_dimension_numbers<[1], [0], [0], [1], [0, 0, 1, 1], [], []>} : vector<2x32xf32>, vector<32x128xf32>, vector<2x128xf32> -> vector<2x128xf32>
    %268 = arith.addf %267, %14 : vector<2x128xf32>
    %cst_106 = arith.constant dense<0xFF800000> : vector<2xf32>
    %269 = vector.multi_reduction <maximumf>, %268, %cst_106 [1] : vector<2x128xf32> to vector<2xf32>
    %cst_107 = arith.constant 0xFF800000 : f32
    %270 = vector.broadcast %cst_107 : f32 to vector<2xf32>
    %271 = arith.maximumf %270, %269 : vector<2xf32>
    %272 = vector.shape_cast %271 : vector<2xf32> to vector<2x1xf32>
    %273 = vector.broadcast %272 : vector<2x1xf32> to vector<2x128xf32>
    %274 = arith.subf %268, %273 : vector<2x128xf32>
    %275 = math.exp %274 : vector<2x128xf32>
    %cst_108 = arith.constant dense<0.000000e+00> : vector<2xf32>
    %276 = vector.multi_reduction <add>, %275, %cst_108 [1] : vector<2x128xf32> to vector<2xf32>
    %277 = vector.shape_cast %276 : vector<2xf32> to vector<2x1xf32>
    %278 = math.log %277 : vector<2x1xf32>
    %279 = vector.broadcast %278 : vector<2x1xf32> to vector<2x128xf32>
    %280 = arith.subf %274, %279 : vector<2x128xf32>
    %281 = arith.index_cast %c2_i32 : i32 to index
    %c0_109 = arith.constant 0 : index
    %c0_110 = arith.constant 0 : index
    %282 = vector.load %arg16[%281, %c0_109, %c0_110] : memref<6x2x128xf32, #tpu.memory_space<vmem>>, vector<1x2x128xf32>
    %283 = vector.shape_cast %282 : vector<1x2x128xf32> to vector<2x128xf32>
    %284 = vector.shape_cast %280 : vector<2x128xf32> to vector<1x2x128xf32>
    tpu.vector_store %arg16[%281, %c0_109, %c0_110], %284 {strides = array<i32>} : memref<6x2x128xf32, #tpu.memory_space<vmem>>, vector<1x2x128xf32>,
    %c3_i32 = arith.constant 3 : i32
    %285 = arith.index_cast %c3_i32 : i32 to index
    %c0_111 = arith.constant 0 : index
    %c0_112 = arith.constant 0 : index
    %286 = vector.load %arg0[%285, %c0_111, %c0_112] : memref<6x2x32xf32, #tpu.memory_space<vmem>>, vector<1x2x32xf32>
    %287 = vector.shape_cast %286 : vector<1x2x32xf32> to vector<2x32xf32>
    %cst_113 = arith.constant dense<0.000000e+00> : vector<2x128xf32>
    %288 = tpu.matmul %287, %3, %cst_113 {dimension_numbers = #tpu.dot_dimension_numbers<[1], [0], [0], [1], [0, 0, 1, 1], [], []>} : vector<2x32xf32>, vector<32x128xf32>, vector<2x128xf32> -> vector<2x128xf32>
    %289 = arith.addf %26, %288 : vector<2x128xf32>
    %cst_114 = arith.constant dense<0.000000e+00> : vector<2x128xf32>
    %290 = tpu.matmul %230, %4, %cst_114 {dimension_numbers = #tpu.dot_dimension_numbers<[1], [0], [0], [1], [0, 0, 1, 1], [], []>} : vector<2x32xf32>, vector<32x128xf32>, vector<2x128xf32> -> vector<2x128xf32>
    %291 = arith.addf %289, %290 : vector<2x128xf32>
    %292 = vector.extract_strided_slice %291 {offsets = [0, 0], sizes = [2, 32], strides = [1, 1]} : vector<2x128xf32> to vector<2x32xf32>
    %293 = arith.negf %292 : vector<2x32xf32>
    %294 = math.exp %293 : vector<2x32xf32>
    %cst_115 = arith.constant 1.000000e+00 : f32
    %295 = vector.broadcast %cst_115 : f32 to vector<2x32xf32>
    %296 = arith.addf %295, %294 : vector<2x32xf32>
    %297 = arith.divf %295, %296 : vector<2x32xf32>
    %298 = vector.extract_strided_slice %291 {offsets = [0, 32], sizes = [2, 32], strides = [1, 1]} : vector<2x128xf32> to vector<2x32xf32>
    %299 = arith.negf %298 : vector<2x32xf32>
    %300 = math.exp %299 : vector<2x32xf32>
    %cst_116 = arith.constant 1.000000e+00 : f32
    %301 = vector.broadcast %cst_116 : f32 to vector<2x32xf32>
    %302 = arith.addf %301, %300 : vector<2x32xf32>
    %303 = arith.divf %301, %302 : vector<2x32xf32>
    %304 = vector.extract_strided_slice %291 {offsets = [0, 64], sizes = [2, 32], strides = [1, 1]} : vector<2x128xf32> to vector<2x32xf32>
    %305 = math.tanh %304 : vector<2x32xf32>
    %306 = vector.extract_strided_slice %291 {offsets = [0, 96], sizes = [2, 32], strides = [1, 1]} : vector<2x128xf32> to vector<2x32xf32>
    %307 = arith.negf %306 : vector<2x32xf32>
    %308 = math.exp %307 : vector<2x32xf32>
    %cst_117 = arith.constant 1.000000e+00 : f32
    %309 = vector.broadcast %cst_117 : f32 to vector<2x32xf32>
    %310 = arith.addf %309, %308 : vector<2x32xf32>
    %311 = arith.divf %309, %310 : vector<2x32xf32>
    %312 = arith.mulf %303, %228 : vector<2x32xf32>
    %313 = arith.mulf %297, %305 : vector<2x32xf32>
    %314 = arith.addf %312, %313 : vector<2x32xf32>
    %315 = math.tanh %314 : vector<2x32xf32>
    %316 = arith.mulf %311, %315 : vector<2x32xf32>
    %317 = vector.shape_cast %316 : vector<2x32xf32> to vector<2x1x32xf32>
    "tpu.trace_start"() <{level = 10 : i32, message = "bqd,bld->bql"}> : () -> ()
    %cst_118 = arith.constant dense<0.000000e+00> : vector<2x1x8xf32>
    %318 = tpu.matmul %317, %0, %cst_118 {dimension_numbers = #tpu.dot_dimension_numbers<[2], [2], [1], [1], [0, 0, 0, 1, 1, 1], [0], [0]>} : vector<2x1x32xf32>, vector<2x8x32xf32>, vector<2x1x8xf32> -> vector<2x1x8xf32>
    "tpu.trace_stop"() : () -> ()
    %cst_119 = arith.constant dense<0xFF800000> : vector<2x1xf32>
    %319 = vector.multi_reduction <maximumf>, %318, %cst_119 [2] : vector<2x1x8xf32> to vector<2x1xf32>
    %cst_120 = arith.constant 0xFF800000 : f32
    %320 = vector.broadcast %cst_120 : f32 to vector<2x1xf32>
    %321 = arith.maximumf %320, %319 : vector<2x1xf32>
    %322 = vector.shape_cast %321 : vector<2x1xf32> to vector<2x1x1xf32>
    %323 = vector.broadcast %322 : vector<2x1x1xf32> to vector<2x1x8xf32>
    %324 = arith.subf %318, %323 : vector<2x1x8xf32>
    %325 = math.exp %324 : vector<2x1x8xf32>
    %cst_121 = arith.constant dense<0.000000e+00> : vector<2x1xf32>
    %326 = vector.multi_reduction <add>, %325, %cst_121 [2] : vector<2x1x8xf32> to vector<2x1xf32>
    %327 = vector.shape_cast %326 : vector<2x1xf32> to vector<2x1x1xf32>
    %328 = vector.broadcast %327 : vector<2x1x1xf32> to vector<2x1x8xf32>
    %329 = arith.divf %325, %328 : vector<2x1x8xf32>
    "tpu.trace_start"() <{level = 10 : i32, message = "bql,bld->bqd"}> : () -> ()
    %cst_122 = arith.constant dense<0.000000e+00> : vector<2x1x32xf32>
    %330 = tpu.matmul %329, %0, %cst_122 {dimension_numbers = #tpu.dot_dimension_numbers<[2], [1], [1], [2], [0, 0, 0, 1, 1, 2], [0], [0]>} : vector<2x1x8xf32>, vector<2x8x32xf32>, vector<2x1x32xf32> -> vector<2x1x32xf32>
    "tpu.trace_stop"() : () -> ()
    %331 = vector.shape_cast %330 : vector<2x1x32xf32> to vector<2x32xf32>
    "tpu.trace_start"() <{level = 10 : i32, message = "bqd,bld->bql"}> : () -> ()
    %cst_123 = arith.constant dense<0.000000e+00> : vector<2x1x8xf32>
    %332 = tpu.matmul %317, %1, %cst_123 {dimension_numbers = #tpu.dot_dimension_numbers<[2], [2], [1], [1], [0, 0, 0, 1, 1, 1], [0], [0]>} : vector<2x1x32xf32>, vector<2x8x32xf32>, vector<2x1x8xf32> -> vector<2x1x8xf32>
    "tpu.trace_stop"() : () -> ()
    %cst_124 = arith.constant dense<0xFF800000> : vector<2x1xf32>
    %333 = vector.multi_reduction <maximumf>, %332, %cst_124 [2] : vector<2x1x8xf32> to vector<2x1xf32>
    %cst_125 = arith.constant 0xFF800000 : f32
    %334 = vector.broadcast %cst_125 : f32 to vector<2x1xf32>
    %335 = arith.maximumf %334, %333 : vector<2x1xf32>
    %336 = vector.shape_cast %335 : vector<2x1xf32> to vector<2x1x1xf32>
    %337 = vector.broadcast %336 : vector<2x1x1xf32> to vector<2x1x8xf32>
    %338 = arith.subf %332, %337 : vector<2x1x8xf32>
    %339 = math.exp %338 : vector<2x1x8xf32>
    %cst_126 = arith.constant dense<0.000000e+00> : vector<2x1xf32>
    %340 = vector.multi_reduction <add>, %339, %cst_126 [2] : vector<2x1x8xf32> to vector<2x1xf32>
    %341 = vector.shape_cast %340 : vector<2x1xf32> to vector<2x1x1xf32>
    %342 = vector.broadcast %341 : vector<2x1x1xf32> to vector<2x1x8xf32>
    %343 = arith.divf %339, %342 : vector<2x1x8xf32>
    "tpu.trace_start"() <{level = 10 : i32, message = "bql,bld->bqd"}> : () -> ()
    %cst_127 = arith.constant dense<0.000000e+00> : vector<2x1x32xf32>
    %344 = tpu.matmul %343, %1, %cst_127 {dimension_numbers = #tpu.dot_dimension_numbers<[2], [1], [1], [2], [0, 0, 0, 1, 1, 2], [0], [0]>} : vector<2x1x8xf32>, vector<2x8x32xf32>, vector<2x1x32xf32> -> vector<2x1x32xf32>
    "tpu.trace_stop"() : () -> ()
    %345 = vector.shape_cast %344 : vector<2x1x32xf32> to vector<2x32xf32>
    %cst_128 = arith.constant dense<0.000000e+00> : vector<2x32xf32>
    %346 = tpu.matmul %331, %5, %cst_128 {dimension_numbers = #tpu.dot_dimension_numbers<[1], [0], [0], [1], [0, 0, 1, 1], [], []>} : vector<2x32xf32>, vector<32x32xf32>, vector<2x32xf32> -> vector<2x32xf32>
    %cst_129 = arith.constant dense<0.000000e+00> : vector<2x32xf32>
    %347 = tpu.matmul %345, %6, %cst_129 {dimension_numbers = #tpu.dot_dimension_numbers<[1], [0], [0], [1], [0, 0, 1, 1], [], []>} : vector<2x32xf32>, vector<32x32xf32>, vector<2x32xf32> -> vector<2x32xf32>
    %348 = arith.addf %346, %347 : vector<2x32xf32>
    %cst_130 = arith.constant dense<0.000000e+00> : vector<2x32xf32>
    %349 = tpu.matmul %316, %7, %cst_130 {dimension_numbers = #tpu.dot_dimension_numbers<[1], [0], [0], [1], [0, 0, 1, 1], [], []>} : vector<2x32xf32>, vector<32x32xf32>, vector<2x32xf32> -> vector<2x32xf32>
    %350 = arith.addf %348, %349 : vector<2x32xf32>
    %351 = arith.addf %350, %11 : vector<2x32xf32>
    %352 = math.tanh %351 : vector<2x32xf32>
    %cst_131 = arith.constant dense<0.000000e+00> : vector<2x128xf32>
    %353 = tpu.matmul %352, %8, %cst_131 {dimension_numbers = #tpu.dot_dimension_numbers<[1], [0], [0], [1], [0, 0, 1, 1], [], []>} : vector<2x32xf32>, vector<32x128xf32>, vector<2x128xf32> -> vector<2x128xf32>
    %354 = arith.addf %353, %14 : vector<2x128xf32>
    %cst_132 = arith.constant dense<0xFF800000> : vector<2xf32>
    %355 = vector.multi_reduction <maximumf>, %354, %cst_132 [1] : vector<2x128xf32> to vector<2xf32>
    %cst_133 = arith.constant 0xFF800000 : f32
    %356 = vector.broadcast %cst_133 : f32 to vector<2xf32>
    %357 = arith.maximumf %356, %355 : vector<2xf32>
    %358 = vector.shape_cast %357 : vector<2xf32> to vector<2x1xf32>
    %359 = vector.broadcast %358 : vector<2x1xf32> to vector<2x128xf32>
    %360 = arith.subf %354, %359 : vector<2x128xf32>
    %361 = math.exp %360 : vector<2x128xf32>
    %cst_134 = arith.constant dense<0.000000e+00> : vector<2xf32>
    %362 = vector.multi_reduction <add>, %361, %cst_134 [1] : vector<2x128xf32> to vector<2xf32>
    %363 = vector.shape_cast %362 : vector<2xf32> to vector<2x1xf32>
    %364 = math.log %363 : vector<2x1xf32>
    %365 = vector.broadcast %364 : vector<2x1xf32> to vector<2x128xf32>
    %366 = arith.subf %360, %365 : vector<2x128xf32>
    %367 = arith.index_cast %c3_i32 : i32 to index
    %c0_135 = arith.constant 0 : index
    %c0_136 = arith.constant 0 : index
    %368 = vector.load %arg16[%367, %c0_135, %c0_136] : memref<6x2x128xf32, #tpu.memory_space<vmem>>, vector<1x2x128xf32>
    %369 = vector.shape_cast %368 : vector<1x2x128xf32> to vector<2x128xf32>
    %370 = vector.shape_cast %366 : vector<2x128xf32> to vector<1x2x128xf32>
    tpu.vector_store %arg16[%367, %c0_135, %c0_136], %370 {strides = array<i32>} : memref<6x2x128xf32, #tpu.memory_space<vmem>>, vector<1x2x128xf32>,
    %c4_i32 = arith.constant 4 : i32
    %371 = arith.index_cast %c4_i32 : i32 to index
    %c0_137 = arith.constant 0 : index
    %c0_138 = arith.constant 0 : index
    %372 = vector.load %arg0[%371, %c0_137, %c0_138] : memref<6x2x32xf32, #tpu.memory_space<vmem>>, vector<1x2x32xf32>
    %373 = vector.shape_cast %372 : vector<1x2x32xf32> to vector<2x32xf32>
    %cst_139 = arith.constant dense<0.000000e+00> : vector<2x128xf32>
    %374 = tpu.matmul %373, %3, %cst_139 {dimension_numbers = #tpu.dot_dimension_numbers<[1], [0], [0], [1], [0, 0, 1, 1], [], []>} : vector<2x32xf32>, vector<32x128xf32>, vector<2x128xf32> -> vector<2x128xf32>
    %375 = arith.addf %26, %374 : vector<2x128xf32>
    %cst_140 = arith.constant dense<0.000000e+00> : vector<2x128xf32>
    %376 = tpu.matmul %316, %4, %cst_140 {dimension_numbers = #tpu.dot_dimension_numbers<[1], [0], [0], [1], [0, 0, 1, 1], [], []>} : vector<2x32xf32>, vector<32x128xf32>, vector<2x128xf32> -> vector<2x128xf32>
    %377 = arith.addf %375, %376 : vector<2x128xf32>
    %378 = vector.extract_strided_slice %377 {offsets = [0, 0], sizes = [2, 32], strides = [1, 1]} : vector<2x128xf32> to vector<2x32xf32>
    %379 = arith.negf %378 : vector<2x32xf32>
    %380 = math.exp %379 : vector<2x32xf32>
    %cst_141 = arith.constant 1.000000e+00 : f32
    %381 = vector.broadcast %cst_141 : f32 to vector<2x32xf32>
    %382 = arith.addf %381, %380 : vector<2x32xf32>
    %383 = arith.divf %381, %382 : vector<2x32xf32>
    %384 = vector.extract_strided_slice %377 {offsets = [0, 32], sizes = [2, 32], strides = [1, 1]} : vector<2x128xf32> to vector<2x32xf32>
    %385 = arith.negf %384 : vector<2x32xf32>
    %386 = math.exp %385 : vector<2x32xf32>
    %cst_142 = arith.constant 1.000000e+00 : f32
    %387 = vector.broadcast %cst_142 : f32 to vector<2x32xf32>
    %388 = arith.addf %387, %386 : vector<2x32xf32>
    %389 = arith.divf %387, %388 : vector<2x32xf32>
    %390 = vector.extract_strided_slice %377 {offsets = [0, 64], sizes = [2, 32], strides = [1, 1]} : vector<2x128xf32> to vector<2x32xf32>
    %391 = math.tanh %390 : vector<2x32xf32>
    %392 = vector.extract_strided_slice %377 {offsets = [0, 96], sizes = [2, 32], strides = [1, 1]} : vector<2x128xf32> to vector<2x32xf32>
    %393 = arith.negf %392 : vector<2x32xf32>
    %394 = math.exp %393 : vector<2x32xf32>
    %cst_143 = arith.constant 1.000000e+00 : f32
    %395 = vector.broadcast %cst_143 : f32 to vector<2x32xf32>
    %396 = arith.addf %395, %394 : vector<2x32xf32>
    %397 = arith.divf %395, %396 : vector<2x32xf32>
    %398 = arith.mulf %389, %314 : vector<2x32xf32>
    %399 = arith.mulf %383, %391 : vector<2x32xf32>
    %400 = arith.addf %398, %399 : vector<2x32xf32>
    %401 = math.tanh %400 : vector<2x32xf32>
    %402 = arith.mulf %397, %401 : vector<2x32xf32>
    %403 = vector.shape_cast %402 : vector<2x32xf32> to vector<2x1x32xf32>
    "tpu.trace_start"() <{level = 10 : i32, message = "bqd,bld->bql"}> : () -> ()
    %cst_144 = arith.constant dense<0.000000e+00> : vector<2x1x8xf32>
    %404 = tpu.matmul %403, %0, %cst_144 {dimension_numbers = #tpu.dot_dimension_numbers<[2], [2], [1], [1], [0, 0, 0, 1, 1, 1], [0], [0]>} : vector<2x1x32xf32>, vector<2x8x32xf32>, vector<2x1x8xf32> -> vector<2x1x8xf32>
    "tpu.trace_stop"() : () -> ()
    %cst_145 = arith.constant dense<0xFF800000> : vector<2x1xf32>
    %405 = vector.multi_reduction <maximumf>, %404, %cst_145 [2] : vector<2x1x8xf32> to vector<2x1xf32>
    %cst_146 = arith.constant 0xFF800000 : f32
    %406 = vector.broadcast %cst_146 : f32 to vector<2x1xf32>
    %407 = arith.maximumf %406, %405 : vector<2x1xf32>
    %408 = vector.shape_cast %407 : vector<2x1xf32> to vector<2x1x1xf32>
    %409 = vector.broadcast %408 : vector<2x1x1xf32> to vector<2x1x8xf32>
    %410 = arith.subf %404, %409 : vector<2x1x8xf32>
    %411 = math.exp %410 : vector<2x1x8xf32>
    %cst_147 = arith.constant dense<0.000000e+00> : vector<2x1xf32>
    %412 = vector.multi_reduction <add>, %411, %cst_147 [2] : vector<2x1x8xf32> to vector<2x1xf32>
    %413 = vector.shape_cast %412 : vector<2x1xf32> to vector<2x1x1xf32>
    %414 = vector.broadcast %413 : vector<2x1x1xf32> to vector<2x1x8xf32>
    %415 = arith.divf %411, %414 : vector<2x1x8xf32>
    "tpu.trace_start"() <{level = 10 : i32, message = "bql,bld->bqd"}> : () -> ()
    %cst_148 = arith.constant dense<0.000000e+00> : vector<2x1x32xf32>
    %416 = tpu.matmul %415, %0, %cst_148 {dimension_numbers = #tpu.dot_dimension_numbers<[2], [1], [1], [2], [0, 0, 0, 1, 1, 2], [0], [0]>} : vector<2x1x8xf32>, vector<2x8x32xf32>, vector<2x1x32xf32> -> vector<2x1x32xf32>
    "tpu.trace_stop"() : () -> ()
    %417 = vector.shape_cast %416 : vector<2x1x32xf32> to vector<2x32xf32>
    "tpu.trace_start"() <{level = 10 : i32, message = "bqd,bld->bql"}> : () -> ()
    %cst_149 = arith.constant dense<0.000000e+00> : vector<2x1x8xf32>
    %418 = tpu.matmul %403, %1, %cst_149 {dimension_numbers = #tpu.dot_dimension_numbers<[2], [2], [1], [1], [0, 0, 0, 1, 1, 1], [0], [0]>} : vector<2x1x32xf32>, vector<2x8x32xf32>, vector<2x1x8xf32> -> vector<2x1x8xf32>
    "tpu.trace_stop"() : () -> ()
    %cst_150 = arith.constant dense<0xFF800000> : vector<2x1xf32>
    %419 = vector.multi_reduction <maximumf>, %418, %cst_150 [2] : vector<2x1x8xf32> to vector<2x1xf32>
    %cst_151 = arith.constant 0xFF800000 : f32
    %420 = vector.broadcast %cst_151 : f32 to vector<2x1xf32>
    %421 = arith.maximumf %420, %419 : vector<2x1xf32>
    %422 = vector.shape_cast %421 : vector<2x1xf32> to vector<2x1x1xf32>
    %423 = vector.broadcast %422 : vector<2x1x1xf32> to vector<2x1x8xf32>
    %424 = arith.subf %418, %423 : vector<2x1x8xf32>
    %425 = math.exp %424 : vector<2x1x8xf32>
    %cst_152 = arith.constant dense<0.000000e+00> : vector<2x1xf32>
    %426 = vector.multi_reduction <add>, %425, %cst_152 [2] : vector<2x1x8xf32> to vector<2x1xf32>
    %427 = vector.shape_cast %426 : vector<2x1xf32> to vector<2x1x1xf32>
    %428 = vector.broadcast %427 : vector<2x1x1xf32> to vector<2x1x8xf32>
    %429 = arith.divf %425, %428 : vector<2x1x8xf32>
    "tpu.trace_start"() <{level = 10 : i32, message = "bql,bld->bqd"}> : () -> ()
    %cst_153 = arith.constant dense<0.000000e+00> : vector<2x1x32xf32>
    %430 = tpu.matmul %429, %1, %cst_153 {dimension_numbers = #tpu.dot_dimension_numbers<[2], [1], [1], [2], [0, 0, 0, 1, 1, 2], [0], [0]>} : vector<2x1x8xf32>, vector<2x8x32xf32>, vector<2x1x32xf32> -> vector<2x1x32xf32>
    "tpu.trace_stop"() : () -> ()
    %431 = vector.shape_cast %430 : vector<2x1x32xf32> to vector<2x32xf32>
    %cst_154 = arith.constant dense<0.000000e+00> : vector<2x32xf32>
    %432 = tpu.matmul %417, %5, %cst_154 {dimension_numbers = #tpu.dot_dimension_numbers<[1], [0], [0], [1], [0, 0, 1, 1], [], []>} : vector<2x32xf32>, vector<32x32xf32>, vector<2x32xf32> -> vector<2x32xf32>
    %cst_155 = arith.constant dense<0.000000e+00> : vector<2x32xf32>
    %433 = tpu.matmul %431, %6, %cst_155 {dimension_numbers = #tpu.dot_dimension_numbers<[1], [0], [0], [1], [0, 0, 1, 1], [], []>} : vector<2x32xf32>, vector<32x32xf32>, vector<2x32xf32> -> vector<2x32xf32>
    %434 = arith.addf %432, %433 : vector<2x32xf32>
    %cst_156 = arith.constant dense<0.000000e+00> : vector<2x32xf32>
    %435 = tpu.matmul %402, %7, %cst_156 {dimension_numbers = #tpu.dot_dimension_numbers<[1], [0], [0], [1], [0, 0, 1, 1], [], []>} : vector<2x32xf32>, vector<32x32xf32>, vector<2x32xf32> -> vector<2x32xf32>
    %436 = arith.addf %434, %435 : vector<2x32xf32>
    %437 = arith.addf %436, %11 : vector<2x32xf32>
    %438 = math.tanh %437 : vector<2x32xf32>
    %cst_157 = arith.constant dense<0.000000e+00> : vector<2x128xf32>
    %439 = tpu.matmul %438, %8, %cst_157 {dimension_numbers = #tpu.dot_dimension_numbers<[1], [0], [0], [1], [0, 0, 1, 1], [], []>} : vector<2x32xf32>, vector<32x128xf32>, vector<2x128xf32> -> vector<2x128xf32>
    %440 = arith.addf %439, %14 : vector<2x128xf32>
    %cst_158 = arith.constant dense<0xFF800000> : vector<2xf32>
    %441 = vector.multi_reduction <maximumf>, %440, %cst_158 [1] : vector<2x128xf32> to vector<2xf32>
    %cst_159 = arith.constant 0xFF800000 : f32
    %442 = vector.broadcast %cst_159 : f32 to vector<2xf32>
    %443 = arith.maximumf %442, %441 : vector<2xf32>
    %444 = vector.shape_cast %443 : vector<2xf32> to vector<2x1xf32>
    %445 = vector.broadcast %444 : vector<2x1xf32> to vector<2x128xf32>
    %446 = arith.subf %440, %445 : vector<2x128xf32>
    %447 = math.exp %446 : vector<2x128xf32>
    %cst_160 = arith.constant dense<0.000000e+00> : vector<2xf32>
    %448 = vector.multi_reduction <add>, %447, %cst_160 [1] : vector<2x128xf32> to vector<2xf32>
    %449 = vector.shape_cast %448 : vector<2xf32> to vector<2x1xf32>
    %450 = math.log %449 : vector<2x1xf32>
    %451 = vector.broadcast %450 : vector<2x1xf32> to vector<2x128xf32>
    %452 = arith.subf %446, %451 : vector<2x128xf32>
    %453 = arith.index_cast %c4_i32 : i32 to index
    %c0_161 = arith.constant 0 : index
    %c0_162 = arith.constant 0 : index
    %454 = vector.load %arg16[%453, %c0_161, %c0_162] : memref<6x2x128xf32, #tpu.memory_space<vmem>>, vector<1x2x128xf32>
    %455 = vector.shape_cast %454 : vector<1x2x128xf32> to vector<2x128xf32>
    %456 = vector.shape_cast %452 : vector<2x128xf32> to vector<1x2x128xf32>
    tpu.vector_store %arg16[%453, %c0_161, %c0_162], %456 {strides = array<i32>} : memref<6x2x128xf32, #tpu.memory_space<vmem>>, vector<1x2x128xf32>,
    %c5_i32 = arith.constant 5 : i32
    %457 = arith.index_cast %c5_i32 : i32 to index
    %c0_163 = arith.constant 0 : index
    %c0_164 = arith.constant 0 : index
    %458 = vector.load %arg0[%457, %c0_163, %c0_164] : memref<6x2x32xf32, #tpu.memory_space<vmem>>, vector<1x2x32xf32>
    %459 = vector.shape_cast %458 : vector<1x2x32xf32> to vector<2x32xf32>
    %cst_165 = arith.constant dense<0.000000e+00> : vector<2x128xf32>
    %460 = tpu.matmul %459, %3, %cst_165 {dimension_numbers = #tpu.dot_dimension_numbers<[1], [0], [0], [1], [0, 0, 1, 1], [], []>} : vector<2x32xf32>, vector<32x128xf32>, vector<2x128xf32> -> vector<2x128xf32>
    %461 = arith.addf %26, %460 : vector<2x128xf32>
    %cst_166 = arith.constant dense<0.000000e+00> : vector<2x128xf32>
    %462 = tpu.matmul %402, %4, %cst_166 {dimension_numbers = #tpu.dot_dimension_numbers<[1], [0], [0], [1], [0, 0, 1, 1], [], []>} : vector<2x32xf32>, vector<32x128xf32>, vector<2x128xf32> -> vector<2x128xf32>
    %463 = arith.addf %461, %462 : vector<2x128xf32>
    %464 = vector.extract_strided_slice %463 {offsets = [0, 0], sizes = [2, 32], strides = [1, 1]} : vector<2x128xf32> to vector<2x32xf32>
    %465 = arith.negf %464 : vector<2x32xf32>
    %466 = math.exp %465 : vector<2x32xf32>
    %cst_167 = arith.constant 1.000000e+00 : f32
    %467 = vector.broadcast %cst_167 : f32 to vector<2x32xf32>
    %468 = arith.addf %467, %466 : vector<2x32xf32>
    %469 = arith.divf %467, %468 : vector<2x32xf32>
    %470 = vector.extract_strided_slice %463 {offsets = [0, 32], sizes = [2, 32], strides = [1, 1]} : vector<2x128xf32> to vector<2x32xf32>
    %471 = arith.negf %470 : vector<2x32xf32>
    %472 = math.exp %471 : vector<2x32xf32>
    %cst_168 = arith.constant 1.000000e+00 : f32
    %473 = vector.broadcast %cst_168 : f32 to vector<2x32xf32>
    %474 = arith.addf %473, %472 : vector<2x32xf32>
    %475 = arith.divf %473, %474 : vector<2x32xf32>
    %476 = vector.extract_strided_slice %463 {offsets = [0, 64], sizes = [2, 32], strides = [1, 1]} : vector<2x128xf32> to vector<2x32xf32>
    %477 = math.tanh %476 : vector<2x32xf32>
    %478 = vector.extract_strided_slice %463 {offsets = [0, 96], sizes = [2, 32], strides = [1, 1]} : vector<2x128xf32> to vector<2x32xf32>
    %479 = arith.negf %478 : vector<2x32xf32>
    %480 = math.exp %479 : vector<2x32xf32>
    %cst_169 = arith.constant 1.000000e+00 : f32
    %481 = vector.broadcast %cst_169 : f32 to vector<2x32xf32>
    %482 = arith.addf %481, %480 : vector<2x32xf32>
    %483 = arith.divf %481, %482 : vector<2x32xf32>
    %484 = arith.mulf %475, %400 : vector<2x32xf32>
    %485 = arith.mulf %469, %477 : vector<2x32xf32>
    %486 = arith.addf %484, %485 : vector<2x32xf32>
    %487 = math.tanh %486 : vector<2x32xf32>
    %488 = arith.mulf %483, %487 : vector<2x32xf32>
    %489 = vector.shape_cast %488 : vector<2x32xf32> to vector<2x1x32xf32>
    "tpu.trace_start"() <{level = 10 : i32, message = "bqd,bld->bql"}> : () -> ()
    %cst_170 = arith.constant dense<0.000000e+00> : vector<2x1x8xf32>
    %490 = tpu.matmul %489, %0, %cst_170 {dimension_numbers = #tpu.dot_dimension_numbers<[2], [2], [1], [1], [0, 0, 0, 1, 1, 1], [0], [0]>} : vector<2x1x32xf32>, vector<2x8x32xf32>, vector<2x1x8xf32> -> vector<2x1x8xf32>
    "tpu.trace_stop"() : () -> ()
    %cst_171 = arith.constant dense<0xFF800000> : vector<2x1xf32>
    %491 = vector.multi_reduction <maximumf>, %490, %cst_171 [2] : vector<2x1x8xf32> to vector<2x1xf32>
    %cst_172 = arith.constant 0xFF800000 : f32
    %492 = vector.broadcast %cst_172 : f32 to vector<2x1xf32>
    %493 = arith.maximumf %492, %491 : vector<2x1xf32>
    %494 = vector.shape_cast %493 : vector<2x1xf32> to vector<2x1x1xf32>
    %495 = vector.broadcast %494 : vector<2x1x1xf32> to vector<2x1x8xf32>
    %496 = arith.subf %490, %495 : vector<2x1x8xf32>
    %497 = math.exp %496 : vector<2x1x8xf32>
    %cst_173 = arith.constant dense<0.000000e+00> : vector<2x1xf32>
    %498 = vector.multi_reduction <add>, %497, %cst_173 [2] : vector<2x1x8xf32> to vector<2x1xf32>
    %499 = vector.shape_cast %498 : vector<2x1xf32> to vector<2x1x1xf32>
    %500 = vector.broadcast %499 : vector<2x1x1xf32> to vector<2x1x8xf32>
    %501 = arith.divf %497, %500 : vector<2x1x8xf32>
    "tpu.trace_start"() <{level = 10 : i32, message = "bql,bld->bqd"}> : () -> ()
    %cst_174 = arith.constant dense<0.000000e+00> : vector<2x1x32xf32>
    %502 = tpu.matmul %501, %0, %cst_174 {dimension_numbers = #tpu.dot_dimension_numbers<[2], [1], [1], [2], [0, 0, 0, 1, 1, 2], [0], [0]>} : vector<2x1x8xf32>, vector<2x8x32xf32>, vector<2x1x32xf32> -> vector<2x1x32xf32>
    "tpu.trace_stop"() : () -> ()
    %503 = vector.shape_cast %502 : vector<2x1x32xf32> to vector<2x32xf32>
    "tpu.trace_start"() <{level = 10 : i32, message = "bqd,bld->bql"}> : () -> ()
    %cst_175 = arith.constant dense<0.000000e+00> : vector<2x1x8xf32>
    %504 = tpu.matmul %489, %1, %cst_175 {dimension_numbers = #tpu.dot_dimension_numbers<[2], [2], [1], [1], [0, 0, 0, 1, 1, 1], [0], [0]>} : vector<2x1x32xf32>, vector<2x8x32xf32>, vector<2x1x8xf32> -> vector<2x1x8xf32>
    "tpu.trace_stop"() : () -> ()
    %cst_176 = arith.constant dense<0xFF800000> : vector<2x1xf32>
    %505 = vector.multi_reduction <maximumf>, %504, %cst_176 [2] : vector<2x1x8xf32> to vector<2x1xf32>
    %cst_177 = arith.constant 0xFF800000 : f32
    %506 = vector.broadcast %cst_177 : f32 to vector<2x1xf32>
    %507 = arith.maximumf %506, %505 : vector<2x1xf32>
    %508 = vector.shape_cast %507 : vector<2x1xf32> to vector<2x1x1xf32>
    %509 = vector.broadcast %508 : vector<2x1x1xf32> to vector<2x1x8xf32>
    %510 = arith.subf %504, %509 : vector<2x1x8xf32>
    %511 = math.exp %510 : vector<2x1x8xf32>
    %cst_178 = arith.constant dense<0.000000e+00> : vector<2x1xf32>
    %512 = vector.multi_reduction <add>, %511, %cst_178 [2] : vector<2x1x8xf32> to vector<2x1xf32>
    %513 = vector.shape_cast %512 : vector<2x1xf32> to vector<2x1x1xf32>
    %514 = vector.broadcast %513 : vector<2x1x1xf32> to vector<2x1x8xf32>
    %515 = arith.divf %511, %514 : vector<2x1x8xf32>
    "tpu.trace_start"() <{level = 10 : i32, message = "bql,bld->bqd"}> : () -> ()
    %cst_179 = arith.constant dense<0.000000e+00> : vector<2x1x32xf32>
    %516 = tpu.matmul %515, %1, %cst_179 {dimension_numbers = #tpu.dot_dimension_numbers<[2], [1], [1], [2], [0, 0, 0, 1, 1, 2], [0], [0]>} : vector<2x1x8xf32>, vector<2x8x32xf32>, vector<2x1x32xf32> -> vector<2x1x32xf32>
    "tpu.trace_stop"() : () -> ()
    %517 = vector.shape_cast %516 : vector<2x1x32xf32> to vector<2x32xf32>
    %cst_180 = arith.constant dense<0.000000e+00> : vector<2x32xf32>
    %518 = tpu.matmul %503, %5, %cst_180 {dimension_numbers = #tpu.dot_dimension_numbers<[1], [0], [0], [1], [0, 0, 1, 1], [], []>} : vector<2x32xf32>, vector<32x32xf32>, vector<2x32xf32> -> vector<2x32xf32>
    %cst_181 = arith.constant dense<0.000000e+00> : vector<2x32xf32>
    %519 = tpu.matmul %517, %6, %cst_181 {dimension_numbers = #tpu.dot_dimension_numbers<[1], [0], [0], [1], [0, 0, 1, 1], [], []>} : vector<2x32xf32>, vector<32x32xf32>, vector<2x32xf32> -> vector<2x32xf32>
    %520 = arith.addf %518, %519 : vector<2x32xf32>
    %cst_182 = arith.constant dense<0.000000e+00> : vector<2x32xf32>
    %521 = tpu.matmul %488, %7, %cst_182 {dimension_numbers = #tpu.dot_dimension_numbers<[1], [0], [0], [1], [0, 0, 1, 1], [], []>} : vector<2x32xf32>, vector<32x32xf32>, vector<2x32xf32> -> vector<2x32xf32>
    %522 = arith.addf %520, %521 : vector<2x32xf32>
    %523 = arith.addf %522, %11 : vector<2x32xf32>
    %524 = math.tanh %523 : vector<2x32xf32>
    %cst_183 = arith.constant dense<0.000000e+00> : vector<2x128xf32>
    %525 = tpu.matmul %524, %8, %cst_183 {dimension_numbers = #tpu.dot_dimension_numbers<[1], [0], [0], [1], [0, 0, 1, 1], [], []>} : vector<2x32xf32>, vector<32x128xf32>, vector<2x128xf32> -> vector<2x128xf32>
    %526 = arith.addf %525, %14 : vector<2x128xf32>
    %cst_184 = arith.constant dense<0xFF800000> : vector<2xf32>
    %527 = vector.multi_reduction <maximumf>, %526, %cst_184 [1] : vector<2x128xf32> to vector<2xf32>
    %cst_185 = arith.constant 0xFF800000 : f32
    %528 = vector.broadcast %cst_185 : f32 to vector<2xf32>
    %529 = arith.maximumf %528, %527 : vector<2xf32>
    %530 = vector.shape_cast %529 : vector<2xf32> to vector<2x1xf32>
    %531 = vector.broadcast %530 : vector<2x1xf32> to vector<2x128xf32>
    %532 = arith.subf %526, %531 : vector<2x128xf32>
    %533 = math.exp %532 : vector<2x128xf32>
    %cst_186 = arith.constant dense<0.000000e+00> : vector<2xf32>
    %534 = vector.multi_reduction <add>, %533, %cst_186 [1] : vector<2x128xf32> to vector<2xf32>
    %535 = vector.shape_cast %534 : vector<2xf32> to vector<2x1xf32>
    %536 = math.log %535 : vector<2x1xf32>
    %537 = vector.broadcast %536 : vector<2x1xf32> to vector<2x128xf32>
    %538 = arith.subf %532, %537 : vector<2x128xf32>
    %539 = arith.index_cast %c5_i32 : i32 to index
    %c0_187 = arith.constant 0 : index
    %c0_188 = arith.constant 0 : index
    %540 = vector.load %arg16[%539, %c0_187, %c0_188] : memref<6x2x128xf32, #tpu.memory_space<vmem>>, vector<1x2x128xf32>
    %541 = vector.shape_cast %540 : vector<1x2x128xf32> to vector<2x128xf32>
    %542 = vector.shape_cast %538 : vector<2x128xf32> to vector<1x2x128xf32>
    tpu.vector_store %arg16[%539, %c0_187, %c0_188], %542 {strides = array<i32>} : memref<6x2x128xf32, #tpu.memory_space<vmem>>, vector<1x2x128xf32>,
    %c6_i32 = arith.constant 6 : i32
    return
  }
}

module attributes {stable_mosaic.version = 11 : i64} {
  func.func @encoder_kernel(%arg0: memref<16x96xf32, #tpu.memory_space<vmem>>, %arg1: memref<96x32xf32, #tpu.memory_space<vmem>>, %arg2: memref<1x32xf32, #tpu.memory_space<vmem>>, %arg3: memref<96x32xf32, #tpu.memory_space<vmem>>, %arg4: memref<1x32xf32, #tpu.memory_space<vmem>>, %arg5: memref<16x32xf32, #tpu.memory_space<vmem>>, %arg6: memref<16x32xf32, #tpu.memory_space<vmem>>, %arg7: memref<2x32xf32, #tpu.memory_space<vmem>>) attributes {dimension_semantics = [], scalar_prefetch = 0 : i64, scratch_operands = 0 : i64, tpu.core_type = #tpu.core_type<tc>} {
    %c0 = arith.constant 0 : index
    %c0_0 = arith.constant 0 : index
    %0 = vector.load %arg0[%c0, %c0_0] : memref<16x96xf32, #tpu.memory_space<vmem>>, vector<16x96xf32>
    %c0_1 = arith.constant 0 : index
    %c0_2 = arith.constant 0 : index
    %1 = vector.load %arg1[%c0_1, %c0_2] : memref<96x32xf32, #tpu.memory_space<vmem>>, vector<96x32xf32>
    %cst = arith.constant dense<0.000000e+00> : vector<16x32xf32>
    %2 = tpu.matmul %0, %1, %cst {dimension_numbers = #tpu.dot_dimension_numbers<[1], [0], [0], [1], [0, 0, 1, 1], [], []>} : vector<16x96xf32>, vector<96x32xf32>, vector<16x32xf32> -> vector<16x32xf32>
    %c0_3 = arith.constant 0 : index
    %c0_4 = arith.constant 0 : index
    %3 = vector.load %arg2[%c0_3, %c0_4] : memref<1x32xf32, #tpu.memory_space<vmem>>, vector<1x32xf32>
    %4 = vector.broadcast %3 : vector<1x32xf32> to vector<16x32xf32>
    %5 = arith.addf %2, %4 : vector<16x32xf32>
    %cst_5 = arith.constant 0.000000e+00 : f32
    %6 = vector.broadcast %cst_5 : f32 to vector<16x32xf32>
    %7 = arith.maximumf %5, %6 : vector<16x32xf32>
    %c0_6 = arith.constant 0 : index
    %c0_7 = arith.constant 0 : index
    %8 = vector.load %arg3[%c0_6, %c0_7] : memref<96x32xf32, #tpu.memory_space<vmem>>, vector<96x32xf32>
    %cst_8 = arith.constant dense<0.000000e+00> : vector<16x32xf32>
    %9 = tpu.matmul %0, %8, %cst_8 {dimension_numbers = #tpu.dot_dimension_numbers<[1], [0], [0], [1], [0, 0, 1, 1], [], []>} : vector<16x96xf32>, vector<96x32xf32>, vector<16x32xf32> -> vector<16x32xf32>
    %c0_9 = arith.constant 0 : index
    %c0_10 = arith.constant 0 : index
    %10 = vector.load %arg4[%c0_9, %c0_10] : memref<1x32xf32, #tpu.memory_space<vmem>>, vector<1x32xf32>
    %11 = vector.broadcast %10 : vector<1x32xf32> to vector<16x32xf32>
    %12 = arith.addf %9, %11 : vector<16x32xf32>
    %13 = math.tanh %12 : vector<16x32xf32>
    %c0_11 = arith.constant 0 : index
    %c0_12 = arith.constant 0 : index
    %14 = vector.load %arg5[%c0_11, %c0_12] : memref<16x32xf32, #tpu.memory_space<vmem>>, vector<16x32xf32>
    tpu.vector_store %arg5[%c0_11, %c0_12], %7 {strides = array<i32>} : memref<16x32xf32, #tpu.memory_space<vmem>>, vector<16x32xf32>,
    %c0_13 = arith.constant 0 : index
    %c0_14 = arith.constant 0 : index
    %15 = vector.load %arg6[%c0_13, %c0_14] : memref<16x32xf32, #tpu.memory_space<vmem>>, vector<16x32xf32>
    tpu.vector_store %arg6[%c0_13, %c0_14], %13 {strides = array<i32>} : memref<16x32xf32, #tpu.memory_space<vmem>>, vector<16x32xf32>,
    %16 = vector.shape_cast %7 : vector<16x32xf32> to vector<2x8x32xf32>
    %cst_15 = arith.constant dense<0xFF800000> : vector<2x32xf32>
    %17 = vector.multi_reduction <maximumf>, %16, %cst_15 [1] : vector<2x8x32xf32> to vector<2x32xf32>
    %c0_16 = arith.constant 0 : index
    %c0_17 = arith.constant 0 : index
    %18 = vector.load %arg7[%c0_16, %c0_17] : memref<2x32xf32, #tpu.memory_space<vmem>>, vector<2x32xf32>
    tpu.vector_store %arg7[%c0_16, %c0_17], %17 {strides = array<i32>} : memref<2x32xf32, #tpu.memory_space<vmem>>, vector<2x32xf32>,
    return
  }
}

</mosaic_0001>

<llo_original>
// kernel: _forward_core.2
$region0: #{_forward_core.2}
  #allocation0 [shape = 'u32[]', space=smem, size = 0x4, offset = 0x4, fixed_abs, tag = 'smem constant byte address 0x4 - core index']
  #allocation1 [shape = 'u32[144,128]{1,0:T(1,128)}', space=vmem, size = 0x12000, scoped, tag = 'internal scratch']
  %s0 = inlined_call_operand.vmem [shape: f32[16,96], index: 0, kind: input, shape index: {}]
  %s1 = inlined_call_operand.vmem [shape: f32[96,32], index: 1, kind: input, shape index: {}]
  %s2 = inlined_call_operand.vmem [shape: f32[1,32], index: 2, kind: input, shape index: {}]
  %s3 = inlined_call_operand.vmem [shape: f32[96,32], index: 3, kind: input, shape index: {}]
  %s4 = inlined_call_operand.vmem [shape: f32[1,32], index: 4, kind: input, shape index: {}]
  %s5 = inlined_call_operand.vmem [shape: f32[16,32], index: 5, kind: output, shape index: {0}]
  %s6 = inlined_call_operand.vmem [shape: f32[16,32], index: 6, kind: output, shape index: {1}]
  %s7 = inlined_call_operand.vmem [shape: f32[2,32], index: 7, kind: output, shape index: {2}]
  %8 = xla_tuple %s5, %s6, %s7
  %s9 = sld [smem:[#allocation0]]
  $region46: #{_forward_core.2} parent=0
    _
  %s11 = ssub.s32 1, %s9
  %s12 = scalar_select 0, %s11, %s9
  // Predicated region
  $region2: #{_forward_core.2} parent=0 // pred_check
    _
  $region3: #{_forward_core.2} parent=0 // pred_check_branch
    %14 = sbr.rel (0) target = $region5
  $region4: #{_forward_core.2} parent=0 // pred_region
    _
  $region5: #{_forward_core.2} parent=0 // pred_fallthru
    _
  // Predicated region
  $region6: #{_forward_core.2} parent=0 // pred_check
    _
  $region7: #{_forward_core.2} parent=0 // pred_check_branch
    %16 = sbr.rel (0) target = $region9
  $region8: #{_forward_core.2} parent=0 // pred_region
    _
  $region9: #{_forward_core.2} parent=0 // pred_fallthru
    _
  // Predicated region
  $region10: #{_forward_core.2} parent=0 // pred_check
    _
  $region11: #{_forward_core.2} parent=0 // pred_check_branch
    %18 = sbr.rel (0) target = $region13
  $region12: #{_forward_core.2} parent=0 // pred_region
    _
  $region13: #{_forward_core.2} parent=0 // pred_fallthru
    _
  // Predicated region
  $region14: #{_forward_core.2} parent=0 // pred_check
    _
  $region15: #{_forward_core.2} parent=0 // pred_check_branch
    %20 = sbr.rel (0) target = $region17
  $region16: #{_forward_core.2} parent=0 // pred_region
    _
  $region17: #{_forward_core.2} parent=0 // pred_fallthru
    _
  // Predicated region
  $region18: #{_forward_core.2} parent=0 // pred_check
    _
  $region19: #{_forward_core.2} parent=0 // pred_check_branch
    %22 = sbr.rel (0) target = $region21
  $region20: #{_forward_core.2} parent=0 // pred_region
    _
  $region21: #{_forward_core.2} parent=0 // pred_fallthru
    _
  %v23 = vld [vmem:[%s0] sm:$0xff]
  %v24 = vld [vmem:[%s0 + $0x8] sm:$0xff]
  %v25 = vld [vmem:[%s1] sm:$0xff]
  %v26 = vld [vmem:[%s1 + $0x8] sm:$0xff]
  %v27 = vld [vmem:[%s1 + $0x10] sm:$0xff]
  %v28 = vld [vmem:[%s1 + $0x18] sm:$0xff]
  %v29 = vld [vmem:[%s1 + $0x20] sm:$0xff]
  %v30 = vld [vmem:[%s1 + $0x28] sm:$0xff]
  %v31 = vld [vmem:[%s1 + $0x30] sm:$0xff]
  %v32 = vld [vmem:[%s1 + $0x38] sm:$0xff]
  %v33 = vld [vmem:[%s1 + $0x40] sm:$0xff]
  %v34 = vld [vmem:[%s1 + $0x48] sm:$0xff]
  %v35 = vld [vmem:[%s1 + $0x50] sm:$0xff]
  %v36 = vld [vmem:[%s1 + $0x58] sm:$0xff]
  %v37 = vld [vmem:[%s2] sm:$0x1]
  %v39 = vlaneseq
  %v40 = vshrl.u32 %v39, 7
  %v41 = vsub.s32 0, %v40
  %v42 = vrot.slane %v37, %v41
  %vm44 = vcmask 785408
  %v46 = vsel %vm44, %v23, 0
  %v49 = vsel %vm44, %v24, 0
  %51 = vmatprep.subr.mxu0 0.0
  %52 = vmatpush1.msra.mxu0 %v25
  %53 = vmatprep.subr.mxu0 0.0
  %54 = vmatpush1.msra.mxu0 %v26
  %55 = vmatprep.subr.mxu0 0.0
  %56 = vmatpush1.msra.mxu0 %v27
  %57 = vmatprep.subr.mxu0 0.0
  %58 = vmatpush1.msra.mxu0 %v28
  %59 = vmatprep.subr.mxu0 0.0
  %60 = vmatpush1.msra.mxu0 %v29
  %61 = vmatprep.subr.mxu0 0.0
  %62 = vmatpush1.msra.mxu0 %v30
  %63 = vmatprep.subr.mxu0 0.0
  %64 = vmatpush1.msra.mxu0 %v31
  %65 = vmatprep.subr.mxu0 0.0
  %66 = vmatpush1.msra.mxu0 %v32
  %67 = vmatprep.subr.mxu0 0.0
  %68 = vmatpush1.msra.mxu0 %v33
  %69 = vmatprep.subr.mxu0 0.0
  %70 = vmatpush1.msra.mxu0 %v34
  %71 = vmatprep.subr.mxu0 0.0
  %72 = vmatpush1.msra.mxu0 %v35
  %73 = vmatprep.subr.mxu0 0.0
  %74 = vmatpush1.msra.mxu0 %v36
  %75 = vmatprep.subr.mxu0 0.0
  %76 = vmatpush1.msra.mxu0 0.0
  %77 = vmatprep.subr.mxu0 0.0
  %78 = vmatpush1.msra.mxu0 0.0
  %79 = vmatprep.subr.mxu0 0.0
  %80 = vmatpush1.msra.mxu0 0.0
  %81 = vmatprep.subr.mxu0 0.0
  %82 = vmatpush1.msra.mxu0 0.0
  %83 = vmatprep.subr.mxu0 0.0
  %84 = vmatpush1.msra.mxu0 0.0
  %85 = vmatprep.subr.mxu0 0.0
  %86 = vmatpush1.msra.mxu0 0.0
  %87 = vmatprep.subr.mxu0 0.0
  %88 = vmatpush1.msra.mxu0 0.0
  %89 = vmatprep.subr.mxu0 0.0
  %90 = vmatpush1.msra.mxu0 0.0
  %91 = vmatprep.subr.mxu0 0.0
  %92 = vmatpush1.msra.mxu0 0.0
  %93 = vmatprep.subr.mxu0 0.0
  %94 = vmatpush1.msra.mxu0 0.0
  %95 = vmatprep.subr.mxu0 0.0
  %96 = vmatpush1.msra.mxu0 0.0
  %97 = vmatprep.subr.mxu0 0.0
  %98 = vmatpush1.msra.mxu0 0.0
  %99 = vmatprep.subr.mxu0 0.0
  %100 = vmatpush1.msra.mxu0 0.0
  %101 = vmatprep.subr.mxu0 0.0
  %102 = vmatpush1.msra.mxu0 0.0
  %103 = vmatprep.subr.mxu0 0.0
  %104 = vmatpush1.msra.mxu0 0.0
  %105 = vmatprep.subr.mxu0 0.0
  %106 = vmatpush1.msra.mxu0 0.0
  %107 = vmatprep.subr.mxu0 0.0
  %108 = vmatpush1.msra.mxu0 0.0
  %109 = vmatprep.subr.mxu0 0.0
  %110 = vmatpush1.msra.mxu0 0.0
  %111 = vmatprep.subr.mxu0 0.0
  %112 = vmatpush1.msra.mxu0 0.0
  %113 = vmatprep.subr.mxu0 0.0
  %114 = vmatpush1.msra.mxu0 0.0
  %115 = vmatprep.mubr.f32.mxu0 0.0
  %116 = vmatmul.mubr.f32.gmra.mrb[0].mxu0 %v46
  %v117 = vpop.f32.mrb[0].mxu0
  %v118 = vadd.f32 %v42, %v117
  %v119 = vpop.f32.mrb[0].mxu0
  %120 = vmatprep.mubr.f32.mxu0 0.0
  %121 = vmatmul.mubr.f32.gmra.mrb[0].mxu0 %v49
  %v122 = vpop.f32.mrb[0].mxu0
  %v123 = vadd.f32 %v42, %v122
  %v124 = vpop.f32.mrb[0].mxu0
  %125 = vdwg.mxu0
  %v126 = vmax.f32 %v118, 0.0
  %v127 = vmax.f32 %v123, 0.0
  %v128 = vld [vmem:[%s3] sm:$0xff]
  %v129 = vld [vmem:[%s3 + $0x8] sm:$0xff]
  %v130 = vld [vmem:[%s3 + $0x10] sm:$0xff]
  %v131 = vld [vmem:[%s3 + $0x18] sm:$0xff]
  %v132 = vld [vmem:[%s3 + $0x20] sm:$0xff]
  %v133 = vld [vmem:[%s3 + $0x28] sm:$0xff]
  %v134 = vld [vmem:[%s3 + $0x30] sm:$0xff]
  %v135 = vld [vmem:[%s3 + $0x38] sm:$0xff]
  %v136 = vld [vmem:[%s3 + $0x40] sm:$0xff]
  %v137 = vld [vmem:[%s3 + $0x48] sm:$0xff]
  %v138 = vld [vmem:[%s3 + $0x50] sm:$0xff]
  %v139 = vld [vmem:[%s3 + $0x58] sm:$0xff]
  %v140 = vld [vmem:[%s4] sm:$0x1]
  %v142 = vlaneseq
  %v143 = vshrl.u32 %v142, 7
  %v144 = vsub.s32 0, %v143
  %v145 = vrot.slane %v140, %v144
  %147 = vmatprep.subr.mxu0 0.0
  %148 = vmatpush1.msra.mxu0 %v128
  %149 = vmatprep.subr.mxu0 0.0
  %150 = vmatpush1.msra.mxu0 %v129
  %151 = vmatprep.subr.mxu0 0.0
  %152 = vmatpush1.msra.mxu0 %v130
  %153 = vmatprep.subr.mxu0 0.0
  %154 = vmatpush1.msra.mxu0 %v131
  %155 = vmatprep.subr.mxu0 0.0
  %156 = vmatpush1.msra.mxu0 %v132
  %157 = vmatprep.subr.mxu0 0.0
  %158 = vmatpush1.msra.mxu0 %v133
  %159 = vmatprep.subr.mxu0 0.0
  %160 = vmatpush1.msra.mxu0 %v134
  %161 = vmatprep.subr.mxu0 0.0
  %162 = vmatpush1.msra.mxu0 %v135
  %163 = vmatprep.subr.mxu0 0.0
  %164 = vmatpush1.msra.mxu0 %v136
  %165 = vmatprep.subr.mxu0 0.0
  %166 = vmatpush1.msra.mxu0 %v137
  %167 = vmatprep.subr.mxu0 0.0
  %168 = vmatpush1.msra.mxu0 %v138
  %169 = vmatprep.subr.mxu0 0.0
  %170 = vmatpush1.msra.mxu0 %v139
  %171 = vmatprep.subr.mxu0 0.0
  %172 = vmatpush1.msra.mxu0 0.0
  %173 = vmatprep.subr.mxu0 0.0
  %174 = vmatpush1.msra.mxu0 0.0
  %175 = vmatprep.subr.mxu0 0.0
  %176 = vmatpush1.msra.mxu0 0.0
  %177 = vmatprep.subr.mxu0 0.0
  %178 = vmatpush1.msra.mxu0 0.0
  %179 = vmatprep.subr.mxu0 0.0
  %180 = vmatpush1.msra.mxu0 0.0
  %181 = vmatprep.subr.mxu0 0.0
  %182 = vmatpush1.msra.mxu0 0.0
  %183 = vmatprep.subr.mxu0 0.0
  %184 = vmatpush1.msra.mxu0 0.0
  %185 = vmatprep.subr.mxu0 0.0
  %186 = vmatpush1.msra.mxu0 0.0
  %187 = vmatprep.subr.mxu0 0.0
  %188 = vmatpush1.msra.mxu0 0.0
  %189 = vmatprep.subr.mxu0 0.0
  %190 = vmatpush1.msra.mxu0 0.0
  %191 = vmatprep.subr.mxu0 0.0
  %192 = vmatpush1.msra.mxu0 0.0
  %193 = vmatprep.subr.mxu0 0.0
  %194 = vmatpush1.msra.mxu0 0.0
  %195 = vmatprep.subr.mxu0 0.0
  %196 = vmatpush1.msra.mxu0 0.0
  %197 = vmatprep.subr.mxu0 0.0
  %198 = vmatpush1.msra.mxu0 0.0
  %199 = vmatprep.subr.mxu0 0.0
  %200 = vmatpush1.msra.mxu0 0.0
  %201 = vmatprep.subr.mxu0 0.0
  %202 = vmatpush1.msra.mxu0 0.0
  %203 = vmatprep.subr.mxu0 0.0
  %204 = vmatpush1.msra.mxu0 0.0
  %205 = vmatprep.subr.mxu0 0.0
  %206 = vmatpush1.msra.mxu0 0.0
  %207 = vmatprep.subr.mxu0 0.0
  %208 = vmatpush1.msra.mxu0 0.0
  %209 = vmatprep.subr.mxu0 0.0
  %210 = vmatpush1.msra.mxu0 0.0
  %211 = vmatprep.mubr.f32.mxu0 0.0
  %212 = vmatmul.mubr.f32.gmra.mrb[0].mxu0 %v46
  %v213 = vpop.f32.mrb[0].mxu0
  %v214 = vadd.f32 %v145, %v213
  %v215 = vpop.f32.mrb[0].mxu0
  %216 = vmatprep.mubr.f32.mxu0 0.0
  %217 = vmatmul.mubr.f32.gmra.mrb[0].mxu0 %v49
  %v218 = vpop.f32.mrb[0].mxu0
  %v219 = vadd.f32 %v145, %v218
  %v220 = vpop.f32.mrb[0].mxu0
  %221 = vdwg.mxu0
  %v222 = vtanh.pop %v214
  %v223 = vtanh.pop %v219
  %vm224 = vcmask 261120
  %225 = vst.msk [vmem:[%s5] sm:$0xff] %vm224, %v126
  %226 = vst.msk [vmem:[%s5 + $0x8] sm:$0xff] %vm224, %v127
  %227 = vst.msk [vmem:[%s6] sm:$0xff] %vm224, %v222
  %228 = vst.msk [vmem:[%s6 + $0x8] sm:$0xff] %vm224, %v223
  %v229 = vsel %vm224, %v126, -inf
  %v230 = vrot.slane %v229, 4
  %v231 = vmax.f32 %v229, %v230
  %v232 = vrot.slane %v231, 2
  %v233 = vmax.f32 %v231, %v232
  %v234 = vrot.slane %v233, 1
  %v235 = vmax.f32 %v233, %v234
  %v236 = vsel %vm224, %v127, -inf
  %v237 = vrot.slane %v236, 4
  %v238 = vmax.f32 %v236, %v237
  %v239 = vrot.slane %v238, 2
  %v240 = vmax.f32 %v238, %v239
  %v241 = vrot.slane %v240, 1
  %v242 = vmax.f32 %v240, %v241
  %vm245 = vcmask 1041409
  %v246 = vsel %vm245, %v242, %v235
  %vm248 = vcmask 254976
  %249 = vst.msk [vmem:[%s7] sm:$0x3] %vm248, %v246
  // Predicated region
  $region22: #{_forward_core.2} parent=0 // pred_check
    _
  $region23: #{_forward_core.2} parent=0 // pred_check_branch
    %251 = sbr.rel (0) target = $region25
  $region24: #{_forward_core.2} parent=0 // pred_region
    _
  $region25: #{_forward_core.2} parent=0 // pred_fallthru
    _
  // Predicated region
  $region26: #{_forward_core.2} parent=0 // pred_check
    _
  $region27: #{_forward_core.2} parent=0 // pred_check_branch
    %253 = sbr.rel (0) target = $region29
  $region28: #{_forward_core.2} parent=0 // pred_region
    _
  $region29: #{_forward_core.2} parent=0 // pred_fallthru
    _
  // Predicated region
  $region30: #{_forward_core.2} parent=0 // pred_check
    _
  $region31: #{_forward_core.2} parent=0 // pred_check_branch
    %255 = sbr.rel (0) target = $region33
  $region32: #{_forward_core.2} parent=0 // pred_region
    _
  $region33: #{_forward_core.2} parent=0 // pred_fallthru
    _
  // Predicated region
  $region34: #{_forward_core.2} parent=0 // pred_check
    _
  $region35: #{_forward_core.2} parent=0 // pred_check_branch
    %257 = sbr.rel (0) target = $region37
  $region36: #{_forward_core.2} parent=0 // pred_region
    _
  $region37: #{_forward_core.2} parent=0 // pred_fallthru
    _
  // Predicated region
  $region38: #{_forward_core.2} parent=0 // pred_check
    _
  $region39: #{_forward_core.2} parent=0 // pred_check_branch
    %259 = sbr.rel (0) target = $region41
  $region40: #{_forward_core.2} parent=0 // pred_region
    _
  $region41: #{_forward_core.2} parent=0 // pred_fallthru
    _
  // Predicated region
  $region42: #{_forward_core.2} parent=0 // pred_check
    _
  $region43: #{_forward_core.2} parent=0 // pred_check_branch
    %261 = sbr.rel (0) target = $region45
  $region44: #{_forward_core.2} parent=0 // pred_region
    _
  $region45: #{_forward_core.2} parent=0 // pred_fallthru
    _

// kernel: _forward_core.3
$region0: #{_forward_core.3}
  #allocation0 [shape = 'u32[]', space=smem, size = 0x4, offset = 0x4, fixed_abs, tag = 'smem constant byte address 0x4 - core index']
  #allocation1 [shape = 'u32[144,128]{1,0:T(1,128)}', space=vmem, size = 0x12000, scoped, tag = 'internal scratch']
  %s0 = inlined_call_operand.vmem [shape: f32[6,2,32], index: 0, kind: input, shape index: {}]
  %s1 = inlined_call_operand.vmem [shape: f32[2,8,32], index: 1, kind: input, shape index: {}]
  %s2 = inlined_call_operand.vmem [shape: f32[2,8,32], index: 2, kind: input, shape index: {}]
  %s3 = inlined_call_operand.vmem [shape: f32[2,32], index: 3, kind: input, shape index: {}]
  %s4 = inlined_call_operand.vmem [shape: f32[32,128], index: 4, kind: input, shape index: {}]
  %s5 = inlined_call_operand.vmem [shape: f32[32,128], index: 5, kind: input, shape index: {}]
  %s6 = inlined_call_operand.vmem [shape: f32[32,128], index: 6, kind: input, shape index: {}]
  %s7 = inlined_call_operand.vmem [shape: f32[1,128], index: 7, kind: input, shape index: {}]
  %s8 = inlined_call_operand.vmem [shape: f32[32,128], index: 8, kind: input, shape index: {}]
  %s9 = inlined_call_operand.vmem [shape: f32[1,128], index: 9, kind: input, shape index: {}]
  %s10 = inlined_call_operand.vmem [shape: f32[32,32], index: 10, kind: input, shape index: {}]
  %s11 = inlined_call_operand.vmem [shape: f32[32,32], index: 11, kind: input, shape index: {}]
  %s12 = inlined_call_operand.vmem [shape: f32[32,32], index: 12, kind: input, shape index: {}]
  %s13 = inlined_call_operand.vmem [shape: f32[1,32], index: 13, kind: input, shape index: {}]
  %s14 = inlined_call_operand.vmem [shape: f32[32,128], index: 14, kind: input, shape index: {}]
  %s15 = inlined_call_operand.vmem [shape: f32[1,128], index: 15, kind: input, shape index: {}]
  %s16 = inlined_call_operand.vmem [shape: f32[6,2,128], index: 16, kind: output, shape index: {}]
  %s17 = sld [smem:[#allocation0]]
  $region74: #{_forward_core.3} parent=0
    _
  %s19 = ssub.s32 1, %s17
  %s20 = scalar_select 0, %s19, %s17
  // Predicated region
  $region2: #{_forward_core.3} parent=0 // pred_check
    _
  $region3: #{_forward_core.3} parent=0 // pred_check_branch
    %22 = sbr.rel (0) target = $region5
  $region4: #{_forward_core.3} parent=0 // pred_region
    _
  $region5: #{_forward_core.3} parent=0 // pred_fallthru
    _
  // Predicated region
  $region6: #{_forward_core.3} parent=0 // pred_check
    _
  $region7: #{_forward_core.3} parent=0 // pred_check_branch
    %24 = sbr.rel (0) target = $region9
  $region8: #{_forward_core.3} parent=0 // pred_region
    _
  $region9: #{_forward_core.3} parent=0 // pred_fallthru
    _
  // Predicated region
  $region10: #{_forward_core.3} parent=0 // pred_check
    _
  $region11: #{_forward_core.3} parent=0 // pred_check_branch
    %26 = sbr.rel (0) target = $region13
  $region12: #{_forward_core.3} parent=0 // pred_region
    _
  $region13: #{_forward_core.3} parent=0 // pred_fallthru
    _
  // Predicated region
  $region14: #{_forward_core.3} parent=0 // pred_check
    _
  $region15: #{_forward_core.3} parent=0 // pred_check_branch
    %28 = sbr.rel (0) target = $region17
  $region16: #{_forward_core.3} parent=0 // pred_region
    _
  $region17: #{_forward_core.3} parent=0 // pred_fallthru
    _
  // Predicated region
  $region18: #{_forward_core.3} parent=0 // pred_check
    _
  $region19: #{_forward_core.3} parent=0 // pred_check_branch
    %30 = sbr.rel (0) target = $region21
  $region20: #{_forward_core.3} parent=0 // pred_region
    _
  $region21: #{_forward_core.3} parent=0 // pred_fallthru
    _
  // Predicated region
  $region22: #{_forward_core.3} parent=0 // pred_check
    _
  $region23: #{_forward_core.3} parent=0 // pred_check_branch
    %32 = sbr.rel (0) target = $region25
  $region24: #{_forward_core.3} parent=0 // pred_region
    _
  $region25: #{_forward_core.3} parent=0 // pred_fallthru
    _
  // Predicated region
  $region26: #{_forward_core.3} parent=0 // pred_check
    _
  $region27: #{_forward_core.3} parent=0 // pred_check_branch
    %34 = sbr.rel (0) target = $region29
  $region28: #{_forward_core.3} parent=0 // pred_region
    _
  $region29: #{_forward_core.3} parent=0 // pred_fallthru
    _
  // Predicated region
  $region30: #{_forward_core.3} parent=0 // pred_check
    _
  $region31: #{_forward_core.3} parent=0 // pred_check_branch
    %36 = sbr.rel (0) target = $region33
  $region32: #{_forward_core.3} parent=0 // pred_region
    _
  $region33: #{_forward_core.3} parent=0 // pred_fallthru
    _
  // Predicated region
  $region34: #{_forward_core.3} parent=0 // pred_check
    _
  $region35: #{_forward_core.3} parent=0 // pred_check_branch
    %38 = sbr.rel (0) target = $region37
  $region36: #{_forward_core.3} parent=0 // pred_region
    _
  $region37: #{_forward_core.3} parent=0 // pred_fallthru
    _
  // Predicated region
  $region38: #{_forward_core.3} parent=0 // pred_check
    _
  $region39: #{_forward_core.3} parent=0 // pred_check_branch
    %40 = sbr.rel (0) target = $region41
  $region40: #{_forward_core.3} parent=0 // pred_region
    _
  $region41: #{_forward_core.3} parent=0 // pred_fallthru
    _
  // Predicated region
  $region42: #{_forward_core.3} parent=0 // pred_check
    _
  $region43: #{_forward_core.3} parent=0 // pred_check_branch
    %42 = sbr.rel (0) target = $region45
  $region44: #{_forward_core.3} parent=0 // pred_region
    _
  $region45: #{_forward_core.3} parent=0 // pred_fallthru
    _
  // Predicated region
  $region46: #{_forward_core.3} parent=0 // pred_check
    _
  $region47: #{_forward_core.3} parent=0 // pred_check_branch
    %44 = sbr.rel (0) target = $region49
  $region48: #{_forward_core.3} parent=0 // pred_region
    _
  $region49: #{_forward_core.3} parent=0 // pred_fallthru
    _
  // Predicated region
  $region50: #{_forward_core.3} parent=0 // pred_check
    _
  $region51: #{_forward_core.3} parent=0 // pred_check_branch
    %46 = sbr.rel (0) target = $region53
  $region52: #{_forward_core.3} parent=0 // pred_region
    _
  $region53: #{_forward_core.3} parent=0 // pred_fallthru
    _
  // Predicated region
  $region54: #{_forward_core.3} parent=0 // pred_check
    _
  $region55: #{_forward_core.3} parent=0 // pred_check_branch
    %48 = sbr.rel (0) target = $region57
  $region56: #{_forward_core.3} parent=0 // pred_region
    _
  $region57: #{_forward_core.3} parent=0 // pred_fallthru
    _
  // Predicated region
  $region58: #{_forward_core.3} parent=0 // pred_check
    _
  $region59: #{_forward_core.3} parent=0 // pred_check_branch
    %50 = sbr.rel (0) target = $region61
  $region60: #{_forward_core.3} parent=0 // pred_region
    _
  $region61: #{_forward_core.3} parent=0 // pred_fallthru
    _
  // Predicated region
  $region62: #{_forward_core.3} parent=0 // pred_check
    _
  $region63: #{_forward_core.3} parent=0 // pred_check_branch
    %52 = sbr.rel (0) target = $region65
  $region64: #{_forward_core.3} parent=0 // pred_region
    _
  $region65: #{_forward_core.3} parent=0 // pred_fallthru
    _
  %v53 = vld [vmem:[%s1] sm:$0xff]
  %v54 = vld [vmem:[%s1 + $0x8] sm:$0xff]
  %v55 = vld [vmem:[%s2] sm:$0xff]
  %v56 = vld [vmem:[%s2 + $0x8] sm:$0xff]
  %v57 = vld [vmem:[%s3] sm:$0x3]
  %v58 = vld [vmem:[%s4] sm:$0xff]
  %v59 = vld [vmem:[%s4 + $0x8] sm:$0xff]
  %v60 = vld [vmem:[%s4 + $0x10] sm:$0xff]
  %v61 = vld [vmem:[%s4 + $0x18] sm:$0xff]
  %v62 = vld [vmem:[%s8] sm:$0xff]
  %v63 = vld [vmem:[%s8 + $0x8] sm:$0xff]
  %v64 = vld [vmem:[%s8 + $0x10] sm:$0xff]
  %v65 = vld [vmem:[%s8 + $0x18] sm:$0xff]
  %v66 = vld [vmem:[%s10] sm:$0xff]
  %v67 = vld [vmem:[%s10 + $0x8] sm:$0xff]
  %v68 = vld [vmem:[%s10 + $0x10] sm:$0xff]
  %v69 = vld [vmem:[%s10 + $0x18] sm:$0xff]
  %v70 = vld [vmem:[%s11] sm:$0xff]
  %v71 = vld [vmem:[%s11 + $0x8] sm:$0xff]
  %v72 = vld [vmem:[%s11 + $0x10] sm:$0xff]
  %v73 = vld [vmem:[%s11 + $0x18] sm:$0xff]
  %v74 = vld [vmem:[%s12] sm:$0xff]
  %v75 = vld [vmem:[%s12 + $0x8] sm:$0xff]
  %v76 = vld [vmem:[%s12 + $0x10] sm:$0xff]
  %v77 = vld [vmem:[%s12 + $0x18] sm:$0xff]
  %v78 = vld [vmem:[%s14] sm:$0xff]
  %v79 = vld [vmem:[%s14 + $0x8] sm:$0xff]
  %v80 = vld [vmem:[%s14 + $0x10] sm:$0xff]
  %v81 = vld [vmem:[%s14 + $0x18] sm:$0xff]
  %v82 = vld [vmem:[%s13] sm:$0x1]
  %v84 = vlaneseq
  %v85 = vshrl.u32 %v84, 7
  %v86 = vsub.s32 0, %v85
  %v87 = vrot.slane %v82, %v86
  %v89 = vld [vmem:[%s15] sm:$0x1]
  %v91 = vlaneseq
  %v92 = vshrl.u32 %v91, 7
  %v93 = vsub.s32 0, %v92
  %v94 = vrot.slane %v89, %v93
  %v96 = vld [vmem:[%s5] sm:$0xff]
  %v97 = vld [vmem:[%s5 + $0x8] sm:$0xff]
  %v98 = vld [vmem:[%s5 + $0x10] sm:$0xff]
  %v99 = vld [vmem:[%s5 + $0x18] sm:$0xff]
  %v100 = vld [vmem:[%s6] sm:$0xff]
  %v101 = vld [vmem:[%s6 + $0x8] sm:$0xff]
  %v102 = vld [vmem:[%s6 + $0x10] sm:$0xff]
  %v103 = vld [vmem:[%s6 + $0x18] sm:$0xff]
  %vm104 = vcmask 261120
  %v106 = vsel %vm104, 0.0, 0
  %108 = vmatprep.subr.mxu0 0.0
  %109 = vmatpush1.msra.mxu0 %v100
  %110 = vmatprep.subr.mxu0 0.0
  %111 = vmatpush1.msra.mxu0 %v101
  %112 = vmatprep.subr.mxu0 0.0
  %113 = vmatpush1.msra.mxu0 %v102
  %114 = vmatprep.subr.mxu0 0.0
  %115 = vmatpush1.msra.mxu0 %v103
  %116 = vmatprep.subr.mxu0 0.0
  %117 = vmatpush1.msra.mxu0 0.0
  %118 = vmatprep.subr.mxu0 0.0
  %119 = vmatpush1.msra.mxu0 0.0
  %120 = vmatprep.subr.mxu0 0.0
  %121 = vmatpush1.msra.mxu0 0.0
  %122 = vmatprep.subr.mxu0 0.0
  %123 = vmatpush1.msra.mxu0 0.0
  %124 = vmatprep.subr.mxu0 0.0
  %125 = vmatpush1.msra.mxu0 0.0
  %126 = vmatprep.subr.mxu0 0.0
  %127 = vmatpush1.msra.mxu0 0.0
  %128 = vmatprep.subr.mxu0 0.0
  %129 = vmatpush1.msra.mxu0 0.0
  %130 = vmatprep.subr.mxu0 0.0
  %131 = vmatpush1.msra.mxu0 0.0
  %132 = vmatprep.subr.mxu0 0.0
  %133 = vmatpush1.msra.mxu0 0.0
  %134 = vmatprep.subr.mxu0 0.0
  %135 = vmatpush1.msra.mxu0 0.0
  %136 = vmatprep.subr.mxu0 0.0
  %137 = vmatpush1.msra.mxu0 0.0
  %138 = vmatprep.subr.mxu0 0.0
  %139 = vmatpush1.msra.mxu0 0.0
  %140 = vmatprep.subr.mxu0 0.0
  %141 = vmatpush1.msra.mxu0 0.0
  %142 = vmatprep.subr.mxu0 0.0
  %143 = vmatpush1.msra.mxu0 0.0
  %144 = vmatprep.subr.mxu0 0.0
  %145 = vmatpush1.msra.mxu0 0.0
  %146 = vmatprep.subr.mxu0 0.0
  %147 = vmatpush1.msra.mxu0 0.0
  %148 = vmatprep.subr.mxu0 0.0
  %149 = vmatpush1.msra.mxu0 0.0
  %150 = vmatprep.subr.mxu0 0.0
  %151 = vmatpush1.msra.mxu0 0.0
  %152 = vmatprep.subr.mxu0 0.0
  %153 = vmatpush1.msra.mxu0 0.0
  %154 = vmatprep.subr.mxu0 0.0
  %155 = vmatpush1.msra.mxu0 0.0
  %156 = vmatprep.subr.mxu0 0.0
  %157 = vmatpush1.msra.mxu0 0.0
  %158 = vmatprep.subr.mxu0 0.0
  %159 = vmatpush1.msra.mxu0 0.0
  %160 = vmatprep.subr.mxu0 0.0
  %161 = vmatpush1.msra.mxu0 0.0
  %162 = vmatprep.subr.mxu0 0.0
  %163 = vmatpush1.msra.mxu0 0.0
  %164 = vmatprep.subr.mxu0 0.0
  %165 = vmatpush1.msra.mxu0 0.0
  %166 = vmatprep.subr.mxu0 0.0
  %167 = vmatpush1.msra.mxu0 0.0
  %168 = vmatprep.subr.mxu0 0.0
  %169 = vmatpush1.msra.mxu0 0.0
  %170 = vmatprep.subr.mxu0 0.0
  %171 = vmatpush1.msra.mxu0 0.0
  %172 = vmatprep.mubr.f32.mxu0 0.0
  %173 = vmatmul.mubr.f32.gmra.mrb[0].mxu0 %v106
  %v174 = vpop.f32.mrb[0].mxu0
  %v175 = vadd.f32 0.0, %v174
  %v176 = vpop.f32.mrb[0].mxu0
  %177 = vdwg.mxu0
  %v179 = vsel %vm104, %v57, 0
  %181 = vmatprep.subr.mxu0 0.0
  %182 = vmatpush1.msra.mxu0 %v96
  %183 = vmatprep.subr.mxu0 0.0
  %184 = vmatpush1.msra.mxu0 %v97
  %185 = vmatprep.subr.mxu0 0.0
  %186 = vmatpush1.msra.mxu0 %v98
  %187 = vmatprep.subr.mxu0 0.0
  %188 = vmatpush1.msra.mxu0 %v99
  %189 = vmatprep.subr.mxu0 0.0
  %190 = vmatpush1.msra.mxu0 0.0
  %191 = vmatprep.subr.mxu0 0.0
  %192 = vmatpush1.msra.mxu0 0.0
  %193 = vmatprep.subr.mxu0 0.0
  %194 = vmatpush1.msra.mxu0 0.0
  %195 = vmatprep.subr.mxu0 0.0
  %196 = vmatpush1.msra.mxu0 0.0
  %197 = vmatprep.subr.mxu0 0.0
  %198 = vmatpush1.msra.mxu0 0.0
  %199 = vmatprep.subr.mxu0 0.0
  %200 = vmatpush1.msra.mxu0 0.0
  %201 = vmatprep.subr.mxu0 0.0
  %202 = vmatpush1.msra.mxu0 0.0
  %203 = vmatprep.subr.mxu0 0.0
  %204 = vmatpush1.msra.mxu0 0.0
  %205 = vmatprep.subr.mxu0 0.0
  %206 = vmatpush1.msra.mxu0 0.0
  %207 = vmatprep.subr.mxu0 0.0
  %208 = vmatpush1.msra.mxu0 0.0
  %209 = vmatprep.subr.mxu0 0.0
  %210 = vmatpush1.msra.mxu0 0.0
  %211 = vmatprep.subr.mxu0 0.0
  %212 = vmatpush1.msra.mxu0 0.0
  %213 = vmatprep.subr.mxu0 0.0
  %214 = vmatpush1.msra.mxu0 0.0
  %215 = vmatprep.subr.mxu0 0.0
  %216 = vmatpush1.msra.mxu0 0.0
  %217 = vmatprep.subr.mxu0 0.0
  %218 = vmatpush1.msra.mxu0 0.0
  %219 = vmatprep.subr.mxu0 0.0
  %220 = vmatpush1.msra.mxu0 0.0
  %221 = vmatprep.subr.mxu0 0.0
  %222 = vmatpush1.msra.mxu0 0.0
  %223 = vmatprep.subr.mxu0 0.0
  %224 = vmatpush1.msra.mxu0 0.0
  %225 = vmatprep.subr.mxu0 0.0
  %226 = vmatpush1.msra.mxu0 0.0
  %227 = vmatprep.subr.mxu0 0.0
  %228 = vmatpush1.msra.mxu0 0.0
  %229 = vmatprep.subr.mxu0 0.0
  %230 = vmatpush1.msra.mxu0 0.0
  %231 = vmatprep.subr.mxu0 0.0
  %232 = vmatpush1.msra.mxu0 0.0
  %233 = vmatprep.subr.mxu0 0.0
  %234 = vmatpush1.msra.mxu0 0.0
  %235 = vmatprep.subr.mxu0 0.0
  %236 = vmatpush1.msra.mxu0 0.0
  %237 = vmatprep.subr.mxu0 0.0
  %238 = vmatpush1.msra.mxu0 0.0
  %239 = vmatprep.subr.mxu0 0.0
  %240 = vmatpush1.msra.mxu0 0.0
  %241 = vmatprep.subr.mxu0 0.0
  %242 = vmatpush1.msra.mxu0 0.0
  %243 = vmatprep.subr.mxu0 0.0
  %244 = vmatpush1.msra.mxu0 0.0
  %245 = vmatprep.mubr.f32.mxu0 0.0
  %246 = vmatmul.mubr.f32.gmra.mrb[0].mxu0 %v179
  %v247 = vpop.f32.mrb[0].mxu0
  %v248 = vadd.f32 %v175, %v247
  %v249 = vpop.f32.mrb[0].mxu0
  %250 = vdwg.mxu0
  %v251 = vld [vmem:[%s7] sm:$0x1]
  %v253 = vlaneseq
  %v254 = vshrl.u32 %v253, 7
  %v255 = vsub.s32 0, %v254
  %v256 = vrot.slane %v251, %v255
  %v258 = vadd.f32 %v248, %v256
  %v259 = vld [vmem:[%s9] sm:$0x1]
  %v261 = vlaneseq
  %v262 = vshrl.u32 %v261, 7
  %v263 = vsub.s32 0, %v262
  %v264 = vrot.slane %v259, %v263
  %v266 = vadd.f32 %v258, %v264
  %v267 = vld [vmem:[%s0] sm:$0x3]
  %v269 = vsel %vm104, %v267, 0
  %271 = vmatprep.subr.mxu0 0.0
  %272 = vmatpush1.msra.mxu0 %v58
  %273 = vmatprep.subr.mxu0 0.0
  %274 = vmatpush1.msra.mxu0 %v59
  %275 = vmatprep.subr.mxu0 0.0
  %276 = vmatpush1.msra.mxu0 %v60
  %277 = vmatprep.subr.mxu0 0.0
  %278 = vmatpush1.msra.mxu0 %v61
  %279 = vmatprep.subr.mxu0 0.0
  %280 = vmatpush1.msra.mxu0 0.0
  %281 = vmatprep.subr.mxu0 0.0
  %282 = vmatpush1.msra.mxu0 0.0
  %283 = vmatprep.subr.mxu0 0.0
  %284 = vmatpush1.msra.mxu0 0.0
  %285 = vmatprep.subr.mxu0 0.0
  %286 = vmatpush1.msra.mxu0 0.0
  %287 = vmatprep.subr.mxu0 0.0
  %288 = vmatpush1.msra.mxu0 0.0
  %289 = vmatprep.subr.mxu0 0.0
  %290 = vmatpush1.msra.mxu0 0.0
  %291 = vmatprep.subr.mxu0 0.0
  %292 = vmatpush1.msra.mxu0 0.0
  %293 = vmatprep.subr.mxu0 0.0
  %294 = vmatpush1.msra.mxu0 0.0
  %295 = vmatprep.subr.mxu0 0.0
  %296 = vmatpush1.msra.mxu0 0.0
  %297 = vmatprep.subr.mxu0 0.0
  %298 = vmatpush1.msra.mxu0 0.0
  %299 = vmatprep.subr.mxu0 0.0
  %300 = vmatpush1.msra.mxu0 0.0
  %301 = vmatprep.subr.mxu0 0.0
  %302 = vmatpush1.msra.mxu0 0.0
  %303 = vmatprep.subr.mxu0 0.0
  %304 = vmatpush1.msra.mxu0 0.0
  %305 = vmatprep.subr.mxu0 0.0
  %306 = vmatpush1.msra.mxu0 0.0
  %307 = vmatprep.subr.mxu0 0.0
  %308 = vmatpush1.msra.mxu0 0.0
  %309 = vmatprep.subr.mxu0 0.0
  %310 = vmatpush1.msra.mxu0 0.0
  %311 = vmatprep.subr.mxu0 0.0
  %312 = vmatpush1.msra.mxu0 0.0
  %313 = vmatprep.subr.mxu0 0.0
  %314 = vmatpush1.msra.mxu0 0.0
  %315 = vmatprep.subr.mxu0 0.0
  %316 = vmatpush1.msra.mxu0 0.0
  %317 = vmatprep.subr.mxu0 0.0
  %318 = vmatpush1.msra.mxu0 0.0
  %319 = vmatprep.subr.mxu0 0.0
  %320 = vmatpush1.msra.mxu0 0.0
  %321 = vmatprep.subr.mxu0 0.0
  %322 = vmatpush1.msra.mxu0 0.0
  %323 = vmatprep.subr.mxu0 0.0
  %324 = vmatpush1.msra.mxu0 0.0
  %325 = vmatprep.subr.mxu0 0.0
  %326 = vmatpush1.msra.mxu0 0.0
  %327 = vmatprep.subr.mxu0 0.0
  %328 = vmatpush1.msra.mxu0 0.0
  %329 = vmatprep.subr.mxu0 0.0
  %330 = vmatpush1.msra.mxu0 0.0
  %331 = vmatprep.subr.mxu0 0.0
  %332 = vmatpush1.msra.mxu0 0.0
  %333 = vmatprep.subr.mxu0 0.0
  %334 = vmatpush1.msra.mxu0 0.0
  %335 = vmatprep.mubr.f32.mxu0 0.0
  %336 = vmatmul.mubr.f32.gmra.mrb[0].mxu0 %v269
  %v337 = vpop.f32.mrb[0].mxu0
  %v338 = vadd.f32 0.0, %v337
  %v339 = vpop.f32.mrb[0].mxu0
  %340 = vdwg.mxu0
  %v341 = vadd.f32 %v266, %v338
  %342 = vmatprep.subr.mxu0 0.0
  %343 = vmatpush1.msra.mxu0 %v62
  %344 = vmatprep.subr.mxu0 0.0
  %345 = vmatpush1.msra.mxu0 %v63
  %346 = vmatprep.subr.mxu0 0.0
  %347 = vmatpush1.msra.mxu0 %v64
  %348 = vmatprep.subr.mxu0 0.0
  %349 = vmatpush1.msra.mxu0 %v65
  %350 = vmatprep.subr.mxu0 0.0
  %351 = vmatpush1.msra.mxu0 0.0
  %352 = vmatprep.subr.mxu0 0.0
  %353 = vmatpush1.msra.mxu0 0.0
  %354 = vmatprep.subr.mxu0 0.0
  %355 = vmatpush1.msra.mxu0 0.0
  %356 = vmatprep.subr.mxu0 0.0
  %357 = vmatpush1.msra.mxu0 0.0
  %358 = vmatprep.subr.mxu0 0.0
  %359 = vmatpush1.msra.mxu0 0.0
  %360 = vmatprep.subr.mxu0 0.0
  %361 = vmatpush1.msra.mxu0 0.0
  %362 = vmatprep.subr.mxu0 0.0
  %363 = vmatpush1.msra.mxu0 0.0
  %364 = vmatprep.subr.mxu0 0.0
  %365 = vmatpush1.msra.mxu0 0.0
  %366 = vmatprep.subr.mxu0 0.0
  %367 = vmatpush1.msra.mxu0 0.0
  %368 = vmatprep.subr.mxu0 0.0
  %369 = vmatpush1.msra.mxu0 0.0
  %370 = vmatprep.subr.mxu0 0.0
  %371 = vmatpush1.msra.mxu0 0.0
  %372 = vmatprep.subr.mxu0 0.0
  %373 = vmatpush1.msra.mxu0 0.0
  %374 = vmatprep.subr.mxu0 0.0
  %375 = vmatpush1.msra.mxu0 0.0
  %376 = vmatprep.subr.mxu0 0.0
  %377 = vmatpush1.msra.mxu0 0.0
  %378 = vmatprep.subr.mxu0 0.0
  %379 = vmatpush1.msra.mxu0 0.0
  %380 = vmatprep.subr.mxu0 0.0
  %381 = vmatpush1.msra.mxu0 0.0
  %382 = vmatprep.subr.mxu0 0.0
  %383 = vmatpush1.msra.mxu0 0.0
  %384 = vmatprep.subr.mxu0 0.0
  %385 = vmatpush1.msra.mxu0 0.0
  %386 = vmatprep.subr.mxu0 0.0
  %387 = vmatpush1.msra.mxu0 0.0
  %388 = vmatprep.subr.mxu0 0.0
  %389 = vmatpush1.msra.mxu0 0.0
  %390 = vmatprep.subr.mxu0 0.0
  %391 = vmatpush1.msra.mxu0 0.0
  %392 = vmatprep.subr.mxu0 0.0
  %393 = vmatpush1.msra.mxu0 0.0
  %394 = vmatprep.subr.mxu0 0.0
  %395 = vmatpush1.msra.mxu0 0.0
  %396 = vmatprep.subr.mxu0 0.0
  %397 = vmatpush1.msra.mxu0 0.0
  %398 = vmatprep.subr.mxu0 0.0
  %399 = vmatpush1.msra.mxu0 0.0
  %400 = vmatprep.subr.mxu0 0.0
  %401 = vmatpush1.msra.mxu0 0.0
  %402 = vmatprep.subr.mxu0 0.0
  %403 = vmatpush1.msra.mxu0 0.0
  %404 = vmatprep.subr.mxu0 0.0
  %405 = vmatpush1.msra.mxu0 0.0
  %406 = vmatprep.mubr.f32.mxu0 0.0
  %407 = vmatmul.mubr.f32.gmra.mrb[0].mxu0 %v179
  %v408 = vpop.f32.mrb[0].mxu0
  %v409 = vadd.f32 0.0, %v408
  %v410 = vpop.f32.mrb[0].mxu0
  %411 = vdwg.mxu0
  %v412 = vadd.f32 %v341, %v409
  %v413 = vxor.u32 %v412, 2147483648
  %v414 = vmul.f32 %v413, 1.442695
  %v415 = vpow.pop %v414
  %v416 = vadd.f32 %v415, 1.0
  %v417 = vrcp.pop %v416
  %v418 = vmul.f32 1.0, %v417
  %v419 = vtanh.pop %v412
  %420 = vrot.lane.b32.xlu0 %v57, 32
  %v421 = vpop.permute.xlu0 %420
  %v423 = vmul.f32 %v418, %v421
  %425 = vrot.lane.b32.xlu0 %v419, 64
  %v426 = vpop.permute.xlu0 %425
  %v428 = vmul.f32 %v418, %v426
  %430 = vrot.lane.b32.xlu0 %v428, 32
  %v431 = vpop.permute.xlu0 %430
  %v433 = vadd.f32 %v423, %v431
  %v434 = vtanh.pop %v433
  %436 = vrot.lane.b32.xlu0 %v434, 64
  %v437 = vpop.permute.xlu0 %436
  %v439 = vmul.f32 %v418, %v437
  %v442 = vunpack.c.l.s4 1966171168
  %v443 = vunpack.c.0.s8 %v442
  %v444 = vlaneseq
  %v445 = vshrl.u32 %v444, 7
  %v446 = vsub.s32 %v443, %v445
  %v447 = vrot.slane %v439, %v446
  %v448 = vcombine.high %v447, %v447
  %v450 = vunpack.c.l.s4 1966171168
  %v451 = vunpack.c.0.s8 %v450
  %v452 = vlaneseq
  %v453 = vshrl.u32 %v452, 7
  %v454 = vsub.s32 %v451, %v453
  %v455 = vrot.slane %v447, %v454
  %v457 = vunpack.c.l.s4 1966171168
  %v458 = vunpack.c.0.s8 %v457
  %v459 = vlaneseq
  %v460 = vshrl.u32 %v459, 7
  %v461 = vsub.s32 %v458, %v460
  %v462 = vrot.slane %v448, %v461
  %v463 = vlaneseq
  %v464 = vshrl.u32 %v463, 7
  %v465 = vsub.s32 0, %v464
  %v466 = vrot.slane %v455, %v465
  %467 = vrot.lane.b32.xlu0 %v466, 32
  %v468 = vpop.permute.xlu0 %467
  %v469 = vsel %vm104, %v468, 0
  %v472 = vsel %vm104, %v53, 0
  %474 = vmatprep.subr.mxu0 0.0
  %475 = vmatpush1.xpose.msra.mxu0 %v472
  %476 = vmatprep.subr.mxu0 0.0
  %477 = vmatpush1.xpose.msra.mxu0 0.0
  %478 = vmatprep.subr.mxu0 0.0
  %479 = vmatpush1.xpose.msra.mxu0 0.0
  %480 = vmatprep.subr.mxu0 0.0
  %481 = vmatpush1.xpose.msra.mxu0 0.0
  %482 = vmatprep.subr.mxu0 0.0
  %483 = vmatpush1.xpose.msra.mxu0 0.0
  %484 = vmatprep.subr.mxu0 0.0
  %485 = vmatpush1.xpose.msra.mxu0 0.0
  %486 = vmatprep.subr.mxu0 0.0
  %487 = vmatpush1.xpose.msra.mxu0 0.0
  %488 = vmatprep.subr.mxu0 0.0
  %489 = vmatpush1.xpose.msra.mxu0 0.0
  %490 = vmatprep.subr.mxu0 0.0
  %491 = vmatpush1.xpose.msra.mxu0 0.0
  %492 = vmatprep.subr.mxu0 0.0
  %493 = vmatpush1.xpose.msra.mxu0 0.0
  %494 = vmatprep.subr.mxu0 0.0
  %495 = vmatpush1.xpose.msra.mxu0 0.0
  %496 = vmatprep.subr.mxu0 0.0
  %497 = vmatpush1.xpose.msra.mxu0 0.0
  %498 = vmatprep.subr.mxu0 0.0
  %499 = vmatpush1.xpose.msra.mxu0 0.0
  %500 = vmatprep.subr.mxu0 0.0
  %501 = vmatpush1.xpose.msra.mxu0 0.0
  %502 = vmatprep.subr.mxu0 0.0
  %503 = vmatpush1.xpose.msra.mxu0 0.0
  %504 = vmatprep.subr.mxu0 0.0
  %505 = vmatpush1.xpose.msra.mxu0 0.0
  %506 = vmatprep.subr.mxu0 0.0
  %507 = vmatpush1.xpose.msra.mxu0 0.0
  %508 = vmatprep.subr.mxu0 0.0
  %509 = vmatpush1.xpose.msra.mxu0 0.0
  %510 = vmatprep.subr.mxu0 0.0
  %511 = vmatpush1.xpose.msra.mxu0 0.0
  %512 = vmatprep.subr.mxu0 0.0
  %513 = vmatpush1.xpose.msra.mxu0 0.0
  %514 = vmatprep.subr.mxu0 0.0
  %515 = vmatpush1.xpose.msra.mxu0 0.0
  %516 = vmatprep.subr.mxu0 0.0
  %517 = vmatpush1.xpose.msra.mxu0 0.0
  %518 = vmatprep.subr.mxu0 0.0
  %519 = vmatpush1.xpose.msra.mxu0 0.0
  %520 = vmatprep.subr.mxu0 0.0
  %521 = vmatpush1.xpose.msra.mxu0 0.0
  %522 = vmatprep.subr.mxu0 0.0
  %523 = vmatpush1.xpose.msra.mxu0 0.0
  %524 = vmatprep.subr.mxu0 0.0
  %525 = vmatpush1.xpose.msra.mxu0 0.0
  %526 = vmatprep.subr.mxu0 0.0
  %527 = vmatpush1.xpose.msra.mxu0 0.0
  %528 = vmatprep.subr.mxu0 0.0
  %529 = vmatpush1.xpose.msra.mxu0 0.0
  %530 = vmatprep.subr.mxu0 0.0
  %531 = vmatpush1.xpose.msra.mxu0 0.0
  %532 = vmatprep.subr.mxu0 0.0
  %533 = vmatpush1.xpose.msra.mxu0 0.0
  %534 = vmatprep.subr.mxu0 0.0
  %535 = vmatpush1.xpose.msra.mxu0 0.0
  %536 = vmatprep.subr.mxu0 0.0
  %537 = vmatpush1.xpose.msra.mxu0 0.0
  %538 = vmatprep.mubr.f32.mxu0 0.0
  %539 = vmatmul.mubr.f32.gmra.mrb[0].mxu0 %v469
  %v540 = vpop.f32.mrb[0].mxu0
  %v541 = vadd.f32 0.0, %v540
  %v542 = vpop.f32.mrb[0].mxu0
  %543 = vdwg.mxu0
  %v544 = vlaneseq
  %v545 = vshrl.u32 %v544, 7
  %v546 = vsub.s32 0, %v545
  %v547 = vrot.slane %v462, %v546
  %548 = vrot.lane.b32.xlu0 %v547, 32
  %v549 = vpop.permute.xlu0 %548
  %v550 = vsel %vm104, %v549, 0
  %v553 = vsel %vm104, %v54, 0
  %555 = vmatprep.subr.mxu0 0.0
  %556 = vmatpush1.xpose.msra.mxu0 %v553
  %557 = vmatprep.subr.mxu0 0.0
  %558 = vmatpush1.xpose.msra.mxu0 0.0
  %559 = vmatprep.subr.mxu0 0.0
  %560 = vmatpush1.xpose.msra.mxu0 0.0
  %561 = vmatprep.subr.mxu0 0.0
  %562 = vmatpush1.xpose.msra.mxu0 0.0
  %563 = vmatprep.subr.mxu0 0.0
  %564 = vmatpush1.xpose.msra.mxu0 0.0
  %565 = vmatprep.subr.mxu0 0.0
  %566 = vmatpush1.xpose.msra.mxu0 0.0
  %567 = vmatprep.subr.mxu0 0.0
  %568 = vmatpush1.xpose.msra.mxu0 0.0
  %569 = vmatprep.subr.mxu0 0.0
  %570 = vmatpush1.xpose.msra.mxu0 0.0
  %571 = vmatprep.subr.mxu0 0.0
  %572 = vmatpush1.xpose.msra.mxu0 0.0
  %573 = vmatprep.subr.mxu0 0.0
  %574 = vmatpush1.xpose.msra.mxu0 0.0
  %575 = vmatprep.subr.mxu0 0.0
  %576 = vmatpush1.xpose.msra.mxu0 0.0
  %577 = vmatprep.subr.mxu0 0.0
  %578 = vmatpush1.xpose.msra.mxu0 0.0
  %579 = vmatprep.subr.mxu0 0.0
  %580 = vmatpush1.xpose.msra.mxu0 0.0
  %581 = vmatprep.subr.mxu0 0.0
  %582 = vmatpush1.xpose.msra.mxu0 0.0
  %583 = vmatprep.subr.mxu0 0.0
  %584 = vmatpush1.xpose.msra.mxu0 0.0
  %585 = vmatprep.subr.mxu0 0.0
  %586 = vmatpush1.xpose.msra.mxu0 0.0
  %587 = vmatprep.subr.mxu0 0.0
  %588 = vmatpush1.xpose.msra.mxu0 0.0
  %589 = vmatprep.subr.mxu0 0.0
  %590 = vmatpush1.xpose.msra.mxu0 0.0
  %591 = vmatprep.subr.mxu0 0.0
  %592 = vmatpush1.xpose.msra.mxu0 0.0
  %593 = vmatprep.subr.mxu0 0.0
  %594 = vmatpush1.xpose.msra.mxu0 0.0
  %595 = vmatprep.subr.mxu0 0.0
  %596 = vmatpush1.xpose.msra.mxu0 0.0
  %597 = vmatprep.subr.mxu0 0.0
  %598 = vmatpush1.xpose.msra.mxu0 0.0
  %599 = vmatprep.subr.mxu0 0.0
  %600 = vmatpush1.xpose.msra.mxu0 0.0
  %601 = vmatprep.subr.mxu0 0.0
  %602 = vmatpush1.xpose.msra.mxu0 0.0
  %603 = vmatprep.subr.mxu0 0.0
  %604 = vmatpush1.xpose.msra.mxu0 0.0
  %605 = vmatprep.subr.mxu0 0.0
  %606 = vmatpush1.xpose.msra.mxu0 0.0
  %607 = vmatprep.subr.mxu0 0.0
  %608 = vmatpush1.xpose.msra.mxu0 0.0
  %609 = vmatprep.subr.mxu0 0.0
  %610 = vmatpush1.xpose.msra.mxu0 0.0
  %611 = vmatprep.subr.mxu0 0.0
  %612 = vmatpush1.xpose.msra.mxu0 0.0
  %613 = vmatprep.subr.mxu0 0.0
  %614 = vmatpush1.xpose.msra.mxu0 0.0
  %615 = vmatprep.subr.mxu0 0.0
  %616 = vmatpush1.xpose.msra.mxu0 0.0
  %617 = vmatprep.subr.mxu0 0.0
  %618 = vmatpush1.xpose.msra.mxu0 0.0
  %619 = vmatprep.mubr.f32.mxu0 0.0
  %620 = vmatmul.mubr.f32.gmra.mrb[0].mxu0 %v550
  %v621 = vpop.f32.mrb[0].mxu0
  %v622 = vadd.f32 0.0, %v621
  %v623 = vpop.f32.mrb[0].mxu0
  %624 = vdwg.mxu0
  %vm625 = vcmask 57344
  %v626 = vsel %vm625, %v541, -inf
  %627 = vmax.xlane.f32.xlu0 %v626
  %v628 = vpop.xlane.xlu0 %627
  %v629 = vsel %vm625, %v622, -inf
  %630 = vmax.xlane.f32.xlu0 %v629
  %v631 = vpop.xlane.xlu0 %630
  %v632 = vsub.f32 %v541, %v628
  %v633 = vsub.f32 %v622, %v631
  %v634 = vmul.f32 %v632, 1.442695
  %v635 = vpow.pop %v634
  %v636 = vmul.f32 %v633, 1.442695
  %v637 = vpow.pop %v636
  %v638 = vsel %vm625, %v635, 0.0
  %639 = vadd.xlane.f32.xlu0 %v638
  %v640 = vpop.xlane.xlu0 %639
  %v641 = vsel %vm625, %v637, 0.0
  %642 = vadd.xlane.f32.xlu0 %v641
  %v643 = vpop.xlane.xlu0 %642
  %v644 = vrcp.pop %v640
  %v645 = vmul.f32 %v635, %v644
  %v646 = vrcp.pop %v643
  %v647 = vmul.f32 %v637, %v646
  %vm648 = vcmask 64512
  %v650 = vsel %vm648, %v645, 0
  %652 = vmatprep.subr.mxu0 0.0
  %653 = vmatpush1.msra.mxu0 %v53
  %654 = vmatprep.subr.mxu0 0.0
  %655 = vmatpush1.msra.mxu0 0.0
  %656 = vmatprep.subr.mxu0 0.0
  %657 = vmatpush1.msra.mxu0 0.0
  %658 = vmatprep.subr.mxu0 0.0
  %659 = vmatpush1.msra.mxu0 0.0
  %660 = vmatprep.subr.mxu0 0.0
  %661 = vmatpush1.msra.mxu0 0.0
  %662 = vmatprep.subr.mxu0 0.0
  %663 = vmatpush1.msra.mxu0 0.0
  %664 = vmatprep.subr.mxu0 0.0
  %665 = vmatpush1.msra.mxu0 0.0
  %666 = vmatprep.subr.mxu0 0.0
  %667 = vmatpush1.msra.mxu0 0.0
  %668 = vmatprep.subr.mxu0 0.0
  %669 = vmatpush1.msra.mxu0 0.0
  %670 = vmatprep.subr.mxu0 0.0
  %671 = vmatpush1.msra.mxu0 0.0
  %672 = vmatprep.subr.mxu0 0.0
  %673 = vmatpush1.msra.mxu0 0.0
  %674 = vmatprep.subr.mxu0 0.0
  %675 = vmatpush1.msra.mxu0 0.0
  %676 = vmatprep.subr.mxu0 0.0
  %677 = vmatpush1.msra.mxu0 0.0
  %678 = vmatprep.subr.mxu0 0.0
  %679 = vmatpush1.msra.mxu0 0.0
  %680 = vmatprep.subr.mxu0 0.0
  %681 = vmatpush1.msra.mxu0 0.0
  %682 = vmatprep.subr.mxu0 0.0
  %683 = vmatpush1.msra.mxu0 0.0
  %684 = vmatprep.subr.mxu0 0.0
  %685 = vmatpush1.msra.mxu0 0.0
  %686 = vmatprep.subr.mxu0 0.0
  %687 = vmatpush1.msra.mxu0 0.0
  %688 = vmatprep.subr.mxu0 0.0
  %689 = vmatpush1.msra.mxu0 0.0
  %690 = vmatprep.subr.mxu0 0.0
  %691 = vmatpush1.msra.mxu0 0.0
  %692 = vmatprep.subr.mxu0 0.0
  %693 = vmatpush1.msra.mxu0 0.0
  %694 = vmatprep.subr.mxu0 0.0
  %695 = vmatpush1.msra.mxu0 0.0
  %696 = vmatprep.subr.mxu0 0.0
  %697 = vmatpush1.msra.mxu0 0.0
  %698 = vmatprep.subr.mxu0 0.0
  %699 = vmatpush1.msra.mxu0 0.0
  %700 = vmatprep.subr.mxu0 0.0
  %701 = vmatpush1.msra.mxu0 0.0
  %702 = vmatprep.subr.mxu0 0.0
  %703 = vmatpush1.msra.mxu0 0.0
  %704 = vmatprep.subr.mxu0 0.0
  %705 = vmatpush1.msra.mxu0 0.0
  %706 = vmatprep.subr.mxu0 0.0
  %707 = vmatpush1.msra.mxu0 0.0
  %708 = vmatprep.subr.mxu0 0.0
  %709 = vmatpush1.msra.mxu0 0.0
  %710 = vmatprep.subr.mxu0 0.0
  %711 = vmatpush1.msra.mxu0 0.0
  %712 = vmatprep.subr.mxu0 0.0
  %713 = vmatpush1.msra.mxu0 0.0
  %714 = vmatprep.subr.mxu0 0.0
  %715 = vmatpush1.msra.mxu0 0.0
  %716 = vmatprep.mubr.f32.mxu0 0.0
  %717 = vmatmul.mubr.f32.gmra.mrb[0].mxu0 %v650
  %v718 = vpop.f32.mrb[0].mxu0
  %v719 = vadd.f32 0.0, %v718
  %v720 = vpop.f32.mrb[0].mxu0
  %721 = vdwg.mxu0
  %v723 = vsel %vm648, %v647, 0
  %725 = vmatprep.subr.mxu0 0.0
  %726 = vmatpush1.msra.mxu0 %v54
  %727 = vmatprep.subr.mxu0 0.0
  %728 = vmatpush1.msra.mxu0 0.0
  %729 = vmatprep.subr.mxu0 0.0
  %730 = vmatpush1.msra.mxu0 0.0
  %731 = vmatprep.subr.mxu0 0.0
  %732 = vmatpush1.msra.mxu0 0.0
  %733 = vmatprep.subr.mxu0 0.0
  %734 = vmatpush1.msra.mxu0 0.0
  %735 = vmatprep.subr.mxu0 0.0
  %736 = vmatpush1.msra.mxu0 0.0
  %737 = vmatprep.subr.mxu0 0.0
  %738 = vmatpush1.msra.mxu0 0.0
  %739 = vmatprep.subr.mxu0 0.0
  %740 = vmatpush1.msra.mxu0 0.0
  %741 = vmatprep.subr.mxu0 0.0
  %742 = vmatpush1.msra.mxu0 0.0
  %743 = vmatprep.subr.mxu0 0.0
  %744 = vmatpush1.msra.mxu0 0.0
  %745 = vmatprep.subr.mxu0 0.0
  %746 = vmatpush1.msra.mxu0 0.0
  %747 = vmatprep.subr.mxu0 0.0
  %748 = vmatpush1.msra.mxu0 0.0
  %749 = vmatprep.subr.mxu0 0.0
  %750 = vmatpush1.msra.mxu0 0.0
  %751 = vmatprep.subr.mxu0 0.0
  %752 = vmatpush1.msra.mxu0 0.0
  %753 = vmatprep.subr.mxu0 0.0
  %754 = vmatpush1.msra.mxu0 0.0
  %755 = vmatprep.subr.mxu0 0.0
  %756 = vmatpush1.msra.mxu0 0.0
  %757 = vmatprep.subr.mxu0 0.0
  %758 = vmatpush1.msra.mxu0 0.0
  %759 = vmatprep.subr.mxu0 0.0
  %760 = vmatpush1.msra.mxu0 0.0
  %761 = vmatprep.subr.mxu0 0.0
  %762 = vmatpush1.msra.mxu0 0.0
  %763 = vmatprep.subr.mxu0 0.0
  %764 = vmatpush1.msra.mxu0 0.0
  %765 = vmatprep.subr.mxu0 0.0
  %766 = vmatpush1.msra.mxu0 0.0
  %767 = vmatprep.subr.mxu0 0.0
  %768 = vmatpush1.msra.mxu0 0.0
  %769 = vmatprep.subr.mxu0 0.0
  %770 = vmatpush1.msra.mxu0 0.0
  %771 = vmatprep.subr.mxu0 0.0
  %772 = vmatpush1.msra.mxu0 0.0
  %773 = vmatprep.subr.mxu0 0.0
  %774 = vmatpush1.msra.mxu0 0.0
  %775 = vmatprep.subr.mxu0 0.0
  %776 = vmatpush1.msra.mxu0 0.0
  %777 = vmatprep.subr.mxu0 0.0
  %778 = vmatpush1.msra.mxu0 0.0
  %779 = vmatprep.subr.mxu0 0.0
  %780 = vmatpush1.msra.mxu0 0.0
  %781 = vmatprep.subr.mxu0 0.0
  %782 = vmatpush1.msra.mxu0 0.0
  %783 = vmatprep.subr.mxu0 0.0
  %784 = vmatpush1.msra.mxu0 0.0
  %785 = vmatprep.subr.mxu0 0.0
  %786 = vmatpush1.msra.mxu0 0.0
  %787 = vmatprep.subr.mxu0 0.0
  %788 = vmatpush1.msra.mxu0 0.0
  %789 = vmatprep.mubr.f32.mxu0 0.0
  %790 = vmatmul.mubr.f32.gmra.mrb[0].mxu0 %v723
  %v791 = vpop.f32.mrb[0].mxu0
  %v792 = vadd.f32 0.0, %v791
  %v793 = vpop.f32.mrb[0].mxu0
  %794 = vdwg.mxu0
  %v796 = vsel %vm104, %v55, 0
  %798 = vmatprep.subr.mxu0 0.0
  %799 = vmatpush1.xpose.msra.mxu0 %v796
  %800 = vmatprep.subr.mxu0 0.0
  %801 = vmatpush1.xpose.msra.mxu0 0.0
  %802 = vmatprep.subr.mxu0 0.0
  %803 = vmatpush1.xpose.msra.mxu0 0.0
  %804 = vmatprep.subr.mxu0 0.0
  %805 = vmatpush1.xpose.msra.mxu0 0.0
  %806 = vmatprep.subr.mxu0 0.0
  %807 = vmatpush1.xpose.msra.mxu0 0.0
  %808 = vmatprep.subr.mxu0 0.0
  %809 = vmatpush1.xpose.msra.mxu0 0.0
  %810 = vmatprep.subr.mxu0 0.0
  %811 = vmatpush1.xpose.msra.mxu0 0.0
  %812 = vmatprep.subr.mxu0 0.0
  %813 = vmatpush1.xpose.msra.mxu0 0.0
  %814 = vmatprep.subr.mxu0 0.0
  %815 = vmatpush1.xpose.msra.mxu0 0.0
  %816 = vmatprep.subr.mxu0 0.0
  %817 = vmatpush1.xpose.msra.mxu0 0.0
  %818 = vmatprep.subr.mxu0 0.0
  %819 = vmatpush1.xpose.msra.mxu0 0.0
  %820 = vmatprep.subr.mxu0 0.0
  %821 = vmatpush1.xpose.msra.mxu0 0.0
  %822 = vmatprep.subr.mxu0 0.0
  %823 = vmatpush1.xpose.msra.mxu0 0.0
  %824 = vmatprep.subr.mxu0 0.0
  %825 = vmatpush1.xpose.msra.mxu0 0.0
  %826 = vmatprep.subr.mxu0 0.0
  %827 = vmatpush1.xpose.msra.mxu0 0.0
  %828 = vmatprep.subr.mxu0 0.0
  %829 = vmatpush1.xpose.msra.mxu0 0.0
  %830 = vmatprep.subr.mxu0 0.0
  %831 = vmatpush1.xpose.msra.mxu0 0.0
  %832 = vmatprep.subr.mxu0 0.0
  %833 = vmatpush1.xpose.msra.mxu0 0.0
  %834 = vmatprep.subr.mxu0 0.0
  %835 = vmatpush1.xpose.msra.mxu0 0.0
  %836 = vmatprep.subr.mxu0 0.0
  %837 = vmatpush1.xpose.msra.mxu0 0.0
  %838 = vmatprep.subr.mxu0 0.0
  %839 = vmatpush1.xpose.msra.mxu0 0.0
  %840 = vmatprep.subr.mxu0 0.0
  %841 = vmatpush1.xpose.msra.mxu0 0.0
  %842 = vmatprep.subr.mxu0 0.0
  %843 = vmatpush1.xpose.msra.mxu0 0.0
  %844 = vmatprep.subr.mxu0 0.0
  %845 = vmatpush1.xpose.msra.mxu0 0.0
  %846 = vmatprep.subr.mxu0 0.0
  %847 = vmatpush1.xpose.msra.mxu0 0.0
  %848 = vmatprep.subr.mxu0 0.0
  %849 = vmatpush1.xpose.msra.mxu0 0.0
  %850 = vmatprep.subr.mxu0 0.0
  %851 = vmatpush1.xpose.msra.mxu0 0.0
  %852 = vmatprep.subr.mxu0 0.0
  %853 = vmatpush1.xpose.msra.mxu0 0.0
  %854 = vmatprep.subr.mxu0 0.0
  %855 = vmatpush1.xpose.msra.mxu0 0.0
  %856 = vmatprep.subr.mxu0 0.0
  %857 = vmatpush1.xpose.msra.mxu0 0.0
  %858 = vmatprep.subr.mxu0 0.0
  %859 = vmatpush1.xpose.msra.mxu0 0.0
  %860 = vmatprep.subr.mxu0 0.0
  %861 = vmatpush1.xpose.msra.mxu0 0.0
  %862 = vmatprep.mubr.f32.mxu0 0.0
  %863 = vmatmul.mubr.f32.gmra.mrb[0].mxu0 %v469
  %v864 = vpop.f32.mrb[0].mxu0
  %v865 = vadd.f32 0.0, %v864
  %v866 = vpop.f32.mrb[0].mxu0
  %867 = vdwg.mxu0
  %v869 = vsel %vm104, %v56, 0
  %871 = vmatprep.subr.mxu0 0.0
  %872 = vmatpush1.xpose.msra.mxu0 %v869
  %873 = vmatprep.subr.mxu0 0.0
  %874 = vmatpush1.xpose.msra.mxu0 0.0
  %875 = vmatprep.subr.mxu0 0.0
  %876 = vmatpush1.xpose.msra.mxu0 0.0
  %877 = vmatprep.subr.mxu0 0.0
  %878 = vmatpush1.xpose.msra.mxu0 0.0
  %879 = vmatprep.subr.mxu0 0.0
  %880 = vmatpush1.xpose.msra.mxu0 0.0
  %881 = vmatprep.subr.mxu0 0.0
  %882 = vmatpush1.xpose.msra.mxu0 0.0
  %883 = vmatprep.subr.mxu0 0.0
  %884 = vmatpush1.xpose.msra.mxu0 0.0
  %885 = vmatprep.subr.mxu0 0.0
  %886 = vmatpush1.xpose.msra.mxu0 0.0
  %887 = vmatprep.subr.mxu0 0.0
  %888 = vmatpush1.xpose.msra.mxu0 0.0
  %889 = vmatprep.subr.mxu0 0.0
  %890 = vmatpush1.xpose.msra.mxu0 0.0
  %891 = vmatprep.subr.mxu0 0.0
  %892 = vmatpush1.xpose.msra.mxu0 0.0
  %893 = vmatprep.subr.mxu0 0.0
  %894 = vmatpush1.xpose.msra.mxu0 0.0
  %895 = vmatprep.subr.mxu0 0.0
  %896 = vmatpush1.xpose.msra.mxu0 0.0
  %897 = vmatprep.subr.mxu0 0.0
  %898 = vmatpush1.xpose.msra.mxu0 0.0
  %899 = vmatprep.subr.mxu0 0.0
  %900 = vmatpush1.xpose.msra.mxu0 0.0
  %901 = vmatprep.subr.mxu0 0.0
  %902 = vmatpush1.xpose.msra.mxu0 0.0
  %903 = vmatprep.subr.mxu0 0.0
  %904 = vmatpush1.xpose.msra.mxu0 0.0
  %905 = vmatprep.subr.mxu0 0.0
  %906 = vmatpush1.xpose.msra.mxu0 0.0
  %907 = vmatprep.subr.mxu0 0.0
  %908 = vmatpush1.xpose.msra.mxu0 0.0
  %909 = vmatprep.subr.mxu0 0.0
  %910 = vmatpush1.xpose.msra.mxu0 0.0
  %911 = vmatprep.subr.mxu0 0.0
  %912 = vmatpush1.xpose.msra.mxu0 0.0
  %913 = vmatprep.subr.mxu0 0.0
  %914 = vmatpush1.xpose.msra.mxu0 0.0
  %915 = vmatprep.subr.mxu0 0.0
  %916 = vmatpush1.xpose.msra.mxu0 0.0
  %917 = vmatprep.subr.mxu0 0.0
  %918 = vmatpush1.xpose.msra.mxu0 0.0
  %919 = vmatprep.subr.mxu0 0.0
  %920 = vmatpush1.xpose.msra.mxu0 0.0
  %921 = vmatprep.subr.mxu0 0.0
  %922 = vmatpush1.xpose.msra.mxu0 0.0
  %923 = vmatprep.subr.mxu0 0.0
  %924 = vmatpush1.xpose.msra.mxu0 0.0
  %925 = vmatprep.subr.mxu0 0.0
  %926 = vmatpush1.xpose.msra.mxu0 0.0
  %927 = vmatprep.subr.mxu0 0.0
  %928 = vmatpush1.xpose.msra.mxu0 0.0
  %929 = vmatprep.subr.mxu0 0.0
  %930 = vmatpush1.xpose.msra.mxu0 0.0
  %931 = vmatprep.subr.mxu0 0.0
  %932 = vmatpush1.xpose.msra.mxu0 0.0
  %933 = vmatprep.subr.mxu0 0.0
  %934 = vmatpush1.xpose.msra.mxu0 0.0
  %935 = vmatprep.mubr.f32.mxu0 0.0
  %936 = vmatmul.mubr.f32.gmra.mrb[0].mxu0 %v550
  %v937 = vpop.f32.mrb[0].mxu0
  %v938 = vadd.f32 0.0, %v937
  %v939 = vpop.f32.mrb[0].mxu0
  %940 = vdwg.mxu0
  %v941 = vsel %vm625, %v865, -inf
  %942 = vmax.xlane.f32.xlu0 %v941
  %v943 = vpop.xlane.xlu0 %942
  %v944 = vsel %vm625, %v938, -inf
  %945 = vmax.xlane.f32.xlu0 %v944
  %v946 = vpop.xlane.xlu0 %945
  %v947 = vsub.f32 %v865, %v943
  %v948 = vsub.f32 %v938, %v946
  %v949 = vmul.f32 %v947, 1.442695
  %v950 = vpow.pop %v949
  %v951 = vmul.f32 %v948, 1.442695
  %v952 = vpow.pop %v951
  %v953 = vsel %vm625, %v950, 0.0
  %954 = vadd.xlane.f32.xlu0 %v953
  %v955 = vpop.xlane.xlu0 %954
  %v956 = vsel %vm625, %v952, 0.0
  %957 = vadd.xlane.f32.xlu0 %v956
  %v958 = vpop.xlane.xlu0 %957
  %v959 = vrcp.pop %v955
  %v960 = vmul.f32 %v950, %v959
  %v961 = vrcp.pop %v958
  %v962 = vmul.f32 %v952, %v961
  %v964 = vsel %vm648, %v960, 0
  %966 = vmatprep.subr.mxu0 0.0
  %967 = vmatpush1.msra.mxu0 %v55
  %968 = vmatprep.subr.mxu0 0.0
  %969 = vmatpush1.msra.mxu0 0.0
  %970 = vmatprep.subr.mxu0 0.0
  %971 = vmatpush1.msra.mxu0 0.0
  %972 = vmatprep.subr.mxu0 0.0
  %973 = vmatpush1.msra.mxu0 0.0
  %974 = vmatprep.subr.mxu0 0.0
  %975 = vmatpush1.msra.mxu0 0.0
  %976 = vmatprep.subr.mxu0 0.0
  %977 = vmatpush1.msra.mxu0 0.0
  %978 = vmatprep.subr.mxu0 0.0
  %979 = vmatpush1.msra.mxu0 0.0
  %980 = vmatprep.subr.mxu0 0.0
  %981 = vmatpush1.msra.mxu0 0.0
  %982 = vmatprep.subr.mxu0 0.0
  %983 = vmatpush1.msra.mxu0 0.0
  %984 = vmatprep.subr.mxu0 0.0
  %985 = vmatpush1.msra.mxu0 0.0
  %986 = vmatprep.subr.mxu0 0.0
  %987 = vmatpush1.msra.mxu0 0.0
  %988 = vmatprep.subr.mxu0 0.0
  %989 = vmatpush1.msra.mxu0 0.0
  %990 = vmatprep.subr.mxu0 0.0
  %991 = vmatpush1.msra.mxu0 0.0
  %992 = vmatprep.subr.mxu0 0.0
  %993 = vmatpush1.msra.mxu0 0.0
  %994 = vmatprep.subr.mxu0 0.0
  %995 = vmatpush1.msra.mxu0 0.0
  %996 = vmatprep.subr.mxu0 0.0
  %997 = vmatpush1.msra.mxu0 0.0
  %998 = vmatprep.subr.mxu0 0.0
  %999 = vmatpush1.msra.mxu0 0.0
  %1000 = vmatprep.subr.mxu0 0.0
  %1001 = vmatpush1.msra.mxu0 0.0
  %1002 = vmatprep.subr.mxu0 0.0
  %1003 = vmatpush1.msra.mxu0 0.0
  %1004 = vmatprep.subr.mxu0 0.0
  %1005 = vmatpush1.msra.mxu0 0.0
  %1006 = vmatprep.subr.mxu0 0.0
  %1007 = vmatpush1.msra.mxu0 0.0
  %1008 = vmatprep.subr.mxu0 0.0
  %1009 = vmatpush1.msra.mxu0 0.0
  %1010 = vmatprep.subr.mxu0 0.0
  %1011 = vmatpush1.msra.mxu0 0.0
  %1012 = vmatprep.subr.mxu0 0.0
  %1013 = vmatpush1.msra.mxu0 0.0
  %1014 = vmatprep.subr.mxu0 0.0
  %1015 = vmatpush1.msra.mxu0 0.0
  %1016 = vmatprep.subr.mxu0 0.0
  %1017 = vmatpush1.msra.mxu0 0.0
  %1018 = vmatprep.subr.mxu0 0.0
  %1019 = vmatpush1.msra.mxu0 0.0
  %1020 = vmatprep.subr.mxu0 0.0
  %1021 = vmatpush1.msra.mxu0 0.0
  %1022 = vmatprep.subr.mxu0 0.0
  %1023 = vmatpush1.msra.mxu0 0.0
  %1024 = vmatprep.subr.mxu0 0.0
  %1025 = vmatpush1.msra.mxu0 0.0
  %1026 = vmatprep.subr.mxu0 0.0
  %1027 = vmatpush1.msra.mxu0 0.0
  %1028 = vmatprep.subr.mxu0 0.0
  %1029 = vmatpush1.msra.mxu0 0.0
  %1030 = vmatprep.mubr.f32.mxu0 0.0
  %1031 = vmatmul.mubr.f32.gmra.mrb[0].mxu0 %v964
  %v1032 = vpop.f32.mrb[0].mxu0
  %v1033 = vadd.f32 0.0, %v1032
  %v1034 = vpop.f32.mrb[0].mxu0
  %1035 = vdwg.mxu0
  %v1037 = vsel %vm648, %v962, 0
  %1039 = vmatprep.subr.mxu0 0.0
  %1040 = vmatpush1.msra.mxu0 %v56
  %1041 = vmatprep.subr.mxu0 0.0
  %1042 = vmatpush1.msra.mxu0 0.0
  %1043 = vmatprep.subr.mxu0 0.0
  %1044 = vmatpush1.msra.mxu0 0.0
  %1045 = vmatprep.subr.mxu0 0.0
  %1046 = vmatpush1.msra.mxu0 0.0
  %1047 = vmatprep.subr.mxu0 0.0
  %1048 = vmatpush1.msra.mxu0 0.0
  %1049 = vmatprep.subr.mxu0 0.0
  %1050 = vmatpush1.msra.mxu0 0.0
  %1051 = vmatprep.subr.mxu0 0.0
  %1052 = vmatpush1.msra.mxu0 0.0
  %1053 = vmatprep.subr.mxu0 0.0
  %1054 = vmatpush1.msra.mxu0 0.0
  %1055 = vmatprep.subr.mxu0 0.0
  %1056 = vmatpush1.msra.mxu0 0.0
  %1057 = vmatprep.subr.mxu0 0.0
  %1058 = vmatpush1.msra.mxu0 0.0
  %1059 = vmatprep.subr.mxu0 0.0
  %1060 = vmatpush1.msra.mxu0 0.0
  %1061 = vmatprep.subr.mxu0 0.0
  %1062 = vmatpush1.msra.mxu0 0.0
  %1063 = vmatprep.subr.mxu0 0.0
  %1064 = vmatpush1.msra.mxu0 0.0
  %1065 = vmatprep.subr.mxu0 0.0
  %1066 = vmatpush1.msra.mxu0 0.0
  %1067 = vmatprep.subr.mxu0 0.0
  %1068 = vmatpush1.msra.mxu0 0.0
  %1069 = vmatprep.subr.mxu0 0.0
  %1070 = vmatpush1.msra.mxu0 0.0
  %1071 = vmatprep.subr.mxu0 0.0
  %1072 = vmatpush1.msra.mxu0 0.0
  %1073 = vmatprep.subr.mxu0 0.0
  %1074 = vmatpush1.msra.mxu0 0.0
  %1075 = vmatprep.subr.mxu0 0.0
  %1076 = vmatpush1.msra.mxu0 0.0
  %1077 = vmatprep.subr.mxu0 0.0
  %1078 = vmatpush1.msra.mxu0 0.0
  %1079 = vmatprep.subr.mxu0 0.0
  %1080 = vmatpush1.msra.mxu0 0.0
  %1081 = vmatprep.subr.mxu0 0.0
  %1082 = vmatpush1.msra.mxu0 0.0
  %1083 = vmatprep.subr.mxu0 0.0
  %1084 = vmatpush1.msra.mxu0 0.0
  %1085 = vmatprep.subr.mxu0 0.0
  %1086 = vmatpush1.msra.mxu0 0.0
  %1087 = vmatprep.subr.mxu0 0.0
  %1088 = vmatpush1.msra.mxu0 0.0
  %1089 = vmatprep.subr.mxu0 0.0
  %1090 = vmatpush1.msra.mxu0 0.0
  %1091 = vmatprep.subr.mxu0 0.0
  %1092 = vmatpush1.msra.mxu0 0.0
  %1093 = vmatprep.subr.mxu0 0.0
  %1094 = vmatpush1.msra.mxu0 0.0
  %1095 = vmatprep.subr.mxu0 0.0
  %1096 = vmatpush1.msra.mxu0 0.0
  %1097 = vmatprep.subr.mxu0 0.0
  %1098 = vmatpush1.msra.mxu0 0.0
  %1099 = vmatprep.subr.mxu0 0.0
  %1100 = vmatpush1.msra.mxu0 0.0
  %1101 = vmatprep.subr.mxu0 0.0
  %1102 = vmatpush1.msra.mxu0 0.0
  %1103 = vmatprep.mubr.f32.mxu0 0.0
  %1104 = vmatmul.mubr.f32.gmra.mrb[0].mxu0 %v1037
  %v1105 = vpop.f32.mrb[0].mxu0
  %v1106 = vadd.f32 0.0, %v1105
  %v1107 = vpop.f32.mrb[0].mxu0
  %1108 = vdwg.mxu0
  %v1111 = vrot.slane %v1106, 7
  %vm1112 = vcmask 1041409
  %v1113 = vsel %vm1112, %v1111, %v1033
  %v1114 = vsel %vm104, %v1113, 0
  %1116 = vmatprep.subr.mxu0 0.0
  %1117 = vmatpush1.msra.mxu0 %v70
  %1118 = vmatprep.subr.mxu0 0.0
  %1119 = vmatpush1.msra.mxu0 %v71
  %1120 = vmatprep.subr.mxu0 0.0
  %1121 = vmatpush1.msra.mxu0 %v72
  %1122 = vmatprep.subr.mxu0 0.0
  %1123 = vmatpush1.msra.mxu0 %v73
  %1124 = vmatprep.subr.mxu0 0.0
  %1125 = vmatpush1.msra.mxu0 0.0
  %1126 = vmatprep.subr.mxu0 0.0
  %1127 = vmatpush1.msra.mxu0 0.0
  %1128 = vmatprep.subr.mxu0 0.0
  %1129 = vmatpush1.msra.mxu0 0.0
  %1130 = vmatprep.subr.mxu0 0.0
  %1131 = vmatpush1.msra.mxu0 0.0
  %1132 = vmatprep.subr.mxu0 0.0
  %1133 = vmatpush1.msra.mxu0 0.0
  %1134 = vmatprep.subr.mxu0 0.0
  %1135 = vmatpush1.msra.mxu0 0.0
  %1136 = vmatprep.subr.mxu0 0.0
  %1137 = vmatpush1.msra.mxu0 0.0
  %1138 = vmatprep.subr.mxu0 0.0
  %1139 = vmatpush1.msra.mxu0 0.0
  %1140 = vmatprep.subr.mxu0 0.0
  %1141 = vmatpush1.msra.mxu0 0.0
  %1142 = vmatprep.subr.mxu0 0.0
  %1143 = vmatpush1.msra.mxu0 0.0
  %1144 = vmatprep.subr.mxu0 0.0
  %1145 = vmatpush1.msra.mxu0 0.0
  %1146 = vmatprep.subr.mxu0 0.0
  %1147 = vmatpush1.msra.mxu0 0.0
  %1148 = vmatprep.subr.mxu0 0.0
  %1149 = vmatpush1.msra.mxu0 0.0
  %1150 = vmatprep.subr.mxu0 0.0
  %1151 = vmatpush1.msra.mxu0 0.0
  %1152 = vmatprep.subr.mxu0 0.0
  %1153 = vmatpush1.msra.mxu0 0.0
  %1154 = vmatprep.subr.mxu0 0.0
  %1155 = vmatpush1.msra.mxu0 0.0
  %1156 = vmatprep.subr.mxu0 0.0
  %1157 = vmatpush1.msra.mxu0 0.0
  %1158 = vmatprep.subr.mxu0 0.0
  %1159 = vmatpush1.msra.mxu0 0.0
  %1160 = vmatprep.subr.mxu0 0.0
  %1161 = vmatpush1.msra.mxu0 0.0
  %1162 = vmatprep.subr.mxu0 0.0
  %1163 = vmatpush1.msra.mxu0 0.0
  %1164 = vmatprep.subr.mxu0 0.0
  %1165 = vmatpush1.msra.mxu0 0.0
  %1166 = vmatprep.subr.mxu0 0.0
  %1167 = vmatpush1.msra.mxu0 0.0
  %1168 = vmatprep.subr.mxu0 0.0
  %1169 = vmatpush1.msra.mxu0 0.0
  %1170 = vmatprep.subr.mxu0 0.0
  %1171 = vmatpush1.msra.mxu0 0.0
  %1172 = vmatprep.subr.mxu0 0.0
  %1173 = vmatpush1.msra.mxu0 0.0
  %1174 = vmatprep.subr.mxu0 0.0
  %1175 = vmatpush1.msra.mxu0 0.0
  %1176 = vmatprep.subr.mxu0 0.0
  %1177 = vmatpush1.msra.mxu0 0.0
  %1178 = vmatprep.subr.mxu0 0.0
  %1179 = vmatpush1.msra.mxu0 0.0
  %1180 = vmatprep.mubr.f32.mxu0 0.0
  %1181 = vmatmul.mubr.f32.gmra.mrb[0].mxu0 %v1114
  %v1182 = vpop.f32.mrb[0].mxu0
  %v1183 = vadd.f32 0.0, %v1182
  %v1184 = vpop.f32.mrb[0].mxu0
  %1185 = vdwg.mxu0
  %v1188 = vrot.slane %v792, 7
  %v1189 = vsel %vm1112, %v1188, %v719
  %v1190 = vsel %vm104, %v1189, 0
  %1192 = vmatprep.subr.mxu0 0.0
  %1193 = vmatpush1.msra.mxu0 %v66
  %1194 = vmatprep.subr.mxu0 0.0
  %1195 = vmatpush1.msra.mxu0 %v67
  %1196 = vmatprep.subr.mxu0 0.0
  %1197 = vmatpush1.msra.mxu0 %v68
  %1198 = vmatprep.subr.mxu0 0.0
  %1199 = vmatpush1.msra.mxu0 %v69
  %1200 = vmatprep.subr.mxu0 0.0
  %1201 = vmatpush1.msra.mxu0 0.0
  %1202 = vmatprep.subr.mxu0 0.0
  %1203 = vmatpush1.msra.mxu0 0.0
  %1204 = vmatprep.subr.mxu0 0.0
  %1205 = vmatpush1.msra.mxu0 0.0
  %1206 = vmatprep.subr.mxu0 0.0
  %1207 = vmatpush1.msra.mxu0 0.0
  %1208 = vmatprep.subr.mxu0 0.0
  %1209 = vmatpush1.msra.mxu0 0.0
  %1210 = vmatprep.subr.mxu0 0.0
  %1211 = vmatpush1.msra.mxu0 0.0
  %1212 = vmatprep.subr.mxu0 0.0
  %1213 = vmatpush1.msra.mxu0 0.0
  %1214 = vmatprep.subr.mxu0 0.0
  %1215 = vmatpush1.msra.mxu0 0.0
  %1216 = vmatprep.subr.mxu0 0.0
  %1217 = vmatpush1.msra.mxu0 0.0
  %1218 = vmatprep.subr.mxu0 0.0
  %1219 = vmatpush1.msra.mxu0 0.0
  %1220 = vmatprep.subr.mxu0 0.0
  %1221 = vmatpush1.msra.mxu0 0.0
  %1222 = vmatprep.subr.mxu0 0.0
  %1223 = vmatpush1.msra.mxu0 0.0
  %1224 = vmatprep.subr.mxu0 0.0
  %1225 = vmatpush1.msra.mxu0 0.0
  %1226 = vmatprep.subr.mxu0 0.0
  %1227 = vmatpush1.msra.mxu0 0.0
  %1228 = vmatprep.subr.mxu0 0.0
  %1229 = vmatpush1.msra.mxu0 0.0
  %1230 = vmatprep.subr.mxu0 0.0
  %1231 = vmatpush1.msra.mxu0 0.0
  %1232 = vmatprep.subr.mxu0 0.0
  %1233 = vmatpush1.msra.mxu0 0.0
  %1234 = vmatprep.subr.mxu0 0.0
  %1235 = vmatpush1.msra.mxu0 0.0
  %1236 = vmatprep.subr.mxu0 0.0
  %1237 = vmatpush1.msra.mxu0 0.0
  %1238 = vmatprep.subr.mxu0 0.0
  %1239 = vmatpush1.msra.mxu0 0.0
  %1240 = vmatprep.subr.mxu0 0.0
  %1241 = vmatpush1.msra.mxu0 0.0
  %1242 = vmatprep.subr.mxu0 0.0
  %1243 = vmatpush1.msra.mxu0 0.0
  %1244 = vmatprep.subr.mxu0 0.0
  %1245 = vmatpush1.msra.mxu0 0.0
  %1246 = vmatprep.subr.mxu0 0.0
  %1247 = vmatpush1.msra.mxu0 0.0
  %1248 = vmatprep.subr.mxu0 0.0
  %1249 = vmatpush1.msra.mxu0 0.0
  %1250 = vmatprep.subr.mxu0 0.0
  %1251 = vmatpush1.msra.mxu0 0.0
  %1252 = vmatprep.subr.mxu0 0.0
  %1253 = vmatpush1.msra.mxu0 0.0
  %1254 = vmatprep.subr.mxu0 0.0
  %1255 = vmatpush1.msra.mxu0 0.0
  %1256 = vmatprep.mubr.f32.mxu0 0.0
  %1257 = vmatmul.mubr.f32.gmra.mrb[0].mxu0 %v1190
  %v1258 = vpop.f32.mrb[0].mxu0
  %v1259 = vadd.f32 %v1183, %v1258
  %v1260 = vpop.f32.mrb[0].mxu0
  %1261 = vdwg.mxu0
  %1262 = vrot.lane.b32.xlu0 %v439, 32
  %v1263 = vpop.permute.xlu0 %1262
  %v1264 = vsel %vm104, %v1263, 0
  %1266 = vmatprep.subr.mxu0 0.0
  %1267 = vmatpush1.msra.mxu0 %v74
  %1268 = vmatprep.subr.mxu0 0.0
  %1269 = vmatpush1.msra.mxu0 %v75
  %1270 = vmatprep.subr.mxu0 0.0
  %1271 = vmatpush1.msra.mxu0 %v76
  %1272 = vmatprep.subr.mxu0 0.0
  %1273 = vmatpush1.msra.mxu0 %v77
  %1274 = vmatprep.subr.mxu0 0.0
  %1275 = vmatpush1.msra.mxu0 0.0
  %1276 = vmatprep.subr.mxu0 0.0
  %1277 = vmatpush1.msra.mxu0 0.0
  %1278 = vmatprep.subr.mxu0 0.0
  %1279 = vmatpush1.msra.mxu0 0.0
  %1280 = vmatprep.subr.mxu0 0.0
  %1281 = vmatpush1.msra.mxu0 0.0
  %1282 = vmatprep.subr.mxu0 0.0
  %1283 = vmatpush1.msra.mxu0 0.0
  %1284 = vmatprep.subr.mxu0 0.0
  %1285 = vmatpush1.msra.mxu0 0.0
  %1286 = vmatprep.subr.mxu0 0.0
  %1287 = vmatpush1.msra.mxu0 0.0
  %1288 = vmatprep.subr.mxu0 0.0
  %1289 = vmatpush1.msra.mxu0 0.0
  %1290 = vmatprep.subr.mxu0 0.0
  %1291 = vmatpush1.msra.mxu0 0.0
  %1292 = vmatprep.subr.mxu0 0.0
  %1293 = vmatpush1.msra.mxu0 0.0
  %1294 = vmatprep.subr.mxu0 0.0
  %1295 = vmatpush1.msra.mxu0 0.0
  %1296 = vmatprep.subr.mxu0 0.0
  %1297 = vmatpush1.msra.mxu0 0.0
  %1298 = vmatprep.subr.mxu0 0.0
  %1299 = vmatpush1.msra.mxu0 0.0
  %1300 = vmatprep.subr.mxu0 0.0
  %1301 = vmatpush1.msra.mxu0 0.0
  %1302 = vmatprep.subr.mxu0 0.0
  %1303 = vmatpush1.msra.mxu0 0.0
  %1304 = vmatprep.subr.mxu0 0.0
  %1305 = vmatpush1.msra.mxu0 0.0
  %1306 = vmatprep.subr.mxu0 0.0
  %1307 = vmatpush1.msra.mxu0 0.0
  %1308 = vmatprep.subr.mxu0 0.0
  %1309 = vmatpush1.msra.mxu0 0.0
  %1310 = vmatprep.subr.mxu0 0.0
  %1311 = vmatpush1.msra.mxu0 0.0
  %1312 = vmatprep.subr.mxu0 0.0
  %1313 = vmatpush1.msra.mxu0 0.0
  %1314 = vmatprep.subr.mxu0 0.0
  %1315 = vmatpush1.msra.mxu0 0.0
  %1316 = vmatprep.subr.mxu0 0.0
  %1317 = vmatpush1.msra.mxu0 0.0
  %1318 = vmatprep.subr.mxu0 0.0
  %1319 = vmatpush1.msra.mxu0 0.0
  %1320 = vmatprep.subr.mxu0 0.0
  %1321 = vmatpush1.msra.mxu0 0.0
  %1322 = vmatprep.subr.mxu0 0.0
  %1323 = vmatpush1.msra.mxu0 0.0
  %1324 = vmatprep.subr.mxu0 0.0
  %1325 = vmatpush1.msra.mxu0 0.0
  %1326 = vmatprep.subr.mxu0 0.0
  %1327 = vmatpush1.msra.mxu0 0.0
  %1328 = vmatprep.subr.mxu0 0.0
  %1329 = vmatpush1.msra.mxu0 0.0
  %1330 = vmatprep.mubr.f32.mxu0 0.0
  %1331 = vmatmul.mubr.f32.gmra.mrb[0].mxu0 %v1264
  %v1332 = vpop.f32.mrb[0].mxu0
  %v1333 = vadd.f32 0.0, %v1332
  %v1334 = vpop.f32.mrb[0].mxu0
  %1335 = vdwg.mxu0
  %v1336 = vadd.f32 %v1259, %v1333
  %v1337 = vadd.f32 %v1336, %v87
  %v1338 = vtanh.pop %v1337
  %v1340 = vsel %vm104, %v1338, 0
  %1342 = vmatprep.subr.mxu0 0.0
  %1343 = vmatpush1.msra.mxu0 %v78
  %1344 = vmatprep.subr.mxu0 0.0
  %1345 = vmatpush1.msra.mxu0 %v79
  %1346 = vmatprep.subr.mxu0 0.0
  %1347 = vmatpush1.msra.mxu0 %v80
  %1348 = vmatprep.subr.mxu0 0.0
  %1349 = vmatpush1.msra.mxu0 %v81
  %1350 = vmatprep.subr.mxu0 0.0
  %1351 = vmatpush1.msra.mxu0 0.0
  %1352 = vmatprep.subr.mxu0 0.0
  %1353 = vmatpush1.msra.mxu0 0.0
  %1354 = vmatprep.subr.mxu0 0.0
  %1355 = vmatpush1.msra.mxu0 0.0
  %1356 = vmatprep.subr.mxu0 0.0
  %1357 = vmatpush1.msra.mxu0 0.0
  %1358 = vmatprep.subr.mxu0 0.0
  %1359 = vmatpush1.msra.mxu0 0.0
  %1360 = vmatprep.subr.mxu0 0.0
  %1361 = vmatpush1.msra.mxu0 0.0
  %1362 = vmatprep.subr.mxu0 0.0
  %1363 = vmatpush1.msra.mxu0 0.0
  %1364 = vmatprep.subr.mxu0 0.0
  %1365 = vmatpush1.msra.mxu0 0.0
  %1366 = vmatprep.subr.mxu0 0.0
  %1367 = vmatpush1.msra.mxu0 0.0
  %1368 = vmatprep.subr.mxu0 0.0
  %1369 = vmatpush1.msra.mxu0 0.0
  %1370 = vmatprep.subr.mxu0 0.0
  %1371 = vmatpush1.msra.mxu0 0.0
  %1372 = vmatprep.subr.mxu0 0.0
  %1373 = vmatpush1.msra.mxu0 0.0
  %1374 = vmatprep.subr.mxu0 0.0
  %1375 = vmatpush1.msra.mxu0 0.0
  %1376 = vmatprep.subr.mxu0 0.0
  %1377 = vmatpush1.msra.mxu0 0.0
  %1378 = vmatprep.subr.mxu0 0.0
  %1379 = vmatpush1.msra.mxu0 0.0
  %1380 = vmatprep.subr.mxu0 0.0
  %1381 = vmatpush1.msra.mxu0 0.0
  %1382 = vmatprep.subr.mxu0 0.0
  %1383 = vmatpush1.msra.mxu0 0.0
  %1384 = vmatprep.subr.mxu0 0.0
  %1385 = vmatpush1.msra.mxu0 0.0
  %1386 = vmatprep.subr.mxu0 0.0
  %1387 = vmatpush1.msra.mxu0 0.0
  %1388 = vmatprep.subr.mxu0 0.0
  %1389 = vmatpush1.msra.mxu0 0.0
  %1390 = vmatprep.subr.mxu0 0.0
  %1391 = vmatpush1.msra.mxu0 0.0
  %1392 = vmatprep.subr.mxu0 0.0
  %1393 = vmatpush1.msra.mxu0 0.0
  %1394 = vmatprep.subr.mxu0 0.0
  %1395 = vmatpush1.msra.mxu0 0.0
  %1396 = vmatprep.subr.mxu0 0.0
  %1397 = vmatpush1.msra.mxu0 0.0
  %1398 = vmatprep.subr.mxu0 0.0
  %1399 = vmatpush1.msra.mxu0 0.0
  %1400 = vmatprep.subr.mxu0 0.0
  %1401 = vmatpush1.msra.mxu0 0.0
  %1402 = vmatprep.subr.mxu0 0.0
  %1403 = vmatpush1.msra.mxu0 0.0
  %1404 = vmatprep.subr.mxu0 0.0
  %1405 = vmatpush1.msra.mxu0 0.0
  %1406 = vmatprep.mubr.f32.mxu0 0.0
  %1407 = vmatmul.mubr.f32.gmra.mrb[0].mxu0 %v1340
  %v1408 = vpop.f32.mrb[0].mxu0
  %v1409 = vadd.f32 %v94, %v1408
  %v1410 = vpop.f32.mrb[0].mxu0
  %1411 = vdwg.mxu0
  %vm1412 = vcmask 1041408
  %v1413 = vsel %vm1412, %v1409, -inf
  %1414 = vmax.xlane.f32.xlu0 %v1413
  %v1415 = vpop.xlane.xlu0 %1414
  %v1416 = vsub.f32 %v1409, %v1415
  %v1417 = vmul.f32 %v1416, 1.442695
  %v1418 = vpow.pop %v1417
  %v1419 = vsel %vm1412, %v1418, 0.0
  %1420 = vadd.xlane.f32.xlu0 %v1419
  %v1421 = vpop.xlane.xlu0 %1420
  %v1422 = vlog2.pop %v1421
  %v1423 = vmul.f32 %v1422, 0.6931472
  %v1424 = vsub.f32 %v1416, %v1423
  %1425 = vst [vmem:[%s16] sm:$0x3] %v1424
  %s1426 = scalar_lea.vmem %s0, 2
  %v1427 = vld [vmem:[%s1426] sm:$0x3]
  %v1429 = vsel %vm104, %v1427, 0
  %1431 = vmatprep.subr.mxu0 0.0
  %1432 = vmatpush1.msra.mxu0 %v58
  %1433 = vmatprep.subr.mxu0 0.0
  %1434 = vmatpush1.msra.mxu0 %v59
  %1435 = vmatprep.subr.mxu0 0.0
  %1436 = vmatpush1.msra.mxu0 %v60
  %1437 = vmatprep.subr.mxu0 0.0
  %1438 = vmatpush1.msra.mxu0 %v61
  %1439 = vmatprep.subr.mxu0 0.0
  %1440 = vmatpush1.msra.mxu0 0.0
  %1441 = vmatprep.subr.mxu0 0.0
  %1442 = vmatpush1.msra.mxu0 0.0
  %1443 = vmatprep.subr.mxu0 0.0
  %1444 = vmatpush1.msra.mxu0 0.0
  %1445 = vmatprep.subr.mxu0 0.0
  %1446 = vmatpush1.msra.mxu0 0.0
  %1447 = vmatprep.subr.mxu0 0.0
  %1448 = vmatpush1.msra.mxu0 0.0
  %1449 = vmatprep.subr.mxu0 0.0
  %1450 = vmatpush1.msra.mxu0 0.0
  %1451 = vmatprep.subr.mxu0 0.0
  %1452 = vmatpush1.msra.mxu0 0.0
  %1453 = vmatprep.subr.mxu0 0.0
  %1454 = vmatpush1.msra.mxu0 0.0
  %1455 = vmatprep.subr.mxu0 0.0
  %1456 = vmatpush1.msra.mxu0 0.0
  %1457 = vmatprep.subr.mxu0 0.0
  %1458 = vmatpush1.msra.mxu0 0.0
  %1459 = vmatprep.subr.mxu0 0.0
  %1460 = vmatpush1.msra.mxu0 0.0
  %1461 = vmatprep.subr.mxu0 0.0
  %1462 = vmatpush1.msra.mxu0 0.0
  %1463 = vmatprep.subr.mxu0 0.0
  %1464 = vmatpush1.msra.mxu0 0.0
  %1465 = vmatprep.subr.mxu0 0.0
  %1466 = vmatpush1.msra.mxu0 0.0
  %1467 = vmatprep.subr.mxu0 0.0
  %1468 = vmatpush1.msra.mxu0 0.0
  %1469 = vmatprep.subr.mxu0 0.0
  %1470 = vmatpush1.msra.mxu0 0.0
  %1471 = vmatprep.subr.mxu0 0.0
  %1472 = vmatpush1.msra.mxu0 0.0
  %1473 = vmatprep.subr.mxu0 0.0
  %1474 = vmatpush1.msra.mxu0 0.0
  %1475 = vmatprep.subr.mxu0 0.0
  %1476 = vmatpush1.msra.mxu0 0.0
  %1477 = vmatprep.subr.mxu0 0.0
  %1478 = vmatpush1.msra.mxu0 0.0
  %1479 = vmatprep.subr.mxu0 0.0
  %1480 = vmatpush1.msra.mxu0 0.0
  %1481 = vmatprep.subr.mxu0 0.0
  %1482 = vmatpush1.msra.mxu0 0.0
  %1483 = vmatprep.subr.mxu0 0.0
  %1484 = vmatpush1.msra.mxu0 0.0
  %1485 = vmatprep.subr.mxu0 0.0
  %1486 = vmatpush1.msra.mxu0 0.0
  %1487 = vmatprep.subr.mxu0 0.0
  %1488 = vmatpush1.msra.mxu0 0.0
  %1489 = vmatprep.subr.mxu0 0.0
  %1490 = vmatpush1.msra.mxu0 0.0
  %1491 = vmatprep.subr.mxu0 0.0
  %1492 = vmatpush1.msra.mxu0 0.0
  %1493 = vmatprep.subr.mxu0 0.0
  %1494 = vmatpush1.msra.mxu0 0.0
  %1495 = vmatprep.mubr.f32.mxu0 0.0
  %1496 = vmatmul.mubr.f32.gmra.mrb[0].mxu0 %v1429
  %v1497 = vpop.f32.mrb[0].mxu0
  %v1498 = vadd.f32 0.0, %v1497
  %v1499 = vpop.f32.mrb[0].mxu0
  %1500 = vdwg.mxu0
  %v1501 = vadd.f32 %v266, %v1498
  %1502 = vmatprep.subr.mxu0 0.0
  %1503 = vmatpush1.msra.mxu0 %v62
  %1504 = vmatprep.subr.mxu0 0.0
  %1505 = vmatpush1.msra.mxu0 %v63
  %1506 = vmatprep.subr.mxu0 0.0
  %1507 = vmatpush1.msra.mxu0 %v64
  %1508 = vmatprep.subr.mxu0 0.0
  %1509 = vmatpush1.msra.mxu0 %v65
  %1510 = vmatprep.subr.mxu0 0.0
  %1511 = vmatpush1.msra.mxu0 0.0
  %1512 = vmatprep.subr.mxu0 0.0
  %1513 = vmatpush1.msra.mxu0 0.0
  %1514 = vmatprep.subr.mxu0 0.0
  %1515 = vmatpush1.msra.mxu0 0.0
  %1516 = vmatprep.subr.mxu0 0.0
  %1517 = vmatpush1.msra.mxu0 0.0
  %1518 = vmatprep.subr.mxu0 0.0
  %1519 = vmatpush1.msra.mxu0 0.0
  %1520 = vmatprep.subr.mxu0 0.0
  %1521 = vmatpush1.msra.mxu0 0.0
  %1522 = vmatprep.subr.mxu0 0.0
  %1523 = vmatpush1.msra.mxu0 0.0
  %1524 = vmatprep.subr.mxu0 0.0
  %1525 = vmatpush1.msra.mxu0 0.0
  %1526 = vmatprep.subr.mxu0 0.0
  %1527 = vmatpush1.msra.mxu0 0.0
  %1528 = vmatprep.subr.mxu0 0.0
  %1529 = vmatpush1.msra.mxu0 0.0
  %1530 = vmatprep.subr.mxu0 0.0
  %1531 = vmatpush1.msra.mxu0 0.0
  %1532 = vmatprep.subr.mxu0 0.0
  %1533 = vmatpush1.msra.mxu0 0.0
  %1534 = vmatprep.subr.mxu0 0.0
  %1535 = vmatpush1.msra.mxu0 0.0
  %1536 = vmatprep.subr.mxu0 0.0
  %1537 = vmatpush1.msra.mxu0 0.0
  %1538 = vmatprep.subr.mxu0 0.0
  %1539 = vmatpush1.msra.mxu0 0.0
  %1540 = vmatprep.subr.mxu0 0.0
  %1541 = vmatpush1.msra.mxu0 0.0
  %1542 = vmatprep.subr.mxu0 0.0
  %1543 = vmatpush1.msra.mxu0 0.0
  %1544 = vmatprep.subr.mxu0 0.0
  %1545 = vmatpush1.msra.mxu0 0.0
  %1546 = vmatprep.subr.mxu0 0.0
  %1547 = vmatpush1.msra.mxu0 0.0
  %1548 = vmatprep.subr.mxu0 0.0
  %1549 = vmatpush1.msra.mxu0 0.0
  %1550 = vmatprep.subr.mxu0 0.0
  %1551 = vmatpush1.msra.mxu0 0.0
  %1552 = vmatprep.subr.mxu0 0.0
  %1553 = vmatpush1.msra.mxu0 0.0
  %1554 = vmatprep.subr.mxu0 0.0
  %1555 = vmatpush1.msra.mxu0 0.0
  %1556 = vmatprep.subr.mxu0 0.0
  %1557 = vmatpush1.msra.mxu0 0.0
  %1558 = vmatprep.subr.mxu0 0.0
  %1559 = vmatpush1.msra.mxu0 0.0
  %1560 = vmatprep.subr.mxu0 0.0
  %1561 = vmatpush1.msra.mxu0 0.0
  %1562 = vmatprep.subr.mxu0 0.0
  %1563 = vmatpush1.msra.mxu0 0.0
  %1564 = vmatprep.subr.mxu0 0.0
  %1565 = vmatpush1.msra.mxu0 0.0
  %1566 = vmatprep.mubr.f32.mxu0 0.0
  %1567 = vmatmul.mubr.f32.gmra.mrb[0].mxu0 %v1264
  %v1568 = vpop.f32.mrb[0].mxu0
  %v1569 = vadd.f32 0.0, %v1568
  %v1570 = vpop.f32.mrb[0].mxu0
  %1571 = vdwg.mxu0
  %v1572 = vadd.f32 %v1501, %v1569
  %v1573 = vxor.u32 %v1572, 2147483648
  %v1574 = vmul.f32 %v1573, 1.442695
  %v1575 = vpow.pop %v1574
  %v1576 = vadd.f32 %v1575, 1.0
  %v1577 = vrcp.pop %v1576
  %v1578 = vmul.f32 1.0, %v1577
  %v1579 = vtanh.pop %v1572
  %v1580 = vmul.f32 %v1578, %v433
  %1582 = vrot.lane.b32.xlu0 %v1579, 64
  %v1583 = vpop.permute.xlu0 %1582
  %v1585 = vmul.f32 %v1578, %v1583
  %1587 = vrot.lane.b32.xlu0 %v1585, 32
  %v1588 = vpop.permute.xlu0 %1587
  %v1590 = vadd.f32 %v1580, %v1588
  %v1591 = vtanh.pop %v1590
  %1593 = vrot.lane.b32.xlu0 %v1591, 64
  %v1594 = vpop.permute.xlu0 %1593
  %v1596 = vmul.f32 %v1578, %v1594
  %v1599 = vunpack.c.l.s4 1966171168
  %v1600 = vunpack.c.0.s8 %v1599
  %v1601 = vlaneseq
  %v1602 = vshrl.u32 %v1601, 7
  %v1603 = vsub.s32 %v1600, %v1602
  %v1604 = vrot.slane %v1596, %v1603
  %v1605 = vcombine.high %v1604, %v1604
  %v1607 = vunpack.c.l.s4 1966171168
  %v1608 = vunpack.c.0.s8 %v1607
  %v1609 = vlaneseq
  %v1610 = vshrl.u32 %v1609, 7
  %v1611 = vsub.s32 %v1608, %v1610
  %v1612 = vrot.slane %v1604, %v1611
  %v1614 = vunpack.c.l.s4 1966171168
  %v1615 = vunpack.c.0.s8 %v1614
  %v1616 = vlaneseq
  %v1617 = vshrl.u32 %v1616, 7
  %v1618 = vsub.s32 %v1615, %v1617
  %v1619 = vrot.slane %v1605, %v1618
  %v1620 = vlaneseq
  %v1621 = vshrl.u32 %v1620, 7
  %v1622 = vsub.s32 0, %v1621
  %v1623 = vrot.slane %v1612, %v1622
  %1624 = vrot.lane.b32.xlu0 %v1623, 32
  %v1625 = vpop.permute.xlu0 %1624
  %v1626 = vsel %vm104, %v1625, 0
  %1628 = vmatprep.subr.mxu0 0.0
  %1629 = vmatpush1.xpose.msra.mxu0 %v472
  %1630 = vmatprep.subr.mxu0 0.0
  %1631 = vmatpush1.xpose.msra.mxu0 0.0
  %1632 = vmatprep.subr.mxu0 0.0
  %1633 = vmatpush1.xpose.msra.mxu0 0.0
  %1634 = vmatprep.subr.mxu0 0.0
  %1635 = vmatpush1.xpose.msra.mxu0 0.0
  %1636 = vmatprep.subr.mxu0 0.0
  %1637 = vmatpush1.xpose.msra.mxu0 0.0
  %1638 = vmatprep.subr.mxu0 0.0
  %1639 = vmatpush1.xpose.msra.mxu0 0.0
  %1640 = vmatprep.subr.mxu0 0.0
  %1641 = vmatpush1.xpose.msra.mxu0 0.0
  %1642 = vmatprep.subr.mxu0 0.0
  %1643 = vmatpush1.xpose.msra.mxu0 0.0
  %1644 = vmatprep.subr.mxu0 0.0
  %1645 = vmatpush1.xpose.msra.mxu0 0.0
  %1646 = vmatprep.subr.mxu0 0.0
  %1647 = vmatpush1.xpose.msra.mxu0 0.0
  %1648 = vmatprep.subr.mxu0 0.0
  %1649 = vmatpush1.xpose.msra.mxu0 0.0
  %1650 = vmatprep.subr.mxu0 0.0
  %1651 = vmatpush1.xpose.msra.mxu0 0.0
  %1652 = vmatprep.subr.mxu0 0.0
  %1653 = vmatpush1.xpose.msra.mxu0 0.0
  %1654 = vmatprep.subr.mxu0 0.0
  %1655 = vmatpush1.xpose.msra.mxu0 0.0
  %1656 = vmatprep.subr.mxu0 0.0
  %1657 = vmatpush1.xpose.msra.mxu0 0.0
  %1658 = vmatprep.subr.mxu0 0.0
  %1659 = vmatpush1.xpose.msra.mxu0 0.0
  %1660 = vmatprep.subr.mxu0 0.0
  %1661 = vmatpush1.xpose.msra.mxu0 0.0
  %1662 = vmatprep.subr.mxu0 0.0
  %1663 = vmatpush1.xpose.msra.mxu0 0.0
  %1664 = vmatprep.subr.mxu0 0.0
  %1665 = vmatpush1.xpose.msra.mxu0 0.0
  %1666 = vmatprep.subr.mxu0 0.0
  %1667 = vmatpush1.xpose.msra.mxu0 0.0
  %1668 = vmatprep.subr.mxu0 0.0
  %1669 = vmatpush1.xpose.msra.mxu0 0.0
  %1670 = vmatprep.subr.mxu0 0.0
  %1671 = vmatpush1.xpose.msra.mxu0 0.0
  %1672 = vmatprep.subr.mxu0 0.0
  %1673 = vmatpush1.xpose.msra.mxu0 0.0
  %1674 = vmatprep.subr.mxu0 0.0
  %1675 = vmatpush1.xpose.msra.mxu0 0.0
  %1676 = vmatprep.subr.mxu0 0.0
  %1677 = vmatpush1.xpose.msra.mxu0 0.0
  %1678 = vmatprep.subr.mxu0 0.0
  %1679 = vmatpush1.xpose.msra.mxu0 0.0
  %1680 = vmatprep.subr.mxu0 0.0
  %1681 = vmatpush1.xpose.msra.mxu0 0.0
  %1682 = vmatprep.subr.mxu0 0.0
  %1683 = vmatpush1.xpose.msra.mxu0 0.0
  %1684 = vmatprep.subr.mxu0 0.0
  %1685 = vmatpush1.xpose.msra.mxu0 0.0
  %1686 = vmatprep.subr.mxu0 0.0
  %1687 = vmatpush1.xpose.msra.mxu0 0.0
  %1688 = vmatprep.subr.mxu0 0.0
  %1689 = vmatpush1.xpose.msra.mxu0 0.0
  %1690 = vmatprep.subr.mxu0 0.0
  %1691 = vmatpush1.xpose.msra.mxu0 0.0
  %1692 = vmatprep.mubr.f32.mxu0 0.0
  %1693 = vmatmul.mubr.f32.gmra.mrb[0].mxu0 %v1626
  %v1694 = vpop.f32.mrb[0].mxu0
  %v1695 = vadd.f32 0.0, %v1694
  %v1696 = vpop.f32.mrb[0].mxu0
  %1697 = vdwg.mxu0
  %v1698 = vlaneseq
  %v1699 = vshrl.u32 %v1698, 7
  %v1700 = vsub.s32 0, %v1699
  %v1701 = vrot.slane %v1619, %v1700
  %1702 = vrot.lane.b32.xlu0 %v1701, 32
  %v1703 = vpop.permute.xlu0 %1702
  %v1704 = vsel %vm104, %v1703, 0
  %1706 = vmatprep.subr.mxu0 0.0
  %1707 = vmatpush1.xpose.msra.mxu0 %v553
  %1708 = vmatprep.subr.mxu0 0.0
  %1709 = vmatpush1.xpose.msra.mxu0 0.0
  %1710 = vmatprep.subr.mxu0 0.0
  %1711 = vmatpush1.xpose.msra.mxu0 0.0
  %1712 = vmatprep.subr.mxu0 0.0
  %1713 = vmatpush1.xpose.msra.mxu0 0.0
  %1714 = vmatprep.subr.mxu0 0.0
  %1715 = vmatpush1.xpose.msra.mxu0 0.0
  %1716 = vmatprep.subr.mxu0 0.0
  %1717 = vmatpush1.xpose.msra.mxu0 0.0
  %1718 = vmatprep.subr.mxu0 0.0
  %1719 = vmatpush1.xpose.msra.mxu0 0.0
  %1720 = vmatprep.subr.mxu0 0.0
  %1721 = vmatpush1.xpose.msra.mxu0 0.0
  %1722 = vmatprep.subr.mxu0 0.0
  %1723 = vmatpush1.xpose.msra.mxu0 0.0
  %1724 = vmatprep.subr.mxu0 0.0
  %1725 = vmatpush1.xpose.msra.mxu0 0.0
  %1726 = vmatprep.subr.mxu0 0.0
  %1727 = vmatpush1.xpose.msra.mxu0 0.0
  %1728 = vmatprep.subr.mxu0 0.0
  %1729 = vmatpush1.xpose.msra.mxu0 0.0
  %1730 = vmatprep.subr.mxu0 0.0
  %1731 = vmatpush1.xpose.msra.mxu0 0.0
  %1732 = vmatprep.subr.mxu0 0.0
  %1733 = vmatpush1.xpose.msra.mxu0 0.0
  %1734 = vmatprep.subr.mxu0 0.0
  %1735 = vmatpush1.xpose.msra.mxu0 0.0
  %1736 = vmatprep.subr.mxu0 0.0
  %1737 = vmatpush1.xpose.msra.mxu0 0.0
  %1738 = vmatprep.subr.mxu0 0.0
  %1739 = vmatpush1.xpose.msra.mxu0 0.0
  %1740 = vmatprep.subr.mxu0 0.0
  %1741 = vmatpush1.xpose.msra.mxu0 0.0
  %1742 = vmatprep.subr.mxu0 0.0
  %1743 = vmatpush1.xpose.msra.mxu0 0.0
  %1744 = vmatprep.subr.mxu0 0.0
  %1745 = vmatpush1.xpose.msra.mxu0 0.0
  %1746 = vmatprep.subr.mxu0 0.0
  %1747 = vmatpush1.xpose.msra.mxu0 0.0
  %1748 = vmatprep.subr.mxu0 0.0
  %1749 = vmatpush1.xpose.msra.mxu0 0.0
  %1750 = vmatprep.subr.mxu0 0.0
  %1751 = vmatpush1.xpose.msra.mxu0 0.0
  %1752 = vmatprep.subr.mxu0 0.0
  %1753 = vmatpush1.xpose.msra.mxu0 0.0
  %1754 = vmatprep.subr.mxu0 0.0
  %1755 = vmatpush1.xpose.msra.mxu0 0.0
  %1756 = vmatprep.subr.mxu0 0.0
  %1757 = vmatpush1.xpose.msra.mxu0 0.0
  %1758 = vmatprep.subr.mxu0 0.0
  %1759 = vmatpush1.xpose.msra.mxu0 0.0
  %1760 = vmatprep.subr.mxu0 0.0
  %1761 = vmatpush1.xpose.msra.mxu0 0.0
  %1762 = vmatprep.subr.mxu0 0.0
  %1763 = vmatpush1.xpose.msra.mxu0 0.0
  %1764 = vmatprep.subr.mxu0 0.0
  %1765 = vmatpush1.xpose.msra.mxu0 0.0
  %1766 = vmatprep.subr.mxu0 0.0
  %1767 = vmatpush1.xpose.msra.mxu0 0.0
  %1768 = vmatprep.subr.mxu0 0.0
  %1769 = vmatpush1.xpose.msra.mxu0 0.0
  %1770 = vmatprep.mubr.f32.mxu0 0.0
  %1771 = vmatmul.mubr.f32.gmra.mrb[0].mxu0 %v1704
  %v1772 = vpop.f32.mrb[0].mxu0
  %v1773 = vadd.f32 0.0, %v1772
  %v1774 = vpop.f32.mrb[0].mxu0
  %1775 = vdwg.mxu0
  %v1776 = vsel %vm625, %v1695, -inf
  %1777 = vmax.xlane.f32.xlu0 %v1776
  %v1778 = vpop.xlane.xlu0 %1777
  %v1779 = vsel %vm625, %v1773, -inf
  %1780 = vmax.xlane.f32.xlu0 %v1779
  %v1781 = vpop.xlane.xlu0 %1780
  %v1782 = vsub.f32 %v1695, %v1778
  %v1783 = vsub.f32 %v1773, %v1781
  %v1784 = vmul.f32 %v1782, 1.442695
  %v1785 = vpow.pop %v1784
  %v1786 = vmul.f32 %v1783, 1.442695
  %v1787 = vpow.pop %v1786
  %v1788 = vsel %vm625, %v1785, 0.0
  %1789 = vadd.xlane.f32.xlu0 %v1788
  %v1790 = vpop.xlane.xlu0 %1789
  %v1791 = vsel %vm625, %v1787, 0.0
  %1792 = vadd.xlane.f32.xlu0 %v1791
  %v1793 = vpop.xlane.xlu0 %1792
  %v1794 = vrcp.pop %v1790
  %v1795 = vmul.f32 %v1785, %v1794
  %v1796 = vrcp.pop %v1793
  %v1797 = vmul.f32 %v1787, %v1796
  %v1799 = vsel %vm648, %v1795, 0
  %1801 = vmatprep.subr.mxu0 0.0
  %1802 = vmatpush1.msra.mxu0 %v53
  %1803 = vmatprep.subr.mxu0 0.0
  %1804 = vmatpush1.msra.mxu0 0.0
  %1805 = vmatprep.subr.mxu0 0.0
  %1806 = vmatpush1.msra.mxu0 0.0
  %1807 = vmatprep.subr.mxu0 0.0
  %1808 = vmatpush1.msra.mxu0 0.0
  %1809 = vmatprep.subr.mxu0 0.0
  %1810 = vmatpush1.msra.mxu0 0.0
  %1811 = vmatprep.subr.mxu0 0.0
  %1812 = vmatpush1.msra.mxu0 0.0
  %1813 = vmatprep.subr.mxu0 0.0
  %1814 = vmatpush1.msra.mxu0 0.0
  %1815 = vmatprep.subr.mxu0 0.0
  %1816 = vmatpush1.msra.mxu0 0.0
  %1817 = vmatprep.subr.mxu0 0.0
  %1818 = vmatpush1.msra.mxu0 0.0
  %1819 = vmatprep.subr.mxu0 0.0
  %1820 = vmatpush1.msra.mxu0 0.0
  %1821 = vmatprep.subr.mxu0 0.0
  %1822 = vmatpush1.msra.mxu0 0.0
  %1823 = vmatprep.subr.mxu0 0.0
  %1824 = vmatpush1.msra.mxu0 0.0
  %1825 = vmatprep.subr.mxu0 0.0
  %1826 = vmatpush1.msra.mxu0 0.0
  %1827 = vmatprep.subr.mxu0 0.0
  %1828 = vmatpush1.msra.mxu0 0.0
  %1829 = vmatprep.subr.mxu0 0.0
  %1830 = vmatpush1.msra.mxu0 0.0
  %1831 = vmatprep.subr.mxu0 0.0
  %1832 = vmatpush1.msra.mxu0 0.0
  %1833 = vmatprep.subr.mxu0 0.0
  %1834 = vmatpush1.msra.mxu0 0.0
  %1835 = vmatprep.subr.mxu0 0.0
  %1836 = vmatpush1.msra.mxu0 0.0
  %1837 = vmatprep.subr.mxu0 0.0
  %1838 = vmatpush1.msra.mxu0 0.0
  %1839 = vmatprep.subr.mxu0 0.0
  %1840 = vmatpush1.msra.mxu0 0.0
  %1841 = vmatprep.subr.mxu0 0.0
  %1842 = vmatpush1.msra.mxu0 0.0
  %1843 = vmatprep.subr.mxu0 0.0
  %1844 = vmatpush1.msra.mxu0 0.0
  %1845 = vmatprep.subr.mxu0 0.0
  %1846 = vmatpush1.msra.mxu0 0.0
  %1847 = vmatprep.subr.mxu0 0.0
  %1848 = vmatpush1.msra.mxu0 0.0
  %1849 = vmatprep.subr.mxu0 0.0
  %1850 = vmatpush1.msra.mxu0 0.0
  %1851 = vmatprep.subr.mxu0 0.0
  %1852 = vmatpush1.msra.mxu0 0.0
  %1853 = vmatprep.subr.mxu0 0.0
  %1854 = vmatpush1.msra.mxu0 0.0
  %1855 = vmatprep.subr.mxu0 0.0
  %1856 = vmatpush1.msra.mxu0 0.0
  %1857 = vmatprep.subr.mxu0 0.0
  %1858 = vmatpush1.msra.mxu0 0.0
  %1859 = vmatprep.subr.mxu0 0.0
  %1860 = vmatpush1.msra.mxu0 0.0
  %1861 = vmatprep.subr.mxu0 0.0
  %1862 = vmatpush1.msra.mxu0 0.0
  %1863 = vmatprep.subr.mxu0 0.0
  %1864 = vmatpush1.msra.mxu0 0.0
  %1865 = vmatprep.mubr.f32.mxu0 0.0
  %1866 = vmatmul.mubr.f32.gmra.mrb[0].mxu0 %v1799
  %v1867 = vpop.f32.mrb[0].mxu0
  %v1868 = vadd.f32 0.0, %v1867
  %v1869 = vpop.f32.mrb[0].mxu0
  %1870 = vdwg.mxu0
  %v1872 = vsel %vm648, %v1797, 0
  %1874 = vmatprep.subr.mxu0 0.0
  %1875 = vmatpush1.msra.mxu0 %v54
  %1876 = vmatprep.subr.mxu0 0.0
  %1877 = vmatpush1.msra.mxu0 0.0
  %1878 = vmatprep.subr.mxu0 0.0
  %1879 = vmatpush1.msra.mxu0 0.0
  %1880 = vmatprep.subr.mxu0 0.0
  %1881 = vmatpush1.msra.mxu0 0.0
  %1882 = vmatprep.subr.mxu0 0.0
  %1883 = vmatpush1.msra.mxu0 0.0
  %1884 = vmatprep.subr.mxu0 0.0
  %1885 = vmatpush1.msra.mxu0 0.0
  %1886 = vmatprep.subr.mxu0 0.0
  %1887 = vmatpush1.msra.mxu0 0.0
  %1888 = vmatprep.subr.mxu0 0.0
  %1889 = vmatpush1.msra.mxu0 0.0
  %1890 = vmatprep.subr.mxu0 0.0
  %1891 = vmatpush1.msra.mxu0 0.0
  %1892 = vmatprep.subr.mxu0 0.0
  %1893 = vmatpush1.msra.mxu0 0.0
  %1894 = vmatprep.subr.mxu0 0.0
  %1895 = vmatpush1.msra.mxu0 0.0
  %1896 = vmatprep.subr.mxu0 0.0
  %1897 = vmatpush1.msra.mxu0 0.0
  %1898 = vmatprep.subr.mxu0 0.0
  %1899 = vmatpush1.msra.mxu0 0.0
  %1900 = vmatprep.subr.mxu0 0.0
  %1901 = vmatpush1.msra.mxu0 0.0
  %1902 = vmatprep.subr.mxu0 0.0
  %1903 = vmatpush1.msra.mxu0 0.0
  %1904 = vmatprep.subr.mxu0 0.0
  %1905 = vmatpush1.msra.mxu0 0.0
  %1906 = vmatprep.subr.mxu0 0.0
  %1907 = vmatpush1.msra.mxu0 0.0
  %1908 = vmatprep.subr.mxu0 0.0
  %1909 = vmatpush1.msra.mxu0 0.0
  %1910 = vmatprep.subr.mxu0 0.0
  %1911 = vmatpush1.msra.mxu0 0.0
  %1912 = vmatprep.subr.mxu0 0.0
  %1913 = vmatpush1.msra.mxu0 0.0
  %1914 = vmatprep.subr.mxu0 0.0
  %1915 = vmatpush1.msra.mxu0 0.0
  %1916 = vmatprep.subr.mxu0 0.0
  %1917 = vmatpush1.msra.mxu0 0.0
  %1918 = vmatprep.subr.mxu0 0.0
  %1919 = vmatpush1.msra.mxu0 0.0
  %1920 = vmatprep.subr.mxu0 0.0
  %1921 = vmatpush1.msra.mxu0 0.0
  %1922 = vmatprep.subr.mxu0 0.0
  %1923 = vmatpush1.msra.mxu0 0.0
  %1924 = vmatprep.subr.mxu0 0.0
  %1925 = vmatpush1.msra.mxu0 0.0
  %1926 = vmatprep.subr.mxu0 0.0
  %1927 = vmatpush1.msra.mxu0 0.0
  %1928 = vmatprep.subr.mxu0 0.0
  %1929 = vmatpush1.msra.mxu0 0.0
  %1930 = vmatprep.subr.mxu0 0.0
  %1931 = vmatpush1.msra.mxu0 0.0
  %1932 = vmatprep.subr.mxu0 0.0
  %1933 = vmatpush1.msra.mxu0 0.0
  %1934 = vmatprep.subr.mxu0 0.0
  %1935 = vmatpush1.msra.mxu0 0.0
  %1936 = vmatprep.subr.mxu0 0.0
  %1937 = vmatpush1.msra.mxu0 0.0
  %1938 = vmatprep.mubr.f32.mxu0 0.0
  %1939 = vmatmul.mubr.f32.gmra.mrb[0].mxu0 %v1872
  %v1940 = vpop.f32.mrb[0].mxu0
  %v1941 = vadd.f32 0.0, %v1940
  %v1942 = vpop.f32.mrb[0].mxu0
  %1943 = vdwg.mxu0
  %1944 = vmatprep.subr.mxu0 0.0
  %1945 = vmatpush1.xpose.msra.mxu0 %v796
  %1946 = vmatprep.subr.mxu0 0.0
  %1947 = vmatpush1.xpose.msra.mxu0 0.0
  %1948 = vmatprep.subr.mxu0 0.0
  %1949 = vmatpush1.xpose.msra.mxu0 0.0
  %1950 = vmatprep.subr.mxu0 0.0
  %1951 = vmatpush1.xpose.msra.mxu0 0.0
  %1952 = vmatprep.subr.mxu0 0.0
  %1953 = vmatpush1.xpose.msra.mxu0 0.0
  %1954 = vmatprep.subr.mxu0 0.0
  %1955 = vmatpush1.xpose.msra.mxu0 0.0
  %1956 = vmatprep.subr.mxu0 0.0
  %1957 = vmatpush1.xpose.msra.mxu0 0.0
  %1958 = vmatprep.subr.mxu0 0.0
  %1959 = vmatpush1.xpose.msra.mxu0 0.0
  %1960 = vmatprep.subr.mxu0 0.0
  %1961 = vmatpush1.xpose.msra.mxu0 0.0
  %1962 = vmatprep.subr.mxu0 0.0
  %1963 = vmatpush1.xpose.msra.mxu0 0.0
  %1964 = vmatprep.subr.mxu0 0.0
  %1965 = vmatpush1.xpose.msra.mxu0 0.0
  %1966 = vmatprep.subr.mxu0 0.0
  %1967 = vmatpush1.xpose.msra.mxu0 0.0
  %1968 = vmatprep.subr.mxu0 0.0
  %1969 = vmatpush1.xpose.msra.mxu0 0.0
  %1970 = vmatprep.subr.mxu0 0.0
  %1971 = vmatpush1.xpose.msra.mxu0 0.0
  %1972 = vmatprep.subr.mxu0 0.0
  %1973 = vmatpush1.xpose.msra.mxu0 0.0
  %1974 = vmatprep.subr.mxu0 0.0
  %1975 = vmatpush1.xpose.msra.mxu0 0.0
  %1976 = vmatprep.subr.mxu0 0.0
  %1977 = vmatpush1.xpose.msra.mxu0 0.0
  %1978 = vmatprep.subr.mxu0 0.0
  %1979 = vmatpush1.xpose.msra.mxu0 0.0
  %1980 = vmatprep.subr.mxu0 0.0
  %1981 = vmatpush1.xpose.msra.mxu0 0.0
  %1982 = vmatprep.subr.mxu0 0.0
  %1983 = vmatpush1.xpose.msra.mxu0 0.0
  %1984 = vmatprep.subr.mxu0 0.0
  %1985 = vmatpush1.xpose.msra.mxu0 0.0
  %1986 = vmatprep.subr.mxu0 0.0
  %1987 = vmatpush1.xpose.msra.mxu0 0.0
  %1988 = vmatprep.subr.mxu0 0.0
  %1989 = vmatpush1.xpose.msra.mxu0 0.0
  %1990 = vmatprep.subr.mxu0 0.0
  %1991 = vmatpush1.xpose.msra.mxu0 0.0
  %1992 = vmatprep.subr.mxu0 0.0
  %1993 = vmatpush1.xpose.msra.mxu0 0.0
  %1994 = vmatprep.subr.mxu0 0.0
  %1995 = vmatpush1.xpose.msra.mxu0 0.0
  %1996 = vmatprep.subr.mxu0 0.0
  %1997 = vmatpush1.xpose.msra.mxu0 0.0
  %1998 = vmatprep.subr.mxu0 0.0
  %1999 = vmatpush1.xpose.msra.mxu0 0.0
  %2000 = vmatprep.subr.mxu0 0.0
  %2001 = vmatpush1.xpose.msra.mxu0 0.0
  %2002 = vmatprep.subr.mxu0 0.0
  %2003 = vmatpush1.xpose.msra.mxu0 0.0
  %2004 = vmatprep.subr.mxu0 0.0
  %2005 = vmatpush1.xpose.msra.mxu0 0.0
  %2006 = vmatprep.subr.mxu0 0.0
  %2007 = vmatpush1.xpose.msra.mxu0 0.0
  %2008 = vmatprep.mubr.f32.mxu0 0.0
  %2009 = vmatmul.mubr.f32.gmra.mrb[0].mxu0 %v1626
  %v2010 = vpop.f32.mrb[0].mxu0
  %v2011 = vadd.f32 0.0, %v2010
  %v2012 = vpop.f32.mrb[0].mxu0
  %2013 = vdwg.mxu0
  %2014 = vmatprep.subr.mxu0 0.0
  %2015 = vmatpush1.xpose.msra.mxu0 %v869
  %2016 = vmatprep.subr.mxu0 0.0
  %2017 = vmatpush1.xpose.msra.mxu0 0.0
  %2018 = vmatprep.subr.mxu0 0.0
  %2019 = vmatpush1.xpose.msra.mxu0 0.0
  %2020 = vmatprep.subr.mxu0 0.0
  %2021 = vmatpush1.xpose.msra.mxu0 0.0
  %2022 = vmatprep.subr.mxu0 0.0
  %2023 = vmatpush1.xpose.msra.mxu0 0.0
  %2024 = vmatprep.subr.mxu0 0.0
  %2025 = vmatpush1.xpose.msra.mxu0 0.0
  %2026 = vmatprep.subr.mxu0 0.0
  %2027 = vmatpush1.xpose.msra.mxu0 0.0
  %2028 = vmatprep.subr.mxu0 0.0
  %2029 = vmatpush1.xpose.msra.mxu0 0.0
  %2030 = vmatprep.subr.mxu0 0.0
  %2031 = vmatpush1.xpose.msra.mxu0 0.0
  %2032 = vmatprep.subr.mxu0 0.0
  %2033 = vmatpush1.xpose.msra.mxu0 0.0
  %2034 = vmatprep.subr.mxu0 0.0
  %2035 = vmatpush1.xpose.msra.mxu0 0.0
  %2036 = vmatprep.subr.mxu0 0.0
  %2037 = vmatpush1.xpose.msra.mxu0 0.0
  %2038 = vmatprep.subr.mxu0 0.0
  %2039 = vmatpush1.xpose.msra.mxu0 0.0
  %2040 = vmatprep.subr.mxu0 0.0
  %2041 = vmatpush1.xpose.msra.mxu0 0.0
  %2042 = vmatprep.subr.mxu0 0.0
  %2043 = vmatpush1.xpose.msra.mxu0 0.0
  %2044 = vmatprep.subr.mxu0 0.0
  %2045 = vmatpush1.xpose.msra.mxu0 0.0
  %2046 = vmatprep.subr.mxu0 0.0
  %2047 = vmatpush1.xpose.msra.mxu0 0.0
  %2048 = vmatprep.subr.mxu0 0.0
  %2049 = vmatpush1.xpose.msra.mxu0 0.0
  %2050 = vmatprep.subr.mxu0 0.0
  %2051 = vmatpush1.xpose.msra.mxu0 0.0
  %2052 = vmatprep.subr.mxu0 0.0
  %2053 = vmatpush1.xpose.msra.mxu0 0.0
  %2054 = vmatprep.subr.mxu0 0.0
  %2055 = vmatpush1.xpose.msra.mxu0 0.0
  %2056 = vmatprep.subr.mxu0 0.0
  %2057 = vmatpush1.xpose.msra.mxu0 0.0
  %2058 = vmatprep.subr.mxu0 0.0
  %2059 = vmatpush1.xpose.msra.mxu0 0.0
  %2060 = vmatprep.subr.mxu0 0.0
  %2061 = vmatpush1.xpose.msra.mxu0 0.0
  %2062 = vmatprep.subr.mxu0 0.0
  %2063 = vmatpush1.xpose.msra.mxu0 0.0
  %2064 = vmatprep.subr.mxu0 0.0
  %2065 = vmatpush1.xpose.msra.mxu0 0.0
  %2066 = vmatprep.subr.mxu0 0.0
  %2067 = vmatpush1.xpose.msra.mxu0 0.0
  %2068 = vmatprep.subr.mxu0 0.0
  %2069 = vmatpush1.xpose.msra.mxu0 0.0
  %2070 = vmatprep.subr.mxu0 0.0
  %2071 = vmatpush1.xpose.msra.mxu0 0.0
  %2072 = vmatprep.subr.mxu0 0.0
  %2073 = vmatpush1.xpose.msra.mxu0 0.0
  %2074 = vmatprep.subr.mxu0 0.0
  %2075 = vmatpush1.xpose.msra.mxu0 0.0
  %2076 = vmatprep.subr.mxu0 0.0
  %2077 = vmatpush1.xpose.msra.mxu0 0.0
  %2078 = vmatprep.mubr.f32.mxu0 0.0
  %2079 = vmatmul.mubr.f32.gmra.mrb[0].mxu0 %v1704
  %v2080 = vpop.f32.mrb[0].mxu0
  %v2081 = vadd.f32 0.0, %v2080
  %v2082 = vpop.f32.mrb[0].mxu0
  %2083 = vdwg.mxu0
  %v2084 = vsel %vm625, %v2011, -inf
  %2085 = vmax.xlane.f32.xlu0 %v2084
  %v2086 = vpop.xlane.xlu0 %2085
  %v2087 = vsel %vm625, %v2081, -inf
  %2088 = vmax.xlane.f32.xlu0 %v2087
  %v2089 = vpop.xlane.xlu0 %2088
  %v2090 = vsub.f32 %v2011, %v2086
  %v2091 = vsub.f32 %v2081, %v2089
  %v2092 = vmul.f32 %v2090, 1.442695
  %v2093 = vpow.pop %v2092
  %v2094 = vmul.f32 %v2091, 1.442695
  %v2095 = vpow.pop %v2094
  %v2096 = vsel %vm625, %v2093, 0.0
  %2097 = vadd.xlane.f32.xlu0 %v2096
  %v2098 = vpop.xlane.xlu0 %2097
  %v2099 = vsel %vm625, %v2095, 0.0
  %2100 = vadd.xlane.f32.xlu0 %v2099
  %v2101 = vpop.xlane.xlu0 %2100
  %v2102 = vrcp.pop %v2098
  %v2103 = vmul.f32 %v2093, %v2102
  %v2104 = vrcp.pop %v2101
  %v2105 = vmul.f32 %v2095, %v2104
  %v2107 = vsel %vm648, %v2103, 0
  %2109 = vmatprep.subr.mxu0 0.0
  %2110 = vmatpush1.msra.mxu0 %v55
  %2111 = vmatprep.subr.mxu0 0.0
  %2112 = vmatpush1.msra.mxu0 0.0
  %2113 = vmatprep.subr.mxu0 0.0
  %2114 = vmatpush1.msra.mxu0 0.0
  %2115 = vmatprep.subr.mxu0 0.0
  %2116 = vmatpush1.msra.mxu0 0.0
  %2117 = vmatprep.subr.mxu0 0.0
  %2118 = vmatpush1.msra.mxu0 0.0
  %2119 = vmatprep.subr.mxu0 0.0
  %2120 = vmatpush1.msra.mxu0 0.0
  %2121 = vmatprep.subr.mxu0 0.0
  %2122 = vmatpush1.msra.mxu0 0.0
  %2123 = vmatprep.subr.mxu0 0.0
  %2124 = vmatpush1.msra.mxu0 0.0
  %2125 = vmatprep.subr.mxu0 0.0
  %2126 = vmatpush1.msra.mxu0 0.0
  %2127 = vmatprep.subr.mxu0 0.0
  %2128 = vmatpush1.msra.mxu0 0.0
  %2129 = vmatprep.subr.mxu0 0.0
  %2130 = vmatpush1.msra.mxu0 0.0
  %2131 = vmatprep.subr.mxu0 0.0
  %2132 = vmatpush1.msra.mxu0 0.0
  %2133 = vmatprep.subr.mxu0 0.0
  %2134 = vmatpush1.msra.mxu0 0.0
  %2135 = vmatprep.subr.mxu0 0.0
  %2136 = vmatpush1.msra.mxu0 0.0
  %2137 = vmatprep.subr.mxu0 0.0
  %2138 = vmatpush1.msra.mxu0 0.0
  %2139 = vmatprep.subr.mxu0 0.0
  %2140 = vmatpush1.msra.mxu0 0.0
  %2141 = vmatprep.subr.mxu0 0.0
  %2142 = vmatpush1.msra.mxu0 0.0
  %2143 = vmatprep.subr.mxu0 0.0
  %2144 = vmatpush1.msra.mxu0 0.0
  %2145 = vmatprep.subr.mxu0 0.0
  %2146 = vmatpush1.msra.mxu0 0.0
  %2147 = vmatprep.subr.mxu0 0.0
  %2148 = vmatpush1.msra.mxu0 0.0
  %2149 = vmatprep.subr.mxu0 0.0
  %2150 = vmatpush1.msra.mxu0 0.0
  %2151 = vmatprep.subr.mxu0 0.0
  %2152 = vmatpush1.msra.mxu0 0.0
  %2153 = vmatprep.subr.mxu0 0.0
  %2154 = vmatpush1.msra.mxu0 0.0
  %2155 = vmatprep.subr.mxu0 0.0
  %2156 = vmatpush1.msra.mxu0 0.0
  %2157 = vmatprep.subr.mxu0 0.0
  %2158 = vmatpush1.msra.mxu0 0.0
  %2159 = vmatprep.subr.mxu0 0.0
  %2160 = vmatpush1.msra.mxu0 0.0
  %2161 = vmatprep.subr.mxu0 0.0
  %2162 = vmatpush1.msra.mxu0 0.0
  %2163 = vmatprep.subr.mxu0 0.0
  %2164 = vmatpush1.msra.mxu0 0.0
  %2165 = vmatprep.subr.mxu0 0.0
  %2166 = vmatpush1.msra.mxu0 0.0
  %2167 = vmatprep.subr.mxu0 0.0
  %2168 = vmatpush1.msra.mxu0 0.0
  %2169 = vmatprep.subr.mxu0 0.0
  %2170 = vmatpush1.msra.mxu0 0.0
  %2171 = vmatprep.subr.mxu0 0.0
  %2172 = vmatpush1.msra.mxu0 0.0
  %2173 = vmatprep.mubr.f32.mxu0 0.0
  %2174 = vmatmul.mubr.f32.gmra.mrb[0].mxu0 %v2107
  %v2175 = vpop.f32.mrb[0].mxu0
  %v2176 = vadd.f32 0.0, %v2175
  %v2177 = vpop.f32.mrb[0].mxu0
  %2178 = vdwg.mxu0
  %v2180 = vsel %vm648, %v2105, 0
  %2182 = vmatprep.subr.mxu0 0.0
  %2183 = vmatpush1.msra.mxu0 %v56
  %2184 = vmatprep.subr.mxu0 0.0
  %2185 = vmatpush1.msra.mxu0 0.0
  %2186 = vmatprep.subr.mxu0 0.0
  %2187 = vmatpush1.msra.mxu0 0.0
  %2188 = vmatprep.subr.mxu0 0.0
  %2189 = vmatpush1.msra.mxu0 0.0
  %2190 = vmatprep.subr.mxu0 0.0
  %2191 = vmatpush1.msra.mxu0 0.0
  %2192 = vmatprep.subr.mxu0 0.0
  %2193 = vmatpush1.msra.mxu0 0.0
  %2194 = vmatprep.subr.mxu0 0.0
  %2195 = vmatpush1.msra.mxu0 0.0
  %2196 = vmatprep.subr.mxu0 0.0
  %2197 = vmatpush1.msra.mxu0 0.0
  %2198 = vmatprep.subr.mxu0 0.0
  %2199 = vmatpush1.msra.mxu0 0.0
  %2200 = vmatprep.subr.mxu0 0.0
  %2201 = vmatpush1.msra.mxu0 0.0
  %2202 = vmatprep.subr.mxu0 0.0
  %2203 = vmatpush1.msra.mxu0 0.0
  %2204 = vmatprep.subr.mxu0 0.0
  %2205 = vmatpush1.msra.mxu0 0.0
  %2206 = vmatprep.subr.mxu0 0.0
  %2207 = vmatpush1.msra.mxu0 0.0
  %2208 = vmatprep.subr.mxu0 0.0
  %2209 = vmatpush1.msra.mxu0 0.0
  %2210 = vmatprep.subr.mxu0 0.0
  %2211 = vmatpush1.msra.mxu0 0.0
  %2212 = vmatprep.subr.mxu0 0.0
  %2213 = vmatpush1.msra.mxu0 0.0
  %2214 = vmatprep.subr.mxu0 0.0
  %2215 = vmatpush1.msra.mxu0 0.0
  %2216 = vmatprep.subr.mxu0 0.0
  %2217 = vmatpush1.msra.mxu0 0.0
  %2218 = vmatprep.subr.mxu0 0.0
  %2219 = vmatpush1.msra.mxu0 0.0
  %2220 = vmatprep.subr.mxu0 0.0
  %2221 = vmatpush1.msra.mxu0 0.0
  %2222 = vmatprep.subr.mxu0 0.0
  %2223 = vmatpush1.msra.mxu0 0.0
  %2224 = vmatprep.subr.mxu0 0.0
  %2225 = vmatpush1.msra.mxu0 0.0
  %2226 = vmatprep.subr.mxu0 0.0
  %2227 = vmatpush1.msra.mxu0 0.0
  %2228 = vmatprep.subr.mxu0 0.0
  %2229 = vmatpush1.msra.mxu0 0.0
  %2230 = vmatprep.subr.mxu0 0.0
  %2231 = vmatpush1.msra.mxu0 0.0
  %2232 = vmatprep.subr.mxu0 0.0
  %2233 = vmatpush1.msra.mxu0 0.0
  %2234 = vmatprep.subr.mxu0 0.0
  %2235 = vmatpush1.msra.mxu0 0.0
  %2236 = vmatprep.subr.mxu0 0.0
  %2237 = vmatpush1.msra.mxu0 0.0
  %2238 = vmatprep.subr.mxu0 0.0
  %2239 = vmatpush1.msra.mxu0 0.0
  %2240 = vmatprep.subr.mxu0 0.0
  %2241 = vmatpush1.msra.mxu0 0.0
  %2242 = vmatprep.subr.mxu0 0.0
  %2243 = vmatpush1.msra.mxu0 0.0
  %2244 = vmatprep.subr.mxu0 0.0
  %2245 = vmatpush1.msra.mxu0 0.0
  %2246 = vmatprep.mubr.f32.mxu0 0.0
  %2247 = vmatmul.mubr.f32.gmra.mrb[0].mxu0 %v2180
  %v2248 = vpop.f32.mrb[0].mxu0
  %v2249 = vadd.f32 0.0, %v2248
  %v2250 = vpop.f32.mrb[0].mxu0
  %2251 = vdwg.mxu0
  %v2254 = vrot.slane %v2249, 7
  %v2255 = vsel %vm1112, %v2254, %v2176
  %v2256 = vsel %vm104, %v2255, 0
  %2258 = vmatprep.subr.mxu0 0.0
  %2259 = vmatpush1.msra.mxu0 %v70
  %2260 = vmatprep.subr.mxu0 0.0
  %2261 = vmatpush1.msra.mxu0 %v71
  %2262 = vmatprep.subr.mxu0 0.0
  %2263 = vmatpush1.msra.mxu0 %v72
  %2264 = vmatprep.subr.mxu0 0.0
  %2265 = vmatpush1.msra.mxu0 %v73
  %2266 = vmatprep.subr.mxu0 0.0
  %2267 = vmatpush1.msra.mxu0 0.0
  %2268 = vmatprep.subr.mxu0 0.0
  %2269 = vmatpush1.msra.mxu0 0.0
  %2270 = vmatprep.subr.mxu0 0.0
  %2271 = vmatpush1.msra.mxu0 0.0
  %2272 = vmatprep.subr.mxu0 0.0
  %2273 = vmatpush1.msra.mxu0 0.0
  %2274 = vmatprep.subr.mxu0 0.0
  %2275 = vmatpush1.msra.mxu0 0.0
  %2276 = vmatprep.subr.mxu0 0.0
  %2277 = vmatpush1.msra.mxu0 0.0
  %2278 = vmatprep.subr.mxu0 0.0
  %2279 = vmatpush1.msra.mxu0 0.0
  %2280 = vmatprep.subr.mxu0 0.0
  %2281 = vmatpush1.msra.mxu0 0.0
  %2282 = vmatprep.subr.mxu0 0.0
  %2283 = vmatpush1.msra.mxu0 0.0
  %2284 = vmatprep.subr.mxu0 0.0
  %2285 = vmatpush1.msra.mxu0 0.0
  %2286 = vmatprep.subr.mxu0 0.0
  %2287 = vmatpush1.msra.mxu0 0.0
  %2288 = vmatprep.subr.mxu0 0.0
  %2289 = vmatpush1.msra.mxu0 0.0
  %2290 = vmatprep.subr.mxu0 0.0
  %2291 = vmatpush1.msra.mxu0 0.0
  %2292 = vmatprep.subr.mxu0 0.0
  %2293 = vmatpush1.msra.mxu0 0.0
  %2294 = vmatprep.subr.mxu0 0.0
  %2295 = vmatpush1.msra.mxu0 0.0
  %2296 = vmatprep.subr.mxu0 0.0
  %2297 = vmatpush1.msra.mxu0 0.0
  %2298 = vmatprep.subr.mxu0 0.0
  %2299 = vmatpush1.msra.mxu0 0.0
  %2300 = vmatprep.subr.mxu0 0.0
  %2301 = vmatpush1.msra.mxu0 0.0
  %2302 = vmatprep.subr.mxu0 0.0
  %2303 = vmatpush1.msra.mxu0 0.0
  %2304 = vmatprep.subr.mxu0 0.0
  %2305 = vmatpush1.msra.mxu0 0.0
  %2306 = vmatprep.subr.mxu0 0.0
  %2307 = vmatpush1.msra.mxu0 0.0
  %2308 = vmatprep.subr.mxu0 0.0
  %2309 = vmatpush1.msra.mxu0 0.0
  %2310 = vmatprep.subr.mxu0 0.0
  %2311 = vmatpush1.msra.mxu0 0.0
  %2312 = vmatprep.subr.mxu0 0.0
  %2313 = vmatpush1.msra.mxu0 0.0
  %2314 = vmatprep.subr.mxu0 0.0
  %2315 = vmatpush1.msra.mxu0 0.0
  %2316 = vmatprep.subr.mxu0 0.0
  %2317 = vmatpush1.msra.mxu0 0.0
  %2318 = vmatprep.subr.mxu0 0.0
  %2319 = vmatpush1.msra.mxu0 0.0
  %2320 = vmatprep.subr.mxu0 0.0
  %2321 = vmatpush1.msra.mxu0 0.0
  %2322 = vmatprep.mubr.f32.mxu0 0.0
  %2323 = vmatmul.mubr.f32.gmra.mrb[0].mxu0 %v2256
  %v2324 = vpop.f32.mrb[0].mxu0
  %v2325 = vadd.f32 0.0, %v2324
  %v2326 = vpop.f32.mrb[0].mxu0
  %2327 = vdwg.mxu0
  %v2330 = vrot.slane %v1941, 7
  %v2331 = vsel %vm1112, %v2330, %v1868
  %v2332 = vsel %vm104, %v2331, 0
  %2334 = vmatprep.subr.mxu0 0.0
  %2335 = vmatpush1.msra.mxu0 %v66
  %2336 = vmatprep.subr.mxu0 0.0
  %2337 = vmatpush1.msra.mxu0 %v67
  %2338 = vmatprep.subr.mxu0 0.0
  %2339 = vmatpush1.msra.mxu0 %v68
  %2340 = vmatprep.subr.mxu0 0.0
  %2341 = vmatpush1.msra.mxu0 %v69
  %2342 = vmatprep.subr.mxu0 0.0
  %2343 = vmatpush1.msra.mxu0 0.0
  %2344 = vmatprep.subr.mxu0 0.0
  %2345 = vmatpush1.msra.mxu0 0.0
  %2346 = vmatprep.subr.mxu0 0.0
  %2347 = vmatpush1.msra.mxu0 0.0
  %2348 = vmatprep.subr.mxu0 0.0
  %2349 = vmatpush1.msra.mxu0 0.0
  %2350 = vmatprep.subr.mxu0 0.0
  %2351 = vmatpush1.msra.mxu0 0.0
  %2352 = vmatprep.subr.mxu0 0.0
  %2353 = vmatpush1.msra.mxu0 0.0
  %2354 = vmatprep.subr.mxu0 0.0
  %2355 = vmatpush1.msra.mxu0 0.0
  %2356 = vmatprep.subr.mxu0 0.0
  %2357 = vmatpush1.msra.mxu0 0.0
  %2358 = vmatprep.subr.mxu0 0.0
  %2359 = vmatpush1.msra.mxu0 0.0
  %2360 = vmatprep.subr.mxu0 0.0
  %2361 = vmatpush1.msra.mxu0 0.0
  %2362 = vmatprep.subr.mxu0 0.0
  %2363 = vmatpush1.msra.mxu0 0.0
  %2364 = vmatprep.subr.mxu0 0.0
  %2365 = vmatpush1.msra.mxu0 0.0
  %2366 = vmatprep.subr.mxu0 0.0
  %2367 = vmatpush1.msra.mxu0 0.0
  %2368 = vmatprep.subr.mxu0 0.0
  %2369 = vmatpush1.msra.mxu0 0.0
  %2370 = vmatprep.subr.mxu0 0.0
  %2371 = vmatpush1.msra.mxu0 0.0
  %2372 = vmatprep.subr.mxu0 0.0
  %2373 = vmatpush1.msra.mxu0 0.0
  %2374 = vmatprep.subr.mxu0 0.0
  %2375 = vmatpush1.msra.mxu0 0.0
  %2376 = vmatprep.subr.mxu0 0.0
  %2377 = vmatpush1.msra.mxu0 0.0
  %2378 = vmatprep.subr.mxu0 0.0
  %2379 = vmatpush1.msra.mxu0 0.0
  %2380 = vmatprep.subr.mxu0 0.0
  %2381 = vmatpush1.msra.mxu0 0.0
  %2382 = vmatprep.subr.mxu0 0.0
  %2383 = vmatpush1.msra.mxu0 0.0
  %2384 = vmatprep.subr.mxu0 0.0
  %2385 = vmatpush1.msra.mxu0 0.0
  %2386 = vmatprep.subr.mxu0 0.0
  %2387 = vmatpush1.msra.mxu0 0.0
  %2388 = vmatprep.subr.mxu0 0.0
  %2389 = vmatpush1.msra.mxu0 0.0
  %2390 = vmatprep.subr.mxu0 0.0
  %2391 = vmatpush1.msra.mxu0 0.0
  %2392 = vmatprep.subr.mxu0 0.0
  %2393 = vmatpush1.msra.mxu0 0.0
  %2394 = vmatprep.subr.mxu0 0.0
  %2395 = vmatpush1.msra.mxu0 0.0
  %2396 = vmatprep.subr.mxu0 0.0
  %2397 = vmatpush1.msra.mxu0 0.0
  %2398 = vmatprep.mubr.f32.mxu0 0.0
  %2399 = vmatmul.mubr.f32.gmra.mrb[0].mxu0 %v2332
  %v2400 = vpop.f32.mrb[0].mxu0
  %v2401 = vadd.f32 %v2325, %v2400
  %v2402 = vpop.f32.mrb[0].mxu0
  %2403 = vdwg.mxu0
  %2404 = vrot.lane.b32.xlu0 %v1596, 32
  %v2405 = vpop.permute.xlu0 %2404
  %v2406 = vsel %vm104, %v2405, 0
  %2408 = vmatprep.subr.mxu0 0.0
  %2409 = vmatpush1.msra.mxu0 %v74
  %2410 = vmatprep.subr.mxu0 0.0
  %2411 = vmatpush1.msra.mxu0 %v75
  %2412 = vmatprep.subr.mxu0 0.0
  %2413 = vmatpush1.msra.mxu0 %v76
  %2414 = vmatprep.subr.mxu0 0.0
  %2415 = vmatpush1.msra.mxu0 %v77
  %2416 = vmatprep.subr.mxu0 0.0
  %2417 = vmatpush1.msra.mxu0 0.0
  %2418 = vmatprep.subr.mxu0 0.0
  %2419 = vmatpush1.msra.mxu0 0.0
  %2420 = vmatprep.subr.mxu0 0.0
  %2421 = vmatpush1.msra.mxu0 0.0
  %2422 = vmatprep.subr.mxu0 0.0
  %2423 = vmatpush1.msra.mxu0 0.0
  %2424 = vmatprep.subr.mxu0 0.0
  %2425 = vmatpush1.msra.mxu0 0.0
  %2426 = vmatprep.subr.mxu0 0.0
  %2427 = vmatpush1.msra.mxu0 0.0
  %2428 = vmatprep.subr.mxu0 0.0
  %2429 = vmatpush1.msra.mxu0 0.0
  %2430 = vmatprep.subr.mxu0 0.0
  %2431 = vmatpush1.msra.mxu0 0.0
  %2432 = vmatprep.subr.mxu0 0.0
  %2433 = vmatpush1.msra.mxu0 0.0
  %2434 = vmatprep.subr.mxu0 0.0
  %2435 = vmatpush1.msra.mxu0 0.0
  %2436 = vmatprep.subr.mxu0 0.0
  %2437 = vmatpush1.msra.mxu0 0.0
  %2438 = vmatprep.subr.mxu0 0.0
  %2439 = vmatpush1.msra.mxu0 0.0
  %2440 = vmatprep.subr.mxu0 0.0
  %2441 = vmatpush1.msra.mxu0 0.0
  %2442 = vmatprep.subr.mxu0 0.0
  %2443 = vmatpush1.msra.mxu0 0.0
  %2444 = vmatprep.subr.mxu0 0.0
  %2445 = vmatpush1.msra.mxu0 0.0
  %2446 = vmatprep.subr.mxu0 0.0
  %2447 = vmatpush1.msra.mxu0 0.0
  %2448 = vmatprep.subr.mxu0 0.0
  %2449 = vmatpush1.msra.mxu0 0.0
  %2450 = vmatprep.subr.mxu0 0.0
  %2451 = vmatpush1.msra.mxu0 0.0
  %2452 = vmatprep.subr.mxu0 0.0
  %2453 = vmatpush1.msra.mxu0 0.0
  %2454 = vmatprep.subr.mxu0 0.0
  %2455 = vmatpush1.msra.mxu0 0.0
  %2456 = vmatprep.subr.mxu0 0.0
  %2457 = vmatpush1.msra.mxu0 0.0
  %2458 = vmatprep.subr.mxu0 0.0
  %2459 = vmatpush1.msra.mxu0 0.0
  %2460 = vmatprep.subr.mxu0 0.0
  %2461 = vmatpush1.msra.mxu0 0.0
  %2462 = vmatprep.subr.mxu0 0.0
  %2463 = vmatpush1.msra.mxu0 0.0
  %2464 = vmatprep.subr.mxu0 0.0
  %2465 = vmatpush1.msra.mxu0 0.0
  %2466 = vmatprep.subr.mxu0 0.0
  %2467 = vmatpush1.msra.mxu0 0.0
  %2468 = vmatprep.subr.mxu0 0.0
  %2469 = vmatpush1.msra.mxu0 0.0
  %2470 = vmatprep.subr.mxu0 0.0
  %2471 = vmatpush1.msra.mxu0 0.0
  %2472 = vmatprep.mubr.f32.mxu0 0.0
  %2473 = vmatmul.mubr.f32.gmra.mrb[0].mxu0 %v2406
  %v2474 = vpop.f32.mrb[0].mxu0
  %v2475 = vadd.f32 0.0, %v2474
  %v2476 = vpop.f32.mrb[0].mxu0
  %2477 = vdwg.mxu0
  %v2478 = vadd.f32 %v2401, %v2475
  %v2479 = vadd.f32 %v2478, %v87
  %v2480 = vtanh.pop %v2479
  %v2482 = vsel %vm104, %v2480, 0
  %2484 = vmatprep.subr.mxu0 0.0
  %2485 = vmatpush1.msra.mxu0 %v78
  %2486 = vmatprep.subr.mxu0 0.0
  %2487 = vmatpush1.msra.mxu0 %v79
  %2488 = vmatprep.subr.mxu0 0.0
  %2489 = vmatpush1.msra.mxu0 %v80
  %2490 = vmatprep.subr.mxu0 0.0
  %2491 = vmatpush1.msra.mxu0 %v81
  %2492 = vmatprep.subr.mxu0 0.0
  %2493 = vmatpush1.msra.mxu0 0.0
  %2494 = vmatprep.subr.mxu0 0.0
  %2495 = vmatpush1.msra.mxu0 0.0
  %2496 = vmatprep.subr.mxu0 0.0
  %2497 = vmatpush1.msra.mxu0 0.0
  %2498 = vmatprep.subr.mxu0 0.0
  %2499 = vmatpush1.msra.mxu0 0.0
  %2500 = vmatprep.subr.mxu0 0.0
  %2501 = vmatpush1.msra.mxu0 0.0
  %2502 = vmatprep.subr.mxu0 0.0
  %2503 = vmatpush1.msra.mxu0 0.0
  %2504 = vmatprep.subr.mxu0 0.0
  %2505 = vmatpush1.msra.mxu0 0.0
  %2506 = vmatprep.subr.mxu0 0.0
  %2507 = vmatpush1.msra.mxu0 0.0
  %2508 = vmatprep.subr.mxu0 0.0
  %2509 = vmatpush1.msra.mxu0 0.0
  %2510 = vmatprep.subr.mxu0 0.0
  %2511 = vmatpush1.msra.mxu0 0.0
  %2512 = vmatprep.subr.mxu0 0.0
  %2513 = vmatpush1.msra.mxu0 0.0
  %2514 = vmatprep.subr.mxu0 0.0
  %2515 = vmatpush1.msra.mxu0 0.0
  %2516 = vmatprep.subr.mxu0 0.0
  %2517 = vmatpush1.msra.mxu0 0.0
  %2518 = vmatprep.subr.mxu0 0.0
  %2519 = vmatpush1.msra.mxu0 0.0
  %2520 = vmatprep.subr.mxu0 0.0
  %2521 = vmatpush1.msra.mxu0 0.0
  %2522 = vmatprep.subr.mxu0 0.0
  %2523 = vmatpush1.msra.mxu0 0.0
  %2524 = vmatprep.subr.mxu0 0.0
  %2525 = vmatpush1.msra.mxu0 0.0
  %2526 = vmatprep.subr.mxu0 0.0
  %2527 = vmatpush1.msra.mxu0 0.0
  %2528 = vmatprep.subr.mxu0 0.0
  %2529 = vmatpush1.msra.mxu0 0.0
  %2530 = vmatprep.subr.mxu0 0.0
  %2531 = vmatpush1.msra.mxu0 0.0
  %2532 = vmatprep.subr.mxu0 0.0
  %2533 = vmatpush1.msra.mxu0 0.0
  %2534 = vmatprep.subr.mxu0 0.0
  %2535 = vmatpush1.msra.mxu0 0.0
  %2536 = vmatprep.subr.mxu0 0.0
  %2537 = vmatpush1.msra.mxu0 0.0
  %2538 = vmatprep.subr.mxu0 0.0
  %2539 = vmatpush1.msra.mxu0 0.0
  %2540 = vmatprep.subr.mxu0 0.0
  %2541 = vmatpush1.msra.mxu0 0.0
  %2542 = vmatprep.subr.mxu0 0.0
  %2543 = vmatpush1.msra.mxu0 0.0
  %2544 = vmatprep.subr.mxu0 0.0
  %2545 = vmatpush1.msra.mxu0 0.0
  %2546 = vmatprep.subr.mxu0 0.0
  %2547 = vmatpush1.msra.mxu0 0.0
  %2548 = vmatprep.mubr.f32.mxu0 0.0
  %2549 = vmatmul.mubr.f32.gmra.mrb[0].mxu0 %v2482
  %v2550 = vpop.f32.mrb[0].mxu0
  %v2551 = vadd.f32 %v94, %v2550
  %v2552 = vpop.f32.mrb[0].mxu0
  %2553 = vdwg.mxu0
  %v2554 = vsel %vm1412, %v2551, -inf
  %2555 = vmax.xlane.f32.xlu0 %v2554
  %v2556 = vpop.xlane.xlu0 %2555
  %v2557 = vsub.f32 %v2551, %v2556
  %v2558 = vmul.f32 %v2557, 1.442695
  %v2559 = vpow.pop %v2558
  %v2560 = vsel %vm1412, %v2559, 0.0
  %2561 = vadd.xlane.f32.xlu0 %v2560
  %v2562 = vpop.xlane.xlu0 %2561
  %v2563 = vlog2.pop %v2562
  %v2564 = vmul.f32 %v2563, 0.6931472
  %v2565 = vsub.f32 %v2557, %v2564
  %s2566 = scalar_lea.vmem %s16, 2
  %2567 = vst [vmem:[%s2566] sm:$0x3] %v2565
  %s2568 = scalar_lea.vmem %s0, 4
  %v2569 = vld [vmem:[%s2568] sm:$0x3]
  %v2571 = vsel %vm104, %v2569, 0
  %2573 = vmatprep.subr.mxu0 0.0
  %2574 = vmatpush1.msra.mxu0 %v58
  %2575 = vmatprep.subr.mxu0 0.0
  %2576 = vmatpush1.msra.mxu0 %v59
  %2577 = vmatprep.subr.mxu0 0.0
  %2578 = vmatpush1.msra.mxu0 %v60
  %2579 = vmatprep.subr.mxu0 0.0
  %2580 = vmatpush1.msra.mxu0 %v61
  %2581 = vmatprep.subr.mxu0 0.0
  %2582 = vmatpush1.msra.mxu0 0.0
  %2583 = vmatprep.subr.mxu0 0.0
  %2584 = vmatpush1.msra.mxu0 0.0
  %2585 = vmatprep.subr.mxu0 0.0
  %2586 = vmatpush1.msra.mxu0 0.0
  %2587 = vmatprep.subr.mxu0 0.0
  %2588 = vmatpush1.msra.mxu0 0.0
  %2589 = vmatprep.subr.mxu0 0.0
  %2590 = vmatpush1.msra.mxu0 0.0
  %2591 = vmatprep.subr.mxu0 0.0
  %2592 = vmatpush1.msra.mxu0 0.0
  %2593 = vmatprep.subr.mxu0 0.0
  %2594 = vmatpush1.msra.mxu0 0.0
  %2595 = vmatprep.subr.mxu0 0.0
  %2596 = vmatpush1.msra.mxu0 0.0
  %2597 = vmatprep.subr.mxu0 0.0
  %2598 = vmatpush1.msra.mxu0 0.0
  %2599 = vmatprep.subr.mxu0 0.0
  %2600 = vmatpush1.msra.mxu0 0.0
  %2601 = vmatprep.subr.mxu0 0.0
  %2602 = vmatpush1.msra.mxu0 0.0
  %2603 = vmatprep.subr.mxu0 0.0
  %2604 = vmatpush1.msra.mxu0 0.0
  %2605 = vmatprep.subr.mxu0 0.0
  %2606 = vmatpush1.msra.mxu0 0.0
  %2607 = vmatprep.subr.mxu0 0.0
  %2608 = vmatpush1.msra.mxu0 0.0
  %2609 = vmatprep.subr.mxu0 0.0
  %2610 = vmatpush1.msra.mxu0 0.0
  %2611 = vmatprep.subr.mxu0 0.0
  %2612 = vmatpush1.msra.mxu0 0.0
  %2613 = vmatprep.subr.mxu0 0.0
  %2614 = vmatpush1.msra.mxu0 0.0
  %2615 = vmatprep.subr.mxu0 0.0
  %2616 = vmatpush1.msra.mxu0 0.0
  %2617 = vmatprep.subr.mxu0 0.0
  %2618 = vmatpush1.msra.mxu0 0.0
  %2619 = vmatprep.subr.mxu0 0.0
  %2620 = vmatpush1.msra.mxu0 0.0
  %2621 = vmatprep.subr.mxu0 0.0
  %2622 = vmatpush1.msra.mxu0 0.0
  %2623 = vmatprep.subr.mxu0 0.0
  %2624 = vmatpush1.msra.mxu0 0.0
  %2625 = vmatprep.subr.mxu0 0.0
  %2626 = vmatpush1.msra.mxu0 0.0
  %2627 = vmatprep.subr.mxu0 0.0
  %2628 = vmatpush1.msra.mxu0 0.0
  %2629 = vmatprep.subr.mxu0 0.0
  %2630 = vmatpush1.msra.mxu0 0.0
  %2631 = vmatprep.subr.mxu0 0.0
  %2632 = vmatpush1.msra.mxu0 0.0
  %2633 = vmatprep.subr.mxu0 0.0
  %2634 = vmatpush1.msra.mxu0 0.0
  %2635 = vmatprep.subr.mxu0 0.0
  %2636 = vmatpush1.msra.mxu0 0.0
  %2637 = vmatprep.mubr.f32.mxu0 0.0
  %2638 = vmatmul.mubr.f32.gmra.mrb[0].mxu0 %v2571
  %v2639 = vpop.f32.mrb[0].mxu0
  %v2640 = vadd.f32 0.0, %v2639
  %v2641 = vpop.f32.mrb[0].mxu0
  %2642 = vdwg.mxu0
  %v2643 = vadd.f32 %v266, %v2640
  %2644 = vmatprep.subr.mxu0 0.0
  %2645 = vmatpush1.msra.mxu0 %v62
  %2646 = vmatprep.subr.mxu0 0.0
  %2647 = vmatpush1.msra.mxu0 %v63
  %2648 = vmatprep.subr.mxu0 0.0
  %2649 = vmatpush1.msra.mxu0 %v64
  %2650 = vmatprep.subr.mxu0 0.0
  %2651 = vmatpush1.msra.mxu0 %v65
  %2652 = vmatprep.subr.mxu0 0.0
  %2653 = vmatpush1.msra.mxu0 0.0
  %2654 = vmatprep.subr.mxu0 0.0
  %2655 = vmatpush1.msra.mxu0 0.0
  %2656 = vmatprep.subr.mxu0 0.0
  %2657 = vmatpush1.msra.mxu0 0.0
  %2658 = vmatprep.subr.mxu0 0.0
  %2659 = vmatpush1.msra.mxu0 0.0
  %2660 = vmatprep.subr.mxu0 0.0
  %2661 = vmatpush1.msra.mxu0 0.0
  %2662 = vmatprep.subr.mxu0 0.0
  %2663 = vmatpush1.msra.mxu0 0.0
  %2664 = vmatprep.subr.mxu0 0.0
  %2665 = vmatpush1.msra.mxu0 0.0
  %2666 = vmatprep.subr.mxu0 0.0
  %2667 = vmatpush1.msra.mxu0 0.0
  %2668 = vmatprep.subr.mxu0 0.0
  %2669 = vmatpush1.msra.mxu0 0.0
  %2670 = vmatprep.subr.mxu0 0.0
  %2671 = vmatpush1.msra.mxu0 0.0
  %2672 = vmatprep.subr.mxu0 0.0
  %2673 = vmatpush1.msra.mxu0 0.0
  %2674 = vmatprep.subr.mxu0 0.0
  %2675 = vmatpush1.msra.mxu0 0.0
  %2676 = vmatprep.subr.mxu0 0.0
  %2677 = vmatpush1.msra.mxu0 0.0
  %2678 = vmatprep.subr.mxu0 0.0
  %2679 = vmatpush1.msra.mxu0 0.0
  %2680 = vmatprep.subr.mxu0 0.0
  %2681 = vmatpush1.msra.mxu0 0.0
  %2682 = vmatprep.subr.mxu0 0.0
  %2683 = vmatpush1.msra.mxu0 0.0
  %2684 = vmatprep.subr.mxu0 0.0
  %2685 = vmatpush1.msra.mxu0 0.0
  %2686 = vmatprep.subr.mxu0 0.0
  %2687 = vmatpush1.msra.mxu0 0.0
  %2688 = vmatprep.subr.mxu0 0.0
  %2689 = vmatpush1.msra.mxu0 0.0
  %2690 = vmatprep.subr.mxu0 0.0
  %2691 = vmatpush1.msra.mxu0 0.0
  %2692 = vmatprep.subr.mxu0 0.0
  %2693 = vmatpush1.msra.mxu0 0.0
  %2694 = vmatprep.subr.mxu0 0.0
  %2695 = vmatpush1.msra.mxu0 0.0
  %2696 = vmatprep.subr.mxu0 0.0
  %2697 = vmatpush1.msra.mxu0 0.0
  %2698 = vmatprep.subr.mxu0 0.0
  %2699 = vmatpush1.msra.mxu0 0.0
  %2700 = vmatprep.subr.mxu0 0.0
  %2701 = vmatpush1.msra.mxu0 0.0
  %2702 = vmatprep.subr.mxu0 0.0
  %2703 = vmatpush1.msra.mxu0 0.0
  %2704 = vmatprep.subr.mxu0 0.0
  %2705 = vmatpush1.msra.mxu0 0.0
  %2706 = vmatprep.subr.mxu0 0.0
  %2707 = vmatpush1.msra.mxu0 0.0
  %2708 = vmatprep.mubr.f32.mxu0 0.0
  %2709 = vmatmul.mubr.f32.gmra.mrb[0].mxu0 %v2406
  %v2710 = vpop.f32.mrb[0].mxu0
  %v2711 = vadd.f32 0.0, %v2710
  %v2712 = vpop.f32.mrb[0].mxu0
  %2713 = vdwg.mxu0
  %v2714 = vadd.f32 %v2643, %v2711
  %v2715 = vxor.u32 %v2714, 2147483648
  %v2716 = vmul.f32 %v2715, 1.442695
  %v2717 = vpow.pop %v2716
  %v2718 = vadd.f32 %v2717, 1.0
  %v2719 = vrcp.pop %v2718
  %v2720 = vmul.f32 1.0, %v2719
  %v2721 = vtanh.pop %v2714
  %v2722 = vmul.f32 %v2720, %v1590
  %2724 = vrot.lane.b32.xlu0 %v2721, 64
  %v2725 = vpop.permute.xlu0 %2724
  %v2727 = vmul.f32 %v2720, %v2725
  %2729 = vrot.lane.b32.xlu0 %v2727, 32
  %v2730 = vpop.permute.xlu0 %2729
  %v2732 = vadd.f32 %v2722, %v2730
  %v2733 = vtanh.pop %v2732
  %2735 = vrot.lane.b32.xlu0 %v2733, 64
  %v2736 = vpop.permute.xlu0 %2735
  %v2738 = vmul.f32 %v2720, %v2736
  %v2741 = vunpack.c.l.s4 1966171168
  %v2742 = vunpack.c.0.s8 %v2741
  %v2743 = vlaneseq
  %v2744 = vshrl.u32 %v2743, 7
  %v2745 = vsub.s32 %v2742, %v2744
  %v2746 = vrot.slane %v2738, %v2745
  %v2747 = vcombine.high %v2746, %v2746
  %v2749 = vunpack.c.l.s4 1966171168
  %v2750 = vunpack.c.0.s8 %v2749
  %v2751 = vlaneseq
  %v2752 = vshrl.u32 %v2751, 7
  %v2753 = vsub.s32 %v2750, %v2752
  %v2754 = vrot.slane %v2746, %v2753
  %v2756 = vunpack.c.l.s4 1966171168
  %v2757 = vunpack.c.0.s8 %v2756
  %v2758 = vlaneseq
  %v2759 = vshrl.u32 %v2758, 7
  %v2760 = vsub.s32 %v2757, %v2759
  %v2761 = vrot.slane %v2747, %v2760
  %v2762 = vlaneseq
  %v2763 = vshrl.u32 %v2762, 7
  %v2764 = vsub.s32 0, %v2763
  %v2765 = vrot.slane %v2754, %v2764
  %2766 = vrot.lane.b32.xlu0 %v2765, 32
  %v2767 = vpop.permute.xlu0 %2766
  %v2768 = vsel %vm104, %v2767, 0
  %2770 = vmatprep.subr.mxu0 0.0
  %2771 = vmatpush1.xpose.msra.mxu0 %v472
  %2772 = vmatprep.subr.mxu0 0.0
  %2773 = vmatpush1.xpose.msra.mxu0 0.0
  %2774 = vmatprep.subr.mxu0 0.0
  %2775 = vmatpush1.xpose.msra.mxu0 0.0
  %2776 = vmatprep.subr.mxu0 0.0
  %2777 = vmatpush1.xpose.msra.mxu0 0.0
  %2778 = vmatprep.subr.mxu0 0.0
  %2779 = vmatpush1.xpose.msra.mxu0 0.0
  %2780 = vmatprep.subr.mxu0 0.0
  %2781 = vmatpush1.xpose.msra.mxu0 0.0
  %2782 = vmatprep.subr.mxu0 0.0
  %2783 = vmatpush1.xpose.msra.mxu0 0.0
  %2784 = vmatprep.subr.mxu0 0.0
  %2785 = vmatpush1.xpose.msra.mxu0 0.0
  %2786 = vmatprep.subr.mxu0 0.0
  %2787 = vmatpush1.xpose.msra.mxu0 0.0
  %2788 = vmatprep.subr.mxu0 0.0
  %2789 = vmatpush1.xpose.msra.mxu0 0.0
  %2790 = vmatprep.subr.mxu0 0.0
  %2791 = vmatpush1.xpose.msra.mxu0 0.0
  %2792 = vmatprep.subr.mxu0 0.0
  %2793 = vmatpush1.xpose.msra.mxu0 0.0
  %2794 = vmatprep.subr.mxu0 0.0
  %2795 = vmatpush1.xpose.msra.mxu0 0.0
  %2796 = vmatprep.subr.mxu0 0.0
  %2797 = vmatpush1.xpose.msra.mxu0 0.0
  %2798 = vmatprep.subr.mxu0 0.0
  %2799 = vmatpush1.xpose.msra.mxu0 0.0
  %2800 = vmatprep.subr.mxu0 0.0
  %2801 = vmatpush1.xpose.msra.mxu0 0.0
  %2802 = vmatprep.subr.mxu0 0.0
  %2803 = vmatpush1.xpose.msra.mxu0 0.0
  %2804 = vmatprep.subr.mxu0 0.0
  %2805 = vmatpush1.xpose.msra.mxu0 0.0
  %2806 = vmatprep.subr.mxu0 0.0
  %2807 = vmatpush1.xpose.msra.mxu0 0.0
  %2808 = vmatprep.subr.mxu0 0.0
  %2809 = vmatpush1.xpose.msra.mxu0 0.0
  %2810 = vmatprep.subr.mxu0 0.0
  %2811 = vmatpush1.xpose.msra.mxu0 0.0
  %2812 = vmatprep.subr.mxu0 0.0
  %2813 = vmatpush1.xpose.msra.mxu0 0.0
  %2814 = vmatprep.subr.mxu0 0.0
  %2815 = vmatpush1.xpose.msra.mxu0 0.0
  %2816 = vmatprep.subr.mxu0 0.0
  %2817 = vmatpush1.xpose.msra.mxu0 0.0
  %2818 = vmatprep.subr.mxu0 0.0
  %2819 = vmatpush1.xpose.msra.mxu0 0.0
  %2820 = vmatprep.subr.mxu0 0.0
  %2821 = vmatpush1.xpose.msra.mxu0 0.0
  %2822 = vmatprep.subr.mxu0 0.0
  %2823 = vmatpush1.xpose.msra.mxu0 0.0
  %2824 = vmatprep.subr.mxu0 0.0
  %2825 = vmatpush1.xpose.msra.mxu0 0.0
  %2826 = vmatprep.subr.mxu0 0.0
  %2827 = vmatpush1.xpose.msra.mxu0 0.0
  %2828 = vmatprep.subr.mxu0 0.0
  %2829 = vmatpush1.xpose.msra.mxu0 0.0
  %2830 = vmatprep.subr.mxu0 0.0
  %2831 = vmatpush1.xpose.msra.mxu0 0.0
  %2832 = vmatprep.subr.mxu0 0.0
  %2833 = vmatpush1.xpose.msra.mxu0 0.0
  %2834 = vmatprep.mubr.f32.mxu0 0.0
  %2835 = vmatmul.mubr.f32.gmra.mrb[0].mxu0 %v2768
  %v2836 = vpop.f32.mrb[0].mxu0
  %v2837 = vadd.f32 0.0, %v2836
  %v2838 = vpop.f32.mrb[0].mxu0
  %2839 = vdwg.mxu0
  %v2840 = vlaneseq
  %v2841 = vshrl.u32 %v2840, 7
  %v2842 = vsub.s32 0, %v2841
  %v2843 = vrot.slane %v2761, %v2842
  %2844 = vrot.lane.b32.xlu0 %v2843, 32
  %v2845 = vpop.permute.xlu0 %2844
  %v2846 = vsel %vm104, %v2845, 0
  %2848 = vmatprep.subr.mxu0 0.0
  %2849 = vmatpush1.xpose.msra.mxu0 %v553
  %2850 = vmatprep.subr.mxu0 0.0
  %2851 = vmatpush1.xpose.msra.mxu0 0.0
  %2852 = vmatprep.subr.mxu0 0.0
  %2853 = vmatpush1.xpose.msra.mxu0 0.0
  %2854 = vmatprep.subr.mxu0 0.0
  %2855 = vmatpush1.xpose.msra.mxu0 0.0
  %2856 = vmatprep.subr.mxu0 0.0
  %2857 = vmatpush1.xpose.msra.mxu0 0.0
  %2858 = vmatprep.subr.mxu0 0.0
  %2859 = vmatpush1.xpose.msra.mxu0 0.0
  %2860 = vmatprep.subr.mxu0 0.0
  %2861 = vmatpush1.xpose.msra.mxu0 0.0
  %2862 = vmatprep.subr.mxu0 0.0
  %2863 = vmatpush1.xpose.msra.mxu0 0.0
  %2864 = vmatprep.subr.mxu0 0.0
  %2865 = vmatpush1.xpose.msra.mxu0 0.0
  %2866 = vmatprep.subr.mxu0 0.0
  %2867 = vmatpush1.xpose.msra.mxu0 0.0
  %2868 = vmatprep.subr.mxu0 0.0
  %2869 = vmatpush1.xpose.msra.mxu0 0.0
  %2870 = vmatprep.subr.mxu0 0.0
  %2871 = vmatpush1.xpose.msra.mxu0 0.0
  %2872 = vmatprep.subr.mxu0 0.0
  %2873 = vmatpush1.xpose.msra.mxu0 0.0
  %2874 = vmatprep.subr.mxu0 0.0
  %2875 = vmatpush1.xpose.msra.mxu0 0.0
  %2876 = vmatprep.subr.mxu0 0.0
  %2877 = vmatpush1.xpose.msra.mxu0 0.0
  %2878 = vmatprep.subr.mxu0 0.0
  %2879 = vmatpush1.xpose.msra.mxu0 0.0
  %2880 = vmatprep.subr.mxu0 0.0
  %2881 = vmatpush1.xpose.msra.mxu0 0.0
  %2882 = vmatprep.subr.mxu0 0.0
  %2883 = vmatpush1.xpose.msra.mxu0 0.0
  %2884 = vmatprep.subr.mxu0 0.0
  %2885 = vmatpush1.xpose.msra.mxu0 0.0
  %2886 = vmatprep.subr.mxu0 0.0
  %2887 = vmatpush1.xpose.msra.mxu0 0.0
  %2888 = vmatprep.subr.mxu0 0.0
  %2889 = vmatpush1.xpose.msra.mxu0 0.0
  %2890 = vmatprep.subr.mxu0 0.0
  %2891 = vmatpush1.xpose.msra.mxu0 0.0
  %2892 = vmatprep.subr.mxu0 0.0
  %2893 = vmatpush1.xpose.msra.mxu0 0.0
  %2894 = vmatprep.subr.mxu0 0.0
  %2895 = vmatpush1.xpose.msra.mxu0 0.0
  %2896 = vmatprep.subr.mxu0 0.0
  %2897 = vmatpush1.xpose.msra.mxu0 0.0
  %2898 = vmatprep.subr.mxu0 0.0
  %2899 = vmatpush1.xpose.msra.mxu0 0.0
  %2900 = vmatprep.subr.mxu0 0.0
  %2901 = vmatpush1.xpose.msra.mxu0 0.0
  %2902 = vmatprep.subr.mxu0 0.0
  %2903 = vmatpush1.xpose.msra.mxu0 0.0
  %2904 = vmatprep.subr.mxu0 0.0
  %2905 = vmatpush1.xpose.msra.mxu0 0.0
  %2906 = vmatprep.subr.mxu0 0.0
  %2907 = vmatpush1.xpose.msra.mxu0 0.0
  %2908 = vmatprep.subr.mxu0 0.0
  %2909 = vmatpush1.xpose.msra.mxu0 0.0
  %2910 = vmatprep.subr.mxu0 0.0
  %2911 = vmatpush1.xpose.msra.mxu0 0.0
  %2912 = vmatprep.mubr.f32.mxu0 0.0
  %2913 = vmatmul.mubr.f32.gmra.mrb[0].mxu0 %v2846
  %v2914 = vpop.f32.mrb[0].mxu0
  %v2915 = vadd.f32 0.0, %v2914
  %v2916 = vpop.f32.mrb[0].mxu0
  %2917 = vdwg.mxu0
  %v2918 = vsel %vm625, %v2837, -inf
  %2919 = vmax.xlane.f32.xlu0 %v2918
  %v2920 = vpop.xlane.xlu0 %2919
  %v2921 = vsel %vm625, %v2915, -inf
  %2922 = vmax.xlane.f32.xlu0 %v2921
  %v2923 = vpop.xlane.xlu0 %2922
  %v2924 = vsub.f32 %v2837, %v2920
  %v2925 = vsub.f32 %v2915, %v2923
  %v2926 = vmul.f32 %v2924, 1.442695
  %v2927 = vpow.pop %v2926
  %v2928 = vmul.f32 %v2925, 1.442695
  %v2929 = vpow.pop %v2928
  %v2930 = vsel %vm625, %v2927, 0.0
  %2931 = vadd.xlane.f32.xlu0 %v2930
  %v2932 = vpop.xlane.xlu0 %2931
  %v2933 = vsel %vm625, %v2929, 0.0
  %2934 = vadd.xlane.f32.xlu0 %v2933
  %v2935 = vpop.xlane.xlu0 %2934
  %v2936 = vrcp.pop %v2932
  %v2937 = vmul.f32 %v2927, %v2936
  %v2938 = vrcp.pop %v2935
  %v2939 = vmul.f32 %v2929, %v2938
  %v2941 = vsel %vm648, %v2937, 0
  %2943 = vmatprep.subr.mxu0 0.0
  %2944 = vmatpush1.msra.mxu0 %v53
  %2945 = vmatprep.subr.mxu0 0.0
  %2946 = vmatpush1.msra.mxu0 0.0
  %2947 = vmatprep.subr.mxu0 0.0
  %2948 = vmatpush1.msra.mxu0 0.0
  %2949 = vmatprep.subr.mxu0 0.0
  %2950 = vmatpush1.msra.mxu0 0.0
  %2951 = vmatprep.subr.mxu0 0.0
  %2952 = vmatpush1.msra.mxu0 0.0
  %2953 = vmatprep.subr.mxu0 0.0
  %2954 = vmatpush1.msra.mxu0 0.0
  %2955 = vmatprep.subr.mxu0 0.0
  %2956 = vmatpush1.msra.mxu0 0.0
  %2957 = vmatprep.subr.mxu0 0.0
  %2958 = vmatpush1.msra.mxu0 0.0
  %2959 = vmatprep.subr.mxu0 0.0
  %2960 = vmatpush1.msra.mxu0 0.0
  %2961 = vmatprep.subr.mxu0 0.0
  %2962 = vmatpush1.msra.mxu0 0.0
  %2963 = vmatprep.subr.mxu0 0.0
  %2964 = vmatpush1.msra.mxu0 0.0
  %2965 = vmatprep.subr.mxu0 0.0
  %2966 = vmatpush1.msra.mxu0 0.0
  %2967 = vmatprep.subr.mxu0 0.0
  %2968 = vmatpush1.msra.mxu0 0.0
  %2969 = vmatprep.subr.mxu0 0.0
  %2970 = vmatpush1.msra.mxu0 0.0
  %2971 = vmatprep.subr.mxu0 0.0
  %2972 = vmatpush1.msra.mxu0 0.0
  %2973 = vmatprep.subr.mxu0 0.0
  %2974 = vmatpush1.msra.mxu0 0.0
  %2975 = vmatprep.subr.mxu0 0.0
  %2976 = vmatpush1.msra.mxu0 0.0
  %2977 = vmatprep.subr.mxu0 0.0
  %2978 = vmatpush1.msra.mxu0 0.0
  %2979 = vmatprep.subr.mxu0 0.0
  %2980 = vmatpush1.msra.mxu0 0.0
  %2981 = vmatprep.subr.mxu0 0.0
  %2982 = vmatpush1.msra.mxu0 0.0
  %2983 = vmatprep.subr.mxu0 0.0
  %2984 = vmatpush1.msra.mxu0 0.0
  %2985 = vmatprep.subr.mxu0 0.0
  %2986 = vmatpush1.msra.mxu0 0.0
  %2987 = vmatprep.subr.mxu0 0.0
  %2988 = vmatpush1.msra.mxu0 0.0
  %2989 = vmatprep.subr.mxu0 0.0
  %2990 = vmatpush1.msra.mxu0 0.0
  %2991 = vmatprep.subr.mxu0 0.0
  %2992 = vmatpush1.msra.mxu0 0.0
  %2993 = vmatprep.subr.mxu0 0.0
  %2994 = vmatpush1.msra.mxu0 0.0
  %2995 = vmatprep.subr.mxu0 0.0
  %2996 = vmatpush1.msra.mxu0 0.0
  %2997 = vmatprep.subr.mxu0 0.0
  %2998 = vmatpush1.msra.mxu0 0.0
  %2999 = vmatprep.subr.mxu0 0.0
  %3000 = vmatpush1.msra.mxu0 0.0
  %3001 = vmatprep.subr.mxu0 0.0
  %3002 = vmatpush1.msra.mxu0 0.0
  %3003 = vmatprep.subr.mxu0 0.0
  %3004 = vmatpush1.msra.mxu0 0.0
  %3005 = vmatprep.subr.mxu0 0.0
  %3006 = vmatpush1.msra.mxu0 0.0
  %3007 = vmatprep.mubr.f32.mxu0 0.0
  %3008 = vmatmul.mubr.f32.gmra.mrb[0].mxu0 %v2941
  %v3009 = vpop.f32.mrb[0].mxu0
  %v3010 = vadd.f32 0.0, %v3009
  %v3011 = vpop.f32.mrb[0].mxu0
  %3012 = vdwg.mxu0
  %v3014 = vsel %vm648, %v2939, 0
  %3016 = vmatprep.subr.mxu0 0.0
  %3017 = vmatpush1.msra.mxu0 %v54
  %3018 = vmatprep.subr.mxu0 0.0
  %3019 = vmatpush1.msra.mxu0 0.0
  %3020 = vmatprep.subr.mxu0 0.0
  %3021 = vmatpush1.msra.mxu0 0.0
  %3022 = vmatprep.subr.mxu0 0.0
  %3023 = vmatpush1.msra.mxu0 0.0
  %3024 = vmatprep.subr.mxu0 0.0
  %3025 = vmatpush1.msra.mxu0 0.0
  %3026 = vmatprep.subr.mxu0 0.0
  %3027 = vmatpush1.msra.mxu0 0.0
  %3028 = vmatprep.subr.mxu0 0.0
  %3029 = vmatpush1.msra.mxu0 0.0
  %3030 = vmatprep.subr.mxu0 0.0
  %3031 = vmatpush1.msra.mxu0 0.0
  %3032 = vmatprep.subr.mxu0 0.0
  %3033 = vmatpush1.msra.mxu0 0.0
  %3034 = vmatprep.subr.mxu0 0.0
  %3035 = vmatpush1.msra.mxu0 0.0
  %3036 = vmatprep.subr.mxu0 0.0
  %3037 = vmatpush1.msra.mxu0 0.0
  %3038 = vmatprep.subr.mxu0 0.0
  %3039 = vmatpush1.msra.mxu0 0.0
  %3040 = vmatprep.subr.mxu0 0.0
  %3041 = vmatpush1.msra.mxu0 0.0
  %3042 = vmatprep.subr.mxu0 0.0
  %3043 = vmatpush1.msra.mxu0 0.0
  %3044 = vmatprep.subr.mxu0 0.0
  %3045 = vmatpush1.msra.mxu0 0.0
  %3046 = vmatprep.subr.mxu0 0.0
  %3047 = vmatpush1.msra.mxu0 0.0
  %3048 = vmatprep.subr.mxu0 0.0
  %3049 = vmatpush1.msra.mxu0 0.0
  %3050 = vmatprep.subr.mxu0 0.0
  %3051 = vmatpush1.msra.mxu0 0.0
  %3052 = vmatprep.subr.mxu0 0.0
  %3053 = vmatpush1.msra.mxu0 0.0
  %3054 = vmatprep.subr.mxu0 0.0
  %3055 = vmatpush1.msra.mxu0 0.0
  %3056 = vmatprep.subr.mxu0 0.0
  %3057 = vmatpush1.msra.mxu0 0.0
  %3058 = vmatprep.subr.mxu0 0.0
  %3059 = vmatpush1.msra.mxu0 0.0
  %3060 = vmatprep.subr.mxu0 0.0
  %3061 = vmatpush1.msra.mxu0 0.0
  %3062 = vmatprep.subr.mxu0 0.0
  %3063 = vmatpush1.msra.mxu0 0.0
  %3064 = vmatprep.subr.mxu0 0.0
  %3065 = vmatpush1.msra.mxu0 0.0
  %3066 = vmatprep.subr.mxu0 0.0
  %3067 = vmatpush1.msra.mxu0 0.0
  %3068 = vmatprep.subr.mxu0 0.0
  %3069 = vmatpush1.msra.mxu0 0.0
  %3070 = vmatprep.subr.mxu0 0.0
  %3071 = vmatpush1.msra.mxu0 0.0
  %3072 = vmatprep.subr.mxu0 0.0
  %3073 = vmatpush1.msra.mxu0 0.0
  %3074 = vmatprep.subr.mxu0 0.0
  %3075 = vmatpush1.msra.mxu0 0.0
  %3076 = vmatprep.subr.mxu0 0.0
  %3077 = vmatpush1.msra.mxu0 0.0
  %3078 = vmatprep.subr.mxu0 0.0
  %3079 = vmatpush1.msra.mxu0 0.0
  %3080 = vmatprep.mubr.f32.mxu0 0.0
  %3081 = vmatmul.mubr.f32.gmra.mrb[0].mxu0 %v3014
  %v3082 = vpop.f32.mrb[0].mxu0
  %v3083 = vadd.f32 0.0, %v3082
  %v3084 = vpop.f32.mrb[0].mxu0
  %3085 = vdwg.mxu0
  %3086 = vmatprep.subr.mxu0 0.0
  %3087 = vmatpush1.xpose.msra.mxu0 %v796
  %3088 = vmatprep.subr.mxu0 0.0
  %3089 = vmatpush1.xpose.msra.mxu0 0.0
  %3090 = vmatprep.subr.mxu0 0.0
  %3091 = vmatpush1.xpose.msra.mxu0 0.0
  %3092 = vmatprep.subr.mxu0 0.0
  %3093 = vmatpush1.xpose.msra.mxu0 0.0
  %3094 = vmatprep.subr.mxu0 0.0
  %3095 = vmatpush1.xpose.msra.mxu0 0.0
  %3096 = vmatprep.subr.mxu0 0.0
  %3097 = vmatpush1.xpose.msra.mxu0 0.0
  %3098 = vmatprep.subr.mxu0 0.0
  %3099 = vmatpush1.xpose.msra.mxu0 0.0
  %3100 = vmatprep.subr.mxu0 0.0
  %3101 = vmatpush1.xpose.msra.mxu0 0.0
  %3102 = vmatprep.subr.mxu0 0.0
  %3103 = vmatpush1.xpose.msra.mxu0 0.0
  %3104 = vmatprep.subr.mxu0 0.0
  %3105 = vmatpush1.xpose.msra.mxu0 0.0
  %3106 = vmatprep.subr.mxu0 0.0
  %3107 = vmatpush1.xpose.msra.mxu0 0.0
  %3108 = vmatprep.subr.mxu0 0.0
  %3109 = vmatpush1.xpose.msra.mxu0 0.0
  %3110 = vmatprep.subr.mxu0 0.0
  %3111 = vmatpush1.xpose.msra.mxu0 0.0
  %3112 = vmatprep.subr.mxu0 0.0
  %3113 = vmatpush1.xpose.msra.mxu0 0.0
  %3114 = vmatprep.subr.mxu0 0.0
  %3115 = vmatpush1.xpose.msra.mxu0 0.0
  %3116 = vmatprep.subr.mxu0 0.0
  %3117 = vmatpush1.xpose.msra.mxu0 0.0
  %3118 = vmatprep.subr.mxu0 0.0
  %3119 = vmatpush1.xpose.msra.mxu0 0.0
  %3120 = vmatprep.subr.mxu0 0.0
  %3121 = vmatpush1.xpose.msra.mxu0 0.0
  %3122 = vmatprep.subr.mxu0 0.0
  %3123 = vmatpush1.xpose.msra.mxu0 0.0
  %3124 = vmatprep.subr.mxu0 0.0
  %3125 = vmatpush1.xpose.msra.mxu0 0.0
  %3126 = vmatprep.subr.mxu0 0.0
  %3127 = vmatpush1.xpose.msra.mxu0 0.0
  %3128 = vmatprep.subr.mxu0 0.0
  %3129 = vmatpush1.xpose.msra.mxu0 0.0
  %3130 = vmatprep.subr.mxu0 0.0
  %3131 = vmatpush1.xpose.msra.mxu0 0.0
  %3132 = vmatprep.subr.mxu0 0.0
  %3133 = vmatpush1.xpose.msra.mxu0 0.0
  %3134 = vmatprep.subr.mxu0 0.0
  %3135 = vmatpush1.xpose.msra.mxu0 0.0
  %3136 = vmatprep.subr.mxu0 0.0
  %3137 = vmatpush1.xpose.msra.mxu0 0.0
  %3138 = vmatprep.subr.mxu0 0.0
  %3139 = vmatpush1.xpose.msra.mxu0 0.0
  %3140 = vmatprep.subr.mxu0 0.0
  %3141 = vmatpush1.xpose.msra.mxu0 0.0
  %3142 = vmatprep.subr.mxu0 0.0
  %3143 = vmatpush1.xpose.msra.mxu0 0.0
  %3144 = vmatprep.subr.mxu0 0.0
  %3145 = vmatpush1.xpose.msra.mxu0 0.0
  %3146 = vmatprep.subr.mxu0 0.0
  %3147 = vmatpush1.xpose.msra.mxu0 0.0
  %3148 = vmatprep.subr.mxu0 0.0
  %3149 = vmatpush1.xpose.msra.mxu0 0.0
  %3150 = vmatprep.mubr.f32.mxu0 0.0
  %3151 = vmatmul.mubr.f32.gmra.mrb[0].mxu0 %v2768
  %v3152 = vpop.f32.mrb[0].mxu0
  %v3153 = vadd.f32 0.0, %v3152
  %v3154 = vpop.f32.mrb[0].mxu0
  %3155 = vdwg.mxu0
  %3156 = vmatprep.subr.mxu0 0.0
  %3157 = vmatpush1.xpose.msra.mxu0 %v869
  %3158 = vmatprep.subr.mxu0 0.0
  %3159 = vmatpush1.xpose.msra.mxu0 0.0
  %3160 = vmatprep.subr.mxu0 0.0
  %3161 = vmatpush1.xpose.msra.mxu0 0.0
  %3162 = vmatprep.subr.mxu0 0.0
  %3163 = vmatpush1.xpose.msra.mxu0 0.0
  %3164 = vmatprep.subr.mxu0 0.0
  %3165 = vmatpush1.xpose.msra.mxu0 0.0
  %3166 = vmatprep.subr.mxu0 0.0
  %3167 = vmatpush1.xpose.msra.mxu0 0.0
  %3168 = vmatprep.subr.mxu0 0.0
  %3169 = vmatpush1.xpose.msra.mxu0 0.0
  %3170 = vmatprep.subr.mxu0 0.0
  %3171 = vmatpush1.xpose.msra.mxu0 0.0
  %3172 = vmatprep.subr.mxu0 0.0
  %3173 = vmatpush1.xpose.msra.mxu0 0.0
  %3174 = vmatprep.subr.mxu0 0.0
  %3175 = vmatpush1.xpose.msra.mxu0 0.0
  %3176 = vmatprep.subr.mxu0 0.0
  %3177 = vmatpush1.xpose.msra.mxu0 0.0
  %3178 = vmatprep.subr.mxu0 0.0
  %3179 = vmatpush1.xpose.msra.mxu0 0.0
  %3180 = vmatprep.subr.mxu0 0.0
  %3181 = vmatpush1.xpose.msra.mxu0 0.0
  %3182 = vmatprep.subr.mxu0 0.0
  %3183 = vmatpush1.xpose.msra.mxu0 0.0
  %3184 = vmatprep.subr.mxu0 0.0
  %3185 = vmatpush1.xpose.msra.mxu0 0.0
  %3186 = vmatprep.subr.mxu0 0.0
  %3187 = vmatpush1.xpose.msra.mxu0 0.0
  %3188 = vmatprep.subr.mxu0 0.0
  %3189 = vmatpush1.xpose.msra.mxu0 0.0
  %3190 = vmatprep.subr.mxu0 0.0
  %3191 = vmatpush1.xpose.msra.mxu0 0.0
  %3192 = vmatprep.subr.mxu0 0.0
  %3193 = vmatpush1.xpose.msra.mxu0 0.0
  %3194 = vmatprep.subr.mxu0 0.0
  %3195 = vmatpush1.xpose.msra.mxu0 0.0
  %3196 = vmatprep.subr.mxu0 0.0
  %3197 = vmatpush1.xpose.msra.mxu0 0.0
  %3198 = vmatprep.subr.mxu0 0.0
  %3199 = vmatpush1.xpose.msra.mxu0 0.0
  %3200 = vmatprep.subr.mxu0 0.0
  %3201 = vmatpush1.xpose.msra.mxu0 0.0
  %3202 = vmatprep.subr.mxu0 0.0
  %3203 = vmatpush1.xpose.msra.mxu0 0.0
  %3204 = vmatprep.subr.mxu0 0.0
  %3205 = vmatpush1.xpose.msra.mxu0 0.0
  %3206 = vmatprep.subr.mxu0 0.0
  %3207 = vmatpush1.xpose.msra.mxu0 0.0
  %3208 = vmatprep.subr.mxu0 0.0
  %3209 = vmatpush1.xpose.msra.mxu0 0.0
  %3210 = vmatprep.subr.mxu0 0.0
  %3211 = vmatpush1.xpose.msra.mxu0 0.0
  %3212 = vmatprep.subr.mxu0 0.0
  %3213 = vmatpush1.xpose.msra.mxu0 0.0
  %3214 = vmatprep.subr.mxu0 0.0
  %3215 = vmatpush1.xpose.msra.mxu0 0.0
  %3216 = vmatprep.subr.mxu0 0.0
  %3217 = vmatpush1.xpose.msra.mxu0 0.0
  %3218 = vmatprep.subr.mxu0 0.0
  %3219 = vmatpush1.xpose.msra.mxu0 0.0
  %3220 = vmatprep.mubr.f32.mxu0 0.0
  %3221 = vmatmul.mubr.f32.gmra.mrb[0].mxu0 %v2846
  %v3222 = vpop.f32.mrb[0].mxu0
  %v3223 = vadd.f32 0.0, %v3222
  %v3224 = vpop.f32.mrb[0].mxu0
  %3225 = vdwg.mxu0
  %v3226 = vsel %vm625, %v3153, -inf
  %3227 = vmax.xlane.f32.xlu0 %v3226
  %v3228 = vpop.xlane.xlu0 %3227
  %v3229 = vsel %vm625, %v3223, -inf
  %3230 = vmax.xlane.f32.xlu0 %v3229
  %v3231 = vpop.xlane.xlu0 %3230
  %v3232 = vsub.f32 %v3153, %v3228
  %v3233 = vsub.f32 %v3223, %v3231
  %v3234 = vmul.f32 %v3232, 1.442695
  %v3235 = vpow.pop %v3234
  %v3236 = vmul.f32 %v3233, 1.442695
  %v3237 = vpow.pop %v3236
  %v3238 = vsel %vm625, %v3235, 0.0
  %3239 = vadd.xlane.f32.xlu0 %v3238
  %v3240 = vpop.xlane.xlu0 %3239
  %v3241 = vsel %vm625, %v3237, 0.0
  %3242 = vadd.xlane.f32.xlu0 %v3241
  %v3243 = vpop.xlane.xlu0 %3242
  %v3244 = vrcp.pop %v3240
  %v3245 = vmul.f32 %v3235, %v3244
  %v3246 = vrcp.pop %v3243
  %v3247 = vmul.f32 %v3237, %v3246
  %v3249 = vsel %vm648, %v3245, 0
  %3251 = vmatprep.subr.mxu0 0.0
  %3252 = vmatpush1.msra.mxu0 %v55
  %3253 = vmatprep.subr.mxu0 0.0
  %3254 = vmatpush1.msra.mxu0 0.0
  %3255 = vmatprep.subr.mxu0 0.0
  %3256 = vmatpush1.msra.mxu0 0.0
  %3257 = vmatprep.subr.mxu0 0.0
  %3258 = vmatpush1.msra.mxu0 0.0
  %3259 = vmatprep.subr.mxu0 0.0
  %3260 = vmatpush1.msra.mxu0 0.0
  %3261 = vmatprep.subr.mxu0 0.0
  %3262 = vmatpush1.msra.mxu0 0.0
  %3263 = vmatprep.subr.mxu0 0.0
  %3264 = vmatpush1.msra.mxu0 0.0
  %3265 = vmatprep.subr.mxu0 0.0
  %3266 = vmatpush1.msra.mxu0 0.0
  %3267 = vmatprep.subr.mxu0 0.0
  %3268 = vmatpush1.msra.mxu0 0.0
  %3269 = vmatprep.subr.mxu0 0.0
  %3270 = vmatpush1.msra.mxu0 0.0
  %3271 = vmatprep.subr.mxu0 0.0
  %3272 = vmatpush1.msra.mxu0 0.0
  %3273 = vmatprep.subr.mxu0 0.0
  %3274 = vmatpush1.msra.mxu0 0.0
  %3275 = vmatprep.subr.mxu0 0.0
  %3276 = vmatpush1.msra.mxu0 0.0
  %3277 = vmatprep.subr.mxu0 0.0
  %3278 = vmatpush1.msra.mxu0 0.0
  %3279 = vmatprep.subr.mxu0 0.0
  %3280 = vmatpush1.msra.mxu0 0.0
  %3281 = vmatprep.subr.mxu0 0.0
  %3282 = vmatpush1.msra.mxu0 0.0
  %3283 = vmatprep.subr.mxu0 0.0
  %3284 = vmatpush1.msra.mxu0 0.0
  %3285 = vmatprep.subr.mxu0 0.0
  %3286 = vmatpush1.msra.mxu0 0.0
  %3287 = vmatprep.subr.mxu0 0.0
  %3288 = vmatpush1.msra.mxu0 0.0
  %3289 = vmatprep.subr.mxu0 0.0
  %3290 = vmatpush1.msra.mxu0 0.0
  %3291 = vmatprep.subr.mxu0 0.0
  %3292 = vmatpush1.msra.mxu0 0.0
  %3293 = vmatprep.subr.mxu0 0.0
  %3294 = vmatpush1.msra.mxu0 0.0
  %3295 = vmatprep.subr.mxu0 0.0
  %3296 = vmatpush1.msra.mxu0 0.0
  %3297 = vmatprep.subr.mxu0 0.0
  %3298 = vmatpush1.msra.mxu0 0.0
  %3299 = vmatprep.subr.mxu0 0.0
  %3300 = vmatpush1.msra.mxu0 0.0
  %3301 = vmatprep.subr.mxu0 0.0
  %3302 = vmatpush1.msra.mxu0 0.0
  %3303 = vmatprep.subr.mxu0 0.0
  %3304 = vmatpush1.msra.mxu0 0.0
  %3305 = vmatprep.subr.mxu0 0.0
  %3306 = vmatpush1.msra.mxu0 0.0
  %3307 = vmatprep.subr.mxu0 0.0
  %3308 = vmatpush1.msra.mxu0 0.0
  %3309 = vmatprep.subr.mxu0 0.0
  %3310 = vmatpush1.msra.mxu0 0.0
  %3311 = vmatprep.subr.mxu0 0.0
  %3312 = vmatpush1.msra.mxu0 0.0
  %3313 = vmatprep.subr.mxu0 0.0
  %3314 = vmatpush1.msra.mxu0 0.0
  %3315 = vmatprep.mubr.f32.mxu0 0.0
  %3316 = vmatmul.mubr.f32.gmra.mrb[0].mxu0 %v3249
  %v3317 = vpop.f32.mrb[0].mxu0
  %v3318 = vadd.f32 0.0, %v3317
  %v3319 = vpop.f32.mrb[0].mxu0
  %3320 = vdwg.mxu0
  %v3322 = vsel %vm648, %v3247, 0
  %3324 = vmatprep.subr.mxu0 0.0
  %3325 = vmatpush1.msra.mxu0 %v56
  %3326 = vmatprep.subr.mxu0 0.0
  %3327 = vmatpush1.msra.mxu0 0.0
  %3328 = vmatprep.subr.mxu0 0.0
  %3329 = vmatpush1.msra.mxu0 0.0
  %3330 = vmatprep.subr.mxu0 0.0
  %3331 = vmatpush1.msra.mxu0 0.0
  %3332 = vmatprep.subr.mxu0 0.0
  %3333 = vmatpush1.msra.mxu0 0.0
  %3334 = vmatprep.subr.mxu0 0.0
  %3335 = vmatpush1.msra.mxu0 0.0
  %3336 = vmatprep.subr.mxu0 0.0
  %3337 = vmatpush1.msra.mxu0 0.0
  %3338 = vmatprep.subr.mxu0 0.0
  %3339 = vmatpush1.msra.mxu0 0.0
  %3340 = vmatprep.subr.mxu0 0.0
  %3341 = vmatpush1.msra.mxu0 0.0
  %3342 = vmatprep.subr.mxu0 0.0
  %3343 = vmatpush1.msra.mxu0 0.0
  %3344 = vmatprep.subr.mxu0 0.0
  %3345 = vmatpush1.msra.mxu0 0.0
  %3346 = vmatprep.subr.mxu0 0.0
  %3347 = vmatpush1.msra.mxu0 0.0
  %3348 = vmatprep.subr.mxu0 0.0
  %3349 = vmatpush1.msra.mxu0 0.0
  %3350 = vmatprep.subr.mxu0 0.0
  %3351 = vmatpush1.msra.mxu0 0.0
  %3352 = vmatprep.subr.mxu0 0.0
  %3353 = vmatpush1.msra.mxu0 0.0
  %3354 = vmatprep.subr.mxu0 0.0
  %3355 = vmatpush1.msra.mxu0 0.0
  %3356 = vmatprep.subr.mxu0 0.0
  %3357 = vmatpush1.msra.mxu0 0.0
  %3358 = vmatprep.subr.mxu0 0.0
  %3359 = vmatpush1.msra.mxu0 0.0
  %3360 = vmatprep.subr.mxu0 0.0
  %3361 = vmatpush1.msra.mxu0 0.0
  %3362 = vmatprep.subr.mxu0 0.0
  %3363 = vmatpush1.msra.mxu0 0.0
  %3364 = vmatprep.subr.mxu0 0.0
  %3365 = vmatpush1.msra.mxu0 0.0
  %3366 = vmatprep.subr.mxu0 0.0
  %3367 = vmatpush1.msra.mxu0 0.0
  %3368 = vmatprep.subr.mxu0 0.0
  %3369 = vmatpush1.msra.mxu0 0.0
  %3370 = vmatprep.subr.mxu0 0.0
  %3371 = vmatpush1.msra.mxu0 0.0
  %3372 = vmatprep.subr.mxu0 0.0
  %3373 = vmatpush1.msra.mxu0 0.0
  %3374 = vmatprep.subr.mxu0 0.0
  %3375 = vmatpush1.msra.mxu0 0.0
  %3376 = vmatprep.subr.mxu0 0.0
  %3377 = vmatpush1.msra.mxu0 0.0
  %3378 = vmatprep.subr.mxu0 0.0
  %3379 = vmatpush1.msra.mxu0 0.0
  %3380 = vmatprep.subr.mxu0 0.0
  %3381 = vmatpush1.msra.mxu0 0.0
  %3382 = vmatprep.subr.mxu0 0.0
  %3383 = vmatpush1.msra.mxu0 0.0
  %3384 = vmatprep.subr.mxu0 0.0
  %3385 = vmatpush1.msra.mxu0 0.0
  %3386 = vmatprep.subr.mxu0 0.0
  %3387 = vmatpush1.msra.mxu0 0.0
  %3388 = vmatprep.mubr.f32.mxu0 0.0
  %3389 = vmatmul.mubr.f32.gmra.mrb[0].mxu0 %v3322
  %v3390 = vpop.f32.mrb[0].mxu0
  %v3391 = vadd.f32 0.0, %v3390
  %v3392 = vpop.f32.mrb[0].mxu0
  %3393 = vdwg.mxu0
  %v3396 = vrot.slane %v3391, 7
  %v3397 = vsel %vm1112, %v3396, %v3318
  %v3398 = vsel %vm104, %v3397, 0
  %3400 = vmatprep.subr.mxu0 0.0
  %3401 = vmatpush1.msra.mxu0 %v70
  %3402 = vmatprep.subr.mxu0 0.0
  %3403 = vmatpush1.msra.mxu0 %v71
  %3404 = vmatprep.subr.mxu0 0.0
  %3405 = vmatpush1.msra.mxu0 %v72
  %3406 = vmatprep.subr.mxu0 0.0
  %3407 = vmatpush1.msra.mxu0 %v73
  %3408 = vmatprep.subr.mxu0 0.0
  %3409 = vmatpush1.msra.mxu0 0.0
  %3410 = vmatprep.subr.mxu0 0.0
  %3411 = vmatpush1.msra.mxu0 0.0
  %3412 = vmatprep.subr.mxu0 0.0
  %3413 = vmatpush1.msra.mxu0 0.0
  %3414 = vmatprep.subr.mxu0 0.0
  %3415 = vmatpush1.msra.mxu0 0.0
  %3416 = vmatprep.subr.mxu0 0.0
  %3417 = vmatpush1.msra.mxu0 0.0
  %3418 = vmatprep.subr.mxu0 0.0
  %3419 = vmatpush1.msra.mxu0 0.0
  %3420 = vmatprep.subr.mxu0 0.0
  %3421 = vmatpush1.msra.mxu0 0.0
  %3422 = vmatprep.subr.mxu0 0.0
  %3423 = vmatpush1.msra.mxu0 0.0
  %3424 = vmatprep.subr.mxu0 0.0
  %3425 = vmatpush1.msra.mxu0 0.0
  %3426 = vmatprep.subr.mxu0 0.0
  %3427 = vmatpush1.msra.mxu0 0.0
  %3428 = vmatprep.subr.mxu0 0.0
  %3429 = vmatpush1.msra.mxu0 0.0
  %3430 = vmatprep.subr.mxu0 0.0
  %3431 = vmatpush1.msra.mxu0 0.0
  %3432 = vmatprep.subr.mxu0 0.0
  %3433 = vmatpush1.msra.mxu0 0.0
  %3434 = vmatprep.subr.mxu0 0.0
  %3435 = vmatpush1.msra.mxu0 0.0
  %3436 = vmatprep.subr.mxu0 0.0
  %3437 = vmatpush1.msra.mxu0 0.0
  %3438 = vmatprep.subr.mxu0 0.0
  %3439 = vmatpush1.msra.mxu0 0.0
  %3440 = vmatprep.subr.mxu0 0.0
  %3441 = vmatpush1.msra.mxu0 0.0
  %3442 = vmatprep.subr.mxu0 0.0
  %3443 = vmatpush1.msra.mxu0 0.0
  %3444 = vmatprep.subr.mxu0 0.0
  %3445 = vmatpush1.msra.mxu0 0.0
  %3446 = vmatprep.subr.mxu0 0.0
  %3447 = vmatpush1.msra.mxu0 0.0
  %3448 = vmatprep.subr.mxu0 0.0
  %3449 = vmatpush1.msra.mxu0 0.0
  %3450 = vmatprep.subr.mxu0 0.0
  %3451 = vmatpush1.msra.mxu0 0.0
  %3452 = vmatprep.subr.mxu0 0.0
  %3453 = vmatpush1.msra.mxu0 0.0
  %3454 = vmatprep.subr.mxu0 0.0
  %3455 = vmatpush1.msra.mxu0 0.0
  %3456 = vmatprep.subr.mxu0 0.0
  %3457 = vmatpush1.msra.mxu0 0.0
  %3458 = vmatprep.subr.mxu0 0.0
  %3459 = vmatpush1.msra.mxu0 0.0
  %3460 = vmatprep.subr.mxu0 0.0
  %3461 = vmatpush1.msra.mxu0 0.0
  %3462 = vmatprep.subr.mxu0 0.0
  %3463 = vmatpush1.msra.mxu0 0.0
  %3464 = vmatprep.mubr.f32.mxu0 0.0
  %3465 = vmatmul.mubr.f32.gmra.mrb[0].mxu0 %v3398
  %v3466 = vpop.f32.mrb[0].mxu0
  %v3467 = vadd.f32 0.0, %v3466
  %v3468 = vpop.f32.mrb[0].mxu0
  %3469 = vdwg.mxu0
  %v3472 = vrot.slane %v3083, 7
  %v3473 = vsel %vm1112, %v3472, %v3010
  %v3474 = vsel %vm104, %v3473, 0
  %3476 = vmatprep.subr.mxu0 0.0
  %3477 = vmatpush1.msra.mxu0 %v66
  %3478 = vmatprep.subr.mxu0 0.0
  %3479 = vmatpush1.msra.mxu0 %v67
  %3480 = vmatprep.subr.mxu0 0.0
  %3481 = vmatpush1.msra.mxu0 %v68
  %3482 = vmatprep.subr.mxu0 0.0
  %3483 = vmatpush1.msra.mxu0 %v69
  %3484 = vmatprep.subr.mxu0 0.0
  %3485 = vmatpush1.msra.mxu0 0.0
  %3486 = vmatprep.subr.mxu0 0.0
  %3487 = vmatpush1.msra.mxu0 0.0
  %3488 = vmatprep.subr.mxu0 0.0
  %3489 = vmatpush1.msra.mxu0 0.0
  %3490 = vmatprep.subr.mxu0 0.0
  %3491 = vmatpush1.msra.mxu0 0.0
  %3492 = vmatprep.subr.mxu0 0.0
  %3493 = vmatpush1.msra.mxu0 0.0
  %3494 = vmatprep.subr.mxu0 0.0
  %3495 = vmatpush1.msra.mxu0 0.0
  %3496 = vmatprep.subr.mxu0 0.0
  %3497 = vmatpush1.msra.mxu0 0.0
  %3498 = vmatprep.subr.mxu0 0.0
  %3499 = vmatpush1.msra.mxu0 0.0
  %3500 = vmatprep.subr.mxu0 0.0
  %3501 = vmatpush1.msra.mxu0 0.0
  %3502 = vmatprep.subr.mxu0 0.0
  %3503 = vmatpush1.msra.mxu0 0.0
  %3504 = vmatprep.subr.mxu0 0.0
  %3505 = vmatpush1.msra.mxu0 0.0
  %3506 = vmatprep.subr.mxu0 0.0
  %3507 = vmatpush1.msra.mxu0 0.0
  %3508 = vmatprep.subr.mxu0 0.0
  %3509 = vmatpush1.msra.mxu0 0.0
  %3510 = vmatprep.subr.mxu0 0.0
  %3511 = vmatpush1.msra.mxu0 0.0
  %3512 = vmatprep.subr.mxu0 0.0
  %3513 = vmatpush1.msra.mxu0 0.0
  %3514 = vmatprep.subr.mxu0 0.0
  %3515 = vmatpush1.msra.mxu0 0.0
  %3516 = vmatprep.subr.mxu0 0.0
  %3517 = vmatpush1.msra.mxu0 0.0
  %3518 = vmatprep.subr.mxu0 0.0
  %3519 = vmatpush1.msra.mxu0 0.0
  %3520 = vmatprep.subr.mxu0 0.0
  %3521 = vmatpush1.msra.mxu0 0.0
  %3522 = vmatprep.subr.mxu0 0.0
  %3523 = vmatpush1.msra.mxu0 0.0
  %3524 = vmatprep.subr.mxu0 0.0
  %3525 = vmatpush1.msra.mxu0 0.0
  %3526 = vmatprep.subr.mxu0 0.0
  %3527 = vmatpush1.msra.mxu0 0.0
  %3528 = vmatprep.subr.mxu0 0.0
  %3529 = vmatpush1.msra.mxu0 0.0
  %3530 = vmatprep.subr.mxu0 0.0
  %3531 = vmatpush1.msra.mxu0 0.0
  %3532 = vmatprep.subr.mxu0 0.0
  %3533 = vmatpush1.msra.mxu0 0.0
  %3534 = vmatprep.subr.mxu0 0.0
  %3535 = vmatpush1.msra.mxu0 0.0
  %3536 = vmatprep.subr.mxu0 0.0
  %3537 = vmatpush1.msra.mxu0 0.0
  %3538 = vmatprep.subr.mxu0 0.0
  %3539 = vmatpush1.msra.mxu0 0.0
  %3540 = vmatprep.mubr.f32.mxu0 0.0
  %3541 = vmatmul.mubr.f32.gmra.mrb[0].mxu0 %v3474
  %v3542 = vpop.f32.mrb[0].mxu0
  %v3543 = vadd.f32 %v3467, %v3542
  %v3544 = vpop.f32.mrb[0].mxu0
  %3545 = vdwg.mxu0
  %3546 = vrot.lane.b32.xlu0 %v2738, 32
  %v3547 = vpop.permute.xlu0 %3546
  %v3548 = vsel %vm104, %v3547, 0
  %3550 = vmatprep.subr.mxu0 0.0
  %3551 = vmatpush1.msra.mxu0 %v74
  %3552 = vmatprep.subr.mxu0 0.0
  %3553 = vmatpush1.msra.mxu0 %v75
  %3554 = vmatprep.subr.mxu0 0.0
  %3555 = vmatpush1.msra.mxu0 %v76
  %3556 = vmatprep.subr.mxu0 0.0
  %3557 = vmatpush1.msra.mxu0 %v77
  %3558 = vmatprep.subr.mxu0 0.0
  %3559 = vmatpush1.msra.mxu0 0.0
  %3560 = vmatprep.subr.mxu0 0.0
  %3561 = vmatpush1.msra.mxu0 0.0
  %3562 = vmatprep.subr.mxu0 0.0
  %3563 = vmatpush1.msra.mxu0 0.0
  %3564 = vmatprep.subr.mxu0 0.0
  %3565 = vmatpush1.msra.mxu0 0.0
  %3566 = vmatprep.subr.mxu0 0.0
  %3567 = vmatpush1.msra.mxu0 0.0
  %3568 = vmatprep.subr.mxu0 0.0
  %3569 = vmatpush1.msra.mxu0 0.0
  %3570 = vmatprep.subr.mxu0 0.0
  %3571 = vmatpush1.msra.mxu0 0.0
  %3572 = vmatprep.subr.mxu0 0.0
  %3573 = vmatpush1.msra.mxu0 0.0
  %3574 = vmatprep.subr.mxu0 0.0
  %3575 = vmatpush1.msra.mxu0 0.0
  %3576 = vmatprep.subr.mxu0 0.0
  %3577 = vmatpush1.msra.mxu0 0.0
  %3578 = vmatprep.subr.mxu0 0.0
  %3579 = vmatpush1.msra.mxu0 0.0
  %3580 = vmatprep.subr.mxu0 0.0
  %3581 = vmatpush1.msra.mxu0 0.0
  %3582 = vmatprep.subr.mxu0 0.0
  %3583 = vmatpush1.msra.mxu0 0.0
  %3584 = vmatprep.subr.mxu0 0.0
  %3585 = vmatpush1.msra.mxu0 0.0
  %3586 = vmatprep.subr.mxu0 0.0
  %3587 = vmatpush1.msra.mxu0 0.0
  %3588 = vmatprep.subr.mxu0 0.0
  %3589 = vmatpush1.msra.mxu0 0.0
  %3590 = vmatprep.subr.mxu0 0.0
  %3591 = vmatpush1.msra.mxu0 0.0
  %3592 = vmatprep.subr.mxu0 0.0
  %3593 = vmatpush1.msra.mxu0 0.0
  %3594 = vmatprep.subr.mxu0 0.0
  %3595 = vmatpush1.msra.mxu0 0.0
  %3596 = vmatprep.subr.mxu0 0.0
  %3597 = vmatpush1.msra.mxu0 0.0
  %3598 = vmatprep.subr.mxu0 0.0
  %3599 = vmatpush1.msra.mxu0 0.0
  %3600 = vmatprep.subr.mxu0 0.0
  %3601 = vmatpush1.msra.mxu0 0.0
  %3602 = vmatprep.subr.mxu0 0.0
  %3603 = vmatpush1.msra.mxu0 0.0
  %3604 = vmatprep.subr.mxu0 0.0
  %3605 = vmatpush1.msra.mxu0 0.0
  %3606 = vmatprep.subr.mxu0 0.0
  %3607 = vmatpush1.msra.mxu0 0.0
  %3608 = vmatprep.subr.mxu0 0.0
  %3609 = vmatpush1.msra.mxu0 0.0
  %3610 = vmatprep.subr.mxu0 0.0
  %3611 = vmatpush1.msra.mxu0 0.0
  %3612 = vmatprep.subr.mxu0 0.0
  %3613 = vmatpush1.msra.mxu0 0.0
  %3614 = vmatprep.mubr.f32.mxu0 0.0
  %3615 = vmatmul.mubr.f32.gmra.mrb[0].mxu0 %v3548
  %v3616 = vpop.f32.mrb[0].mxu0
  %v3617 = vadd.f32 0.0, %v3616
  %v3618 = vpop.f32.mrb[0].mxu0
  %3619 = vdwg.mxu0
  %v3620 = vadd.f32 %v3543, %v3617
  %v3621 = vadd.f32 %v3620, %v87
  %v3622 = vtanh.pop %v3621
  %v3624 = vsel %vm104, %v3622, 0
  %3626 = vmatprep.subr.mxu0 0.0
  %3627 = vmatpush1.msra.mxu0 %v78
  %3628 = vmatprep.subr.mxu0 0.0
  %3629 = vmatpush1.msra.mxu0 %v79
  %3630 = vmatprep.subr.mxu0 0.0
  %3631 = vmatpush1.msra.mxu0 %v80
  %3632 = vmatprep.subr.mxu0 0.0
  %3633 = vmatpush1.msra.mxu0 %v81
  %3634 = vmatprep.subr.mxu0 0.0
  %3635 = vmatpush1.msra.mxu0 0.0
  %3636 = vmatprep.subr.mxu0 0.0
  %3637 = vmatpush1.msra.mxu0 0.0
  %3638 = vmatprep.subr.mxu0 0.0
  %3639 = vmatpush1.msra.mxu0 0.0
  %3640 = vmatprep.subr.mxu0 0.0
  %3641 = vmatpush1.msra.mxu0 0.0
  %3642 = vmatprep.subr.mxu0 0.0
  %3643 = vmatpush1.msra.mxu0 0.0
  %3644 = vmatprep.subr.mxu0 0.0
  %3645 = vmatpush1.msra.mxu0 0.0
  %3646 = vmatprep.subr.mxu0 0.0
  %3647 = vmatpush1.msra.mxu0 0.0
  %3648 = vmatprep.subr.mxu0 0.0
  %3649 = vmatpush1.msra.mxu0 0.0
  %3650 = vmatprep.subr.mxu0 0.0
  %3651 = vmatpush1.msra.mxu0 0.0
  %3652 = vmatprep.subr.mxu0 0.0
  %3653 = vmatpush1.msra.mxu0 0.0
  %3654 = vmatprep.subr.mxu0 0.0
  %3655 = vmatpush1.msra.mxu0 0.0
  %3656 = vmatprep.subr.mxu0 0.0
  %3657 = vmatpush1.msra.mxu0 0.0
  %3658 = vmatprep.subr.mxu0 0.0
  %3659 = vmatpush1.msra.mxu0 0.0
  %3660 = vmatprep.subr.mxu0 0.0
  %3661 = vmatpush1.msra.mxu0 0.0
  %3662 = vmatprep.subr.mxu0 0.0
  %3663 = vmatpush1.msra.mxu0 0.0
  %3664 = vmatprep.subr.mxu0 0.0
  %3665 = vmatpush1.msra.mxu0 0.0
  %3666 = vmatprep.subr.mxu0 0.0
  %3667 = vmatpush1.msra.mxu0 0.0
  %3668 = vmatprep.subr.mxu0 0.0
  %3669 = vmatpush1.msra.mxu0 0.0
  %3670 = vmatprep.subr.mxu0 0.0
  %3671 = vmatpush1.msra.mxu0 0.0
  %3672 = vmatprep.subr.mxu0 0.0
  %3673 = vmatpush1.msra.mxu0 0.0
  %3674 = vmatprep.subr.mxu0 0.0
  %3675 = vmatpush1.msra.mxu0 0.0
  %3676 = vmatprep.subr.mxu0 0.0
  %3677 = vmatpush1.msra.mxu0 0.0
  %3678 = vmatprep.subr.mxu0 0.0
  %3679 = vmatpush1.msra.mxu0 0.0
  %3680 = vmatprep.subr.mxu0 0.0
  %3681 = vmatpush1.msra.mxu0 0.0
  %3682 = vmatprep.subr.mxu0 0.0
  %3683 = vmatpush1.msra.mxu0 0.0
  %3684 = vmatprep.subr.mxu0 0.0
  %3685 = vmatpush1.msra.mxu0 0.0
  %3686 = vmatprep.subr.mxu0 0.0
  %3687 = vmatpush1.msra.mxu0 0.0
  %3688 = vmatprep.subr.mxu0 0.0
  %3689 = vmatpush1.msra.mxu0 0.0
  %3690 = vmatprep.mubr.f32.mxu0 0.0
  %3691 = vmatmul.mubr.f32.gmra.mrb[0].mxu0 %v3624
  %v3692 = vpop.f32.mrb[0].mxu0
  %v3693 = vadd.f32 %v94, %v3692
  %v3694 = vpop.f32.mrb[0].mxu0
  %3695 = vdwg.mxu0
  %v3696 = vsel %vm1412, %v3693, -inf
  %3697 = vmax.xlane.f32.xlu0 %v3696
  %v3698 = vpop.xlane.xlu0 %3697
  %v3699 = vsub.f32 %v3693, %v3698
  %v3700 = vmul.f32 %v3699, 1.442695
  %v3701 = vpow.pop %v3700
  %v3702 = vsel %vm1412, %v3701, 0.0
  %3703 = vadd.xlane.f32.xlu0 %v3702
  %v3704 = vpop.xlane.xlu0 %3703
  %v3705 = vlog2.pop %v3704
  %v3706 = vmul.f32 %v3705, 0.6931472
  %v3707 = vsub.f32 %v3699, %v3706
  %s3708 = scalar_lea.vmem %s16, 4
  %3709 = vst [vmem:[%s3708] sm:$0x3] %v3707
  %s3710 = scalar_lea.vmem %s0, 6
  %v3711 = vld [vmem:[%s3710] sm:$0x3]
  %v3713 = vsel %vm104, %v3711, 0
  %3715 = vmatprep.subr.mxu0 0.0
  %3716 = vmatpush1.msra.mxu0 %v58
  %3717 = vmatprep.subr.mxu0 0.0
  %3718 = vmatpush1.msra.mxu0 %v59
  %3719 = vmatprep.subr.mxu0 0.0
  %3720 = vmatpush1.msra.mxu0 %v60
  %3721 = vmatprep.subr.mxu0 0.0
  %3722 = vmatpush1.msra.mxu0 %v61
  %3723 = vmatprep.subr.mxu0 0.0
  %3724 = vmatpush1.msra.mxu0 0.0
  %3725 = vmatprep.subr.mxu0 0.0
  %3726 = vmatpush1.msra.mxu0 0.0
  %3727 = vmatprep.subr.mxu0 0.0
  %3728 = vmatpush1.msra.mxu0 0.0
  %3729 = vmatprep.subr.mxu0 0.0
  %3730 = vmatpush1.msra.mxu0 0.0
  %3731 = vmatprep.subr.mxu0 0.0
  %3732 = vmatpush1.msra.mxu0 0.0
  %3733 = vmatprep.subr.mxu0 0.0
  %3734 = vmatpush1.msra.mxu0 0.0
  %3735 = vmatprep.subr.mxu0 0.0
  %3736 = vmatpush1.msra.mxu0 0.0
  %3737 = vmatprep.subr.mxu0 0.0
  %3738 = vmatpush1.msra.mxu0 0.0
  %3739 = vmatprep.subr.mxu0 0.0
  %3740 = vmatpush1.msra.mxu0 0.0
  %3741 = vmatprep.subr.mxu0 0.0
  %3742 = vmatpush1.msra.mxu0 0.0
  %3743 = vmatprep.subr.mxu0 0.0
  %3744 = vmatpush1.msra.mxu0 0.0
  %3745 = vmatprep.subr.mxu0 0.0
  %3746 = vmatpush1.msra.mxu0 0.0
  %3747 = vmatprep.subr.mxu0 0.0
  %3748 = vmatpush1.msra.mxu0 0.0
  %3749 = vmatprep.subr.mxu0 0.0
  %3750 = vmatpush1.msra.mxu0 0.0
  %3751 = vmatprep.subr.mxu0 0.0
  %3752 = vmatpush1.msra.mxu0 0.0
  %3753 = vmatprep.subr.mxu0 0.0
  %3754 = vmatpush1.msra.mxu0 0.0
  %3755 = vmatprep.subr.mxu0 0.0
  %3756 = vmatpush1.msra.mxu0 0.0
  %3757 = vmatprep.subr.mxu0 0.0
  %3758 = vmatpush1.msra.mxu0 0.0
  %3759 = vmatprep.subr.mxu0 0.0
  %3760 = vmatpush1.msra.mxu0 0.0
  %3761 = vmatprep.subr.mxu0 0.0
  %3762 = vmatpush1.msra.mxu0 0.0
  %3763 = vmatprep.subr.mxu0 0.0
  %3764 = vmatpush1.msra.mxu0 0.0
  %3765 = vmatprep.subr.mxu0 0.0
  %3766 = vmatpush1.msra.mxu0 0.0
  %3767 = vmatprep.subr.mxu0 0.0
  %3768 = vmatpush1.msra.mxu0 0.0
  %3769 = vmatprep.subr.mxu0 0.0
  %3770 = vmatpush1.msra.mxu0 0.0
  %3771 = vmatprep.subr.mxu0 0.0
  %3772 = vmatpush1.msra.mxu0 0.0
  %3773 = vmatprep.subr.mxu0 0.0
  %3774 = vmatpush1.msra.mxu0 0.0
  %3775 = vmatprep.subr.mxu0 0.0
  %3776 = vmatpush1.msra.mxu0 0.0
  %3777 = vmatprep.subr.mxu0 0.0
  %3778 = vmatpush1.msra.mxu0 0.0
  %3779 = vmatprep.mubr.f32.mxu0 0.0
  %3780 = vmatmul.mubr.f32.gmra.mrb[0].mxu0 %v3713
  %v3781 = vpop.f32.mrb[0].mxu0
  %v3782 = vadd.f32 0.0, %v3781
  %v3783 = vpop.f32.mrb[0].mxu0
  %3784 = vdwg.mxu0
  %v3785 = vadd.f32 %v266, %v3782
  %3786 = vmatprep.subr.mxu0 0.0
  %3787 = vmatpush1.msra.mxu0 %v62
  %3788 = vmatprep.subr.mxu0 0.0
  %3789 = vmatpush1.msra.mxu0 %v63
  %3790 = vmatprep.subr.mxu0 0.0
  %3791 = vmatpush1.msra.mxu0 %v64
  %3792 = vmatprep.subr.mxu0 0.0
  %3793 = vmatpush1.msra.mxu0 %v65
  %3794 = vmatprep.subr.mxu0 0.0
  %3795 = vmatpush1.msra.mxu0 0.0
  %3796 = vmatprep.subr.mxu0 0.0
  %3797 = vmatpush1.msra.mxu0 0.0
  %3798 = vmatprep.subr.mxu0 0.0
  %3799 = vmatpush1.msra.mxu0 0.0
  %3800 = vmatprep.subr.mxu0 0.0
  %3801 = vmatpush1.msra.mxu0 0.0
  %3802 = vmatprep.subr.mxu0 0.0
  %3803 = vmatpush1.msra.mxu0 0.0
  %3804 = vmatprep.subr.mxu0 0.0
  %3805 = vmatpush1.msra.mxu0 0.0
  %3806 = vmatprep.subr.mxu0 0.0
  %3807 = vmatpush1.msra.mxu0 0.0
  %3808 = vmatprep.subr.mxu0 0.0
  %3809 = vmatpush1.msra.mxu0 0.0
  %3810 = vmatprep.subr.mxu0 0.0
  %3811 = vmatpush1.msra.mxu0 0.0
  %3812 = vmatprep.subr.mxu0 0.0
  %3813 = vmatpush1.msra.mxu0 0.0
  %3814 = vmatprep.subr.mxu0 0.0
  %3815 = vmatpush1.msra.mxu0 0.0
  %3816 = vmatprep.subr.mxu0 0.0
  %3817 = vmatpush1.msra.mxu0 0.0
  %3818 = vmatprep.subr.mxu0 0.0
  %3819 = vmatpush1.msra.mxu0 0.0
  %3820 = vmatprep.subr.mxu0 0.0
  %3821 = vmatpush1.msra.mxu0 0.0
  %3822 = vmatprep.subr.mxu0 0.0
  %3823 = vmatpush1.msra.mxu0 0.0
  %3824 = vmatprep.subr.mxu0 0.0
  %3825 = vmatpush1.msra.mxu0 0.0
  %3826 = vmatprep.subr.mxu0 0.0
  %3827 = vmatpush1.msra.mxu0 0.0
  %3828 = vmatprep.subr.mxu0 0.0
  %3829 = vmatpush1.msra.mxu0 0.0
  %3830 = vmatprep.subr.mxu0 0.0
  %3831 = vmatpush1.msra.mxu0 0.0
  %3832 = vmatprep.subr.mxu0 0.0
  %3833 = vmatpush1.msra.mxu0 0.0
  %3834 = vmatprep.subr.mxu0 0.0
  %3835 = vmatpush1.msra.mxu0 0.0
  %3836 = vmatprep.subr.mxu0 0.0
  %3837 = vmatpush1.msra.mxu0 0.0
  %3838 = vmatprep.subr.mxu0 0.0
  %3839 = vmatpush1.msra.mxu0 0.0
  %3840 = vmatprep.subr.mxu0 0.0
  %3841 = vmatpush1.msra.mxu0 0.0
  %3842 = vmatprep.subr.mxu0 0.0
  %3843 = vmatpush1.msra.mxu0 0.0
  %3844 = vmatprep.subr.mxu0 0.0
  %3845 = vmatpush1.msra.mxu0 0.0
  %3846 = vmatprep.subr.mxu0 0.0
  %3847 = vmatpush1.msra.mxu0 0.0
  %3848 = vmatprep.subr.mxu0 0.0
  %3849 = vmatpush1.msra.mxu0 0.0
  %3850 = vmatprep.mubr.f32.mxu0 0.0
  %3851 = vmatmul.mubr.f32.gmra.mrb[0].mxu0 %v3548
  %v3852 = vpop.f32.mrb[0].mxu0
  %v3853 = vadd.f32 0.0, %v3852
  %v3854 = vpop.f32.mrb[0].mxu0
  %3855 = vdwg.mxu0
  %v3856 = vadd.f32 %v3785, %v3853
  %v3857 = vxor.u32 %v3856, 2147483648
  %v3858 = vmul.f32 %v3857, 1.442695
  %v3859 = vpow.pop %v3858
  %v3860 = vadd.f32 %v3859, 1.0
  %v3861 = vrcp.pop %v3860
  %v3862 = vmul.f32 1.0, %v3861
  %v3863 = vtanh.pop %v3856
  %v3864 = vmul.f32 %v3862, %v2732
  %3866 = vrot.lane.b32.xlu0 %v3863, 64
  %v3867 = vpop.permute.xlu0 %3866
  %v3869 = vmul.f32 %v3862, %v3867
  %3871 = vrot.lane.b32.xlu0 %v3869, 32
  %v3872 = vpop.permute.xlu0 %3871
  %v3874 = vadd.f32 %v3864, %v3872
  %v3875 = vtanh.pop %v3874
  %3877 = vrot.lane.b32.xlu0 %v3875, 64
  %v3878 = vpop.permute.xlu0 %3877
  %v3880 = vmul.f32 %v3862, %v3878
  %v3883 = vunpack.c.l.s4 1966171168
  %v3884 = vunpack.c.0.s8 %v3883
  %v3885 = vlaneseq
  %v3886 = vshrl.u32 %v3885, 7
  %v3887 = vsub.s32 %v3884, %v3886
  %v3888 = vrot.slane %v3880, %v3887
  %v3889 = vcombine.high %v3888, %v3888
  %v3891 = vunpack.c.l.s4 1966171168
  %v3892 = vunpack.c.0.s8 %v3891
  %v3893 = vlaneseq
  %v3894 = vshrl.u32 %v3893, 7
  %v3895 = vsub.s32 %v3892, %v3894
  %v3896 = vrot.slane %v3888, %v3895
  %v3898 = vunpack.c.l.s4 1966171168
  %v3899 = vunpack.c.0.s8 %v3898
  %v3900 = vlaneseq
  %v3901 = vshrl.u32 %v3900, 7
  %v3902 = vsub.s32 %v3899, %v3901
  %v3903 = vrot.slane %v3889, %v3902
  %v3904 = vlaneseq
  %v3905 = vshrl.u32 %v3904, 7
  %v3906 = vsub.s32 0, %v3905
  %v3907 = vrot.slane %v3896, %v3906
  %3908 = vrot.lane.b32.xlu0 %v3907, 32
  %v3909 = vpop.permute.xlu0 %3908
  %v3910 = vsel %vm104, %v3909, 0
  %3912 = vmatprep.subr.mxu0 0.0
  %3913 = vmatpush1.xpose.msra.mxu0 %v472
  %3914 = vmatprep.subr.mxu0 0.0
  %3915 = vmatpush1.xpose.msra.mxu0 0.0
  %3916 = vmatprep.subr.mxu0 0.0
  %3917 = vmatpush1.xpose.msra.mxu0 0.0
  %3918 = vmatprep.subr.mxu0 0.0
  %3919 = vmatpush1.xpose.msra.mxu0 0.0
  %3920 = vmatprep.subr.mxu0 0.0
  %3921 = vmatpush1.xpose.msra.mxu0 0.0
  %3922 = vmatprep.subr.mxu0 0.0
  %3923 = vmatpush1.xpose.msra.mxu0 0.0
  %3924 = vmatprep.subr.mxu0 0.0
  %3925 = vmatpush1.xpose.msra.mxu0 0.0
  %3926 = vmatprep.subr.mxu0 0.0
  %3927 = vmatpush1.xpose.msra.mxu0 0.0
  %3928 = vmatprep.subr.mxu0 0.0
  %3929 = vmatpush1.xpose.msra.mxu0 0.0
  %3930 = vmatprep.subr.mxu0 0.0
  %3931 = vmatpush1.xpose.msra.mxu0 0.0
  %3932 = vmatprep.subr.mxu0 0.0
  %3933 = vmatpush1.xpose.msra.mxu0 0.0
  %3934 = vmatprep.subr.mxu0 0.0
  %3935 = vmatpush1.xpose.msra.mxu0 0.0
  %3936 = vmatprep.subr.mxu0 0.0
  %3937 = vmatpush1.xpose.msra.mxu0 0.0
  %3938 = vmatprep.subr.mxu0 0.0
  %3939 = vmatpush1.xpose.msra.mxu0 0.0
  %3940 = vmatprep.subr.mxu0 0.0
  %3941 = vmatpush1.xpose.msra.mxu0 0.0
  %3942 = vmatprep.subr.mxu0 0.0
  %3943 = vmatpush1.xpose.msra.mxu0 0.0
  %3944 = vmatprep.subr.mxu0 0.0
  %3945 = vmatpush1.xpose.msra.mxu0 0.0
  %3946 = vmatprep.subr.mxu0 0.0
  %3947 = vmatpush1.xpose.msra.mxu0 0.0
  %3948 = vmatprep.subr.mxu0 0.0
  %3949 = vmatpush1.xpose.msra.mxu0 0.0
  %3950 = vmatprep.subr.mxu0 0.0
  %3951 = vmatpush1.xpose.msra.mxu0 0.0
  %3952 = vmatprep.subr.mxu0 0.0
  %3953 = vmatpush1.xpose.msra.mxu0 0.0
  %3954 = vmatprep.subr.mxu0 0.0
  %3955 = vmatpush1.xpose.msra.mxu0 0.0
  %3956 = vmatprep.subr.mxu0 0.0
  %3957 = vmatpush1.xpose.msra.mxu0 0.0
  %3958 = vmatprep.subr.mxu0 0.0
  %3959 = vmatpush1.xpose.msra.mxu0 0.0
  %3960 = vmatprep.subr.mxu0 0.0
  %3961 = vmatpush1.xpose.msra.mxu0 0.0
  %3962 = vmatprep.subr.mxu0 0.0
  %3963 = vmatpush1.xpose.msra.mxu0 0.0
  %3964 = vmatprep.subr.mxu0 0.0
  %3965 = vmatpush1.xpose.msra.mxu0 0.0
  %3966 = vmatprep.subr.mxu0 0.0
  %3967 = vmatpush1.xpose.msra.mxu0 0.0
  %3968 = vmatprep.subr.mxu0 0.0
  %3969 = vmatpush1.xpose.msra.mxu0 0.0
  %3970 = vmatprep.subr.mxu0 0.0
  %3971 = vmatpush1.xpose.msra.mxu0 0.0
  %3972 = vmatprep.subr.mxu0 0.0
  %3973 = vmatpush1.xpose.msra.mxu0 0.0
  %3974 = vmatprep.subr.mxu0 0.0
  %3975 = vmatpush1.xpose.msra.mxu0 0.0
  %3976 = vmatprep.mubr.f32.mxu0 0.0
  %3977 = vmatmul.mubr.f32.gmra.mrb[0].mxu0 %v3910
  %v3978 = vpop.f32.mrb[0].mxu0
  %v3979 = vadd.f32 0.0, %v3978
  %v3980 = vpop.f32.mrb[0].mxu0
  %3981 = vdwg.mxu0
  %v3982 = vlaneseq
  %v3983 = vshrl.u32 %v3982, 7
  %v3984 = vsub.s32 0, %v3983
  %v3985 = vrot.slane %v3903, %v3984
  %3986 = vrot.lane.b32.xlu0 %v3985, 32
  %v3987 = vpop.permute.xlu0 %3986
  %v3988 = vsel %vm104, %v3987, 0
  %3990 = vmatprep.subr.mxu0 0.0
  %3991 = vmatpush1.xpose.msra.mxu0 %v553
  %3992 = vmatprep.subr.mxu0 0.0
  %3993 = vmatpush1.xpose.msra.mxu0 0.0
  %3994 = vmatprep.subr.mxu0 0.0
  %3995 = vmatpush1.xpose.msra.mxu0 0.0
  %3996 = vmatprep.subr.mxu0 0.0
  %3997 = vmatpush1.xpose.msra.mxu0 0.0
  %3998 = vmatprep.subr.mxu0 0.0
  %3999 = vmatpush1.xpose.msra.mxu0 0.0
  %4000 = vmatprep.subr.mxu0 0.0
  %4001 = vmatpush1.xpose.msra.mxu0 0.0
  %4002 = vmatprep.subr.mxu0 0.0
  %4003 = vmatpush1.xpose.msra.mxu0 0.0
  %4004 = vmatprep.subr.mxu0 0.0
  %4005 = vmatpush1.xpose.msra.mxu0 0.0
  %4006 = vmatprep.subr.mxu0 0.0
  %4007 = vmatpush1.xpose.msra.mxu0 0.0
  %4008 = vmatprep.subr.mxu0 0.0
  %4009 = vmatpush1.xpose.msra.mxu0 0.0
  %4010 = vmatprep.subr.mxu0 0.0
  %4011 = vmatpush1.xpose.msra.mxu0 0.0
  %4012 = vmatprep.subr.mxu0 0.0
  %4013 = vmatpush1.xpose.msra.mxu0 0.0
  %4014 = vmatprep.subr.mxu0 0.0
  %4015 = vmatpush1.xpose.msra.mxu0 0.0
  %4016 = vmatprep.subr.mxu0 0.0
  %4017 = vmatpush1.xpose.msra.mxu0 0.0
  %4018 = vmatprep.subr.mxu0 0.0
  %4019 = vmatpush1.xpose.msra.mxu0 0.0
  %4020 = vmatprep.subr.mxu0 0.0
  %4021 = vmatpush1.xpose.msra.mxu0 0.0
  %4022 = vmatprep.subr.mxu0 0.0
  %4023 = vmatpush1.xpose.msra.mxu0 0.0
  %4024 = vmatprep.subr.mxu0 0.0
  %4025 = vmatpush1.xpose.msra.mxu0 0.0
  %4026 = vmatprep.subr.mxu0 0.0
  %4027 = vmatpush1.xpose.msra.mxu0 0.0
  %4028 = vmatprep.subr.mxu0 0.0
  %4029 = vmatpush1.xpose.msra.mxu0 0.0
  %4030 = vmatprep.subr.mxu0 0.0
  %4031 = vmatpush1.xpose.msra.mxu0 0.0
  %4032 = vmatprep.subr.mxu0 0.0
  %4033 = vmatpush1.xpose.msra.mxu0 0.0
  %4034 = vmatprep.subr.mxu0 0.0
  %4035 = vmatpush1.xpose.msra.mxu0 0.0
  %4036 = vmatprep.subr.mxu0 0.0
  %4037 = vmatpush1.xpose.msra.mxu0 0.0
  %4038 = vmatprep.subr.mxu0 0.0
  %4039 = vmatpush1.xpose.msra.mxu0 0.0
  %4040 = vmatprep.subr.mxu0 0.0
  %4041 = vmatpush1.xpose.msra.mxu0 0.0
  %4042 = vmatprep.subr.mxu0 0.0
  %4043 = vmatpush1.xpose.msra.mxu0 0.0
  %4044 = vmatprep.subr.mxu0 0.0
  %4045 = vmatpush1.xpose.msra.mxu0 0.0
  %4046 = vmatprep.subr.mxu0 0.0
  %4047 = vmatpush1.xpose.msra.mxu0 0.0
  %4048 = vmatprep.subr.mxu0 0.0
  %4049 = vmatpush1.xpose.msra.mxu0 0.0
  %4050 = vmatprep.subr.mxu0 0.0
  %4051 = vmatpush1.xpose.msra.mxu0 0.0
  %4052 = vmatprep.subr.mxu0 0.0
  %4053 = vmatpush1.xpose.msra.mxu0 0.0
  %4054 = vmatprep.mubr.f32.mxu0 0.0
  %4055 = vmatmul.mubr.f32.gmra.mrb[0].mxu0 %v3988
  %v4056 = vpop.f32.mrb[0].mxu0
  %v4057 = vadd.f32 0.0, %v4056
  %v4058 = vpop.f32.mrb[0].mxu0
  %4059 = vdwg.mxu0
  %v4060 = vsel %vm625, %v3979, -inf
  %4061 = vmax.xlane.f32.xlu0 %v4060
  %v4062 = vpop.xlane.xlu0 %4061
  %v4063 = vsel %vm625, %v4057, -inf
  %4064 = vmax.xlane.f32.xlu0 %v4063
  %v4065 = vpop.xlane.xlu0 %4064
  %v4066 = vsub.f32 %v3979, %v4062
  %v4067 = vsub.f32 %v4057, %v4065
  %v4068 = vmul.f32 %v4066, 1.442695
  %v4069 = vpow.pop %v4068
  %v4070 = vmul.f32 %v4067, 1.442695
  %v4071 = vpow.pop %v4070
  %v4072 = vsel %vm625, %v4069, 0.0
  %4073 = vadd.xlane.f32.xlu0 %v4072
  %v4074 = vpop.xlane.xlu0 %4073
  %v4075 = vsel %vm625, %v4071, 0.0
  %4076 = vadd.xlane.f32.xlu0 %v4075
  %v4077 = vpop.xlane.xlu0 %4076
  %v4078 = vrcp.pop %v4074
  %v4079 = vmul.f32 %v4069, %v4078
  %v4080 = vrcp.pop %v4077
  %v4081 = vmul.f32 %v4071, %v4080
  %v4083 = vsel %vm648, %v4079, 0
  %4085 = vmatprep.subr.mxu0 0.0
  %4086 = vmatpush1.msra.mxu0 %v53
  %4087 = vmatprep.subr.mxu0 0.0
  %4088 = vmatpush1.msra.mxu0 0.0
  %4089 = vmatprep.subr.mxu0 0.0
  %4090 = vmatpush1.msra.mxu0 0.0
  %4091 = vmatprep.subr.mxu0 0.0
  %4092 = vmatpush1.msra.mxu0 0.0
  %4093 = vmatprep.subr.mxu0 0.0
  %4094 = vmatpush1.msra.mxu0 0.0
  %4095 = vmatprep.subr.mxu0 0.0
  %4096 = vmatpush1.msra.mxu0 0.0
  %4097 = vmatprep.subr.mxu0 0.0
  %4098 = vmatpush1.msra.mxu0 0.0
  %4099 = vmatprep.subr.mxu0 0.0
  %4100 = vmatpush1.msra.mxu0 0.0
  %4101 = vmatprep.subr.mxu0 0.0
  %4102 = vmatpush1.msra.mxu0 0.0
  %4103 = vmatprep.subr.mxu0 0.0
  %4104 = vmatpush1.msra.mxu0 0.0
  %4105 = vmatprep.subr.mxu0 0.0
  %4106 = vmatpush1.msra.mxu0 0.0
  %4107 = vmatprep.subr.mxu0 0.0
  %4108 = vmatpush1.msra.mxu0 0.0
  %4109 = vmatprep.subr.mxu0 0.0
  %4110 = vmatpush1.msra.mxu0 0.0
  %4111 = vmatprep.subr.mxu0 0.0
  %4112 = vmatpush1.msra.mxu0 0.0
  %4113 = vmatprep.subr.mxu0 0.0
  %4114 = vmatpush1.msra.mxu0 0.0
  %4115 = vmatprep.subr.mxu0 0.0
  %4116 = vmatpush1.msra.mxu0 0.0
  %4117 = vmatprep.subr.mxu0 0.0
  %4118 = vmatpush1.msra.mxu0 0.0
  %4119 = vmatprep.subr.mxu0 0.0
  %4120 = vmatpush1.msra.mxu0 0.0
  %4121 = vmatprep.subr.mxu0 0.0
  %4122 = vmatpush1.msra.mxu0 0.0
  %4123 = vmatprep.subr.mxu0 0.0
  %4124 = vmatpush1.msra.mxu0 0.0
  %4125 = vmatprep.subr.mxu0 0.0
  %4126 = vmatpush1.msra.mxu0 0.0
  %4127 = vmatprep.subr.mxu0 0.0
  %4128 = vmatpush1.msra.mxu0 0.0
  %4129 = vmatprep.subr.mxu0 0.0
  %4130 = vmatpush1.msra.mxu0 0.0
  %4131 = vmatprep.subr.mxu0 0.0
  %4132 = vmatpush1.msra.mxu0 0.0
  %4133 = vmatprep.subr.mxu0 0.0
  %4134 = vmatpush1.msra.mxu0 0.0
  %4135 = vmatprep.subr.mxu0 0.0
  %4136 = vmatpush1.msra.mxu0 0.0
  %4137 = vmatprep.subr.mxu0 0.0
  %4138 = vmatpush1.msra.mxu0 0.0
  %4139 = vmatprep.subr.mxu0 0.0
  %4140 = vmatpush1.msra.mxu0 0.0
  %4141 = vmatprep.subr.mxu0 0.0
  %4142 = vmatpush1.msra.mxu0 0.0
  %4143 = vmatprep.subr.mxu0 0.0
  %4144 = vmatpush1.msra.mxu0 0.0
  %4145 = vmatprep.subr.mxu0 0.0
  %4146 = vmatpush1.msra.mxu0 0.0
  %4147 = vmatprep.subr.mxu0 0.0
  %4148 = vmatpush1.msra.mxu0 0.0
  %4149 = vmatprep.mubr.f32.mxu0 0.0
  %4150 = vmatmul.mubr.f32.gmra.mrb[0].mxu0 %v4083
  %v4151 = vpop.f32.mrb[0].mxu0
  %v4152 = vadd.f32 0.0, %v4151
  %v4153 = vpop.f32.mrb[0].mxu0
  %4154 = vdwg.mxu0
  %v4156 = vsel %vm648, %v4081, 0
  %4158 = vmatprep.subr.mxu0 0.0
  %4159 = vmatpush1.msra.mxu0 %v54
  %4160 = vmatprep.subr.mxu0 0.0
  %4161 = vmatpush1.msra.mxu0 0.0
  %4162 = vmatprep.subr.mxu0 0.0
  %4163 = vmatpush1.msra.mxu0 0.0
  %4164 = vmatprep.subr.mxu0 0.0
  %4165 = vmatpush1.msra.mxu0 0.0
  %4166 = vmatprep.subr.mxu0 0.0
  %4167 = vmatpush1.msra.mxu0 0.0
  %4168 = vmatprep.subr.mxu0 0.0
  %4169 = vmatpush1.msra.mxu0 0.0
  %4170 = vmatprep.subr.mxu0 0.0
  %4171 = vmatpush1.msra.mxu0 0.0
  %4172 = vmatprep.subr.mxu0 0.0
  %4173 = vmatpush1.msra.mxu0 0.0
  %4174 = vmatprep.subr.mxu0 0.0
  %4175 = vmatpush1.msra.mxu0 0.0
  %4176 = vmatprep.subr.mxu0 0.0
  %4177 = vmatpush1.msra.mxu0 0.0
  %4178 = vmatprep.subr.mxu0 0.0
  %4179 = vmatpush1.msra.mxu0 0.0
  %4180 = vmatprep.subr.mxu0 0.0
  %4181 = vmatpush1.msra.mxu0 0.0
  %4182 = vmatprep.subr.mxu0 0.0
  %4183 = vmatpush1.msra.mxu0 0.0
  %4184 = vmatprep.subr.mxu0 0.0
  %4185 = vmatpush1.msra.mxu0 0.0
  %4186 = vmatprep.subr.mxu0 0.0
  %4187 = vmatpush1.msra.mxu0 0.0
  %4188 = vmatprep.subr.mxu0 0.0
  %4189 = vmatpush1.msra.mxu0 0.0
  %4190 = vmatprep.subr.mxu0 0.0
  %4191 = vmatpush1.msra.mxu0 0.0
  %4192 = vmatprep.subr.mxu0 0.0
  %4193 = vmatpush1.msra.mxu0 0.0
  %4194 = vmatprep.subr.mxu0 0.0
  %4195 = vmatpush1.msra.mxu0 0.0
  %4196 = vmatprep.subr.mxu0 0.0
  %4197 = vmatpush1.msra.mxu0 0.0
  %4198 = vmatprep.subr.mxu0 0.0
  %4199 = vmatpush1.msra.mxu0 0.0
  %4200 = vmatprep.subr.mxu0 0.0
  %4201 = vmatpush1.msra.mxu0 0.0
  %4202 = vmatprep.subr.mxu0 0.0
  %4203 = vmatpush1.msra.mxu0 0.0
  %4204 = vmatprep.subr.mxu0 0.0
  %4205 = vmatpush1.msra.mxu0 0.0
  %4206 = vmatprep.subr.mxu0 0.0
  %4207 = vmatpush1.msra.mxu0 0.0
  %4208 = vmatprep.subr.mxu0 0.0
  %4209 = vmatpush1.msra.mxu0 0.0
  %4210 = vmatprep.subr.mxu0 0.0
  %4211 = vmatpush1.msra.mxu0 0.0
  %4212 = vmatprep.subr.mxu0 0.0
  %4213 = vmatpush1.msra.mxu0 0.0
  %4214 = vmatprep.subr.mxu0 0.0
  %4215 = vmatpush1.msra.mxu0 0.0
  %4216 = vmatprep.subr.mxu0 0.0
  %4217 = vmatpush1.msra.mxu0 0.0
  %4218 = vmatprep.subr.mxu0 0.0
  %4219 = vmatpush1.msra.mxu0 0.0
  %4220 = vmatprep.subr.mxu0 0.0
  %4221 = vmatpush1.msra.mxu0 0.0
  %4222 = vmatprep.mubr.f32.mxu0 0.0
  %4223 = vmatmul.mubr.f32.gmra.mrb[0].mxu0 %v4156
  %v4224 = vpop.f32.mrb[0].mxu0
  %v4225 = vadd.f32 0.0, %v4224
  %v4226 = vpop.f32.mrb[0].mxu0
  %4227 = vdwg.mxu0
  %4228 = vmatprep.subr.mxu0 0.0
  %4229 = vmatpush1.xpose.msra.mxu0 %v796
  %4230 = vmatprep.subr.mxu0 0.0
  %4231 = vmatpush1.xpose.msra.mxu0 0.0
  %4232 = vmatprep.subr.mxu0 0.0
  %4233 = vmatpush1.xpose.msra.mxu0 0.0
  %4234 = vmatprep.subr.mxu0 0.0
  %4235 = vmatpush1.xpose.msra.mxu0 0.0
  %4236 = vmatprep.subr.mxu0 0.0
  %4237 = vmatpush1.xpose.msra.mxu0 0.0
  %4238 = vmatprep.subr.mxu0 0.0
  %4239 = vmatpush1.xpose.msra.mxu0 0.0
  %4240 = vmatprep.subr.mxu0 0.0
  %4241 = vmatpush1.xpose.msra.mxu0 0.0
  %4242 = vmatprep.subr.mxu0 0.0
  %4243 = vmatpush1.xpose.msra.mxu0 0.0
  %4244 = vmatprep.subr.mxu0 0.0
  %4245 = vmatpush1.xpose.msra.mxu0 0.0
  %4246 = vmatprep.subr.mxu0 0.0
  %4247 = vmatpush1.xpose.msra.mxu0 0.0
  %4248 = vmatprep.subr.mxu0 0.0
  %4249 = vmatpush1.xpose.msra.mxu0 0.0
  %4250 = vmatprep.subr.mxu0 0.0
  %4251 = vmatpush1.xpose.msra.mxu0 0.0
  %4252 = vmatprep.subr.mxu0 0.0
  %4253 = vmatpush1.xpose.msra.mxu0 0.0
  %4254 = vmatprep.subr.mxu0 0.0
  %4255 = vmatpush1.xpose.msra.mxu0 0.0
  %4256 = vmatprep.subr.mxu0 0.0
  %4257 = vmatpush1.xpose.msra.mxu0 0.0
  %4258 = vmatprep.subr.mxu0 0.0
  %4259 = vmatpush1.xpose.msra.mxu0 0.0
  %4260 = vmatprep.subr.mxu0 0.0
  %4261 = vmatpush1.xpose.msra.mxu0 0.0
  %4262 = vmatprep.subr.mxu0 0.0
  %4263 = vmatpush1.xpose.msra.mxu0 0.0
  %4264 = vmatprep.subr.mxu0 0.0
  %4265 = vmatpush1.xpose.msra.mxu0 0.0
  %4266 = vmatprep.subr.mxu0 0.0
  %4267 = vmatpush1.xpose.msra.mxu0 0.0
  %4268 = vmatprep.subr.mxu0 0.0
  %4269 = vmatpush1.xpose.msra.mxu0 0.0
  %4270 = vmatprep.subr.mxu0 0.0
  %4271 = vmatpush1.xpose.msra.mxu0 0.0
  %4272 = vmatprep.subr.mxu0 0.0
  %4273 = vmatpush1.xpose.msra.mxu0 0.0
  %4274 = vmatprep.subr.mxu0 0.0
  %4275 = vmatpush1.xpose.msra.mxu0 0.0
  %4276 = vmatprep.subr.mxu0 0.0
  %4277 = vmatpush1.xpose.msra.mxu0 0.0
  %4278 = vmatprep.subr.mxu0 0.0
  %4279 = vmatpush1.xpose.msra.mxu0 0.0
  %4280 = vmatprep.subr.mxu0 0.0
  %4281 = vmatpush1.xpose.msra.mxu0 0.0
  %4282 = vmatprep.subr.mxu0 0.0
  %4283 = vmatpush1.xpose.msra.mxu0 0.0
  %4284 = vmatprep.subr.mxu0 0.0
  %4285 = vmatpush1.xpose.msra.mxu0 0.0
  %4286 = vmatprep.subr.mxu0 0.0
  %4287 = vmatpush1.xpose.msra.mxu0 0.0
  %4288 = vmatprep.subr.mxu0 0.0
  %4289 = vmatpush1.xpose.msra.mxu0 0.0
  %4290 = vmatprep.subr.mxu0 0.0
  %4291 = vmatpush1.xpose.msra.mxu0 0.0
  %4292 = vmatprep.mubr.f32.mxu0 0.0
  %4293 = vmatmul.mubr.f32.gmra.mrb[0].mxu0 %v3910
  %v4294 = vpop.f32.mrb[0].mxu0
  %v4295 = vadd.f32 0.0, %v4294
  %v4296 = vpop.f32.mrb[0].mxu0
  %4297 = vdwg.mxu0
  %4298 = vmatprep.subr.mxu0 0.0
  %4299 = vmatpush1.xpose.msra.mxu0 %v869
  %4300 = vmatprep.subr.mxu0 0.0
  %4301 = vmatpush1.xpose.msra.mxu0 0.0
  %4302 = vmatprep.subr.mxu0 0.0
  %4303 = vmatpush1.xpose.msra.mxu0 0.0
  %4304 = vmatprep.subr.mxu0 0.0
  %4305 = vmatpush1.xpose.msra.mxu0 0.0
  %4306 = vmatprep.subr.mxu0 0.0
  %4307 = vmatpush1.xpose.msra.mxu0 0.0
  %4308 = vmatprep.subr.mxu0 0.0
  %4309 = vmatpush1.xpose.msra.mxu0 0.0
  %4310 = vmatprep.subr.mxu0 0.0
  %4311 = vmatpush1.xpose.msra.mxu0 0.0
  %4312 = vmatprep.subr.mxu0 0.0
  %4313 = vmatpush1.xpose.msra.mxu0 0.0
  %4314 = vmatprep.subr.mxu0 0.0
  %4315 = vmatpush1.xpose.msra.mxu0 0.0
  %4316 = vmatprep.subr.mxu0 0.0
  %4317 = vmatpush1.xpose.msra.mxu0 0.0
  %4318 = vmatprep.subr.mxu0 0.0
  %4319 = vmatpush1.xpose.msra.mxu0 0.0
  %4320 = vmatprep.subr.mxu0 0.0
  %4321 = vmatpush1.xpose.msra.mxu0 0.0
  %4322 = vmatprep.subr.mxu0 0.0
  %4323 = vmatpush1.xpose.msra.mxu0 0.0
  %4324 = vmatprep.subr.mxu0 0.0
  %4325 = vmatpush1.xpose.msra.mxu0 0.0
  %4326 = vmatprep.subr.mxu0 0.0
  %4327 = vmatpush1.xpose.msra.mxu0 0.0
  %4328 = vmatprep.subr.mxu0 0.0
  %4329 = vmatpush1.xpose.msra.mxu0 0.0
  %4330 = vmatprep.subr.mxu0 0.0
  %4331 = vmatpush1.xpose.msra.mxu0 0.0
  %4332 = vmatprep.subr.mxu0 0.0
  %4333 = vmatpush1.xpose.msra.mxu0 0.0
  %4334 = vmatprep.subr.mxu0 0.0
  %4335 = vmatpush1.xpose.msra.mxu0 0.0
  %4336 = vmatprep.subr.mxu0 0.0
  %4337 = vmatpush1.xpose.msra.mxu0 0.0
  %4338 = vmatprep.subr.mxu0 0.0
  %4339 = vmatpush1.xpose.msra.mxu0 0.0
  %4340 = vmatprep.subr.mxu0 0.0
  %4341 = vmatpush1.xpose.msra.mxu0 0.0
  %4342 = vmatprep.subr.mxu0 0.0
  %4343 = vmatpush1.xpose.msra.mxu0 0.0
  %4344 = vmatprep.subr.mxu0 0.0
  %4345 = vmatpush1.xpose.msra.mxu0 0.0
  %4346 = vmatprep.subr.mxu0 0.0
  %4347 = vmatpush1.xpose.msra.mxu0 0.0
  %4348 = vmatprep.subr.mxu0 0.0
  %4349 = vmatpush1.xpose.msra.mxu0 0.0
  %4350 = vmatprep.subr.mxu0 0.0
  %4351 = vmatpush1.xpose.msra.mxu0 0.0
  %4352 = vmatprep.subr.mxu0 0.0
  %4353 = vmatpush1.xpose.msra.mxu0 0.0
  %4354 = vmatprep.subr.mxu0 0.0
  %4355 = vmatpush1.xpose.msra.mxu0 0.0
  %4356 = vmatprep.subr.mxu0 0.0
  %4357 = vmatpush1.xpose.msra.mxu0 0.0
  %4358 = vmatprep.subr.mxu0 0.0
  %4359 = vmatpush1.xpose.msra.mxu0 0.0
  %4360 = vmatprep.subr.mxu0 0.0
  %4361 = vmatpush1.xpose.msra.mxu0 0.0
  %4362 = vmatprep.mubr.f32.mxu0 0.0
  %4363 = vmatmul.mubr.f32.gmra.mrb[0].mxu0 %v3988
  %v4364 = vpop.f32.mrb[0].mxu0
  %v4365 = vadd.f32 0.0, %v4364
  %v4366 = vpop.f32.mrb[0].mxu0
  %4367 = vdwg.mxu0
  %v4368 = vsel %vm625, %v4295, -inf
  %4369 = vmax.xlane.f32.xlu0 %v4368
  %v4370 = vpop.xlane.xlu0 %4369
  %v4371 = vsel %vm625, %v4365, -inf
  %4372 = vmax.xlane.f32.xlu0 %v4371
  %v4373 = vpop.xlane.xlu0 %4372
  %v4374 = vsub.f32 %v4295, %v4370
  %v4375 = vsub.f32 %v4365, %v4373
  %v4376 = vmul.f32 %v4374, 1.442695
  %v4377 = vpow.pop %v4376
  %v4378 = vmul.f32 %v4375, 1.442695
  %v4379 = vpow.pop %v4378
  %v4380 = vsel %vm625, %v4377, 0.0
  %4381 = vadd.xlane.f32.xlu0 %v4380
  %v4382 = vpop.xlane.xlu0 %4381
  %v4383 = vsel %vm625, %v4379, 0.0
  %4384 = vadd.xlane.f32.xlu0 %v4383
  %v4385 = vpop.xlane.xlu0 %4384
  %v4386 = vrcp.pop %v4382
  %v4387 = vmul.f32 %v4377, %v4386
  %v4388 = vrcp.pop %v4385
  %v4389 = vmul.f32 %v4379, %v4388
  %v4391 = vsel %vm648, %v4387, 0
  %4393 = vmatprep.subr.mxu0 0.0
  %4394 = vmatpush1.msra.mxu0 %v55
  %4395 = vmatprep.subr.mxu0 0.0
  %4396 = vmatpush1.msra.mxu0 0.0
  %4397 = vmatprep.subr.mxu0 0.0
  %4398 = vmatpush1.msra.mxu0 0.0
  %4399 = vmatprep.subr.mxu0 0.0
  %4400 = vmatpush1.msra.mxu0 0.0
  %4401 = vmatprep.subr.mxu0 0.0
  %4402 = vmatpush1.msra.mxu0 0.0
  %4403 = vmatprep.subr.mxu0 0.0
  %4404 = vmatpush1.msra.mxu0 0.0
  %4405 = vmatprep.subr.mxu0 0.0
  %4406 = vmatpush1.msra.mxu0 0.0
  %4407 = vmatprep.subr.mxu0 0.0
  %4408 = vmatpush1.msra.mxu0 0.0
  %4409 = vmatprep.subr.mxu0 0.0
  %4410 = vmatpush1.msra.mxu0 0.0
  %4411 = vmatprep.subr.mxu0 0.0
  %4412 = vmatpush1.msra.mxu0 0.0
  %4413 = vmatprep.subr.mxu0 0.0
  %4414 = vmatpush1.msra.mxu0 0.0
  %4415 = vmatprep.subr.mxu0 0.0
  %4416 = vmatpush1.msra.mxu0 0.0
  %4417 = vmatprep.subr.mxu0 0.0
  %4418 = vmatpush1.msra.mxu0 0.0
  %4419 = vmatprep.subr.mxu0 0.0
  %4420 = vmatpush1.msra.mxu0 0.0
  %4421 = vmatprep.subr.mxu0 0.0
  %4422 = vmatpush1.msra.mxu0 0.0
  %4423 = vmatprep.subr.mxu0 0.0
  %4424 = vmatpush1.msra.mxu0 0.0
  %4425 = vmatprep.subr.mxu0 0.0
  %4426 = vmatpush1.msra.mxu0 0.0
  %4427 = vmatprep.subr.mxu0 0.0
  %4428 = vmatpush1.msra.mxu0 0.0
  %4429 = vmatprep.subr.mxu0 0.0
  %4430 = vmatpush1.msra.mxu0 0.0
  %4431 = vmatprep.subr.mxu0 0.0
  %4432 = vmatpush1.msra.mxu0 0.0
  %4433 = vmatprep.subr.mxu0 0.0
  %4434 = vmatpush1.msra.mxu0 0.0
  %4435 = vmatprep.subr.mxu0 0.0
  %4436 = vmatpush1.msra.mxu0 0.0
  %4437 = vmatprep.subr.mxu0 0.0
  %4438 = vmatpush1.msra.mxu0 0.0
  %4439 = vmatprep.subr.mxu0 0.0
  %4440 = vmatpush1.msra.mxu0 0.0
  %4441 = vmatprep.subr.mxu0 0.0
  %4442 = vmatpush1.msra.mxu0 0.0
  %4443 = vmatprep.subr.mxu0 0.0
  %4444 = vmatpush1.msra.mxu0 0.0
  %4445 = vmatprep.subr.mxu0 0.0
  %4446 = vmatpush1.msra.mxu0 0.0
  %4447 = vmatprep.subr.mxu0 0.0
  %4448 = vmatpush1.msra.mxu0 0.0
  %4449 = vmatprep.subr.mxu0 0.0
  %4450 = vmatpush1.msra.mxu0 0.0
  %4451 = vmatprep.subr.mxu0 0.0
  %4452 = vmatpush1.msra.mxu0 0.0
  %4453 = vmatprep.subr.mxu0 0.0
  %4454 = vmatpush1.msra.mxu0 0.0
  %4455 = vmatprep.subr.mxu0 0.0
  %4456 = vmatpush1.msra.mxu0 0.0
  %4457 = vmatprep.mubr.f32.mxu0 0.0
  %4458 = vmatmul.mubr.f32.gmra.mrb[0].mxu0 %v4391
  %v4459 = vpop.f32.mrb[0].mxu0
  %v4460 = vadd.f32 0.0, %v4459
  %v4461 = vpop.f32.mrb[0].mxu0
  %4462 = vdwg.mxu0
  %v4464 = vsel %vm648, %v4389, 0
  %4466 = vmatprep.subr.mxu0 0.0
  %4467 = vmatpush1.msra.mxu0 %v56
  %4468 = vmatprep.subr.mxu0 0.0
  %4469 = vmatpush1.msra.mxu0 0.0
  %4470 = vmatprep.subr.mxu0 0.0
  %4471 = vmatpush1.msra.mxu0 0.0
  %4472 = vmatprep.subr.mxu0 0.0
  %4473 = vmatpush1.msra.mxu0 0.0
  %4474 = vmatprep.subr.mxu0 0.0
  %4475 = vmatpush1.msra.mxu0 0.0
  %4476 = vmatprep.subr.mxu0 0.0
  %4477 = vmatpush1.msra.mxu0 0.0
  %4478 = vmatprep.subr.mxu0 0.0
  %4479 = vmatpush1.msra.mxu0 0.0
  %4480 = vmatprep.subr.mxu0 0.0
  %4481 = vmatpush1.msra.mxu0 0.0
  %4482 = vmatprep.subr.mxu0 0.0
  %4483 = vmatpush1.msra.mxu0 0.0
  %4484 = vmatprep.subr.mxu0 0.0
  %4485 = vmatpush1.msra.mxu0 0.0
  %4486 = vmatprep.subr.mxu0 0.0
  %4487 = vmatpush1.msra.mxu0 0.0
  %4488 = vmatprep.subr.mxu0 0.0
  %4489 = vmatpush1.msra.mxu0 0.0
  %4490 = vmatprep.subr.mxu0 0.0
  %4491 = vmatpush1.msra.mxu0 0.0
  %4492 = vmatprep.subr.mxu0 0.0
  %4493 = vmatpush1.msra.mxu0 0.0
  %4494 = vmatprep.subr.mxu0 0.0
  %4495 = vmatpush1.msra.mxu0 0.0
  %4496 = vmatprep.subr.mxu0 0.0
  %4497 = vmatpush1.msra.mxu0 0.0
  %4498 = vmatprep.subr.mxu0 0.0
  %4499 = vmatpush1.msra.mxu0 0.0
  %4500 = vmatprep.subr.mxu0 0.0
  %4501 = vmatpush1.msra.mxu0 0.0
  %4502 = vmatprep.subr.mxu0 0.0
  %4503 = vmatpush1.msra.mxu0 0.0
  %4504 = vmatprep.subr.mxu0 0.0
  %4505 = vmatpush1.msra.mxu0 0.0
  %4506 = vmatprep.subr.mxu0 0.0
  %4507 = vmatpush1.msra.mxu0 0.0
  %4508 = vmatprep.subr.mxu0 0.0
  %4509 = vmatpush1.msra.mxu0 0.0
  %4510 = vmatprep.subr.mxu0 0.0
  %4511 = vmatpush1.msra.mxu0 0.0
  %4512 = vmatprep.subr.mxu0 0.0
  %4513 = vmatpush1.msra.mxu0 0.0
  %4514 = vmatprep.subr.mxu0 0.0
  %4515 = vmatpush1.msra.mxu0 0.0
  %4516 = vmatprep.subr.mxu0 0.0
  %4517 = vmatpush1.msra.mxu0 0.0
  %4518 = vmatprep.subr.mxu0 0.0
  %4519 = vmatpush1.msra.mxu0 0.0
  %4520 = vmatprep.subr.mxu0 0.0
  %4521 = vmatpush1.msra.mxu0 0.0
  %4522 = vmatprep.subr.mxu0 0.0
  %4523 = vmatpush1.msra.mxu0 0.0
  %4524 = vmatprep.subr.mxu0 0.0
  %4525 = vmatpush1.msra.mxu0 0.0
  %4526 = vmatprep.subr.mxu0 0.0
  %4527 = vmatpush1.msra.mxu0 0.0
  %4528 = vmatprep.subr.mxu0 0.0
  %4529 = vmatpush1.msra.mxu0 0.0
  %4530 = vmatprep.mubr.f32.mxu0 0.0
  %4531 = vmatmul.mubr.f32.gmra.mrb[0].mxu0 %v4464
  %v4532 = vpop.f32.mrb[0].mxu0
  %v4533 = vadd.f32 0.0, %v4532
  %v4534 = vpop.f32.mrb[0].mxu0
  %4535 = vdwg.mxu0
  %v4538 = vrot.slane %v4533, 7
  %v4539 = vsel %vm1112, %v4538, %v4460
  %v4540 = vsel %vm104, %v4539, 0
  %4542 = vmatprep.subr.mxu0 0.0
  %4543 = vmatpush1.msra.mxu0 %v70
  %4544 = vmatprep.subr.mxu0 0.0
  %4545 = vmatpush1.msra.mxu0 %v71
  %4546 = vmatprep.subr.mxu0 0.0
  %4547 = vmatpush1.msra.mxu0 %v72
  %4548 = vmatprep.subr.mxu0 0.0
  %4549 = vmatpush1.msra.mxu0 %v73
  %4550 = vmatprep.subr.mxu0 0.0
  %4551 = vmatpush1.msra.mxu0 0.0
  %4552 = vmatprep.subr.mxu0 0.0
  %4553 = vmatpush1.msra.mxu0 0.0
  %4554 = vmatprep.subr.mxu0 0.0
  %4555 = vmatpush1.msra.mxu0 0.0
  %4556 = vmatprep.subr.mxu0 0.0
  %4557 = vmatpush1.msra.mxu0 0.0
  %4558 = vmatprep.subr.mxu0 0.0
  %4559 = vmatpush1.msra.mxu0 0.0
  %4560 = vmatprep.subr.mxu0 0.0
  %4561 = vmatpush1.msra.mxu0 0.0
  %4562 = vmatprep.subr.mxu0 0.0
  %4563 = vmatpush1.msra.mxu0 0.0
  %4564 = vmatprep.subr.mxu0 0.0
  %4565 = vmatpush1.msra.mxu0 0.0
  %4566 = vmatprep.subr.mxu0 0.0
  %4567 = vmatpush1.msra.mxu0 0.0
  %4568 = vmatprep.subr.mxu0 0.0
  %4569 = vmatpush1.msra.mxu0 0.0
  %4570 = vmatprep.subr.mxu0 0.0
  %4571 = vmatpush1.msra.mxu0 0.0
  %4572 = vmatprep.subr.mxu0 0.0
  %4573 = vmatpush1.msra.mxu0 0.0
  %4574 = vmatprep.subr.mxu0 0.0
  %4575 = vmatpush1.msra.mxu0 0.0
  %4576 = vmatprep.subr.mxu0 0.0
  %4577 = vmatpush1.msra.mxu0 0.0
  %4578 = vmatprep.subr.mxu0 0.0
  %4579 = vmatpush1.msra.mxu0 0.0
  %4580 = vmatprep.subr.mxu0 0.0
  %4581 = vmatpush1.msra.mxu0 0.0
  %4582 = vmatprep.subr.mxu0 0.0
  %4583 = vmatpush1.msra.mxu0 0.0
  %4584 = vmatprep.subr.mxu0 0.0
  %4585 = vmatpush1.msra.mxu0 0.0
  %4586 = vmatprep.subr.mxu0 0.0
  %4587 = vmatpush1.msra.mxu0 0.0
  %4588 = vmatprep.subr.mxu0 0.0
  %4589 = vmatpush1.msra.mxu0 0.0
  %4590 = vmatprep.subr.mxu0 0.0
  %4591 = vmatpush1.msra.mxu0 0.0
  %4592 = vmatprep.subr.mxu0 0.0
  %4593 = vmatpush1.msra.mxu0 0.0
  %4594 = vmatprep.subr.mxu0 0.0
  %4595 = vmatpush1.msra.mxu0 0.0
  %4596 = vmatprep.subr.mxu0 0.0
  %4597 = vmatpush1.msra.mxu0 0.0
  %4598 = vmatprep.subr.mxu0 0.0
  %4599 = vmatpush1.msra.mxu0 0.0
  %4600 = vmatprep.subr.mxu0 0.0
  %4601 = vmatpush1.msra.mxu0 0.0
  %4602 = vmatprep.subr.mxu0 0.0
  %4603 = vmatpush1.msra.mxu0 0.0
  %4604 = vmatprep.subr.mxu0 0.0
  %4605 = vmatpush1.msra.mxu0 0.0
  %4606 = vmatprep.mubr.f32.mxu0 0.0
  %4607 = vmatmul.mubr.f32.gmra.mrb[0].mxu0 %v4540
  %v4608 = vpop.f32.mrb[0].mxu0
  %v4609 = vadd.f32 0.0, %v4608
  %v4610 = vpop.f32.mrb[0].mxu0
  %4611 = vdwg.mxu0
  %v4614 = vrot.slane %v4225, 7
  %v4615 = vsel %vm1112, %v4614, %v4152
  %v4616 = vsel %vm104, %v4615, 0
  %4618 = vmatprep.subr.mxu0 0.0
  %4619 = vmatpush1.msra.mxu0 %v66
  %4620 = vmatprep.subr.mxu0 0.0
  %4621 = vmatpush1.msra.mxu0 %v67
  %4622 = vmatprep.subr.mxu0 0.0
  %4623 = vmatpush1.msra.mxu0 %v68
  %4624 = vmatprep.subr.mxu0 0.0
  %4625 = vmatpush1.msra.mxu0 %v69
  %4626 = vmatprep.subr.mxu0 0.0
  %4627 = vmatpush1.msra.mxu0 0.0
  %4628 = vmatprep.subr.mxu0 0.0
  %4629 = vmatpush1.msra.mxu0 0.0
  %4630 = vmatprep.subr.mxu0 0.0
  %4631 = vmatpush1.msra.mxu0 0.0
  %4632 = vmatprep.subr.mxu0 0.0
  %4633 = vmatpush1.msra.mxu0 0.0
  %4634 = vmatprep.subr.mxu0 0.0
  %4635 = vmatpush1.msra.mxu0 0.0
  %4636 = vmatprep.subr.mxu0 0.0
  %4637 = vmatpush1.msra.mxu0 0.0
  %4638 = vmatprep.subr.mxu0 0.0
  %4639 = vmatpush1.msra.mxu0 0.0
  %4640 = vmatprep.subr.mxu0 0.0
  %4641 = vmatpush1.msra.mxu0 0.0
  %4642 = vmatprep.subr.mxu0 0.0
  %4643 = vmatpush1.msra.mxu0 0.0
  %4644 = vmatprep.subr.mxu0 0.0
  %4645 = vmatpush1.msra.mxu0 0.0
  %4646 = vmatprep.subr.mxu0 0.0
  %4647 = vmatpush1.msra.mxu0 0.0
  %4648 = vmatprep.subr.mxu0 0.0
  %4649 = vmatpush1.msra.mxu0 0.0
  %4650 = vmatprep.subr.mxu0 0.0
  %4651 = vmatpush1.msra.mxu0 0.0
  %4652 = vmatprep.subr.mxu0 0.0
  %4653 = vmatpush1.msra.mxu0 0.0
  %4654 = vmatprep.subr.mxu0 0.0
  %4655 = vmatpush1.msra.mxu0 0.0
  %4656 = vmatprep.subr.mxu0 0.0
  %4657 = vmatpush1.msra.mxu0 0.0
  %4658 = vmatprep.subr.mxu0 0.0
  %4659 = vmatpush1.msra.mxu0 0.0
  %4660 = vmatprep.subr.mxu0 0.0
  %4661 = vmatpush1.msra.mxu0 0.0
  %4662 = vmatprep.subr.mxu0 0.0
  %4663 = vmatpush1.msra.mxu0 0.0
  %4664 = vmatprep.subr.mxu0 0.0
  %4665 = vmatpush1.msra.mxu0 0.0
  %4666 = vmatprep.subr.mxu0 0.0
  %4667 = vmatpush1.msra.mxu0 0.0
  %4668 = vmatprep.subr.mxu0 0.0
  %4669 = vmatpush1.msra.mxu0 0.0
  %4670 = vmatprep.subr.mxu0 0.0
  %4671 = vmatpush1.msra.mxu0 0.0
  %4672 = vmatprep.subr.mxu0 0.0
  %4673 = vmatpush1.msra.mxu0 0.0
  %4674 = vmatprep.subr.mxu0 0.0
  %4675 = vmatpush1.msra.mxu0 0.0
  %4676 = vmatprep.subr.mxu0 0.0
  %4677 = vmatpush1.msra.mxu0 0.0
  %4678 = vmatprep.subr.mxu0 0.0
  %4679 = vmatpush1.msra.mxu0 0.0
  %4680 = vmatprep.subr.mxu0 0.0
  %4681 = vmatpush1.msra.mxu0 0.0
  %4682 = vmatprep.mubr.f32.mxu0 0.0
  %4683 = vmatmul.mubr.f32.gmra.mrb[0].mxu0 %v4616
  %v4684 = vpop.f32.mrb[0].mxu0
  %v4685 = vadd.f32 %v4609, %v4684
  %v4686 = vpop.f32.mrb[0].mxu0
  %4687 = vdwg.mxu0
  %4688 = vrot.lane.b32.xlu0 %v3880, 32
  %v4689 = vpop.permute.xlu0 %4688
  %v4690 = vsel %vm104, %v4689, 0
  %4692 = vmatprep.subr.mxu0 0.0
  %4693 = vmatpush1.msra.mxu0 %v74
  %4694 = vmatprep.subr.mxu0 0.0
  %4695 = vmatpush1.msra.mxu0 %v75
  %4696 = vmatprep.subr.mxu0 0.0
  %4697 = vmatpush1.msra.mxu0 %v76
  %4698 = vmatprep.subr.mxu0 0.0
  %4699 = vmatpush1.msra.mxu0 %v77
  %4700 = vmatprep.subr.mxu0 0.0
  %4701 = vmatpush1.msra.mxu0 0.0
  %4702 = vmatprep.subr.mxu0 0.0
  %4703 = vmatpush1.msra.mxu0 0.0
  %4704 = vmatprep.subr.mxu0 0.0
  %4705 = vmatpush1.msra.mxu0 0.0
  %4706 = vmatprep.subr.mxu0 0.0
  %4707 = vmatpush1.msra.mxu0 0.0
  %4708 = vmatprep.subr.mxu0 0.0
  %4709 = vmatpush1.msra.mxu0 0.0
  %4710 = vmatprep.subr.mxu0 0.0
  %4711 = vmatpush1.msra.mxu0 0.0
  %4712 = vmatprep.subr.mxu0 0.0
  %4713 = vmatpush1.msra.mxu0 0.0
  %4714 = vmatprep.subr.mxu0 0.0
  %4715 = vmatpush1.msra.mxu0 0.0
  %4716 = vmatprep.subr.mxu0 0.0
  %4717 = vmatpush1.msra.mxu0 0.0
  %4718 = vmatprep.subr.mxu0 0.0
  %4719 = vmatpush1.msra.mxu0 0.0
  %4720 = vmatprep.subr.mxu0 0.0
  %4721 = vmatpush1.msra.mxu0 0.0
  %4722 = vmatprep.subr.mxu0 0.0
  %4723 = vmatpush1.msra.mxu0 0.0
  %4724 = vmatprep.subr.mxu0 0.0
  %4725 = vmatpush1.msra.mxu0 0.0
  %4726 = vmatprep.subr.mxu0 0.0
  %4727 = vmatpush1.msra.mxu0 0.0
  %4728 = vmatprep.subr.mxu0 0.0
  %4729 = vmatpush1.msra.mxu0 0.0
  %4730 = vmatprep.subr.mxu0 0.0
  %4731 = vmatpush1.msra.mxu0 0.0
  %4732 = vmatprep.subr.mxu0 0.0
  %4733 = vmatpush1.msra.mxu0 0.0
  %4734 = vmatprep.subr.mxu0 0.0
  %4735 = vmatpush1.msra.mxu0 0.0
  %4736 = vmatprep.subr.mxu0 0.0
  %4737 = vmatpush1.msra.mxu0 0.0
  %4738 = vmatprep.subr.mxu0 0.0
  %4739 = vmatpush1.msra.mxu0 0.0
  %4740 = vmatprep.subr.mxu0 0.0
  %4741 = vmatpush1.msra.mxu0 0.0
  %4742 = vmatprep.subr.mxu0 0.0
  %4743 = vmatpush1.msra.mxu0 0.0
  %4744 = vmatprep.subr.mxu0 0.0
  %4745 = vmatpush1.msra.mxu0 0.0
  %4746 = vmatprep.subr.mxu0 0.0
  %4747 = vmatpush1.msra.mxu0 0.0
  %4748 = vmatprep.subr.mxu0 0.0
  %4749 = vmatpush1.msra.mxu0 0.0
  %4750 = vmatprep.subr.mxu0 0.0
  %4751 = vmatpush1.msra.mxu0 0.0
  %4752 = vmatprep.subr.mxu0 0.0
  %4753 = vmatpush1.msra.mxu0 0.0
  %4754 = vmatprep.subr.mxu0 0.0
  %4755 = vmatpush1.msra.mxu0 0.0
  %4756 = vmatprep.mubr.f32.mxu0 0.0
  %4757 = vmatmul.mubr.f32.gmra.mrb[0].mxu0 %v4690
  %v4758 = vpop.f32.mrb[0].mxu0
  %v4759 = vadd.f32 0.0, %v4758
  %v4760 = vpop.f32.mrb[0].mxu0
  %4761 = vdwg.mxu0
  %v4762 = vadd.f32 %v4685, %v4759
  %v4763 = vadd.f32 %v4762, %v87
  %v4764 = vtanh.pop %v4763
  %v4766 = vsel %vm104, %v4764, 0
  %4768 = vmatprep.subr.mxu0 0.0
  %4769 = vmatpush1.msra.mxu0 %v78
  %4770 = vmatprep.subr.mxu0 0.0
  %4771 = vmatpush1.msra.mxu0 %v79
  %4772 = vmatprep.subr.mxu0 0.0
  %4773 = vmatpush1.msra.mxu0 %v80
  %4774 = vmatprep.subr.mxu0 0.0
  %4775 = vmatpush1.msra.mxu0 %v81
  %4776 = vmatprep.subr.mxu0 0.0
  %4777 = vmatpush1.msra.mxu0 0.0
  %4778 = vmatprep.subr.mxu0 0.0
  %4779 = vmatpush1.msra.mxu0 0.0
  %4780 = vmatprep.subr.mxu0 0.0
  %4781 = vmatpush1.msra.mxu0 0.0
  %4782 = vmatprep.subr.mxu0 0.0
  %4783 = vmatpush1.msra.mxu0 0.0
  %4784 = vmatprep.subr.mxu0 0.0
  %4785 = vmatpush1.msra.mxu0 0.0
  %4786 = vmatprep.subr.mxu0 0.0
  %4787 = vmatpush1.msra.mxu0 0.0
  %4788 = vmatprep.subr.mxu0 0.0
  %4789 = vmatpush1.msra.mxu0 0.0
  %4790 = vmatprep.subr.mxu0 0.0
  %4791 = vmatpush1.msra.mxu0 0.0
  %4792 = vmatprep.subr.mxu0 0.0
  %4793 = vmatpush1.msra.mxu0 0.0
  %4794 = vmatprep.subr.mxu0 0.0
  %4795 = vmatpush1.msra.mxu0 0.0
  %4796 = vmatprep.subr.mxu0 0.0
  %4797 = vmatpush1.msra.mxu0 0.0
  %4798 = vmatprep.subr.mxu0 0.0
  %4799 = vmatpush1.msra.mxu0 0.0
  %4800 = vmatprep.subr.mxu0 0.0
  %4801 = vmatpush1.msra.mxu0 0.0
  %4802 = vmatprep.subr.mxu0 0.0
  %4803 = vmatpush1.msra.mxu0 0.0
  %4804 = vmatprep.subr.mxu0 0.0
  %4805 = vmatpush1.msra.mxu0 0.0
  %4806 = vmatprep.subr.mxu0 0.0
  %4807 = vmatpush1.msra.mxu0 0.0
  %4808 = vmatprep.subr.mxu0 0.0
  %4809 = vmatpush1.msra.mxu0 0.0
  %4810 = vmatprep.subr.mxu0 0.0
  %4811 = vmatpush1.msra.mxu0 0.0
  %4812 = vmatprep.subr.mxu0 0.0
  %4813 = vmatpush1.msra.mxu0 0.0
  %4814 = vmatprep.subr.mxu0 0.0
  %4815 = vmatpush1.msra.mxu0 0.0
  %4816 = vmatprep.subr.mxu0 0.0
  %4817 = vmatpush1.msra.mxu0 0.0
  %4818 = vmatprep.subr.mxu0 0.0
  %4819 = vmatpush1.msra.mxu0 0.0
  %4820 = vmatprep.subr.mxu0 0.0
  %4821 = vmatpush1.msra.mxu0 0.0
  %4822 = vmatprep.subr.mxu0 0.0
  %4823 = vmatpush1.msra.mxu0 0.0
  %4824 = vmatprep.subr.mxu0 0.0
  %4825 = vmatpush1.msra.mxu0 0.0
  %4826 = vmatprep.subr.mxu0 0.0
  %4827 = vmatpush1.msra.mxu0 0.0
  %4828 = vmatprep.subr.mxu0 0.0
  %4829 = vmatpush1.msra.mxu0 0.0
  %4830 = vmatprep.subr.mxu0 0.0
  %4831 = vmatpush1.msra.mxu0 0.0
  %4832 = vmatprep.mubr.f32.mxu0 0.0
  %4833 = vmatmul.mubr.f32.gmra.mrb[0].mxu0 %v4766
  %v4834 = vpop.f32.mrb[0].mxu0
  %v4835 = vadd.f32 %v94, %v4834
  %v4836 = vpop.f32.mrb[0].mxu0
  %4837 = vdwg.mxu0
  %v4838 = vsel %vm1412, %v4835, -inf
  %4839 = vmax.xlane.f32.xlu0 %v4838
  %v4840 = vpop.xlane.xlu0 %4839
  %v4841 = vsub.f32 %v4835, %v4840
  %v4842 = vmul.f32 %v4841, 1.442695
  %v4843 = vpow.pop %v4842
  %v4844 = vsel %vm1412, %v4843, 0.0
  %4845 = vadd.xlane.f32.xlu0 %v4844
  %v4846 = vpop.xlane.xlu0 %4845
  %v4847 = vlog2.pop %v4846
  %v4848 = vmul.f32 %v4847, 0.6931472
  %v4849 = vsub.f32 %v4841, %v4848
  %s4850 = scalar_lea.vmem %s16, 6
  %4851 = vst [vmem:[%s4850] sm:$0x3] %v4849
  %s4852 = scalar_lea.vmem %s0, 8
  %v4853 = vld [vmem:[%s4852] sm:$0x3]
  %v4855 = vsel %vm104, %v4853, 0
  %4857 = vmatprep.subr.mxu0 0.0
  %4858 = vmatpush1.msra.mxu0 %v58
  %4859 = vmatprep.subr.mxu0 0.0
  %4860 = vmatpush1.msra.mxu0 %v59
  %4861 = vmatprep.subr.mxu0 0.0
  %4862 = vmatpush1.msra.mxu0 %v60
  %4863 = vmatprep.subr.mxu0 0.0
  %4864 = vmatpush1.msra.mxu0 %v61
  %4865 = vmatprep.subr.mxu0 0.0
  %4866 = vmatpush1.msra.mxu0 0.0
  %4867 = vmatprep.subr.mxu0 0.0
  %4868 = vmatpush1.msra.mxu0 0.0
  %4869 = vmatprep.subr.mxu0 0.0
  %4870 = vmatpush1.msra.mxu0 0.0
  %4871 = vmatprep.subr.mxu0 0.0
  %4872 = vmatpush1.msra.mxu0 0.0
  %4873 = vmatprep.subr.mxu0 0.0
  %4874 = vmatpush1.msra.mxu0 0.0
  %4875 = vmatprep.subr.mxu0 0.0
  %4876 = vmatpush1.msra.mxu0 0.0
  %4877 = vmatprep.subr.mxu0 0.0
  %4878 = vmatpush1.msra.mxu0 0.0
  %4879 = vmatprep.subr.mxu0 0.0
  %4880 = vmatpush1.msra.mxu0 0.0
  %4881 = vmatprep.subr.mxu0 0.0
  %4882 = vmatpush1.msra.mxu0 0.0
  %4883 = vmatprep.subr.mxu0 0.0
  %4884 = vmatpush1.msra.mxu0 0.0
  %4885 = vmatprep.subr.mxu0 0.0
  %4886 = vmatpush1.msra.mxu0 0.0
  %4887 = vmatprep.subr.mxu0 0.0
  %4888 = vmatpush1.msra.mxu0 0.0
  %4889 = vmatprep.subr.mxu0 0.0
  %4890 = vmatpush1.msra.mxu0 0.0
  %4891 = vmatprep.subr.mxu0 0.0
  %4892 = vmatpush1.msra.mxu0 0.0
  %4893 = vmatprep.subr.mxu0 0.0
  %4894 = vmatpush1.msra.mxu0 0.0
  %4895 = vmatprep.subr.mxu0 0.0
  %4896 = vmatpush1.msra.mxu0 0.0
  %4897 = vmatprep.subr.mxu0 0.0
  %4898 = vmatpush1.msra.mxu0 0.0
  %4899 = vmatprep.subr.mxu0 0.0
  %4900 = vmatpush1.msra.mxu0 0.0
  %4901 = vmatprep.subr.mxu0 0.0
  %4902 = vmatpush1.msra.mxu0 0.0
  %4903 = vmatprep.subr.mxu0 0.0
  %4904 = vmatpush1.msra.mxu0 0.0
  %4905 = vmatprep.subr.mxu0 0.0
  %4906 = vmatpush1.msra.mxu0 0.0
  %4907 = vmatprep.subr.mxu0 0.0
  %4908 = vmatpush1.msra.mxu0 0.0
  %4909 = vmatprep.subr.mxu0 0.0
  %4910 = vmatpush1.msra.mxu0 0.0
  %4911 = vmatprep.subr.mxu0 0.0
  %4912 = vmatpush1.msra.mxu0 0.0
  %4913 = vmatprep.subr.mxu0 0.0
  %4914 = vmatpush1.msra.mxu0 0.0
  %4915 = vmatprep.subr.mxu0 0.0
  %4916 = vmatpush1.msra.mxu0 0.0
  %4917 = vmatprep.subr.mxu0 0.0
  %4918 = vmatpush1.msra.mxu0 0.0
  %4919 = vmatprep.subr.mxu0 0.0
  %4920 = vmatpush1.msra.mxu0 0.0
  %4921 = vmatprep.mubr.f32.mxu0 0.0
  %4922 = vmatmul.mubr.f32.gmra.mrb[0].mxu0 %v4855
  %v4923 = vpop.f32.mrb[0].mxu0
  %v4924 = vadd.f32 0.0, %v4923
  %v4925 = vpop.f32.mrb[0].mxu0
  %4926 = vdwg.mxu0
  %v4927 = vadd.f32 %v266, %v4924
  %4928 = vmatprep.subr.mxu0 0.0
  %4929 = vmatpush1.msra.mxu0 %v62
  %4930 = vmatprep.subr.mxu0 0.0
  %4931 = vmatpush1.msra.mxu0 %v63
  %4932 = vmatprep.subr.mxu0 0.0
  %4933 = vmatpush1.msra.mxu0 %v64
  %4934 = vmatprep.subr.mxu0 0.0
  %4935 = vmatpush1.msra.mxu0 %v65
  %4936 = vmatprep.subr.mxu0 0.0
  %4937 = vmatpush1.msra.mxu0 0.0
  %4938 = vmatprep.subr.mxu0 0.0
  %4939 = vmatpush1.msra.mxu0 0.0
  %4940 = vmatprep.subr.mxu0 0.0
  %4941 = vmatpush1.msra.mxu0 0.0
  %4942 = vmatprep.subr.mxu0 0.0
  %4943 = vmatpush1.msra.mxu0 0.0
  %4944 = vmatprep.subr.mxu0 0.0
  %4945 = vmatpush1.msra.mxu0 0.0
  %4946 = vmatprep.subr.mxu0 0.0
  %4947 = vmatpush1.msra.mxu0 0.0
  %4948 = vmatprep.subr.mxu0 0.0
  %4949 = vmatpush1.msra.mxu0 0.0
  %4950 = vmatprep.subr.mxu0 0.0
  %4951 = vmatpush1.msra.mxu0 0.0
  %4952 = vmatprep.subr.mxu0 0.0
  %4953 = vmatpush1.msra.mxu0 0.0
  %4954 = vmatprep.subr.mxu0 0.0
  %4955 = vmatpush1.msra.mxu0 0.0
  %4956 = vmatprep.subr.mxu0 0.0
  %4957 = vmatpush1.msra.mxu0 0.0
  %4958 = vmatprep.subr.mxu0 0.0
  %4959 = vmatpush1.msra.mxu0 0.0
  %4960 = vmatprep.subr.mxu0 0.0
  %4961 = vmatpush1.msra.mxu0 0.0
  %4962 = vmatprep.subr.mxu0 0.0
  %4963 = vmatpush1.msra.mxu0 0.0
  %4964 = vmatprep.subr.mxu0 0.0
  %4965 = vmatpush1.msra.mxu0 0.0
  %4966 = vmatprep.subr.mxu0 0.0
  %4967 = vmatpush1.msra.mxu0 0.0
  %4968 = vmatprep.subr.mxu0 0.0
  %4969 = vmatpush1.msra.mxu0 0.0
  %4970 = vmatprep.subr.mxu0 0.0
  %4971 = vmatpush1.msra.mxu0 0.0
  %4972 = vmatprep.subr.mxu0 0.0
  %4973 = vmatpush1.msra.mxu0 0.0
  %4974 = vmatprep.subr.mxu0 0.0
  %4975 = vmatpush1.msra.mxu0 0.0
  %4976 = vmatprep.subr.mxu0 0.0
  %4977 = vmatpush1.msra.mxu0 0.0
  %4978 = vmatprep.subr.mxu0 0.0
  %4979 = vmatpush1.msra.mxu0 0.0
  %4980 = vmatprep.subr.mxu0 0.0
  %4981 = vmatpush1.msra.mxu0 0.0
  %4982 = vmatprep.subr.mxu0 0.0
  %4983 = vmatpush1.msra.mxu0 0.0
  %4984 = vmatprep.subr.mxu0 0.0
  %4985 = vmatpush1.msra.mxu0 0.0
  %4986 = vmatprep.subr.mxu0 0.0
  %4987 = vmatpush1.msra.mxu0 0.0
  %4988 = vmatprep.subr.mxu0 0.0
  %4989 = vmatpush1.msra.mxu0 0.0
  %4990 = vmatprep.subr.mxu0 0.0
  %4991 = vmatpush1.msra.mxu0 0.0
  %4992 = vmatprep.mubr.f32.mxu0 0.0
  %4993 = vmatmul.mubr.f32.gmra.mrb[0].mxu0 %v4690
  %v4994 = vpop.f32.mrb[0].mxu0
  %v4995 = vadd.f32 0.0, %v4994
  %v4996 = vpop.f32.mrb[0].mxu0
  %4997 = vdwg.mxu0
  %v4998 = vadd.f32 %v4927, %v4995
  %v4999 = vxor.u32 %v4998, 2147483648
  %v5000 = vmul.f32 %v4999, 1.442695
  %v5001 = vpow.pop %v5000
  %v5002 = vadd.f32 %v5001, 1.0
  %v5003 = vrcp.pop %v5002
  %v5004 = vmul.f32 1.0, %v5003
  %v5005 = vtanh.pop %v4998
  %v5006 = vmul.f32 %v5004, %v3874
  %5008 = vrot.lane.b32.xlu0 %v5005, 64
  %v5009 = vpop.permute.xlu0 %5008
  %v5011 = vmul.f32 %v5004, %v5009
  %5013 = vrot.lane.b32.xlu0 %v5011, 32
  %v5014 = vpop.permute.xlu0 %5013
  %v5016 = vadd.f32 %v5006, %v5014
  %v5017 = vtanh.pop %v5016
  %5019 = vrot.lane.b32.xlu0 %v5017, 64
  %v5020 = vpop.permute.xlu0 %5019
  %v5022 = vmul.f32 %v5004, %v5020
  %v5025 = vunpack.c.l.s4 1966171168
  %v5026 = vunpack.c.0.s8 %v5025
  %v5027 = vlaneseq
  %v5028 = vshrl.u32 %v5027, 7
  %v5029 = vsub.s32 %v5026, %v5028
  %v5030 = vrot.slane %v5022, %v5029
  %v5031 = vcombine.high %v5030, %v5030
  %v5033 = vunpack.c.l.s4 1966171168
  %v5034 = vunpack.c.0.s8 %v5033
  %v5035 = vlaneseq
  %v5036 = vshrl.u32 %v5035, 7
  %v5037 = vsub.s32 %v5034, %v5036
  %v5038 = vrot.slane %v5030, %v5037
  %v5040 = vunpack.c.l.s4 1966171168
  %v5041 = vunpack.c.0.s8 %v5040
  %v5042 = vlaneseq
  %v5043 = vshrl.u32 %v5042, 7
  %v5044 = vsub.s32 %v5041, %v5043
  %v5045 = vrot.slane %v5031, %v5044
  %v5046 = vlaneseq
  %v5047 = vshrl.u32 %v5046, 7
  %v5048 = vsub.s32 0, %v5047
  %v5049 = vrot.slane %v5038, %v5048
  %5050 = vrot.lane.b32.xlu0 %v5049, 32
  %v5051 = vpop.permute.xlu0 %5050
  %v5052 = vsel %vm104, %v5051, 0
  %5054 = vmatprep.subr.mxu0 0.0
  %5055 = vmatpush1.xpose.msra.mxu0 %v472
  %5056 = vmatprep.subr.mxu0 0.0
  %5057 = vmatpush1.xpose.msra.mxu0 0.0
  %5058 = vmatprep.subr.mxu0 0.0
  %5059 = vmatpush1.xpose.msra.mxu0 0.0
  %5060 = vmatprep.subr.mxu0 0.0
  %5061 = vmatpush1.xpose.msra.mxu0 0.0
  %5062 = vmatprep.subr.mxu0 0.0
  %5063 = vmatpush1.xpose.msra.mxu0 0.0
  %5064 = vmatprep.subr.mxu0 0.0
  %5065 = vmatpush1.xpose.msra.mxu0 0.0
  %5066 = vmatprep.subr.mxu0 0.0
  %5067 = vmatpush1.xpose.msra.mxu0 0.0
  %5068 = vmatprep.subr.mxu0 0.0
  %5069 = vmatpush1.xpose.msra.mxu0 0.0
  %5070 = vmatprep.subr.mxu0 0.0
  %5071 = vmatpush1.xpose.msra.mxu0 0.0
  %5072 = vmatprep.subr.mxu0 0.0
  %5073 = vmatpush1.xpose.msra.mxu0 0.0
  %5074 = vmatprep.subr.mxu0 0.0
  %5075 = vmatpush1.xpose.msra.mxu0 0.0
  %5076 = vmatprep.subr.mxu0 0.0
  %5077 = vmatpush1.xpose.msra.mxu0 0.0
  %5078 = vmatprep.subr.mxu0 0.0
  %5079 = vmatpush1.xpose.msra.mxu0 0.0
  %5080 = vmatprep.subr.mxu0 0.0
  %5081 = vmatpush1.xpose.msra.mxu0 0.0
  %5082 = vmatprep.subr.mxu0 0.0
  %5083 = vmatpush1.xpose.msra.mxu0 0.0
  %5084 = vmatprep.subr.mxu0 0.0
  %5085 = vmatpush1.xpose.msra.mxu0 0.0
  %5086 = vmatprep.subr.mxu0 0.0
  %5087 = vmatpush1.xpose.msra.mxu0 0.0
  %5088 = vmatprep.subr.mxu0 0.0
  %5089 = vmatpush1.xpose.msra.mxu0 0.0
  %5090 = vmatprep.subr.mxu0 0.0
  %5091 = vmatpush1.xpose.msra.mxu0 0.0
  %5092 = vmatprep.subr.mxu0 0.0
  %5093 = vmatpush1.xpose.msra.mxu0 0.0
  %5094 = vmatprep.subr.mxu0 0.0
  %5095 = vmatpush1.xpose.msra.mxu0 0.0
  %5096 = vmatprep.subr.mxu0 0.0
  %5097 = vmatpush1.xpose.msra.mxu0 0.0
  %5098 = vmatprep.subr.mxu0 0.0
  %5099 = vmatpush1.xpose.msra.mxu0 0.0
  %5100 = vmatprep.subr.mxu0 0.0
  %5101 = vmatpush1.xpose.msra.mxu0 0.0
  %5102 = vmatprep.subr.mxu0 0.0
  %5103 = vmatpush1.xpose.msra.mxu0 0.0
  %5104 = vmatprep.subr.mxu0 0.0
  %5105 = vmatpush1.xpose.msra.mxu0 0.0
  %5106 = vmatprep.subr.mxu0 0.0
  %5107 = vmatpush1.xpose.msra.mxu0 0.0
  %5108 = vmatprep.subr.mxu0 0.0
  %5109 = vmatpush1.xpose.msra.mxu0 0.0
  %5110 = vmatprep.subr.mxu0 0.0
  %5111 = vmatpush1.xpose.msra.mxu0 0.0
  %5112 = vmatprep.subr.mxu0 0.0
  %5113 = vmatpush1.xpose.msra.mxu0 0.0
  %5114 = vmatprep.subr.mxu0 0.0
  %5115 = vmatpush1.xpose.msra.mxu0 0.0
  %5116 = vmatprep.subr.mxu0 0.0
  %5117 = vmatpush1.xpose.msra.mxu0 0.0
  %5118 = vmatprep.mubr.f32.mxu0 0.0
  %5119 = vmatmul.mubr.f32.gmra.mrb[0].mxu0 %v5052
  %v5120 = vpop.f32.mrb[0].mxu0
  %v5121 = vadd.f32 0.0, %v5120
  %v5122 = vpop.f32.mrb[0].mxu0
  %5123 = vdwg.mxu0
  %v5124 = vlaneseq
  %v5125 = vshrl.u32 %v5124, 7
  %v5126 = vsub.s32 0, %v5125
  %v5127 = vrot.slane %v5045, %v5126
  %5128 = vrot.lane.b32.xlu0 %v5127, 32
  %v5129 = vpop.permute.xlu0 %5128
  %v5130 = vsel %vm104, %v5129, 0
  %5132 = vmatprep.subr.mxu0 0.0
  %5133 = vmatpush1.xpose.msra.mxu0 %v553
  %5134 = vmatprep.subr.mxu0 0.0
  %5135 = vmatpush1.xpose.msra.mxu0 0.0
  %5136 = vmatprep.subr.mxu0 0.0
  %5137 = vmatpush1.xpose.msra.mxu0 0.0
  %5138 = vmatprep.subr.mxu0 0.0
  %5139 = vmatpush1.xpose.msra.mxu0 0.0
  %5140 = vmatprep.subr.mxu0 0.0
  %5141 = vmatpush1.xpose.msra.mxu0 0.0
  %5142 = vmatprep.subr.mxu0 0.0
  %5143 = vmatpush1.xpose.msra.mxu0 0.0
  %5144 = vmatprep.subr.mxu0 0.0
  %5145 = vmatpush1.xpose.msra.mxu0 0.0
  %5146 = vmatprep.subr.mxu0 0.0
  %5147 = vmatpush1.xpose.msra.mxu0 0.0
  %5148 = vmatprep.subr.mxu0 0.0
  %5149 = vmatpush1.xpose.msra.mxu0 0.0
  %5150 = vmatprep.subr.mxu0 0.0
  %5151 = vmatpush1.xpose.msra.mxu0 0.0
  %5152 = vmatprep.subr.mxu0 0.0
  %5153 = vmatpush1.xpose.msra.mxu0 0.0
  %5154 = vmatprep.subr.mxu0 0.0
  %5155 = vmatpush1.xpose.msra.mxu0 0.0
  %5156 = vmatprep.subr.mxu0 0.0
  %5157 = vmatpush1.xpose.msra.mxu0 0.0
  %5158 = vmatprep.subr.mxu0 0.0
  %5159 = vmatpush1.xpose.msra.mxu0 0.0
  %5160 = vmatprep.subr.mxu0 0.0
  %5161 = vmatpush1.xpose.msra.mxu0 0.0
  %5162 = vmatprep.subr.mxu0 0.0
  %5163 = vmatpush1.xpose.msra.mxu0 0.0
  %5164 = vmatprep.subr.mxu0 0.0
  %5165 = vmatpush1.xpose.msra.mxu0 0.0
  %5166 = vmatprep.subr.mxu0 0.0
  %5167 = vmatpush1.xpose.msra.mxu0 0.0
  %5168 = vmatprep.subr.mxu0 0.0
  %5169 = vmatpush1.xpose.msra.mxu0 0.0
  %5170 = vmatprep.subr.mxu0 0.0
  %5171 = vmatpush1.xpose.msra.mxu0 0.0
  %5172 = vmatprep.subr.mxu0 0.0
  %5173 = vmatpush1.xpose.msra.mxu0 0.0
  %5174 = vmatprep.subr.mxu0 0.0
  %5175 = vmatpush1.xpose.msra.mxu0 0.0
  %5176 = vmatprep.subr.mxu0 0.0
  %5177 = vmatpush1.xpose.msra.mxu0 0.0
  %5178 = vmatprep.subr.mxu0 0.0
  %5179 = vmatpush1.xpose.msra.mxu0 0.0
  %5180 = vmatprep.subr.mxu0 0.0
  %5181 = vmatpush1.xpose.msra.mxu0 0.0
  %5182 = vmatprep.subr.mxu0 0.0
  %5183 = vmatpush1.xpose.msra.mxu0 0.0
  %5184 = vmatprep.subr.mxu0 0.0
  %5185 = vmatpush1.xpose.msra.mxu0 0.0
  %5186 = vmatprep.subr.mxu0 0.0
  %5187 = vmatpush1.xpose.msra.mxu0 0.0
  %5188 = vmatprep.subr.mxu0 0.0
  %5189 = vmatpush1.xpose.msra.mxu0 0.0
  %5190 = vmatprep.subr.mxu0 0.0
  %5191 = vmatpush1.xpose.msra.mxu0 0.0
  %5192 = vmatprep.subr.mxu0 0.0
  %5193 = vmatpush1.xpose.msra.mxu0 0.0
  %5194 = vmatprep.subr.mxu0 0.0
  %5195 = vmatpush1.xpose.msra.mxu0 0.0
  %5196 = vmatprep.mubr.f32.mxu0 0.0
  %5197 = vmatmul.mubr.f32.gmra.mrb[0].mxu0 %v5130
  %v5198 = vpop.f32.mrb[0].mxu0
  %v5199 = vadd.f32 0.0, %v5198
  %v5200 = vpop.f32.mrb[0].mxu0
  %5201 = vdwg.mxu0
  %v5202 = vsel %vm625, %v5121, -inf
  %5203 = vmax.xlane.f32.xlu0 %v5202
  %v5204 = vpop.xlane.xlu0 %5203
  %v5205 = vsel %vm625, %v5199, -inf
  %5206 = vmax.xlane.f32.xlu0 %v5205
  %v5207 = vpop.xlane.xlu0 %5206
  %v5208 = vsub.f32 %v5121, %v5204
  %v5209 = vsub.f32 %v5199, %v5207
  %v5210 = vmul.f32 %v5208, 1.442695
  %v5211 = vpow.pop %v5210
  %v5212 = vmul.f32 %v5209, 1.442695
  %v5213 = vpow.pop %v5212
  %v5214 = vsel %vm625, %v5211, 0.0
  %5215 = vadd.xlane.f32.xlu0 %v5214
  %v5216 = vpop.xlane.xlu0 %5215
  %v5217 = vsel %vm625, %v5213, 0.0
  %5218 = vadd.xlane.f32.xlu0 %v5217
  %v5219 = vpop.xlane.xlu0 %5218
  %v5220 = vrcp.pop %v5216
  %v5221 = vmul.f32 %v5211, %v5220
  %v5222 = vrcp.pop %v5219
  %v5223 = vmul.f32 %v5213, %v5222
  %v5225 = vsel %vm648, %v5221, 0
  %5227 = vmatprep.subr.mxu0 0.0
  %5228 = vmatpush1.msra.mxu0 %v53
  %5229 = vmatprep.subr.mxu0 0.0
  %5230 = vmatpush1.msra.mxu0 0.0
  %5231 = vmatprep.subr.mxu0 0.0
  %5232 = vmatpush1.msra.mxu0 0.0
  %5233 = vmatprep.subr.mxu0 0.0
  %5234 = vmatpush1.msra.mxu0 0.0
  %5235 = vmatprep.subr.mxu0 0.0
  %5236 = vmatpush1.msra.mxu0 0.0
  %5237 = vmatprep.subr.mxu0 0.0
  %5238 = vmatpush1.msra.mxu0 0.0
  %5239 = vmatprep.subr.mxu0 0.0
  %5240 = vmatpush1.msra.mxu0 0.0
  %5241 = vmatprep.subr.mxu0 0.0
  %5242 = vmatpush1.msra.mxu0 0.0
  %5243 = vmatprep.subr.mxu0 0.0
  %5244 = vmatpush1.msra.mxu0 0.0
  %5245 = vmatprep.subr.mxu0 0.0
  %5246 = vmatpush1.msra.mxu0 0.0
  %5247 = vmatprep.subr.mxu0 0.0
  %5248 = vmatpush1.msra.mxu0 0.0
  %5249 = vmatprep.subr.mxu0 0.0
  %5250 = vmatpush1.msra.mxu0 0.0
  %5251 = vmatprep.subr.mxu0 0.0
  %5252 = vmatpush1.msra.mxu0 0.0
  %5253 = vmatprep.subr.mxu0 0.0
  %5254 = vmatpush1.msra.mxu0 0.0
  %5255 = vmatprep.subr.mxu0 0.0
  %5256 = vmatpush1.msra.mxu0 0.0
  %5257 = vmatprep.subr.mxu0 0.0
  %5258 = vmatpush1.msra.mxu0 0.0
  %5259 = vmatprep.subr.mxu0 0.0
  %5260 = vmatpush1.msra.mxu0 0.0
  %5261 = vmatprep.subr.mxu0 0.0
  %5262 = vmatpush1.msra.mxu0 0.0
  %5263 = vmatprep.subr.mxu0 0.0
  %5264 = vmatpush1.msra.mxu0 0.0
  %5265 = vmatprep.subr.mxu0 0.0
  %5266 = vmatpush1.msra.mxu0 0.0
  %5267 = vmatprep.subr.mxu0 0.0
  %5268 = vmatpush1.msra.mxu0 0.0
  %5269 = vmatprep.subr.mxu0 0.0
  %5270 = vmatpush1.msra.mxu0 0.0
  %5271 = vmatprep.subr.mxu0 0.0
  %5272 = vmatpush1.msra.mxu0 0.0
  %5273 = vmatprep.subr.mxu0 0.0
  %5274 = vmatpush1.msra.mxu0 0.0
  %5275 = vmatprep.subr.mxu0 0.0
  %5276 = vmatpush1.msra.mxu0 0.0
  %5277 = vmatprep.subr.mxu0 0.0
  %5278 = vmatpush1.msra.mxu0 0.0
  %5279 = vmatprep.subr.mxu0 0.0
  %5280 = vmatpush1.msra.mxu0 0.0
  %5281 = vmatprep.subr.mxu0 0.0
  %5282 = vmatpush1.msra.mxu0 0.0
  %5283 = vmatprep.subr.mxu0 0.0
  %5284 = vmatpush1.msra.mxu0 0.0
  %5285 = vmatprep.subr.mxu0 0.0
  %5286 = vmatpush1.msra.mxu0 0.0
  %5287 = vmatprep.subr.mxu0 0.0
  %5288 = vmatpush1.msra.mxu0 0.0
  %5289 = vmatprep.subr.mxu0 0.0
  %5290 = vmatpush1.msra.mxu0 0.0
  %5291 = vmatprep.mubr.f32.mxu0 0.0
  %5292 = vmatmul.mubr.f32.gmra.mrb[0].mxu0 %v5225
  %v5293 = vpop.f32.mrb[0].mxu0
  %v5294 = vadd.f32 0.0, %v5293
  %v5295 = vpop.f32.mrb[0].mxu0
  %5296 = vdwg.mxu0
  %v5298 = vsel %vm648, %v5223, 0
  %5300 = vmatprep.subr.mxu0 0.0
  %5301 = vmatpush1.msra.mxu0 %v54
  %5302 = vmatprep.subr.mxu0 0.0
  %5303 = vmatpush1.msra.mxu0 0.0
  %5304 = vmatprep.subr.mxu0 0.0
  %5305 = vmatpush1.msra.mxu0 0.0
  %5306 = vmatprep.subr.mxu0 0.0
  %5307 = vmatpush1.msra.mxu0 0.0
  %5308 = vmatprep.subr.mxu0 0.0
  %5309 = vmatpush1.msra.mxu0 0.0
  %5310 = vmatprep.subr.mxu0 0.0
  %5311 = vmatpush1.msra.mxu0 0.0
  %5312 = vmatprep.subr.mxu0 0.0
  %5313 = vmatpush1.msra.mxu0 0.0
  %5314 = vmatprep.subr.mxu0 0.0
  %5315 = vmatpush1.msra.mxu0 0.0
  %5316 = vmatprep.subr.mxu0 0.0
  %5317 = vmatpush1.msra.mxu0 0.0
  %5318 = vmatprep.subr.mxu0 0.0
  %5319 = vmatpush1.msra.mxu0 0.0
  %5320 = vmatprep.subr.mxu0 0.0
  %5321 = vmatpush1.msra.mxu0 0.0
  %5322 = vmatprep.subr.mxu0 0.0
  %5323 = vmatpush1.msra.mxu0 0.0
  %5324 = vmatprep.subr.mxu0 0.0
  %5325 = vmatpush1.msra.mxu0 0.0
  %5326 = vmatprep.subr.mxu0 0.0
  %5327 = vmatpush1.msra.mxu0 0.0
  %5328 = vmatprep.subr.mxu0 0.0
  %5329 = vmatpush1.msra.mxu0 0.0
  %5330 = vmatprep.subr.mxu0 0.0
  %5331 = vmatpush1.msra.mxu0 0.0
  %5332 = vmatprep.subr.mxu0 0.0
  %5333 = vmatpush1.msra.mxu0 0.0
  %5334 = vmatprep.subr.mxu0 0.0
  %5335 = vmatpush1.msra.mxu0 0.0
  %5336 = vmatprep.subr.mxu0 0.0
  %5337 = vmatpush1.msra.mxu0 0.0
  %5338 = vmatprep.subr.mxu0 0.0
  %5339 = vmatpush1.msra.mxu0 0.0
  %5340 = vmatprep.subr.mxu0 0.0
  %5341 = vmatpush1.msra.mxu0 0.0
  %5342 = vmatprep.subr.mxu0 0.0
  %5343 = vmatpush1.msra.mxu0 0.0
  %5344 = vmatprep.subr.mxu0 0.0
  %5345 = vmatpush1.msra.mxu0 0.0
  %5346 = vmatprep.subr.mxu0 0.0
  %5347 = vmatpush1.msra.mxu0 0.0
  %5348 = vmatprep.subr.mxu0 0.0
  %5349 = vmatpush1.msra.mxu0 0.0
  %5350 = vmatprep.subr.mxu0 0.0
  %5351 = vmatpush1.msra.mxu0 0.0
  %5352 = vmatprep.subr.mxu0 0.0
  %5353 = vmatpush1.msra.mxu0 0.0
  %5354 = vmatprep.subr.mxu0 0.0
  %5355 = vmatpush1.msra.mxu0 0.0
  %5356 = vmatprep.subr.mxu0 0.0
  %5357 = vmatpush1.msra.mxu0 0.0
  %5358 = vmatprep.subr.mxu0 0.0
  %5359 = vmatpush1.msra.mxu0 0.0
  %5360 = vmatprep.subr.mxu0 0.0
  %5361 = vmatpush1.msra.mxu0 0.0
  %5362 = vmatprep.subr.mxu0 0.0
  %5363 = vmatpush1.msra.mxu0 0.0
  %5364 = vmatprep.mubr.f32.mxu0 0.0
  %5365 = vmatmul.mubr.f32.gmra.mrb[0].mxu0 %v5298
  %v5366 = vpop.f32.mrb[0].mxu0
  %v5367 = vadd.f32 0.0, %v5366
  %v5368 = vpop.f32.mrb[0].mxu0
  %5369 = vdwg.mxu0
  %5370 = vmatprep.subr.mxu0 0.0
  %5371 = vmatpush1.xpose.msra.mxu0 %v796
  %5372 = vmatprep.subr.mxu0 0.0
  %5373 = vmatpush1.xpose.msra.mxu0 0.0
  %5374 = vmatprep.subr.mxu0 0.0
  %5375 = vmatpush1.xpose.msra.mxu0 0.0
  %5376 = vmatprep.subr.mxu0 0.0
  %5377 = vmatpush1.xpose.msra.mxu0 0.0
  %5378 = vmatprep.subr.mxu0 0.0
  %5379 = vmatpush1.xpose.msra.mxu0 0.0
  %5380 = vmatprep.subr.mxu0 0.0
  %5381 = vmatpush1.xpose.msra.mxu0 0.0
  %5382 = vmatprep.subr.mxu0 0.0
  %5383 = vmatpush1.xpose.msra.mxu0 0.0
  %5384 = vmatprep.subr.mxu0 0.0
  %5385 = vmatpush1.xpose.msra.mxu0 0.0
  %5386 = vmatprep.subr.mxu0 0.0
  %5387 = vmatpush1.xpose.msra.mxu0 0.0
  %5388 = vmatprep.subr.mxu0 0.0
  %5389 = vmatpush1.xpose.msra.mxu0 0.0
  %5390 = vmatprep.subr.mxu0 0.0
  %5391 = vmatpush1.xpose.msra.mxu0 0.0
  %5392 = vmatprep.subr.mxu0 0.0
  %5393 = vmatpush1.xpose.msra.mxu0 0.0
  %5394 = vmatprep.subr.mxu0 0.0
  %5395 = vmatpush1.xpose.msra.mxu0 0.0
  %5396 = vmatprep.subr.mxu0 0.0
  %5397 = vmatpush1.xpose.msra.mxu0 0.0
  %5398 = vmatprep.subr.mxu0 0.0
  %5399 = vmatpush1.xpose.msra.mxu0 0.0
  %5400 = vmatprep.subr.mxu0 0.0
  %5401 = vmatpush1.xpose.msra.mxu0 0.0
  %5402 = vmatprep.subr.mxu0 0.0
  %5403 = vmatpush1.xpose.msra.mxu0 0.0
  %5404 = vmatprep.subr.mxu0 0.0
  %5405 = vmatpush1.xpose.msra.mxu0 0.0
  %5406 = vmatprep.subr.mxu0 0.0
  %5407 = vmatpush1.xpose.msra.mxu0 0.0
  %5408 = vmatprep.subr.mxu0 0.0
  %5409 = vmatpush1.xpose.msra.mxu0 0.0
  %5410 = vmatprep.subr.mxu0 0.0
  %5411 = vmatpush1.xpose.msra.mxu0 0.0
  %5412 = vmatprep.subr.mxu0 0.0
  %5413 = vmatpush1.xpose.msra.mxu0 0.0
  %5414 = vmatprep.subr.mxu0 0.0
  %5415 = vmatpush1.xpose.msra.mxu0 0.0
  %5416 = vmatprep.subr.mxu0 0.0
  %5417 = vmatpush1.xpose.msra.mxu0 0.0
  %5418 = vmatprep.subr.mxu0 0.0
  %5419 = vmatpush1.xpose.msra.mxu0 0.0
  %5420 = vmatprep.subr.mxu0 0.0
  %5421 = vmatpush1.xpose.msra.mxu0 0.0
  %5422 = vmatprep.subr.mxu0 0.0
  %5423 = vmatpush1.xpose.msra.mxu0 0.0
  %5424 = vmatprep.subr.mxu0 0.0
  %5425 = vmatpush1.xpose.msra.mxu0 0.0
  %5426 = vmatprep.subr.mxu0 0.0
  %5427 = vmatpush1.xpose.msra.mxu0 0.0
  %5428 = vmatprep.subr.mxu0 0.0
  %5429 = vmatpush1.xpose.msra.mxu0 0.0
  %5430 = vmatprep.subr.mxu0 0.0
  %5431 = vmatpush1.xpose.msra.mxu0 0.0
  %5432 = vmatprep.subr.mxu0 0.0
  %5433 = vmatpush1.xpose.msra.mxu0 0.0
  %5434 = vmatprep.mubr.f32.mxu0 0.0
  %5435 = vmatmul.mubr.f32.gmra.mrb[0].mxu0 %v5052
  %v5436 = vpop.f32.mrb[0].mxu0
  %v5437 = vadd.f32 0.0, %v5436
  %v5438 = vpop.f32.mrb[0].mxu0
  %5439 = vdwg.mxu0
  %5440 = vmatprep.subr.mxu0 0.0
  %5441 = vmatpush1.xpose.msra.mxu0 %v869
  %5442 = vmatprep.subr.mxu0 0.0
  %5443 = vmatpush1.xpose.msra.mxu0 0.0
  %5444 = vmatprep.subr.mxu0 0.0
  %5445 = vmatpush1.xpose.msra.mxu0 0.0
  %5446 = vmatprep.subr.mxu0 0.0
  %5447 = vmatpush1.xpose.msra.mxu0 0.0
  %5448 = vmatprep.subr.mxu0 0.0
  %5449 = vmatpush1.xpose.msra.mxu0 0.0
  %5450 = vmatprep.subr.mxu0 0.0
  %5451 = vmatpush1.xpose.msra.mxu0 0.0
  %5452 = vmatprep.subr.mxu0 0.0
  %5453 = vmatpush1.xpose.msra.mxu0 0.0
  %5454 = vmatprep.subr.mxu0 0.0
  %5455 = vmatpush1.xpose.msra.mxu0 0.0
  %5456 = vmatprep.subr.mxu0 0.0
  %5457 = vmatpush1.xpose.msra.mxu0 0.0
  %5458 = vmatprep.subr.mxu0 0.0
  %5459 = vmatpush1.xpose.msra.mxu0 0.0
  %5460 = vmatprep.subr.mxu0 0.0
  %5461 = vmatpush1.xpose.msra.mxu0 0.0
  %5462 = vmatprep.subr.mxu0 0.0
  %5463 = vmatpush1.xpose.msra.mxu0 0.0
  %5464 = vmatprep.subr.mxu0 0.0
  %5465 = vmatpush1.xpose.msra.mxu0 0.0
  %5466 = vmatprep.subr.mxu0 0.0
  %5467 = vmatpush1.xpose.msra.mxu0 0.0
  %5468 = vmatprep.subr.mxu0 0.0
  %5469 = vmatpush1.xpose.msra.mxu0 0.0
  %5470 = vmatprep.subr.mxu0 0.0
  %5471 = vmatpush1.xpose.msra.mxu0 0.0
  %5472 = vmatprep.subr.mxu0 0.0
  %5473 = vmatpush1.xpose.msra.mxu0 0.0
  %5474 = vmatprep.subr.mxu0 0.0
  %5475 = vmatpush1.xpose.msra.mxu0 0.0
  %5476 = vmatprep.subr.mxu0 0.0
  %5477 = vmatpush1.xpose.msra.mxu0 0.0
  %5478 = vmatprep.subr.mxu0 0.0
  %5479 = vmatpush1.xpose.msra.mxu0 0.0
  %5480 = vmatprep.subr.mxu0 0.0
  %5481 = vmatpush1.xpose.msra.mxu0 0.0
  %5482 = vmatprep.subr.mxu0 0.0
  %5483 = vmatpush1.xpose.msra.mxu0 0.0
  %5484 = vmatprep.subr.mxu0 0.0
  %5485 = vmatpush1.xpose.msra.mxu0 0.0
  %5486 = vmatprep.subr.mxu0 0.0
  %5487 = vmatpush1.xpose.msra.mxu0 0.0
  %5488 = vmatprep.subr.mxu0 0.0
  %5489 = vmatpush1.xpose.msra.mxu0 0.0
  %5490 = vmatprep.subr.mxu0 0.0
  %5491 = vmatpush1.xpose.msra.mxu0 0.0
  %5492 = vmatprep.subr.mxu0 0.0
  %5493 = vmatpush1.xpose.msra.mxu0 0.0
  %5494 = vmatprep.subr.mxu0 0.0
  %5495 = vmatpush1.xpose.msra.mxu0 0.0
  %5496 = vmatprep.subr.mxu0 0.0
  %5497 = vmatpush1.xpose.msra.mxu0 0.0
  %5498 = vmatprep.subr.mxu0 0.0
  %5499 = vmatpush1.xpose.msra.mxu0 0.0
  %5500 = vmatprep.subr.mxu0 0.0
  %5501 = vmatpush1.xpose.msra.mxu0 0.0
  %5502 = vmatprep.subr.mxu0 0.0
  %5503 = vmatpush1.xpose.msra.mxu0 0.0
  %5504 = vmatprep.mubr.f32.mxu0 0.0
  %5505 = vmatmul.mubr.f32.gmra.mrb[0].mxu0 %v5130
  %v5506 = vpop.f32.mrb[0].mxu0
  %v5507 = vadd.f32 0.0, %v5506
  %v5508 = vpop.f32.mrb[0].mxu0
  %5509 = vdwg.mxu0
  %v5510 = vsel %vm625, %v5437, -inf
  %5511 = vmax.xlane.f32.xlu0 %v5510
  %v5512 = vpop.xlane.xlu0 %5511
  %v5513 = vsel %vm625, %v5507, -inf
  %5514 = vmax.xlane.f32.xlu0 %v5513
  %v5515 = vpop.xlane.xlu0 %5514
  %v5516 = vsub.f32 %v5437, %v5512
  %v5517 = vsub.f32 %v5507, %v5515
  %v5518 = vmul.f32 %v5516, 1.442695
  %v5519 = vpow.pop %v5518
  %v5520 = vmul.f32 %v5517, 1.442695
  %v5521 = vpow.pop %v5520
  %v5522 = vsel %vm625, %v5519, 0.0
  %5523 = vadd.xlane.f32.xlu0 %v5522
  %v5524 = vpop.xlane.xlu0 %5523
  %v5525 = vsel %vm625, %v5521, 0.0
  %5526 = vadd.xlane.f32.xlu0 %v5525
  %v5527 = vpop.xlane.xlu0 %5526
  %v5528 = vrcp.pop %v5524
  %v5529 = vmul.f32 %v5519, %v5528
  %v5530 = vrcp.pop %v5527
  %v5531 = vmul.f32 %v5521, %v5530
  %v5533 = vsel %vm648, %v5529, 0
  %5535 = vmatprep.subr.mxu0 0.0
  %5536 = vmatpush1.msra.mxu0 %v55
  %5537 = vmatprep.subr.mxu0 0.0
  %5538 = vmatpush1.msra.mxu0 0.0
  %5539 = vmatprep.subr.mxu0 0.0
  %5540 = vmatpush1.msra.mxu0 0.0
  %5541 = vmatprep.subr.mxu0 0.0
  %5542 = vmatpush1.msra.mxu0 0.0
  %5543 = vmatprep.subr.mxu0 0.0
  %5544 = vmatpush1.msra.mxu0 0.0
  %5545 = vmatprep.subr.mxu0 0.0
  %5546 = vmatpush1.msra.mxu0 0.0
  %5547 = vmatprep.subr.mxu0 0.0
  %5548 = vmatpush1.msra.mxu0 0.0
  %5549 = vmatprep.subr.mxu0 0.0
  %5550 = vmatpush1.msra.mxu0 0.0
  %5551 = vmatprep.subr.mxu0 0.0
  %5552 = vmatpush1.msra.mxu0 0.0
  %5553 = vmatprep.subr.mxu0 0.0
  %5554 = vmatpush1.msra.mxu0 0.0
  %5555 = vmatprep.subr.mxu0 0.0
  %5556 = vmatpush1.msra.mxu0 0.0
  %5557 = vmatprep.subr.mxu0 0.0
  %5558 = vmatpush1.msra.mxu0 0.0
  %5559 = vmatprep.subr.mxu0 0.0
  %5560 = vmatpush1.msra.mxu0 0.0
  %5561 = vmatprep.subr.mxu0 0.0
  %5562 = vmatpush1.msra.mxu0 0.0
  %5563 = vmatprep.subr.mxu0 0.0
  %5564 = vmatpush1.msra.mxu0 0.0
  %5565 = vmatprep.subr.mxu0 0.0
  %5566 = vmatpush1.msra.mxu0 0.0
  %5567 = vmatprep.subr.mxu0 0.0
  %5568 = vmatpush1.msra.mxu0 0.0
  %5569 = vmatprep.subr.mxu0 0.0
  %5570 = vmatpush1.msra.mxu0 0.0
  %5571 = vmatprep.subr.mxu0 0.0
  %5572 = vmatpush1.msra.mxu0 0.0
  %5573 = vmatprep.subr.mxu0 0.0
  %5574 = vmatpush1.msra.mxu0 0.0
  %5575 = vmatprep.subr.mxu0 0.0
  %5576 = vmatpush1.msra.mxu0 0.0
  %5577 = vmatprep.subr.mxu0 0.0
  %5578 = vmatpush1.msra.mxu0 0.0
  %5579 = vmatprep.subr.mxu0 0.0
  %5580 = vmatpush1.msra.mxu0 0.0
  %5581 = vmatprep.subr.mxu0 0.0
  %5582 = vmatpush1.msra.mxu0 0.0
  %5583 = vmatprep.subr.mxu0 0.0
  %5584 = vmatpush1.msra.mxu0 0.0
  %5585 = vmatprep.subr.mxu0 0.0
  %5586 = vmatpush1.msra.mxu0 0.0
  %5587 = vmatprep.subr.mxu0 0.0
  %5588 = vmatpush1.msra.mxu0 0.0
  %5589 = vmatprep.subr.mxu0 0.0
  %5590 = vmatpush1.msra.mxu0 0.0
  %5591 = vmatprep.subr.mxu0 0.0
  %5592 = vmatpush1.msra.mxu0 0.0
  %5593 = vmatprep.subr.mxu0 0.0
  %5594 = vmatpush1.msra.mxu0 0.0
  %5595 = vmatprep.subr.mxu0 0.0
  %5596 = vmatpush1.msra.mxu0 0.0
  %5597 = vmatprep.subr.mxu0 0.0
  %5598 = vmatpush1.msra.mxu0 0.0
  %5599 = vmatprep.mubr.f32.mxu0 0.0
  %5600 = vmatmul.mubr.f32.gmra.mrb[0].mxu0 %v5533
  %v5601 = vpop.f32.mrb[0].mxu0
  %v5602 = vadd.f32 0.0, %v5601
  %v5603 = vpop.f32.mrb[0].mxu0
  %5604 = vdwg.mxu0
  %v5606 = vsel %vm648, %v5531, 0
  %5608 = vmatprep.subr.mxu0 0.0
  %5609 = vmatpush1.msra.mxu0 %v56
  %5610 = vmatprep.subr.mxu0 0.0
  %5611 = vmatpush1.msra.mxu0 0.0
  %5612 = vmatprep.subr.mxu0 0.0
  %5613 = vmatpush1.msra.mxu0 0.0
  %5614 = vmatprep.subr.mxu0 0.0
  %5615 = vmatpush1.msra.mxu0 0.0
  %5616 = vmatprep.subr.mxu0 0.0
  %5617 = vmatpush1.msra.mxu0 0.0
  %5618 = vmatprep.subr.mxu0 0.0
  %5619 = vmatpush1.msra.mxu0 0.0
  %5620 = vmatprep.subr.mxu0 0.0
  %5621 = vmatpush1.msra.mxu0 0.0
  %5622 = vmatprep.subr.mxu0 0.0
  %5623 = vmatpush1.msra.mxu0 0.0
  %5624 = vmatprep.subr.mxu0 0.0
  %5625 = vmatpush1.msra.mxu0 0.0
  %5626 = vmatprep.subr.mxu0 0.0
  %5627 = vmatpush1.msra.mxu0 0.0
  %5628 = vmatprep.subr.mxu0 0.0
  %5629 = vmatpush1.msra.mxu0 0.0
  %5630 = vmatprep.subr.mxu0 0.0
  %5631 = vmatpush1.msra.mxu0 0.0
  %5632 = vmatprep.subr.mxu0 0.0
  %5633 = vmatpush1.msra.mxu0 0.0
  %5634 = vmatprep.subr.mxu0 0.0
  %5635 = vmatpush1.msra.mxu0 0.0
  %5636 = vmatprep.subr.mxu0 0.0
  %5637 = vmatpush1.msra.mxu0 0.0
  %5638 = vmatprep.subr.mxu0 0.0
  %5639 = vmatpush1.msra.mxu0 0.0
  %5640 = vmatprep.subr.mxu0 0.0
  %5641 = vmatpush1.msra.mxu0 0.0
  %5642 = vmatprep.subr.mxu0 0.0
  %5643 = vmatpush1.msra.mxu0 0.0
  %5644 = vmatprep.subr.mxu0 0.0
  %5645 = vmatpush1.msra.mxu0 0.0
  %5646 = vmatprep.subr.mxu0 0.0
  %5647 = vmatpush1.msra.mxu0 0.0
  %5648 = vmatprep.subr.mxu0 0.0
  %5649 = vmatpush1.msra.mxu0 0.0
  %5650 = vmatprep.subr.mxu0 0.0
  %5651 = vmatpush1.msra.mxu0 0.0
  %5652 = vmatprep.subr.mxu0 0.0
  %5653 = vmatpush1.msra.mxu0 0.0
  %5654 = vmatprep.subr.mxu0 0.0
  %5655 = vmatpush1.msra.mxu0 0.0
  %5656 = vmatprep.subr.mxu0 0.0
  %5657 = vmatpush1.msra.mxu0 0.0
  %5658 = vmatprep.subr.mxu0 0.0
  %5659 = vmatpush1.msra.mxu0 0.0
  %5660 = vmatprep.subr.mxu0 0.0
  %5661 = vmatpush1.msra.mxu0 0.0
  %5662 = vmatprep.subr.mxu0 0.0
  %5663 = vmatpush1.msra.mxu0 0.0
  %5664 = vmatprep.subr.mxu0 0.0
  %5665 = vmatpush1.msra.mxu0 0.0
  %5666 = vmatprep.subr.mxu0 0.0
  %5667 = vmatpush1.msra.mxu0 0.0
  %5668 = vmatprep.subr.mxu0 0.0
  %5669 = vmatpush1.msra.mxu0 0.0
  %5670 = vmatprep.subr.mxu0 0.0
  %5671 = vmatpush1.msra.mxu0 0.0
  %5672 = vmatprep.mubr.f32.mxu0 0.0
  %5673 = vmatmul.mubr.f32.gmra.mrb[0].mxu0 %v5606
  %v5674 = vpop.f32.mrb[0].mxu0
  %v5675 = vadd.f32 0.0, %v5674
  %v5676 = vpop.f32.mrb[0].mxu0
  %5677 = vdwg.mxu0
  %v5680 = vrot.slane %v5675, 7
  %v5681 = vsel %vm1112, %v5680, %v5602
  %v5682 = vsel %vm104, %v5681, 0
  %5684 = vmatprep.subr.mxu0 0.0
  %5685 = vmatpush1.msra.mxu0 %v70
  %5686 = vmatprep.subr.mxu0 0.0
  %5687 = vmatpush1.msra.mxu0 %v71
  %5688 = vmatprep.subr.mxu0 0.0
  %5689 = vmatpush1.msra.mxu0 %v72
  %5690 = vmatprep.subr.mxu0 0.0
  %5691 = vmatpush1.msra.mxu0 %v73
  %5692 = vmatprep.subr.mxu0 0.0
  %5693 = vmatpush1.msra.mxu0 0.0
  %5694 = vmatprep.subr.mxu0 0.0
  %5695 = vmatpush1.msra.mxu0 0.0
  %5696 = vmatprep.subr.mxu0 0.0
  %5697 = vmatpush1.msra.mxu0 0.0
  %5698 = vmatprep.subr.mxu0 0.0
  %5699 = vmatpush1.msra.mxu0 0.0
  %5700 = vmatprep.subr.mxu0 0.0
  %5701 = vmatpush1.msra.mxu0 0.0
  %5702 = vmatprep.subr.mxu0 0.0
  %5703 = vmatpush1.msra.mxu0 0.0
  %5704 = vmatprep.subr.mxu0 0.0
  %5705 = vmatpush1.msra.mxu0 0.0
  %5706 = vmatprep.subr.mxu0 0.0
  %5707 = vmatpush1.msra.mxu0 0.0
  %5708 = vmatprep.subr.mxu0 0.0
  %5709 = vmatpush1.msra.mxu0 0.0
  %5710 = vmatprep.subr.mxu0 0.0
  %5711 = vmatpush1.msra.mxu0 0.0
  %5712 = vmatprep.subr.mxu0 0.0
  %5713 = vmatpush1.msra.mxu0 0.0
  %5714 = vmatprep.subr.mxu0 0.0
  %5715 = vmatpush1.msra.mxu0 0.0
  %5716 = vmatprep.subr.mxu0 0.0
  %5717 = vmatpush1.msra.mxu0 0.0
  %5718 = vmatprep.subr.mxu0 0.0
  %5719 = vmatpush1.msra.mxu0 0.0
  %5720 = vmatprep.subr.mxu0 0.0
  %5721 = vmatpush1.msra.mxu0 0.0
  %5722 = vmatprep.subr.mxu0 0.0
  %5723 = vmatpush1.msra.mxu0 0.0
  %5724 = vmatprep.subr.mxu0 0.0
  %5725 = vmatpush1.msra.mxu0 0.0
  %5726 = vmatprep.subr.mxu0 0.0
  %5727 = vmatpush1.msra.mxu0 0.0
  %5728 = vmatprep.subr.mxu0 0.0
  %5729 = vmatpush1.msra.mxu0 0.0
  %5730 = vmatprep.subr.mxu0 0.0
  %5731 = vmatpush1.msra.mxu0 0.0
  %5732 = vmatprep.subr.mxu0 0.0
  %5733 = vmatpush1.msra.mxu0 0.0
  %5734 = vmatprep.subr.mxu0 0.0
  %5735 = vmatpush1.msra.mxu0 0.0
  %5736 = vmatprep.subr.mxu0 0.0
  %5737 = vmatpush1.msra.mxu0 0.0
  %5738 = vmatprep.subr.mxu0 0.0
  %5739 = vmatpush1.msra.mxu0 0.0
  %5740 = vmatprep.subr.mxu0 0.0
  %5741 = vmatpush1.msra.mxu0 0.0
  %5742 = vmatprep.subr.mxu0 0.0
  %5743 = vmatpush1.msra.mxu0 0.0
  %5744 = vmatprep.subr.mxu0 0.0
  %5745 = vmatpush1.msra.mxu0 0.0
  %5746 = vmatprep.subr.mxu0 0.0
  %5747 = vmatpush1.msra.mxu0 0.0
  %5748 = vmatprep.mubr.f32.mxu0 0.0
  %5749 = vmatmul.mubr.f32.gmra.mrb[0].mxu0 %v5682
  %v5750 = vpop.f32.mrb[0].mxu0
  %v5751 = vadd.f32 0.0, %v5750
  %v5752 = vpop.f32.mrb[0].mxu0
  %5753 = vdwg.mxu0
  %v5756 = vrot.slane %v5367, 7
  %v5757 = vsel %vm1112, %v5756, %v5294
  %v5758 = vsel %vm104, %v5757, 0
  %5760 = vmatprep.subr.mxu0 0.0
  %5761 = vmatpush1.msra.mxu0 %v66
  %5762 = vmatprep.subr.mxu0 0.0
  %5763 = vmatpush1.msra.mxu0 %v67
  %5764 = vmatprep.subr.mxu0 0.0
  %5765 = vmatpush1.msra.mxu0 %v68
  %5766 = vmatprep.subr.mxu0 0.0
  %5767 = vmatpush1.msra.mxu0 %v69
  %5768 = vmatprep.subr.mxu0 0.0
  %5769 = vmatpush1.msra.mxu0 0.0
  %5770 = vmatprep.subr.mxu0 0.0
  %5771 = vmatpush1.msra.mxu0 0.0
  %5772 = vmatprep.subr.mxu0 0.0
  %5773 = vmatpush1.msra.mxu0 0.0
  %5774 = vmatprep.subr.mxu0 0.0
  %5775 = vmatpush1.msra.mxu0 0.0
  %5776 = vmatprep.subr.mxu0 0.0
  %5777 = vmatpush1.msra.mxu0 0.0
  %5778 = vmatprep.subr.mxu0 0.0
  %5779 = vmatpush1.msra.mxu0 0.0
  %5780 = vmatprep.subr.mxu0 0.0
  %5781 = vmatpush1.msra.mxu0 0.0
  %5782 = vmatprep.subr.mxu0 0.0
  %5783 = vmatpush1.msra.mxu0 0.0
  %5784 = vmatprep.subr.mxu0 0.0
  %5785 = vmatpush1.msra.mxu0 0.0
  %5786 = vmatprep.subr.mxu0 0.0
  %5787 = vmatpush1.msra.mxu0 0.0
  %5788 = vmatprep.subr.mxu0 0.0
  %5789 = vmatpush1.msra.mxu0 0.0
  %5790 = vmatprep.subr.mxu0 0.0
  %5791 = vmatpush1.msra.mxu0 0.0
  %5792 = vmatprep.subr.mxu0 0.0
  %5793 = vmatpush1.msra.mxu0 0.0
  %5794 = vmatprep.subr.mxu0 0.0
  %5795 = vmatpush1.msra.mxu0 0.0
  %5796 = vmatprep.subr.mxu0 0.0
  %5797 = vmatpush1.msra.mxu0 0.0
  %5798 = vmatprep.subr.mxu0 0.0
  %5799 = vmatpush1.msra.mxu0 0.0
  %5800 = vmatprep.subr.mxu0 0.0
  %5801 = vmatpush1.msra.mxu0 0.0
  %5802 = vmatprep.subr.mxu0 0.0
  %5803 = vmatpush1.msra.mxu0 0.0
  %5804 = vmatprep.subr.mxu0 0.0
  %5805 = vmatpush1.msra.mxu0 0.0
  %5806 = vmatprep.subr.mxu0 0.0
  %5807 = vmatpush1.msra.mxu0 0.0
  %5808 = vmatprep.subr.mxu0 0.0
  %5809 = vmatpush1.msra.mxu0 0.0
  %5810 = vmatprep.subr.mxu0 0.0
  %5811 = vmatpush1.msra.mxu0 0.0
  %5812 = vmatprep.subr.mxu0 0.0
  %5813 = vmatpush1.msra.mxu0 0.0
  %5814 = vmatprep.subr.mxu0 0.0
  %5815 = vmatpush1.msra.mxu0 0.0
  %5816 = vmatprep.subr.mxu0 0.0
  %5817 = vmatpush1.msra.mxu0 0.0
  %5818 = vmatprep.subr.mxu0 0.0
  %5819 = vmatpush1.msra.mxu0 0.0
  %5820 = vmatprep.subr.mxu0 0.0
  %5821 = vmatpush1.msra.mxu0 0.0
  %5822 = vmatprep.subr.mxu0 0.0
  %5823 = vmatpush1.msra.mxu0 0.0
  %5824 = vmatprep.mubr.f32.mxu0 0.0
  %5825 = vmatmul.mubr.f32.gmra.mrb[0].mxu0 %v5758
  %v5826 = vpop.f32.mrb[0].mxu0
  %v5827 = vadd.f32 %v5751, %v5826
  %v5828 = vpop.f32.mrb[0].mxu0
  %5829 = vdwg.mxu0
  %5830 = vrot.lane.b32.xlu0 %v5022, 32
  %v5831 = vpop.permute.xlu0 %5830
  %v5832 = vsel %vm104, %v5831, 0
  %5834 = vmatprep.subr.mxu0 0.0
  %5835 = vmatpush1.msra.mxu0 %v74
  %5836 = vmatprep.subr.mxu0 0.0
  %5837 = vmatpush1.msra.mxu0 %v75
  %5838 = vmatprep.subr.mxu0 0.0
  %5839 = vmatpush1.msra.mxu0 %v76
  %5840 = vmatprep.subr.mxu0 0.0
  %5841 = vmatpush1.msra.mxu0 %v77
  %5842 = vmatprep.subr.mxu0 0.0
  %5843 = vmatpush1.msra.mxu0 0.0
  %5844 = vmatprep.subr.mxu0 0.0
  %5845 = vmatpush1.msra.mxu0 0.0
  %5846 = vmatprep.subr.mxu0 0.0
  %5847 = vmatpush1.msra.mxu0 0.0
  %5848 = vmatprep.subr.mxu0 0.0
  %5849 = vmatpush1.msra.mxu0 0.0
  %5850 = vmatprep.subr.mxu0 0.0
  %5851 = vmatpush1.msra.mxu0 0.0
  %5852 = vmatprep.subr.mxu0 0.0
  %5853 = vmatpush1.msra.mxu0 0.0
  %5854 = vmatprep.subr.mxu0 0.0
  %5855 = vmatpush1.msra.mxu0 0.0
  %5856 = vmatprep.subr.mxu0 0.0
  %5857 = vmatpush1.msra.mxu0 0.0
  %5858 = vmatprep.subr.mxu0 0.0
  %5859 = vmatpush1.msra.mxu0 0.0
  %5860 = vmatprep.subr.mxu0 0.0
  %5861 = vmatpush1.msra.mxu0 0.0
  %5862 = vmatprep.subr.mxu0 0.0
  %5863 = vmatpush1.msra.mxu0 0.0
  %5864 = vmatprep.subr.mxu0 0.0
  %5865 = vmatpush1.msra.mxu0 0.0
  %5866 = vmatprep.subr.mxu0 0.0
  %5867 = vmatpush1.msra.mxu0 0.0
  %5868 = vmatprep.subr.mxu0 0.0
  %5869 = vmatpush1.msra.mxu0 0.0
  %5870 = vmatprep.subr.mxu0 0.0
  %5871 = vmatpush1.msra.mxu0 0.0
  %5872 = vmatprep.subr.mxu0 0.0
  %5873 = vmatpush1.msra.mxu0 0.0
  %5874 = vmatprep.subr.mxu0 0.0
  %5875 = vmatpush1.msra.mxu0 0.0
  %5876 = vmatprep.subr.mxu0 0.0
  %5877 = vmatpush1.msra.mxu0 0.0
  %5878 = vmatprep.subr.mxu0 0.0
  %5879 = vmatpush1.msra.mxu0 0.0
  %5880 = vmatprep.subr.mxu0 0.0
  %5881 = vmatpush1.msra.mxu0 0.0
  %5882 = vmatprep.subr.mxu0 0.0
  %5883 = vmatpush1.msra.mxu0 0.0
  %5884 = vmatprep.subr.mxu0 0.0
  %5885 = vmatpush1.msra.mxu0 0.0
  %5886 = vmatprep.subr.mxu0 0.0
  %5887 = vmatpush1.msra.mxu0 0.0
  %5888 = vmatprep.subr.mxu0 0.0
  %5889 = vmatpush1.msra.mxu0 0.0
  %5890 = vmatprep.subr.mxu0 0.0
  %5891 = vmatpush1.msra.mxu0 0.0
  %5892 = vmatprep.subr.mxu0 0.0
  %5893 = vmatpush1.msra.mxu0 0.0
  %5894 = vmatprep.subr.mxu0 0.0
  %5895 = vmatpush1.msra.mxu0 0.0
  %5896 = vmatprep.subr.mxu0 0.0
  %5897 = vmatpush1.msra.mxu0 0.0
  %5898 = vmatprep.mubr.f32.mxu0 0.0
  %5899 = vmatmul.mubr.f32.gmra.mrb[0].mxu0 %v5832
  %v5900 = vpop.f32.mrb[0].mxu0
  %v5901 = vadd.f32 0.0, %v5900
  %v5902 = vpop.f32.mrb[0].mxu0
  %5903 = vdwg.mxu0
  %v5904 = vadd.f32 %v5827, %v5901
  %v5905 = vadd.f32 %v5904, %v87
  %v5906 = vtanh.pop %v5905
  %v5908 = vsel %vm104, %v5906, 0
  %5910 = vmatprep.subr.mxu0 0.0
  %5911 = vmatpush1.msra.mxu0 %v78
  %5912 = vmatprep.subr.mxu0 0.0
  %5913 = vmatpush1.msra.mxu0 %v79
  %5914 = vmatprep.subr.mxu0 0.0
  %5915 = vmatpush1.msra.mxu0 %v80
  %5916 = vmatprep.subr.mxu0 0.0
  %5917 = vmatpush1.msra.mxu0 %v81
  %5918 = vmatprep.subr.mxu0 0.0
  %5919 = vmatpush1.msra.mxu0 0.0
  %5920 = vmatprep.subr.mxu0 0.0
  %5921 = vmatpush1.msra.mxu0 0.0
  %5922 = vmatprep.subr.mxu0 0.0
  %5923 = vmatpush1.msra.mxu0 0.0
  %5924 = vmatprep.subr.mxu0 0.0
  %5925 = vmatpush1.msra.mxu0 0.0
  %5926 = vmatprep.subr.mxu0 0.0
  %5927 = vmatpush1.msra.mxu0 0.0
  %5928 = vmatprep.subr.mxu0 0.0
  %5929 = vmatpush1.msra.mxu0 0.0
  %5930 = vmatprep.subr.mxu0 0.0
  %5931 = vmatpush1.msra.mxu0 0.0
  %5932 = vmatprep.subr.mxu0 0.0
  %5933 = vmatpush1.msra.mxu0 0.0
  %5934 = vmatprep.subr.mxu0 0.0
  %5935 = vmatpush1.msra.mxu0 0.0
  %5936 = vmatprep.subr.mxu0 0.0
  %5937 = vmatpush1.msra.mxu0 0.0
  %5938 = vmatprep.subr.mxu0 0.0
  %5939 = vmatpush1.msra.mxu0 0.0
  %5940 = vmatprep.subr.mxu0 0.0
  %5941 = vmatpush1.msra.mxu0 0.0
  %5942 = vmatprep.subr.mxu0 0.0
  %5943 = vmatpush1.msra.mxu0 0.0
  %5944 = vmatprep.subr.mxu0 0.0
  %5945 = vmatpush1.msra.mxu0 0.0
  %5946 = vmatprep.subr.mxu0 0.0
  %5947 = vmatpush1.msra.mxu0 0.0
  %5948 = vmatprep.subr.mxu0 0.0
  %5949 = vmatpush1.msra.mxu0 0.0
  %5950 = vmatprep.subr.mxu0 0.0
  %5951 = vmatpush1.msra.mxu0 0.0
  %5952 = vmatprep.subr.mxu0 0.0
  %5953 = vmatpush1.msra.mxu0 0.0
  %5954 = vmatprep.subr.mxu0 0.0
  %5955 = vmatpush1.msra.mxu0 0.0
  %5956 = vmatprep.subr.mxu0 0.0
  %5957 = vmatpush1.msra.mxu0 0.0
  %5958 = vmatprep.subr.mxu0 0.0
  %5959 = vmatpush1.msra.mxu0 0.0
  %5960 = vmatprep.subr.mxu0 0.0
  %5961 = vmatpush1.msra.mxu0 0.0
  %5962 = vmatprep.subr.mxu0 0.0
  %5963 = vmatpush1.msra.mxu0 0.0
  %5964 = vmatprep.subr.mxu0 0.0
  %5965 = vmatpush1.msra.mxu0 0.0
  %5966 = vmatprep.subr.mxu0 0.0
  %5967 = vmatpush1.msra.mxu0 0.0
  %5968 = vmatprep.subr.mxu0 0.0
  %5969 = vmatpush1.msra.mxu0 0.0
  %5970 = vmatprep.subr.mxu0 0.0
  %5971 = vmatpush1.msra.mxu0 0.0
  %5972 = vmatprep.subr.mxu0 0.0
  %5973 = vmatpush1.msra.mxu0 0.0
  %5974 = vmatprep.mubr.f32.mxu0 0.0
  %5975 = vmatmul.mubr.f32.gmra.mrb[0].mxu0 %v5908
  %v5976 = vpop.f32.mrb[0].mxu0
  %v5977 = vadd.f32 %v94, %v5976
  %v5978 = vpop.f32.mrb[0].mxu0
  %5979 = vdwg.mxu0
  %v5980 = vsel %vm1412, %v5977, -inf
  %5981 = vmax.xlane.f32.xlu0 %v5980
  %v5982 = vpop.xlane.xlu0 %5981
  %v5983 = vsub.f32 %v5977, %v5982
  %v5984 = vmul.f32 %v5983, 1.442695
  %v5985 = vpow.pop %v5984
  %v5986 = vsel %vm1412, %v5985, 0.0
  %5987 = vadd.xlane.f32.xlu0 %v5986
  %v5988 = vpop.xlane.xlu0 %5987
  %v5989 = vlog2.pop %v5988
  %v5990 = vmul.f32 %v5989, 0.6931472
  %v5991 = vsub.f32 %v5983, %v5990
  %s5992 = scalar_lea.vmem %s16, 8
  %5993 = vst [vmem:[%s5992] sm:$0x3] %v5991
  %s5994 = scalar_lea.vmem %s0, 10
  %v5995 = vld [vmem:[%s5994] sm:$0x3]
  %v5997 = vsel %vm104, %v5995, 0
  %5999 = vmatprep.subr.mxu0 0.0
  %6000 = vmatpush1.msra.mxu0 %v58
  %6001 = vmatprep.subr.mxu0 0.0
  %6002 = vmatpush1.msra.mxu0 %v59
  %6003 = vmatprep.subr.mxu0 0.0
  %6004 = vmatpush1.msra.mxu0 %v60
  %6005 = vmatprep.subr.mxu0 0.0
  %6006 = vmatpush1.msra.mxu0 %v61
  %6007 = vmatprep.subr.mxu0 0.0
  %6008 = vmatpush1.msra.mxu0 0.0
  %6009 = vmatprep.subr.mxu0 0.0
  %6010 = vmatpush1.msra.mxu0 0.0
  %6011 = vmatprep.subr.mxu0 0.0
  %6012 = vmatpush1.msra.mxu0 0.0
  %6013 = vmatprep.subr.mxu0 0.0
  %6014 = vmatpush1.msra.mxu0 0.0
  %6015 = vmatprep.subr.mxu0 0.0
  %6016 = vmatpush1.msra.mxu0 0.0
  %6017 = vmatprep.subr.mxu0 0.0
  %6018 = vmatpush1.msra.mxu0 0.0
  %6019 = vmatprep.subr.mxu0 0.0
  %6020 = vmatpush1.msra.mxu0 0.0
  %6021 = vmatprep.subr.mxu0 0.0
  %6022 = vmatpush1.msra.mxu0 0.0
  %6023 = vmatprep.subr.mxu0 0.0
  %6024 = vmatpush1.msra.mxu0 0.0
  %6025 = vmatprep.subr.mxu0 0.0
  %6026 = vmatpush1.msra.mxu0 0.0
  %6027 = vmatprep.subr.mxu0 0.0
  %6028 = vmatpush1.msra.mxu0 0.0
  %6029 = vmatprep.subr.mxu0 0.0
  %6030 = vmatpush1.msra.mxu0 0.0
  %6031 = vmatprep.subr.mxu0 0.0
  %6032 = vmatpush1.msra.mxu0 0.0
  %6033 = vmatprep.subr.mxu0 0.0
  %6034 = vmatpush1.msra.mxu0 0.0
  %6035 = vmatprep.subr.mxu0 0.0
  %6036 = vmatpush1.msra.mxu0 0.0
  %6037 = vmatprep.subr.mxu0 0.0
  %6038 = vmatpush1.msra.mxu0 0.0
  %6039 = vmatprep.subr.mxu0 0.0
  %6040 = vmatpush1.msra.mxu0 0.0
  %6041 = vmatprep.subr.mxu0 0.0
  %6042 = vmatpush1.msra.mxu0 0.0
  %6043 = vmatprep.subr.mxu0 0.0
  %6044 = vmatpush1.msra.mxu0 0.0
  %6045 = vmatprep.subr.mxu0 0.0
  %6046 = vmatpush1.msra.mxu0 0.0
  %6047 = vmatprep.subr.mxu0 0.0
  %6048 = vmatpush1.msra.mxu0 0.0
  %6049 = vmatprep.subr.mxu0 0.0
  %6050 = vmatpush1.msra.mxu0 0.0
  %6051 = vmatprep.subr.mxu0 0.0
  %6052 = vmatpush1.msra.mxu0 0.0
  %6053 = vmatprep.subr.mxu0 0.0
  %6054 = vmatpush1.msra.mxu0 0.0
  %6055 = vmatprep.subr.mxu0 0.0
  %6056 = vmatpush1.msra.mxu0 0.0
  %6057 = vmatprep.subr.mxu0 0.0
  %6058 = vmatpush1.msra.mxu0 0.0
  %6059 = vmatprep.subr.mxu0 0.0
  %6060 = vmatpush1.msra.mxu0 0.0
  %6061 = vmatprep.subr.mxu0 0.0
  %6062 = vmatpush1.msra.mxu0 0.0
  %6063 = vmatprep.mubr.f32.mxu0 0.0
  %6064 = vmatmul.mubr.f32.gmra.mrb[0].mxu0 %v5997
  %v6065 = vpop.f32.mrb[0].mxu0
  %v6066 = vadd.f32 0.0, %v6065
  %v6067 = vpop.f32.mrb[0].mxu0
  %6068 = vdwg.mxu0
  %v6069 = vadd.f32 %v266, %v6066
  %6070 = vmatprep.subr.mxu0 0.0
  %6071 = vmatpush1.msra.mxu0 %v62
  %6072 = vmatprep.subr.mxu0 0.0
  %6073 = vmatpush1.msra.mxu0 %v63
  %6074 = vmatprep.subr.mxu0 0.0
  %6075 = vmatpush1.msra.mxu0 %v64
  %6076 = vmatprep.subr.mxu0 0.0
  %6077 = vmatpush1.msra.mxu0 %v65
  %6078 = vmatprep.subr.mxu0 0.0
  %6079 = vmatpush1.msra.mxu0 0.0
  %6080 = vmatprep.subr.mxu0 0.0
  %6081 = vmatpush1.msra.mxu0 0.0
  %6082 = vmatprep.subr.mxu0 0.0
  %6083 = vmatpush1.msra.mxu0 0.0
  %6084 = vmatprep.subr.mxu0 0.0
  %6085 = vmatpush1.msra.mxu0 0.0
  %6086 = vmatprep.subr.mxu0 0.0
  %6087 = vmatpush1.msra.mxu0 0.0
  %6088 = vmatprep.subr.mxu0 0.0
  %6089 = vmatpush1.msra.mxu0 0.0
  %6090 = vmatprep.subr.mxu0 0.0
  %6091 = vmatpush1.msra.mxu0 0.0
  %6092 = vmatprep.subr.mxu0 0.0
  %6093 = vmatpush1.msra.mxu0 0.0
  %6094 = vmatprep.subr.mxu0 0.0
  %6095 = vmatpush1.msra.mxu0 0.0
  %6096 = vmatprep.subr.mxu0 0.0
  %6097 = vmatpush1.msra.mxu0 0.0
  %6098 = vmatprep.subr.mxu0 0.0
  %6099 = vmatpush1.msra.mxu0 0.0
  %6100 = vmatprep.subr.mxu0 0.0
  %6101 = vmatpush1.msra.mxu0 0.0
  %6102 = vmatprep.subr.mxu0 0.0
  %6103 = vmatpush1.msra.mxu0 0.0
  %6104 = vmatprep.subr.mxu0 0.0
  %6105 = vmatpush1.msra.mxu0 0.0
  %6106 = vmatprep.subr.mxu0 0.0
  %6107 = vmatpush1.msra.mxu0 0.0
  %6108 = vmatprep.subr.mxu0 0.0
  %6109 = vmatpush1.msra.mxu0 0.0
  %6110 = vmatprep.subr.mxu0 0.0
  %6111 = vmatpush1.msra.mxu0 0.0
  %6112 = vmatprep.subr.mxu0 0.0
  %6113 = vmatpush1.msra.mxu0 0.0
  %6114 = vmatprep.subr.mxu0 0.0
  %6115 = vmatpush1.msra.mxu0 0.0
  %6116 = vmatprep.subr.mxu0 0.0
  %6117 = vmatpush1.msra.mxu0 0.0
  %6118 = vmatprep.subr.mxu0 0.0
  %6119 = vmatpush1.msra.mxu0 0.0
  %6120 = vmatprep.subr.mxu0 0.0
  %6121 = vmatpush1.msra.mxu0 0.0
  %6122 = vmatprep.subr.mxu0 0.0
  %6123 = vmatpush1.msra.mxu0 0.0
  %6124 = vmatprep.subr.mxu0 0.0
  %6125 = vmatpush1.msra.mxu0 0.0
  %6126 = vmatprep.subr.mxu0 0.0
  %6127 = vmatpush1.msra.mxu0 0.0
  %6128 = vmatprep.subr.mxu0 0.0
  %6129 = vmatpush1.msra.mxu0 0.0
  %6130 = vmatprep.subr.mxu0 0.0
  %6131 = vmatpush1.msra.mxu0 0.0
  %6132 = vmatprep.subr.mxu0 0.0
  %6133 = vmatpush1.msra.mxu0 0.0
  %6134 = vmatprep.mubr.f32.mxu0 0.0
  %6135 = vmatmul.mubr.f32.gmra.mrb[0].mxu0 %v5832
  %v6136 = vpop.f32.mrb[0].mxu0
  %v6137 = vadd.f32 0.0, %v6136
  %v6138 = vpop.f32.mrb[0].mxu0
  %6139 = vdwg.mxu0
  %v6140 = vadd.f32 %v6069, %v6137
  %v6141 = vxor.u32 %v6140, 2147483648
  %v6142 = vmul.f32 %v6141, 1.442695
  %v6143 = vpow.pop %v6142
  %v6144 = vadd.f32 %v6143, 1.0
  %v6145 = vrcp.pop %v6144
  %v6146 = vmul.f32 1.0, %v6145
  %v6147 = vtanh.pop %v6140
  %v6148 = vmul.f32 %v6146, %v5016
  %6150 = vrot.lane.b32.xlu0 %v6147, 64
  %v6151 = vpop.permute.xlu0 %6150
  %v6153 = vmul.f32 %v6146, %v6151
  %6155 = vrot.lane.b32.xlu0 %v6153, 32
  %v6156 = vpop.permute.xlu0 %6155
  %v6158 = vadd.f32 %v6148, %v6156
  %v6159 = vtanh.pop %v6158
  %6161 = vrot.lane.b32.xlu0 %v6159, 64
  %v6162 = vpop.permute.xlu0 %6161
  %v6164 = vmul.f32 %v6146, %v6162
  %v6167 = vunpack.c.l.s4 1966171168
  %v6168 = vunpack.c.0.s8 %v6167
  %v6169 = vlaneseq
  %v6170 = vshrl.u32 %v6169, 7
  %v6171 = vsub.s32 %v6168, %v6170
  %v6172 = vrot.slane %v6164, %v6171
  %v6173 = vcombine.high %v6172, %v6172
  %v6175 = vunpack.c.l.s4 1966171168
  %v6176 = vunpack.c.0.s8 %v6175
  %v6177 = vlaneseq
  %v6178 = vshrl.u32 %v6177, 7
  %v6179 = vsub.s32 %v6176, %v6178
  %v6180 = vrot.slane %v6172, %v6179
  %v6182 = vunpack.c.l.s4 1966171168
  %v6183 = vunpack.c.0.s8 %v6182
  %v6184 = vlaneseq
  %v6185 = vshrl.u32 %v6184, 7
  %v6186 = vsub.s32 %v6183, %v6185
  %v6187 = vrot.slane %v6173, %v6186
  %v6188 = vlaneseq
  %v6189 = vshrl.u32 %v6188, 7
  %v6190 = vsub.s32 0, %v6189
  %v6191 = vrot.slane %v6180, %v6190
  %6192 = vrot.lane.b32.xlu0 %v6191, 32
  %v6193 = vpop.permute.xlu0 %6192
  %v6194 = vsel %vm104, %v6193, 0
  %6196 = vmatprep.subr.mxu0 0.0
  %6197 = vmatpush1.xpose.msra.mxu0 %v472
  %6198 = vmatprep.subr.mxu0 0.0
  %6199 = vmatpush1.xpose.msra.mxu0 0.0
  %6200 = vmatprep.subr.mxu0 0.0
  %6201 = vmatpush1.xpose.msra.mxu0 0.0
  %6202 = vmatprep.subr.mxu0 0.0
  %6203 = vmatpush1.xpose.msra.mxu0 0.0
  %6204 = vmatprep.subr.mxu0 0.0
  %6205 = vmatpush1.xpose.msra.mxu0 0.0
  %6206 = vmatprep.subr.mxu0 0.0
  %6207 = vmatpush1.xpose.msra.mxu0 0.0
  %6208 = vmatprep.subr.mxu0 0.0
  %6209 = vmatpush1.xpose.msra.mxu0 0.0
  %6210 = vmatprep.subr.mxu0 0.0
  %6211 = vmatpush1.xpose.msra.mxu0 0.0
  %6212 = vmatprep.subr.mxu0 0.0
  %6213 = vmatpush1.xpose.msra.mxu0 0.0
  %6214 = vmatprep.subr.mxu0 0.0
  %6215 = vmatpush1.xpose.msra.mxu0 0.0
  %6216 = vmatprep.subr.mxu0 0.0
  %6217 = vmatpush1.xpose.msra.mxu0 0.0
  %6218 = vmatprep.subr.mxu0 0.0
  %6219 = vmatpush1.xpose.msra.mxu0 0.0
  %6220 = vmatprep.subr.mxu0 0.0
  %6221 = vmatpush1.xpose.msra.mxu0 0.0
  %6222 = vmatprep.subr.mxu0 0.0
  %6223 = vmatpush1.xpose.msra.mxu0 0.0
  %6224 = vmatprep.subr.mxu0 0.0
  %6225 = vmatpush1.xpose.msra.mxu0 0.0
  %6226 = vmatprep.subr.mxu0 0.0
  %6227 = vmatpush1.xpose.msra.mxu0 0.0
  %6228 = vmatprep.subr.mxu0 0.0
  %6229 = vmatpush1.xpose.msra.mxu0 0.0
  %6230 = vmatprep.subr.mxu0 0.0
  %6231 = vmatpush1.xpose.msra.mxu0 0.0
  %6232 = vmatprep.subr.mxu0 0.0
  %6233 = vmatpush1.xpose.msra.mxu0 0.0
  %6234 = vmatprep.subr.mxu0 0.0
  %6235 = vmatpush1.xpose.msra.mxu0 0.0
  %6236 = vmatprep.subr.mxu0 0.0
  %6237 = vmatpush1.xpose.msra.mxu0 0.0
  %6238 = vmatprep.subr.mxu0 0.0
  %6239 = vmatpush1.xpose.msra.mxu0 0.0
  %6240 = vmatprep.subr.mxu0 0.0
  %6241 = vmatpush1.xpose.msra.mxu0 0.0
  %6242 = vmatprep.subr.mxu0 0.0
  %6243 = vmatpush1.xpose.msra.mxu0 0.0
  %6244 = vmatprep.subr.mxu0 0.0
  %6245 = vmatpush1.xpose.msra.mxu0 0.0
  %6246 = vmatprep.subr.mxu0 0.0
  %6247 = vmatpush1.xpose.msra.mxu0 0.0
  %6248 = vmatprep.subr.mxu0 0.0
  %6249 = vmatpush1.xpose.msra.mxu0 0.0
  %6250 = vmatprep.subr.mxu0 0.0
  %6251 = vmatpush1.xpose.msra.mxu0 0.0
  %6252 = vmatprep.subr.mxu0 0.0
  %6253 = vmatpush1.xpose.msra.mxu0 0.0
  %6254 = vmatprep.subr.mxu0 0.0
  %6255 = vmatpush1.xpose.msra.mxu0 0.0
  %6256 = vmatprep.subr.mxu0 0.0
  %6257 = vmatpush1.xpose.msra.mxu0 0.0
  %6258 = vmatprep.subr.mxu0 0.0
  %6259 = vmatpush1.xpose.msra.mxu0 0.0
  %6260 = vmatprep.mubr.f32.mxu0 0.0
  %6261 = vmatmul.mubr.f32.gmra.mrb[0].mxu0 %v6194
  %v6262 = vpop.f32.mrb[0].mxu0
  %v6263 = vadd.f32 0.0, %v6262
  %v6264 = vpop.f32.mrb[0].mxu0
  %6265 = vdwg.mxu0
  %v6266 = vlaneseq
  %v6267 = vshrl.u32 %v6266, 7
  %v6268 = vsub.s32 0, %v6267
  %v6269 = vrot.slane %v6187, %v6268
  %6270 = vrot.lane.b32.xlu0 %v6269, 32
  %v6271 = vpop.permute.xlu0 %6270
  %v6272 = vsel %vm104, %v6271, 0
  %6274 = vmatprep.subr.mxu0 0.0
  %6275 = vmatpush1.xpose.msra.mxu0 %v553
  %6276 = vmatprep.subr.mxu0 0.0
  %6277 = vmatpush1.xpose.msra.mxu0 0.0
  %6278 = vmatprep.subr.mxu0 0.0
  %6279 = vmatpush1.xpose.msra.mxu0 0.0
  %6280 = vmatprep.subr.mxu0 0.0
  %6281 = vmatpush1.xpose.msra.mxu0 0.0
  %6282 = vmatprep.subr.mxu0 0.0
  %6283 = vmatpush1.xpose.msra.mxu0 0.0
  %6284 = vmatprep.subr.mxu0 0.0
  %6285 = vmatpush1.xpose.msra.mxu0 0.0
  %6286 = vmatprep.subr.mxu0 0.0
  %6287 = vmatpush1.xpose.msra.mxu0 0.0
  %6288 = vmatprep.subr.mxu0 0.0
  %6289 = vmatpush1.xpose.msra.mxu0 0.0
  %6290 = vmatprep.subr.mxu0 0.0
  %6291 = vmatpush1.xpose.msra.mxu0 0.0
  %6292 = vmatprep.subr.mxu0 0.0
  %6293 = vmatpush1.xpose.msra.mxu0 0.0
  %6294 = vmatprep.subr.mxu0 0.0
  %6295 = vmatpush1.xpose.msra.mxu0 0.0
  %6296 = vmatprep.subr.mxu0 0.0
  %6297 = vmatpush1.xpose.msra.mxu0 0.0
  %6298 = vmatprep.subr.mxu0 0.0
  %6299 = vmatpush1.xpose.msra.mxu0 0.0
  %6300 = vmatprep.subr.mxu0 0.0
  %6301 = vmatpush1.xpose.msra.mxu0 0.0
  %6302 = vmatprep.subr.mxu0 0.0
  %6303 = vmatpush1.xpose.msra.mxu0 0.0
  %6304 = vmatprep.subr.mxu0 0.0
  %6305 = vmatpush1.xpose.msra.mxu0 0.0
  %6306 = vmatprep.subr.mxu0 0.0
  %6307 = vmatpush1.xpose.msra.mxu0 0.0
  %6308 = vmatprep.subr.mxu0 0.0
  %6309 = vmatpush1.xpose.msra.mxu0 0.0
  %6310 = vmatprep.subr.mxu0 0.0
  %6311 = vmatpush1.xpose.msra.mxu0 0.0
  %6312 = vmatprep.subr.mxu0 0.0
  %6313 = vmatpush1.xpose.msra.mxu0 0.0
  %6314 = vmatprep.subr.mxu0 0.0
  %6315 = vmatpush1.xpose.msra.mxu0 0.0
  %6316 = vmatprep.subr.mxu0 0.0
  %6317 = vmatpush1.xpose.msra.mxu0 0.0
  %6318 = vmatprep.subr.mxu0 0.0
  %6319 = vmatpush1.xpose.msra.mxu0 0.0
  %6320 = vmatprep.subr.mxu0 0.0
  %6321 = vmatpush1.xpose.msra.mxu0 0.0
  %6322 = vmatprep.subr.mxu0 0.0
  %6323 = vmatpush1.xpose.msra.mxu0 0.0
  %6324 = vmatprep.subr.mxu0 0.0
  %6325 = vmatpush1.xpose.msra.mxu0 0.0
  %6326 = vmatprep.subr.mxu0 0.0
  %6327 = vmatpush1.xpose.msra.mxu0 0.0
  %6328 = vmatprep.subr.mxu0 0.0
  %6329 = vmatpush1.xpose.msra.mxu0 0.0
  %6330 = vmatprep.subr.mxu0 0.0
  %6331 = vmatpush1.xpose.msra.mxu0 0.0
  %6332 = vmatprep.subr.mxu0 0.0
  %6333 = vmatpush1.xpose.msra.mxu0 0.0
  %6334 = vmatprep.subr.mxu0 0.0
  %6335 = vmatpush1.xpose.msra.mxu0 0.0
  %6336 = vmatprep.subr.mxu0 0.0
  %6337 = vmatpush1.xpose.msra.mxu0 0.0
  %6338 = vmatprep.mubr.f32.mxu0 0.0
  %6339 = vmatmul.mubr.f32.gmra.mrb[0].mxu0 %v6272
  %v6340 = vpop.f32.mrb[0].mxu0
  %v6341 = vadd.f32 0.0, %v6340
  %v6342 = vpop.f32.mrb[0].mxu0
  %6343 = vdwg.mxu0
  %v6344 = vsel %vm625, %v6263, -inf
  %6345 = vmax.xlane.f32.xlu0 %v6344
  %v6346 = vpop.xlane.xlu0 %6345
  %v6347 = vsel %vm625, %v6341, -inf
  %6348 = vmax.xlane.f32.xlu0 %v6347
  %v6349 = vpop.xlane.xlu0 %6348
  %v6350 = vsub.f32 %v6263, %v6346
  %v6351 = vsub.f32 %v6341, %v6349
  %v6352 = vmul.f32 %v6350, 1.442695
  %v6353 = vpow.pop %v6352
  %v6354 = vmul.f32 %v6351, 1.442695
  %v6355 = vpow.pop %v6354
  %v6356 = vsel %vm625, %v6353, 0.0
  %6357 = vadd.xlane.f32.xlu0 %v6356
  %v6358 = vpop.xlane.xlu0 %6357
  %v6359 = vsel %vm625, %v6355, 0.0
  %6360 = vadd.xlane.f32.xlu0 %v6359
  %v6361 = vpop.xlane.xlu0 %6360
  %v6362 = vrcp.pop %v6358
  %v6363 = vmul.f32 %v6353, %v6362
  %v6364 = vrcp.pop %v6361
  %v6365 = vmul.f32 %v6355, %v6364
  %v6367 = vsel %vm648, %v6363, 0
  %6369 = vmatprep.subr.mxu0 0.0
  %6370 = vmatpush1.msra.mxu0 %v53
  %6371 = vmatprep.subr.mxu0 0.0
  %6372 = vmatpush1.msra.mxu0 0.0
  %6373 = vmatprep.subr.mxu0 0.0
  %6374 = vmatpush1.msra.mxu0 0.0
  %6375 = vmatprep.subr.mxu0 0.0
  %6376 = vmatpush1.msra.mxu0 0.0
  %6377 = vmatprep.subr.mxu0 0.0
  %6378 = vmatpush1.msra.mxu0 0.0
  %6379 = vmatprep.subr.mxu0 0.0
  %6380 = vmatpush1.msra.mxu0 0.0
  %6381 = vmatprep.subr.mxu0 0.0
  %6382 = vmatpush1.msra.mxu0 0.0
  %6383 = vmatprep.subr.mxu0 0.0
  %6384 = vmatpush1.msra.mxu0 0.0
  %6385 = vmatprep.subr.mxu0 0.0
  %6386 = vmatpush1.msra.mxu0 0.0
  %6387 = vmatprep.subr.mxu0 0.0
  %6388 = vmatpush1.msra.mxu0 0.0
  %6389 = vmatprep.subr.mxu0 0.0
  %6390 = vmatpush1.msra.mxu0 0.0
  %6391 = vmatprep.subr.mxu0 0.0
  %6392 = vmatpush1.msra.mxu0 0.0
  %6393 = vmatprep.subr.mxu0 0.0
  %6394 = vmatpush1.msra.mxu0 0.0
  %6395 = vmatprep.subr.mxu0 0.0
  %6396 = vmatpush1.msra.mxu0 0.0
  %6397 = vmatprep.subr.mxu0 0.0
  %6398 = vmatpush1.msra.mxu0 0.0
  %6399 = vmatprep.subr.mxu0 0.0
  %6400 = vmatpush1.msra.mxu0 0.0
  %6401 = vmatprep.subr.mxu0 0.0
  %6402 = vmatpush1.msra.mxu0 0.0
  %6403 = vmatprep.subr.mxu0 0.0
  %6404 = vmatpush1.msra.mxu0 0.0
  %6405 = vmatprep.subr.mxu0 0.0
  %6406 = vmatpush1.msra.mxu0 0.0
  %6407 = vmatprep.subr.mxu0 0.0
  %6408 = vmatpush1.msra.mxu0 0.0
  %6409 = vmatprep.subr.mxu0 0.0
  %6410 = vmatpush1.msra.mxu0 0.0
  %6411 = vmatprep.subr.mxu0 0.0
  %6412 = vmatpush1.msra.mxu0 0.0
  %6413 = vmatprep.subr.mxu0 0.0
  %6414 = vmatpush1.msra.mxu0 0.0
  %6415 = vmatprep.subr.mxu0 0.0
  %6416 = vmatpush1.msra.mxu0 0.0
  %6417 = vmatprep.subr.mxu0 0.0
  %6418 = vmatpush1.msra.mxu0 0.0
  %6419 = vmatprep.subr.mxu0 0.0
  %6420 = vmatpush1.msra.mxu0 0.0
  %6421 = vmatprep.subr.mxu0 0.0
  %6422 = vmatpush1.msra.mxu0 0.0
  %6423 = vmatprep.subr.mxu0 0.0
  %6424 = vmatpush1.msra.mxu0 0.0
  %6425 = vmatprep.subr.mxu0 0.0
  %6426 = vmatpush1.msra.mxu0 0.0
  %6427 = vmatprep.subr.mxu0 0.0
  %6428 = vmatpush1.msra.mxu0 0.0
  %6429 = vmatprep.subr.mxu0 0.0
  %6430 = vmatpush1.msra.mxu0 0.0
  %6431 = vmatprep.subr.mxu0 0.0
  %6432 = vmatpush1.msra.mxu0 0.0
  %6433 = vmatprep.mubr.f32.mxu0 0.0
  %6434 = vmatmul.mubr.f32.gmra.mrb[0].mxu0 %v6367
  %v6435 = vpop.f32.mrb[0].mxu0
  %v6436 = vadd.f32 0.0, %v6435
  %v6437 = vpop.f32.mrb[0].mxu0
  %6438 = vdwg.mxu0
  %v6440 = vsel %vm648, %v6365, 0
  %6442 = vmatprep.subr.mxu0 0.0
  %6443 = vmatpush1.msra.mxu0 %v54
  %6444 = vmatprep.subr.mxu0 0.0
  %6445 = vmatpush1.msra.mxu0 0.0
  %6446 = vmatprep.subr.mxu0 0.0
  %6447 = vmatpush1.msra.mxu0 0.0
  %6448 = vmatprep.subr.mxu0 0.0
  %6449 = vmatpush1.msra.mxu0 0.0
  %6450 = vmatprep.subr.mxu0 0.0
  %6451 = vmatpush1.msra.mxu0 0.0
  %6452 = vmatprep.subr.mxu0 0.0
  %6453 = vmatpush1.msra.mxu0 0.0
  %6454 = vmatprep.subr.mxu0 0.0
  %6455 = vmatpush1.msra.mxu0 0.0
  %6456 = vmatprep.subr.mxu0 0.0
  %6457 = vmatpush1.msra.mxu0 0.0
  %6458 = vmatprep.subr.mxu0 0.0
  %6459 = vmatpush1.msra.mxu0 0.0
  %6460 = vmatprep.subr.mxu0 0.0
  %6461 = vmatpush1.msra.mxu0 0.0
  %6462 = vmatprep.subr.mxu0 0.0
  %6463 = vmatpush1.msra.mxu0 0.0
  %6464 = vmatprep.subr.mxu0 0.0
  %6465 = vmatpush1.msra.mxu0 0.0
  %6466 = vmatprep.subr.mxu0 0.0
  %6467 = vmatpush1.msra.mxu0 0.0
  %6468 = vmatprep.subr.mxu0 0.0
  %6469 = vmatpush1.msra.mxu0 0.0
  %6470 = vmatprep.subr.mxu0 0.0
  %6471 = vmatpush1.msra.mxu0 0.0
  %6472 = vmatprep.subr.mxu0 0.0
  %6473 = vmatpush1.msra.mxu0 0.0
  %6474 = vmatprep.subr.mxu0 0.0
  %6475 = vmatpush1.msra.mxu0 0.0
  %6476 = vmatprep.subr.mxu0 0.0
  %6477 = vmatpush1.msra.mxu0 0.0
  %6478 = vmatprep.subr.mxu0 0.0
  %6479 = vmatpush1.msra.mxu0 0.0
  %6480 = vmatprep.subr.mxu0 0.0
  %6481 = vmatpush1.msra.mxu0 0.0
  %6482 = vmatprep.subr.mxu0 0.0
  %6483 = vmatpush1.msra.mxu0 0.0
  %6484 = vmatprep.subr.mxu0 0.0
  %6485 = vmatpush1.msra.mxu0 0.0
  %6486 = vmatprep.subr.mxu0 0.0
  %6487 = vmatpush1.msra.mxu0 0.0
  %6488 = vmatprep.subr.mxu0 0.0
  %6489 = vmatpush1.msra.mxu0 0.0
  %6490 = vmatprep.subr.mxu0 0.0
  %6491 = vmatpush1.msra.mxu0 0.0
  %6492 = vmatprep.subr.mxu0 0.0
  %6493 = vmatpush1.msra.mxu0 0.0
  %6494 = vmatprep.subr.mxu0 0.0
  %6495 = vmatpush1.msra.mxu0 0.0
  %6496 = vmatprep.subr.mxu0 0.0
  %6497 = vmatpush1.msra.mxu0 0.0
  %6498 = vmatprep.subr.mxu0 0.0
  %6499 = vmatpush1.msra.mxu0 0.0
  %6500 = vmatprep.subr.mxu0 0.0
  %6501 = vmatpush1.msra.mxu0 0.0
  %6502 = vmatprep.subr.mxu0 0.0
  %6503 = vmatpush1.msra.mxu0 0.0
  %6504 = vmatprep.subr.mxu0 0.0
  %6505 = vmatpush1.msra.mxu0 0.0
  %6506 = vmatprep.mubr.f32.mxu0 0.0
  %6507 = vmatmul.mubr.f32.gmra.mrb[0].mxu0 %v6440
  %v6508 = vpop.f32.mrb[0].mxu0
  %v6509 = vadd.f32 0.0, %v6508
  %v6510 = vpop.f32.mrb[0].mxu0
  %6511 = vdwg.mxu0
  %6512 = vmatprep.subr.mxu0 0.0
  %6513 = vmatpush1.xpose.msra.mxu0 %v796
  %6514 = vmatprep.subr.mxu0 0.0
  %6515 = vmatpush1.xpose.msra.mxu0 0.0
  %6516 = vmatprep.subr.mxu0 0.0
  %6517 = vmatpush1.xpose.msra.mxu0 0.0
  %6518 = vmatprep.subr.mxu0 0.0
  %6519 = vmatpush1.xpose.msra.mxu0 0.0
  %6520 = vmatprep.subr.mxu0 0.0
  %6521 = vmatpush1.xpose.msra.mxu0 0.0
  %6522 = vmatprep.subr.mxu0 0.0
  %6523 = vmatpush1.xpose.msra.mxu0 0.0
  %6524 = vmatprep.subr.mxu0 0.0
  %6525 = vmatpush1.xpose.msra.mxu0 0.0
  %6526 = vmatprep.subr.mxu0 0.0
  %6527 = vmatpush1.xpose.msra.mxu0 0.0
  %6528 = vmatprep.subr.mxu0 0.0
  %6529 = vmatpush1.xpose.msra.mxu0 0.0
  %6530 = vmatprep.subr.mxu0 0.0
  %6531 = vmatpush1.xpose.msra.mxu0 0.0
  %6532 = vmatprep.subr.mxu0 0.0
  %6533 = vmatpush1.xpose.msra.mxu0 0.0
  %6534 = vmatprep.subr.mxu0 0.0
  %6535 = vmatpush1.xpose.msra.mxu0 0.0
  %6536 = vmatprep.subr.mxu0 0.0
  %6537 = vmatpush1.xpose.msra.mxu0 0.0
  %6538 = vmatprep.subr.mxu0 0.0
  %6539 = vmatpush1.xpose.msra.mxu0 0.0
  %6540 = vmatprep.subr.mxu0 0.0
  %6541 = vmatpush1.xpose.msra.mxu0 0.0
  %6542 = vmatprep.subr.mxu0 0.0
  %6543 = vmatpush1.xpose.msra.mxu0 0.0
  %6544 = vmatprep.subr.mxu0 0.0
  %6545 = vmatpush1.xpose.msra.mxu0 0.0
  %6546 = vmatprep.subr.mxu0 0.0
  %6547 = vmatpush1.xpose.msra.mxu0 0.0
  %6548 = vmatprep.subr.mxu0 0.0
  %6549 = vmatpush1.xpose.msra.mxu0 0.0
  %6550 = vmatprep.subr.mxu0 0.0
  %6551 = vmatpush1.xpose.msra.mxu0 0.0
  %6552 = vmatprep.subr.mxu0 0.0
  %6553 = vmatpush1.xpose.msra.mxu0 0.0
  %6554 = vmatprep.subr.mxu0 0.0
  %6555 = vmatpush1.xpose.msra.mxu0 0.0
  %6556 = vmatprep.subr.mxu0 0.0
  %6557 = vmatpush1.xpose.msra.mxu0 0.0
  %6558 = vmatprep.subr.mxu0 0.0
  %6559 = vmatpush1.xpose.msra.mxu0 0.0
  %6560 = vmatprep.subr.mxu0 0.0
  %6561 = vmatpush1.xpose.msra.mxu0 0.0
  %6562 = vmatprep.subr.mxu0 0.0
  %6563 = vmatpush1.xpose.msra.mxu0 0.0
  %6564 = vmatprep.subr.mxu0 0.0
  %6565 = vmatpush1.xpose.msra.mxu0 0.0
  %6566 = vmatprep.subr.mxu0 0.0
  %6567 = vmatpush1.xpose.msra.mxu0 0.0
  %6568 = vmatprep.subr.mxu0 0.0
  %6569 = vmatpush1.xpose.msra.mxu0 0.0
  %6570 = vmatprep.subr.mxu0 0.0
  %6571 = vmatpush1.xpose.msra.mxu0 0.0
  %6572 = vmatprep.subr.mxu0 0.0
  %6573 = vmatpush1.xpose.msra.mxu0 0.0
  %6574 = vmatprep.subr.mxu0 0.0
  %6575 = vmatpush1.xpose.msra.mxu0 0.0
  %6576 = vmatprep.mubr.f32.mxu0 0.0
  %6577 = vmatmul.mubr.f32.gmra.mrb[0].mxu0 %v6194
  %v6578 = vpop.f32.mrb[0].mxu0
  %v6579 = vadd.f32 0.0, %v6578
  %v6580 = vpop.f32.mrb[0].mxu0
  %6581 = vdwg.mxu0
  %6582 = vmatprep.subr.mxu0 0.0
  %6583 = vmatpush1.xpose.msra.mxu0 %v869
  %6584 = vmatprep.subr.mxu0 0.0
  %6585 = vmatpush1.xpose.msra.mxu0 0.0
  %6586 = vmatprep.subr.mxu0 0.0
  %6587 = vmatpush1.xpose.msra.mxu0 0.0
  %6588 = vmatprep.subr.mxu0 0.0
  %6589 = vmatpush1.xpose.msra.mxu0 0.0
  %6590 = vmatprep.subr.mxu0 0.0
  %6591 = vmatpush1.xpose.msra.mxu0 0.0
  %6592 = vmatprep.subr.mxu0 0.0
  %6593 = vmatpush1.xpose.msra.mxu0 0.0
  %6594 = vmatprep.subr.mxu0 0.0
  %6595 = vmatpush1.xpose.msra.mxu0 0.0
  %6596 = vmatprep.subr.mxu0 0.0
  %6597 = vmatpush1.xpose.msra.mxu0 0.0
  %6598 = vmatprep.subr.mxu0 0.0
  %6599 = vmatpush1.xpose.msra.mxu0 0.0
  %6600 = vmatprep.subr.mxu0 0.0
  %6601 = vmatpush1.xpose.msra.mxu0 0.0
  %6602 = vmatprep.subr.mxu0 0.0
  %6603 = vmatpush1.xpose.msra.mxu0 0.0
  %6604 = vmatprep.subr.mxu0 0.0
  %6605 = vmatpush1.xpose.msra.mxu0 0.0
  %6606 = vmatprep.subr.mxu0 0.0
  %6607 = vmatpush1.xpose.msra.mxu0 0.0
  %6608 = vmatprep.subr.mxu0 0.0
  %6609 = vmatpush1.xpose.msra.mxu0 0.0
  %6610 = vmatprep.subr.mxu0 0.0
  %6611 = vmatpush1.xpose.msra.mxu0 0.0
  %6612 = vmatprep.subr.mxu0 0.0
  %6613 = vmatpush1.xpose.msra.mxu0 0.0
  %6614 = vmatprep.subr.mxu0 0.0
  %6615 = vmatpush1.xpose.msra.mxu0 0.0
  %6616 = vmatprep.subr.mxu0 0.0
  %6617 = vmatpush1.xpose.msra.mxu0 0.0
  %6618 = vmatprep.subr.mxu0 0.0
  %6619 = vmatpush1.xpose.msra.mxu0 0.0
  %6620 = vmatprep.subr.mxu0 0.0
  %6621 = vmatpush1.xpose.msra.mxu0 0.0
  %6622 = vmatprep.subr.mxu0 0.0
  %6623 = vmatpush1.xpose.msra.mxu0 0.0
  %6624 = vmatprep.subr.mxu0 0.0
  %6625 = vmatpush1.xpose.msra.mxu0 0.0
  %6626 = vmatprep.subr.mxu0 0.0
  %6627 = vmatpush1.xpose.msra.mxu0 0.0
  %6628 = vmatprep.subr.mxu0 0.0
  %6629 = vmatpush1.xpose.msra.mxu0 0.0
  %6630 = vmatprep.subr.mxu0 0.0
  %6631 = vmatpush1.xpose.msra.mxu0 0.0
  %6632 = vmatprep.subr.mxu0 0.0
  %6633 = vmatpush1.xpose.msra.mxu0 0.0
  %6634 = vmatprep.subr.mxu0 0.0
  %6635 = vmatpush1.xpose.msra.mxu0 0.0
  %6636 = vmatprep.subr.mxu0 0.0
  %6637 = vmatpush1.xpose.msra.mxu0 0.0
  %6638 = vmatprep.subr.mxu0 0.0
  %6639 = vmatpush1.xpose.msra.mxu0 0.0
  %6640 = vmatprep.subr.mxu0 0.0
  %6641 = vmatpush1.xpose.msra.mxu0 0.0
  %6642 = vmatprep.subr.mxu0 0.0
  %6643 = vmatpush1.xpose.msra.mxu0 0.0
  %6644 = vmatprep.subr.mxu0 0.0
  %6645 = vmatpush1.xpose.msra.mxu0 0.0
  %6646 = vmatprep.mubr.f32.mxu0 0.0
  %6647 = vmatmul.mubr.f32.gmra.mrb[0].mxu0 %v6272
  %v6648 = vpop.f32.mrb[0].mxu0
  %v6649 = vadd.f32 0.0, %v6648
  %v6650 = vpop.f32.mrb[0].mxu0
  %6651 = vdwg.mxu0
  %v6652 = vsel %vm625, %v6579, -inf
  %6653 = vmax.xlane.f32.xlu0 %v6652
  %v6654 = vpop.xlane.xlu0 %6653
  %v6655 = vsel %vm625, %v6649, -inf
  %6656 = vmax.xlane.f32.xlu0 %v6655
  %v6657 = vpop.xlane.xlu0 %6656
  %v6658 = vsub.f32 %v6579, %v6654
  %v6659 = vsub.f32 %v6649, %v6657
  %v6660 = vmul.f32 %v6658, 1.442695
  %v6661 = vpow.pop %v6660
  %v6662 = vmul.f32 %v6659, 1.442695
  %v6663 = vpow.pop %v6662
  %v6664 = vsel %vm625, %v6661, 0.0
  %6665 = vadd.xlane.f32.xlu0 %v6664
  %v6666 = vpop.xlane.xlu0 %6665
  %v6667 = vsel %vm625, %v6663, 0.0
  %6668 = vadd.xlane.f32.xlu0 %v6667
  %v6669 = vpop.xlane.xlu0 %6668
  %v6670 = vrcp.pop %v6666
  %v6671 = vmul.f32 %v6661, %v6670
  %v6672 = vrcp.pop %v6669
  %v6673 = vmul.f32 %v6663, %v6672
  %v6675 = vsel %vm648, %v6671, 0
  %6677 = vmatprep.subr.mxu0 0.0
  %6678 = vmatpush1.msra.mxu0 %v55
  %6679 = vmatprep.subr.mxu0 0.0
  %6680 = vmatpush1.msra.mxu0 0.0
  %6681 = vmatprep.subr.mxu0 0.0
  %6682 = vmatpush1.msra.mxu0 0.0
  %6683 = vmatprep.subr.mxu0 0.0
  %6684 = vmatpush1.msra.mxu0 0.0
  %6685 = vmatprep.subr.mxu0 0.0
  %6686 = vmatpush1.msra.mxu0 0.0
  %6687 = vmatprep.subr.mxu0 0.0
  %6688 = vmatpush1.msra.mxu0 0.0
  %6689 = vmatprep.subr.mxu0 0.0
  %6690 = vmatpush1.msra.mxu0 0.0
  %6691 = vmatprep.subr.mxu0 0.0
  %6692 = vmatpush1.msra.mxu0 0.0
  %6693 = vmatprep.subr.mxu0 0.0
  %6694 = vmatpush1.msra.mxu0 0.0
  %6695 = vmatprep.subr.mxu0 0.0
  %6696 = vmatpush1.msra.mxu0 0.0
  %6697 = vmatprep.subr.mxu0 0.0
  %6698 = vmatpush1.msra.mxu0 0.0
  %6699 = vmatprep.subr.mxu0 0.0
  %6700 = vmatpush1.msra.mxu0 0.0
  %6701 = vmatprep.subr.mxu0 0.0
  %6702 = vmatpush1.msra.mxu0 0.0
  %6703 = vmatprep.subr.mxu0 0.0
  %6704 = vmatpush1.msra.mxu0 0.0
  %6705 = vmatprep.subr.mxu0 0.0
  %6706 = vmatpush1.msra.mxu0 0.0
  %6707 = vmatprep.subr.mxu0 0.0
  %6708 = vmatpush1.msra.mxu0 0.0
  %6709 = vmatprep.subr.mxu0 0.0
  %6710 = vmatpush1.msra.mxu0 0.0
  %6711 = vmatprep.subr.mxu0 0.0
  %6712 = vmatpush1.msra.mxu0 0.0
  %6713 = vmatprep.subr.mxu0 0.0
  %6714 = vmatpush1.msra.mxu0 0.0
  %6715 = vmatprep.subr.mxu0 0.0
  %6716 = vmatpush1.msra.mxu0 0.0
  %6717 = vmatprep.subr.mxu0 0.0
  %6718 = vmatpush1.msra.mxu0 0.0
  %6719 = vmatprep.subr.mxu0 0.0
  %6720 = vmatpush1.msra.mxu0 0.0
  %6721 = vmatprep.subr.mxu0 0.0
  %6722 = vmatpush1.msra.mxu0 0.0
  %6723 = vmatprep.subr.mxu0 0.0
  %6724 = vmatpush1.msra.mxu0 0.0
  %6725 = vmatprep.subr.mxu0 0.0
  %6726 = vmatpush1.msra.mxu0 0.0
  %6727 = vmatprep.subr.mxu0 0.0
  %6728 = vmatpush1.msra.mxu0 0.0
  %6729 = vmatprep.subr.mxu0 0.0
  %6730 = vmatpush1.msra.mxu0 0.0
  %6731 = vmatprep.subr.mxu0 0.0
  %6732 = vmatpush1.msra.mxu0 0.0
  %6733 = vmatprep.subr.mxu0 0.0
  %6734 = vmatpush1.msra.mxu0 0.0
  %6735 = vmatprep.subr.mxu0 0.0
  %6736 = vmatpush1.msra.mxu0 0.0
  %6737 = vmatprep.subr.mxu0 0.0
  %6738 = vmatpush1.msra.mxu0 0.0
  %6739 = vmatprep.subr.mxu0 0.0
  %6740 = vmatpush1.msra.mxu0 0.0
  %6741 = vmatprep.mubr.f32.mxu0 0.0
  %6742 = vmatmul.mubr.f32.gmra.mrb[0].mxu0 %v6675
  %v6743 = vpop.f32.mrb[0].mxu0
  %v6744 = vadd.f32 0.0, %v6743
  %v6745 = vpop.f32.mrb[0].mxu0
  %6746 = vdwg.mxu0
  %v6748 = vsel %vm648, %v6673, 0
  %6750 = vmatprep.subr.mxu0 0.0
  %6751 = vmatpush1.msra.mxu0 %v56
  %6752 = vmatprep.subr.mxu0 0.0
  %6753 = vmatpush1.msra.mxu0 0.0
  %6754 = vmatprep.subr.mxu0 0.0
  %6755 = vmatpush1.msra.mxu0 0.0
  %6756 = vmatprep.subr.mxu0 0.0
  %6757 = vmatpush1.msra.mxu0 0.0
  %6758 = vmatprep.subr.mxu0 0.0
  %6759 = vmatpush1.msra.mxu0 0.0
  %6760 = vmatprep.subr.mxu0 0.0
  %6761 = vmatpush1.msra.mxu0 0.0
  %6762 = vmatprep.subr.mxu0 0.0
  %6763 = vmatpush1.msra.mxu0 0.0
  %6764 = vmatprep.subr.mxu0 0.0
  %6765 = vmatpush1.msra.mxu0 0.0
  %6766 = vmatprep.subr.mxu0 0.0
  %6767 = vmatpush1.msra.mxu0 0.0
  %6768 = vmatprep.subr.mxu0 0.0
  %6769 = vmatpush1.msra.mxu0 0.0
  %6770 = vmatprep.subr.mxu0 0.0
  %6771 = vmatpush1.msra.mxu0 0.0
  %6772 = vmatprep.subr.mxu0 0.0
  %6773 = vmatpush1.msra.mxu0 0.0
  %6774 = vmatprep.subr.mxu0 0.0
  %6775 = vmatpush1.msra.mxu0 0.0
  %6776 = vmatprep.subr.mxu0 0.0
  %6777 = vmatpush1.msra.mxu0 0.0
  %6778 = vmatprep.subr.mxu0 0.0
  %6779 = vmatpush1.msra.mxu0 0.0
  %6780 = vmatprep.subr.mxu0 0.0
  %6781 = vmatpush1.msra.mxu0 0.0
  %6782 = vmatprep.subr.mxu0 0.0
  %6783 = vmatpush1.msra.mxu0 0.0
  %6784 = vmatprep.subr.mxu0 0.0
  %6785 = vmatpush1.msra.mxu0 0.0
  %6786 = vmatprep.subr.mxu0 0.0
  %6787 = vmatpush1.msra.mxu0 0.0
  %6788 = vmatprep.subr.mxu0 0.0
  %6789 = vmatpush1.msra.mxu0 0.0
  %6790 = vmatprep.subr.mxu0 0.0
  %6791 = vmatpush1.msra.mxu0 0.0
  %6792 = vmatprep.subr.mxu0 0.0
  %6793 = vmatpush1.msra.mxu0 0.0
  %6794 = vmatprep.subr.mxu0 0.0
  %6795 = vmatpush1.msra.mxu0 0.0
  %6796 = vmatprep.subr.mxu0 0.0
  %6797 = vmatpush1.msra.mxu0 0.0
  %6798 = vmatprep.subr.mxu0 0.0
  %6799 = vmatpush1.msra.mxu0 0.0
  %6800 = vmatprep.subr.mxu0 0.0
  %6801 = vmatpush1.msra.mxu0 0.0
  %6802 = vmatprep.subr.mxu0 0.0
  %6803 = vmatpush1.msra.mxu0 0.0
  %6804 = vmatprep.subr.mxu0 0.0
  %6805 = vmatpush1.msra.mxu0 0.0
  %6806 = vmatprep.subr.mxu0 0.0
  %6807 = vmatpush1.msra.mxu0 0.0
  %6808 = vmatprep.subr.mxu0 0.0
  %6809 = vmatpush1.msra.mxu0 0.0
  %6810 = vmatprep.subr.mxu0 0.0
  %6811 = vmatpush1.msra.mxu0 0.0
  %6812 = vmatprep.subr.mxu0 0.0
  %6813 = vmatpush1.msra.mxu0 0.0
  %6814 = vmatprep.mubr.f32.mxu0 0.0
  %6815 = vmatmul.mubr.f32.gmra.mrb[0].mxu0 %v6748
  %v6816 = vpop.f32.mrb[0].mxu0
  %v6817 = vadd.f32 0.0, %v6816
  %v6818 = vpop.f32.mrb[0].mxu0
  %6819 = vdwg.mxu0
  %v6822 = vrot.slane %v6817, 7
  %v6823 = vsel %vm1112, %v6822, %v6744
  %v6824 = vsel %vm104, %v6823, 0
  %6826 = vmatprep.subr.mxu0 0.0
  %6827 = vmatpush1.msra.mxu0 %v70
  %6828 = vmatprep.subr.mxu0 0.0
  %6829 = vmatpush1.msra.mxu0 %v71
  %6830 = vmatprep.subr.mxu0 0.0
  %6831 = vmatpush1.msra.mxu0 %v72
  %6832 = vmatprep.subr.mxu0 0.0
  %6833 = vmatpush1.msra.mxu0 %v73
  %6834 = vmatprep.subr.mxu0 0.0
  %6835 = vmatpush1.msra.mxu0 0.0
  %6836 = vmatprep.subr.mxu0 0.0
  %6837 = vmatpush1.msra.mxu0 0.0
  %6838 = vmatprep.subr.mxu0 0.0
  %6839 = vmatpush1.msra.mxu0 0.0
  %6840 = vmatprep.subr.mxu0 0.0
  %6841 = vmatpush1.msra.mxu0 0.0
  %6842 = vmatprep.subr.mxu0 0.0
  %6843 = vmatpush1.msra.mxu0 0.0
  %6844 = vmatprep.subr.mxu0 0.0
  %6845 = vmatpush1.msra.mxu0 0.0
  %6846 = vmatprep.subr.mxu0 0.0
  %6847 = vmatpush1.msra.mxu0 0.0
  %6848 = vmatprep.subr.mxu0 0.0
  %6849 = vmatpush1.msra.mxu0 0.0
  %6850 = vmatprep.subr.mxu0 0.0
  %6851 = vmatpush1.msra.mxu0 0.0
  %6852 = vmatprep.subr.mxu0 0.0
  %6853 = vmatpush1.msra.mxu0 0.0
  %6854 = vmatprep.subr.mxu0 0.0
  %6855 = vmatpush1.msra.mxu0 0.0
  %6856 = vmatprep.subr.mxu0 0.0
  %6857 = vmatpush1.msra.mxu0 0.0
  %6858 = vmatprep.subr.mxu0 0.0
  %6859 = vmatpush1.msra.mxu0 0.0
  %6860 = vmatprep.subr.mxu0 0.0
  %6861 = vmatpush1.msra.mxu0 0.0
  %6862 = vmatprep.subr.mxu0 0.0
  %6863 = vmatpush1.msra.mxu0 0.0
  %6864 = vmatprep.subr.mxu0 0.0
  %6865 = vmatpush1.msra.mxu0 0.0
  %6866 = vmatprep.subr.mxu0 0.0
  %6867 = vmatpush1.msra.mxu0 0.0
  %6868 = vmatprep.subr.mxu0 0.0
  %6869 = vmatpush1.msra.mxu0 0.0
  %6870 = vmatprep.subr.mxu0 0.0
  %6871 = vmatpush1.msra.mxu0 0.0
  %6872 = vmatprep.subr.mxu0 0.0
  %6873 = vmatpush1.msra.mxu0 0.0
  %6874 = vmatprep.subr.mxu0 0.0
  %6875 = vmatpush1.msra.mxu0 0.0
  %6876 = vmatprep.subr.mxu0 0.0
  %6877 = vmatpush1.msra.mxu0 0.0
  %6878 = vmatprep.subr.mxu0 0.0
  %6879 = vmatpush1.msra.mxu0 0.0
  %6880 = vmatprep.subr.mxu0 0.0
  %6881 = vmatpush1.msra.mxu0 0.0
  %6882 = vmatprep.subr.mxu0 0.0
  %6883 = vmatpush1.msra.mxu0 0.0
  %6884 = vmatprep.subr.mxu0 0.0
  %6885 = vmatpush1.msra.mxu0 0.0
  %6886 = vmatprep.subr.mxu0 0.0
  %6887 = vmatpush1.msra.mxu0 0.0
  %6888 = vmatprep.subr.mxu0 0.0
  %6889 = vmatpush1.msra.mxu0 0.0
  %6890 = vmatprep.mubr.f32.mxu0 0.0
  %6891 = vmatmul.mubr.f32.gmra.mrb[0].mxu0 %v6824
  %v6892 = vpop.f32.mrb[0].mxu0
  %v6893 = vadd.f32 0.0, %v6892
  %v6894 = vpop.f32.mrb[0].mxu0
  %6895 = vdwg.mxu0
  %v6898 = vrot.slane %v6509, 7
  %v6899 = vsel %vm1112, %v6898, %v6436
  %v6900 = vsel %vm104, %v6899, 0
  %6902 = vmatprep.subr.mxu0 0.0
  %6903 = vmatpush1.msra.mxu0 %v66
  %6904 = vmatprep.subr.mxu0 0.0
  %6905 = vmatpush1.msra.mxu0 %v67
  %6906 = vmatprep.subr.mxu0 0.0
  %6907 = vmatpush1.msra.mxu0 %v68
  %6908 = vmatprep.subr.mxu0 0.0
  %6909 = vmatpush1.msra.mxu0 %v69
  %6910 = vmatprep.subr.mxu0 0.0
  %6911 = vmatpush1.msra.mxu0 0.0
  %6912 = vmatprep.subr.mxu0 0.0
  %6913 = vmatpush1.msra.mxu0 0.0
  %6914 = vmatprep.subr.mxu0 0.0
  %6915 = vmatpush1.msra.mxu0 0.0
  %6916 = vmatprep.subr.mxu0 0.0
  %6917 = vmatpush1.msra.mxu0 0.0
  %6918 = vmatprep.subr.mxu0 0.0
  %6919 = vmatpush1.msra.mxu0 0.0
  %6920 = vmatprep.subr.mxu0 0.0
  %6921 = vmatpush1.msra.mxu0 0.0
  %6922 = vmatprep.subr.mxu0 0.0
  %6923 = vmatpush1.msra.mxu0 0.0
  %6924 = vmatprep.subr.mxu0 0.0
  %6925 = vmatpush1.msra.mxu0 0.0
  %6926 = vmatprep.subr.mxu0 0.0
  %6927 = vmatpush1.msra.mxu0 0.0
  %6928 = vmatprep.subr.mxu0 0.0
  %6929 = vmatpush1.msra.mxu0 0.0
  %6930 = vmatprep.subr.mxu0 0.0
  %6931 = vmatpush1.msra.mxu0 0.0
  %6932 = vmatprep.subr.mxu0 0.0
  %6933 = vmatpush1.msra.mxu0 0.0
  %6934 = vmatprep.subr.mxu0 0.0
  %6935 = vmatpush1.msra.mxu0 0.0
  %6936 = vmatprep.subr.mxu0 0.0
  %6937 = vmatpush1.msra.mxu0 0.0
  %6938 = vmatprep.subr.mxu0 0.0
  %6939 = vmatpush1.msra.mxu0 0.0
  %6940 = vmatprep.subr.mxu0 0.0
  %6941 = vmatpush1.msra.mxu0 0.0
  %6942 = vmatprep.subr.mxu0 0.0
  %6943 = vmatpush1.msra.mxu0 0.0
  %6944 = vmatprep.subr.mxu0 0.0
  %6945 = vmatpush1.msra.mxu0 0.0
  %6946 = vmatprep.subr.mxu0 0.0
  %6947 = vmatpush1.msra.mxu0 0.0
  %6948 = vmatprep.subr.mxu0 0.0
  %6949 = vmatpush1.msra.mxu0 0.0
  %6950 = vmatprep.subr.mxu0 0.0
  %6951 = vmatpush1.msra.mxu0 0.0
  %6952 = vmatprep.subr.mxu0 0.0
  %6953 = vmatpush1.msra.mxu0 0.0
  %6954 = vmatprep.subr.mxu0 0.0
  %6955 = vmatpush1.msra.mxu0 0.0
  %6956 = vmatprep.subr.mxu0 0.0
  %6957 = vmatpush1.msra.mxu0 0.0
  %6958 = vmatprep.subr.mxu0 0.0
  %6959 = vmatpush1.msra.mxu0 0.0
  %6960 = vmatprep.subr.mxu0 0.0
  %6961 = vmatpush1.msra.mxu0 0.0
  %6962 = vmatprep.subr.mxu0 0.0
  %6963 = vmatpush1.msra.mxu0 0.0
  %6964 = vmatprep.subr.mxu0 0.0
  %6965 = vmatpush1.msra.mxu0 0.0
  %6966 = vmatprep.mubr.f32.mxu0 0.0
  %6967 = vmatmul.mubr.f32.gmra.mrb[0].mxu0 %v6900
  %v6968 = vpop.f32.mrb[0].mxu0
  %v6969 = vadd.f32 %v6893, %v6968
  %v6970 = vpop.f32.mrb[0].mxu0
  %6971 = vdwg.mxu0
  %6972 = vrot.lane.b32.xlu0 %v6164, 32
  %v6973 = vpop.permute.xlu0 %6972
  %v6974 = vsel %vm104, %v6973, 0
  %6976 = vmatprep.subr.mxu0 0.0
  %6977 = vmatpush1.msra.mxu0 %v74
  %6978 = vmatprep.subr.mxu0 0.0
  %6979 = vmatpush1.msra.mxu0 %v75
  %6980 = vmatprep.subr.mxu0 0.0
  %6981 = vmatpush1.msra.mxu0 %v76
  %6982 = vmatprep.subr.mxu0 0.0
  %6983 = vmatpush1.msra.mxu0 %v77
  %6984 = vmatprep.subr.mxu0 0.0
  %6985 = vmatpush1.msra.mxu0 0.0
  %6986 = vmatprep.subr.mxu0 0.0
  %6987 = vmatpush1.msra.mxu0 0.0
  %6988 = vmatprep.subr.mxu0 0.0
  %6989 = vmatpush1.msra.mxu0 0.0
  %6990 = vmatprep.subr.mxu0 0.0
  %6991 = vmatpush1.msra.mxu0 0.0
  %6992 = vmatprep.subr.mxu0 0.0
  %6993 = vmatpush1.msra.mxu0 0.0
  %6994 = vmatprep.subr.mxu0 0.0
  %6995 = vmatpush1.msra.mxu0 0.0
  %6996 = vmatprep.subr.mxu0 0.0
  %6997 = vmatpush1.msra.mxu0 0.0
  %6998 = vmatprep.subr.mxu0 0.0
  %6999 = vmatpush1.msra.mxu0 0.0
  %7000 = vmatprep.subr.mxu0 0.0
  %7001 = vmatpush1.msra.mxu0 0.0
  %7002 = vmatprep.subr.mxu0 0.0
  %7003 = vmatpush1.msra.mxu0 0.0
  %7004 = vmatprep.subr.mxu0 0.0
  %7005 = vmatpush1.msra.mxu0 0.0
  %7006 = vmatprep.subr.mxu0 0.0
  %7007 = vmatpush1.msra.mxu0 0.0
  %7008 = vmatprep.subr.mxu0 0.0
  %7009 = vmatpush1.msra.mxu0 0.0
  %7010 = vmatprep.subr.mxu0 0.0
  %7011 = vmatpush1.msra.mxu0 0.0
  %7012 = vmatprep.subr.mxu0 0.0
  %7013 = vmatpush1.msra.mxu0 0.0
  %7014 = vmatprep.subr.mxu0 0.0
  %7015 = vmatpush1.msra.mxu0 0.0
  %7016 = vmatprep.subr.mxu0 0.0
  %7017 = vmatpush1.msra.mxu0 0.0
  %7018 = vmatprep.subr.mxu0 0.0
  %7019 = vmatpush1.msra.mxu0 0.0
  %7020 = vmatprep.subr.mxu0 0.0
  %7021 = vmatpush1.msra.mxu0 0.0
  %7022 = vmatprep.subr.mxu0 0.0
  %7023 = vmatpush1.msra.mxu0 0.0
  %7024 = vmatprep.subr.mxu0 0.0
  %7025 = vmatpush1.msra.mxu0 0.0
  %7026 = vmatprep.subr.mxu0 0.0
  %7027 = vmatpush1.msra.mxu0 0.0
  %7028 = vmatprep.subr.mxu0 0.0
  %7029 = vmatpush1.msra.mxu0 0.0
  %7030 = vmatprep.subr.mxu0 0.0
  %7031 = vmatpush1.msra.mxu0 0.0
  %7032 = vmatprep.subr.mxu0 0.0
  %7033 = vmatpush1.msra.mxu0 0.0
  %7034 = vmatprep.subr.mxu0 0.0
  %7035 = vmatpush1.msra.mxu0 0.0
  %7036 = vmatprep.subr.mxu0 0.0
  %7037 = vmatpush1.msra.mxu0 0.0
  %7038 = vmatprep.subr.mxu0 0.0
  %7039 = vmatpush1.msra.mxu0 0.0
  %7040 = vmatprep.mubr.f32.mxu0 0.0
  %7041 = vmatmul.mubr.f32.gmra.mrb[0].mxu0 %v6974
  %v7042 = vpop.f32.mrb[0].mxu0
  %v7043 = vadd.f32 0.0, %v7042
  %v7044 = vpop.f32.mrb[0].mxu0
  %7045 = vdwg.mxu0
  %v7046 = vadd.f32 %v6969, %v7043
  %v7047 = vadd.f32 %v7046, %v87
  %v7048 = vtanh.pop %v7047
  %v7050 = vsel %vm104, %v7048, 0
  %7052 = vmatprep.subr.mxu0 0.0
  %7053 = vmatpush1.msra.mxu0 %v78
  %7054 = vmatprep.subr.mxu0 0.0
  %7055 = vmatpush1.msra.mxu0 %v79
  %7056 = vmatprep.subr.mxu0 0.0
  %7057 = vmatpush1.msra.mxu0 %v80
  %7058 = vmatprep.subr.mxu0 0.0
  %7059 = vmatpush1.msra.mxu0 %v81
  %7060 = vmatprep.subr.mxu0 0.0
  %7061 = vmatpush1.msra.mxu0 0.0
  %7062 = vmatprep.subr.mxu0 0.0
  %7063 = vmatpush1.msra.mxu0 0.0
  %7064 = vmatprep.subr.mxu0 0.0
  %7065 = vmatpush1.msra.mxu0 0.0
  %7066 = vmatprep.subr.mxu0 0.0
  %7067 = vmatpush1.msra.mxu0 0.0
  %7068 = vmatprep.subr.mxu0 0.0
  %7069 = vmatpush1.msra.mxu0 0.0
  %7070 = vmatprep.subr.mxu0 0.0
  %7071 = vmatpush1.msra.mxu0 0.0
  %7072 = vmatprep.subr.mxu0 0.0
  %7073 = vmatpush1.msra.mxu0 0.0
  %7074 = vmatprep.subr.mxu0 0.0
  %7075 = vmatpush1.msra.mxu0 0.0
  %7076 = vmatprep.subr.mxu0 0.0
  %7077 = vmatpush1.msra.mxu0 0.0
  %7078 = vmatprep.subr.mxu0 0.0
  %7079 = vmatpush1.msra.mxu0 0.0
  %7080 = vmatprep.subr.mxu0 0.0
  %7081 = vmatpush1.msra.mxu0 0.0
  %7082 = vmatprep.subr.mxu0 0.0
  %7083 = vmatpush1.msra.mxu0 0.0
  %7084 = vmatprep.subr.mxu0 0.0
  %7085 = vmatpush1.msra.mxu0 0.0
  %7086 = vmatprep.subr.mxu0 0.0
  %7087 = vmatpush1.msra.mxu0 0.0
  %7088 = vmatprep.subr.mxu0 0.0
  %7089 = vmatpush1.msra.mxu0 0.0
  %7090 = vmatprep.subr.mxu0 0.0
  %7091 = vmatpush1.msra.mxu0 0.0
  %7092 = vmatprep.subr.mxu0 0.0
  %7093 = vmatpush1.msra.mxu0 0.0
  %7094 = vmatprep.subr.mxu0 0.0
  %7095 = vmatpush1.msra.mxu0 0.0
  %7096 = vmatprep.subr.mxu0 0.0
  %7097 = vmatpush1.msra.mxu0 0.0
  %7098 = vmatprep.subr.mxu0 0.0
  %7099 = vmatpush1.msra.mxu0 0.0
  %7100 = vmatprep.subr.mxu0 0.0
  %7101 = vmatpush1.msra.mxu0 0.0
  %7102 = vmatprep.subr.mxu0 0.0
  %7103 = vmatpush1.msra.mxu0 0.0
  %7104 = vmatprep.subr.mxu0 0.0
  %7105 = vmatpush1.msra.mxu0 0.0
  %7106 = vmatprep.subr.mxu0 0.0
  %7107 = vmatpush1.msra.mxu0 0.0
  %7108 = vmatprep.subr.mxu0 0.0
  %7109 = vmatpush1.msra.mxu0 0.0
  %7110 = vmatprep.subr.mxu0 0.0
  %7111 = vmatpush1.msra.mxu0 0.0
  %7112 = vmatprep.subr.mxu0 0.0
  %7113 = vmatpush1.msra.mxu0 0.0
  %7114 = vmatprep.subr.mxu0 0.0
  %7115 = vmatpush1.msra.mxu0 0.0
  %7116 = vmatprep.mubr.f32.mxu0 0.0
  %7117 = vmatmul.mubr.f32.gmra.mrb[0].mxu0 %v7050
  %v7118 = vpop.f32.mrb[0].mxu0
  %v7119 = vadd.f32 %v94, %v7118
  %v7120 = vpop.f32.mrb[0].mxu0
  %7121 = vdwg.mxu0
  %v7122 = vsel %vm1412, %v7119, -inf
  %7123 = vmax.xlane.f32.xlu0 %v7122
  %v7124 = vpop.xlane.xlu0 %7123
  %v7125 = vsub.f32 %v7119, %v7124
  %v7126 = vmul.f32 %v7125, 1.442695
  %v7127 = vpow.pop %v7126
  %v7128 = vsel %vm1412, %v7127, 0.0
  %7129 = vadd.xlane.f32.xlu0 %v7128
  %v7130 = vpop.xlane.xlu0 %7129
  %v7131 = vlog2.pop %v7130
  %v7132 = vmul.f32 %v7131, 0.6931472
  %v7133 = vsub.f32 %v7125, %v7132
  %s7134 = scalar_lea.vmem %s16, 10
  %7135 = vst [vmem:[%s7134] sm:$0x3] %v7133
  // Predicated region
  $region66: #{_forward_core.3} parent=0 // pred_check
    _
  $region67: #{_forward_core.3} parent=0 // pred_check_branch
    %7137 = sbr.rel (0) target = $region69
  $region68: #{_forward_core.3} parent=0 // pred_region
    _
  $region69: #{_forward_core.3} parent=0 // pred_fallthru
    _
  // Predicated region
  $region70: #{_forward_core.3} parent=0 // pred_check
    _
  $region71: #{_forward_core.3} parent=0 // pred_check_branch
    %7139 = sbr.rel (0) target = $region73
  $region72: #{_forward_core.3} parent=0 // pred_region
    _
  $region73: #{_forward_core.3} parent=0 // pred_fallthru
    _

</llo_original>
